<compile_context>
chip_gen: v7x
topology: tpu7x:2x2x1
jax: 0.10.0
libtpu: 0.0.40
codegen_flags: <defaults>
</compile_context>

<pallas_src>
import math

import numpy as np

import jax
import jax.numpy as jnp
from jax.experimental import pallas as pl

# ----------------------------------------------------------------------------
# Small (but structurally faithful) configuration of the original module.
# Original: enc_channels=[128,256,128,64], enc_linears=[256,128,64,32,2],
#           dec_channels=[64,128,256,128], dec_linears=[90,128,256],
#           cls_channels=[128,256,128],    cls_linears=[256,128,64,32,ncls],
#           input_crop=225, kernel=5, stride=2, padding=2, output_padding=1
# ----------------------------------------------------------------------------
INPUT_CROP = 33
KERNEL = 5
STRIDE = 2
PAD = KERNEL // 2
OUTPUT_PAD = 1
DIL = 1

ENC_CHANNELS = [8, 16, 16, 8]
ENC_LINEARS = [32, 16, 4]          # last entry = latent dim
DEC_CHANNELS = [8, 16, 16, 8]      # DEC_CHANNELS[0] == ENC_CHANNELS[-1]
DEC_LINEARS = [12, 24]             # DEC_LINEARS[0] = latent + notev dims
CLS_CHANNELS = [8, 16, 8]          # CLS_CHANNELS[0] == DEC_CHANNELS[-1]
CLS_LINEARS = [16, 8, 5]           # last entry = number of classes

NEG_SLOPE = 0.2
LN_EPS = 1e-5
LANE = 128


def _round_up(n, m):
    return ((n + m - 1) // m) * m


def _conv_out_sizes(l0, n_convs):
    sizes = [l0]
    for _ in range(n_convs):
        sizes.append(math.floor(
            (sizes[-1] + 2 * PAD - DIL * (KERNEL - 1) - 1) / STRIDE + 1))
    return sizes


CONV_SIZES = _conv_out_sizes(INPUT_CROP, len(ENC_CHANNELS) - 1)
DECONV_SIZES = [CONV_SIZES[-1]]
for _ in range(len(ENC_CHANNELS) - 1):
    DECONV_SIZES.append((DECONV_SIZES[-1] - 1) * STRIDE - 2 * PAD
                        + DIL * (KERNEL - 1) + OUTPUT_PAD + 1)
CLS_CONV_SIZES = _conv_out_sizes(INPUT_CROP, len(CLS_CHANNELS) - 1)

INTERMEDIATE = CONV_SIZES[-1] * ENC_CHANNELS[-1]
CLS_INTERMEDIATE = CLS_CONV_SIZES[-1] * CLS_CHANNELS[-1]

ENC_LIN_FULL = [INTERMEDIATE] + ENC_LINEARS
DEC_LIN_FULL = DEC_LINEARS + [INTERMEDIATE]
CLS_LIN_FULL = [CLS_INTERMEDIATE] + CLS_LINEARS

LATENT = ENC_LINEARS[-1]
NOTEV_DIM = DEC_LINEARS[0] - LATENT

N_ENC_CONV = len(ENC_CHANNELS) - 1     # 3
N_ENC_LIN = len(ENC_LIN_FULL) - 2      # 2
N_DEC_LIN = len(DEC_LIN_FULL) - 1      # 2
N_DEC_CONV = len(DEC_CHANNELS) - 1     # 3
N_CLS_CONV = len(CLS_CHANNELS) - 1     # 2
N_CLS_LIN = len(CLS_LIN_FULL) - 1      # 3

# ----------------------------------------------------------------------------
# Slab geometry (all lane-dense, multiples of 128).
# ----------------------------------------------------------------------------
_LAYER_WIDTHS = (
    [ENC_CHANNELS[i + 1] * CONV_SIZES[i + 1] for i in range(N_ENC_CONV)]
    + ENC_LIN_FULL[1:-1]
    + DEC_LIN_FULL[1:]
    + [DEC_CHANNELS[i + 1] * DECONV_SIZES[i + 1] for i in range(N_DEC_CONV)]
    + [CLS_CHANNELS[i + 1] * CLS_CONV_SIZES[i + 1] for i in range(N_CLS_CONV)]
    + CLS_LIN_FULL[1:]
)
W_LANES = max([_round_up(w, LANE) for w in _LAYER_WIDTHS] + [2 * LANE])  # 384

X_TRUE = INPUT_CROP * ENC_CHANNELS[0]        # 264: (l,c)-flat raw input width
X_SECT = _round_up(X_TRUE, LANE)             # 384: x section of the input slab
IN_LANES = X_SECT + LANE                     # 512: + [eps | notev | 0...] tile
EPS_COL = X_SECT                             # eps at lanes [EPS_COL, +LATENT)
NOTEV_COL = X_SECT + LATENT                  # notev right after eps

DEC_OUT_TRUE = DEC_CHANNELS[-1] * DECONV_SIZES[-1]   # 320: raw decoder output
DEC_OUT_PAD = _round_up(DEC_OUT_TRUE, LANE)          # 384
CLS_OFF = DEC_OUT_PAD                                # classifier logits tile
MEAN_OFF = DEC_OUT_PAD + LANE                        # mean tile
VAR_OFF = DEC_OUT_PAD + 2 * LANE                     # log-var tile
OUT_LANES = DEC_OUT_PAD + 3 * LANE                   # 768


# ----------------------------------------------------------------------------
# Parameter initialization (torch layouts, xavier-normal weights, zero biases,
# LayerNorm gamma=1 / beta=0 — LayerNorms are untouched by initialize_weights).
# ----------------------------------------------------------------------------
def _xavier_normal(key, shape, fan_in, fan_out):
    std = math.sqrt(2.0 / (fan_in + fan_out))
    return (std * jax.random.normal(key, shape)).astype(jnp.float32)


def init_params(key):
    keys = iter(jax.random.split(key, 64))
    K = KERNEL
    p = {"enc_conv": [], "enc_lin": [], "dec_lin": [],
         "dec_deconv": [], "cls_conv": [], "cls_lin": []}

    for i in range(N_ENC_CONV):
        ci, co = ENC_CHANNELS[i], ENC_CHANNELS[i + 1]
        W = _xavier_normal(next(keys), (co, ci, K), ci * K, co * K)
        p["enc_conv"].append((W, jnp.zeros((co,), jnp.float32),
                              jnp.ones((co, CONV_SIZES[i + 1]), jnp.float32),
                              jnp.zeros((co, CONV_SIZES[i + 1]), jnp.float32)))

    for i in range(N_ENC_LIN):
        di, do = ENC_LIN_FULL[i], ENC_LIN_FULL[i + 1]
        W = _xavier_normal(next(keys), (do, di), di, do)
        p["enc_lin"].append((W, jnp.zeros((do,)), jnp.ones((do,)), jnp.zeros((do,))))

    d2, d1 = ENC_LIN_FULL[-2], ENC_LIN_FULL[-1]
    p["mean"] = (_xavier_normal(next(keys), (d1, d2), d2, d1), jnp.zeros((d1,)))
    p["var"] = (_xavier_normal(next(keys), (d1, d2), d2, d1), jnp.zeros((d1,)))

    for i in range(N_DEC_LIN):
        di, do = DEC_LIN_FULL[i], DEC_LIN_FULL[i + 1]
        W = _xavier_normal(next(keys), (do, di), di, do)
        p["dec_lin"].append((W, jnp.zeros((do,)), jnp.ones((do,)), jnp.zeros((do,))))

    for i in range(N_DEC_CONV):
        ci, co = DEC_CHANNELS[i], DEC_CHANNELS[i + 1]
        # torch ConvTranspose1d weight: [Cin, Cout, K]; fan_in=Cout*K, fan_out=Cin*K
        W = _xavier_normal(next(keys), (ci, co, K), co * K, ci * K)
        p["dec_deconv"].append((W, jnp.zeros((co,), jnp.float32),
                                jnp.ones((co, DECONV_SIZES[i + 1]), jnp.float32),
                                jnp.zeros((co, DECONV_SIZES[i + 1]), jnp.float32)))

    for i in range(N_CLS_CONV):
        ci, co = CLS_CHANNELS[i], CLS_CHANNELS[i + 1]
        W = _xavier_normal(next(keys), (co, ci, K), ci * K, co * K)
        # NOTE: original module sizes the cls LayerNorms with the *encoder*
        # conv_sizes; they coincide with CLS_CONV_SIZES in this config.
        p["cls_conv"].append((W, jnp.zeros((co,), jnp.float32),
                              jnp.ones((co, CONV_SIZES[i + 1]), jnp.float32),
                              jnp.zeros((co, CONV_SIZES[i + 1]), jnp.float32)))

    for i in range(N_CLS_LIN):
        di, do = CLS_LIN_FULL[i], CLS_LIN_FULL[i + 1]
        W = _xavier_normal(next(keys), (do, di), di, do)
        p["cls_lin"].append((W, jnp.zeros((do,)), jnp.ones((do,)), jnp.zeros((do,))))

    return p


# ----------------------------------------------------------------------------
# One-time weight lowering: torch-layout params -> dense matmul operands (numpy).
# ----------------------------------------------------------------------------
def _conv_dense(W, Lin, Lout, in_lc=False):
    """Conv1d (stride=STRIDE, pad=PAD) as a dense [Cin*Lin, Cout*Lout] matrix.

    Row order is (c, l)-flat unless in_lc=True (then (l, c)-flat, for layers
    that consume the raw [B, L, C] input / xhat).  Column order is (c, l)-flat,
    matching torch's .view(B, -1) of an NCL tensor.
    """
    W = np.asarray(W)
    Cout, Cin, K = W.shape
    M = np.zeros((Cin * Lin, Cout * Lout), np.float32)
    for lo in range(Lout):
        for k in range(K):
            li = lo * STRIDE + k - PAD
            if 0 <= li < Lin:
                rows = (li * Cin + np.arange(Cin)) if in_lc \
                    else (np.arange(Cin) * Lin + li)
                cols = np.arange(Cout) * Lout + lo
                M[np.ix_(rows, cols)] += W[:, :, k].T      # [Cin, Cout]
    return M


def _deconv_dense(W, Lin, Lout):
    """ConvTranspose1d (stride, pad, output_padding) as a dense matrix, (c,l)-flat."""
    W = np.asarray(W)                                      # [Cin, Cout, K]
    Cin, Cout, K = W.shape
    M = np.zeros((Cin * Lin, Cout * Lout), np.float32)
    for li in range(Lin):
        for k in range(K):
            lo = li * STRIDE - PAD + k
            if 0 <= lo < Lout:
                rows = np.arange(Cin) * Lin + li
                cols = np.arange(Cout) * Lout + lo
                M[np.ix_(rows, cols)] += W[:, :, k]        # [Cin, Cout]
    return M


def _crop_permute(C, L, crop):
    """(c,l)-flat [C*L] -> cropped (l,c)-flat [crop*C] as a 0/1 matrix."""
    P = np.zeros((C * L, crop * C), np.float32)
    for c in range(C):
        for l in range(crop):
            P[c * L + l, l * C + c] = 1.0
    return P


# ----------------------------------------------------------------------------
# Pack every operand into two VMEM slabs + a static plan of row offsets.
# ----------------------------------------------------------------------------
def pack_params(params):
    """Returns dict(w_slab bf16 [R, W_LANES], aux_slab f32 [A, W_LANES], plan).

    Each weight block occupies k_pad rows (k_pad = padded input width of that
    layer, a multiple of 128) so all in-kernel slices are 128-row aligned.
    Each LN layer's aux block is 8 rows: bias / gamma / beta / 5x zero.
    Lane-pad regions are exactly zero (incl. gamma/beta) so padded activation
    lanes stay exactly zero through the whole network.
    """
    w_blocks, aux_blocks = [], []
    w_off = [0]

    def add_w(mat, k_rows):
        assert mat.shape[0] <= k_rows and mat.shape[1] <= W_LANES
        blk = np.zeros((k_rows, W_LANES), np.float32)
        blk[:mat.shape[0], :mat.shape[1]] = mat
        off = w_off[0]
        w_blocks.append(blk)
        w_off[0] += k_rows
        return off

    def add_aux(bias, gamma, beta):
        blk = np.zeros((8, W_LANES), np.float32)
        blk[0, :bias.shape[0]] = bias
        blk[1, :gamma.shape[0]] = gamma
        blk[2, :beta.shape[0]] = beta
        aux_blocks.append(blk)
        return (len(aux_blocks) - 1) * 8

    enc_specs, dec_specs, cls_specs = [], [], []

    # ---- encoder convs (dense block-Toeplitz; conv0 reads the (l,c)-flat input) ----
    prev_pad = X_SECT
    for i, (W, b, g, bt) in enumerate(params["enc_conv"]):
        dense = _conv_dense(W, CONV_SIZES[i], CONV_SIZES[i + 1], in_lc=(i == 0))
        n_true = dense.shape[1]
        enc_specs.append((add_w(dense, prev_pad), prev_pad, n_true,
                          add_aux(np.repeat(np.asarray(b), CONV_SIZES[i + 1]),
                                  np.asarray(g).reshape(-1),
                                  np.asarray(bt).reshape(-1))))
        prev_pad = _round_up(n_true, LANE)

    # ---- encoder linears ----
    for (W, b, g, bt) in params["enc_lin"]:
        Wt = np.asarray(W).T
        n_true = Wt.shape[1]
        enc_specs.append((add_w(Wt, prev_pad), prev_pad, n_true,
                          add_aux(np.asarray(b), np.asarray(g), np.asarray(bt))))
        prev_pad = _round_up(n_true, LANE)

    # ---- fused mean | log-var head: mean -> lanes [0, LATENT),
    #      log-var -> lanes [LANE, LANE+LATENT) (both tiles 128-aligned) ----
    (Wm, bm), (Wv, bv) = params["mean"], params["var"]
    head = np.zeros((np.asarray(Wm).shape[1], W_LANES), np.float32)
    head[:, :LATENT] = np.asarray(Wm).T
    head[:, LANE:LANE + LATENT] = np.asarray(Wv).T
    head_bias = np.zeros((W_LANES,), np.float32)
    head_bias[:LATENT] = np.asarray(bm)
    head_bias[LANE:LANE + LATENT] = np.asarray(bv)
    head_spec = (add_w(head, prev_pad), prev_pad,
                 add_aux(head_bias, np.zeros(1, np.float32), np.zeros(1, np.float32)))

    # ---- decoder linears (lin0 consumes the in-register [z | notev | 0] vector) ----
    prev_pad = _round_up(LATENT + NOTEV_DIM, LANE)
    for (W, b, g, bt) in params["dec_lin"]:
        Wt = np.asarray(W).T
        n_true = Wt.shape[1]
        dec_specs.append((add_w(Wt, prev_pad), prev_pad, n_true,
                          add_aux(np.asarray(b), np.asarray(g), np.asarray(bt))))
        prev_pad = _round_up(n_true, LANE)

    # ---- decoder transposed convs ----
    for i, (W, b, g, bt) in enumerate(params["dec_deconv"]):
        dense = _deconv_dense(W, DECONV_SIZES[i], DECONV_SIZES[i + 1])
        n_true = dense.shape[1]
        dec_specs.append((add_w(dense, prev_pad), prev_pad, n_true,
                          add_aux(np.repeat(np.asarray(b), DECONV_SIZES[i + 1]),
                                  np.asarray(g).reshape(-1),
                                  np.asarray(bt).reshape(-1))))
        prev_pad = _round_up(n_true, LANE)

    # ---- classifier convs; conv0 absorbs the crop + NCL->NLC permute ----
    crop_perm = _crop_permute(DEC_CHANNELS[-1], DECONV_SIZES[-1], INPUT_CROP)
    for i, (W, b, g, bt) in enumerate(params["cls_conv"]):
        dense = _conv_dense(W, CLS_CONV_SIZES[i], CLS_CONV_SIZES[i + 1],
                            in_lc=(i == 0))
        if i == 0:
            dense = crop_perm @ dense          # fold crop + permute at pack time
        n_true = dense.shape[1]
        cls_specs.append((add_w(dense, prev_pad), prev_pad, n_true,
                          add_aux(np.repeat(np.asarray(b), CONV_SIZES[i + 1]),
                                  np.asarray(g).reshape(-1),
                                  np.asarray(bt).reshape(-1))))
        prev_pad = _round_up(n_true, LANE)

    # ---- classifier linears (LN + LeakyReLU on every one, incl. the logits) ----
    for (W, b, g, bt) in params["cls_lin"]:
        Wt = np.asarray(W).T
        n_true = Wt.shape[1]
        cls_specs.append((add_w(Wt, prev_pad), prev_pad, n_true,
                          add_aux(np.asarray(b), np.asarray(g), np.asarray(bt))))
        prev_pad = _round_up(n_true, LANE)

    w_slab = jnp.asarray(np.concatenate(w_blocks, 0), dtype=jnp.bfloat16)
    aux_slab = jnp.asarray(np.concatenate(aux_blocks, 0), dtype=jnp.float32)
    plan = dict(enc=tuple(enc_specs), head=head_spec,
                dec=tuple(dec_specs), cls=tuple(cls_specs))
    return dict(w_slab=w_slab, aux_slab=aux_slab, plan=plan)


# ----------------------------------------------------------------------------
# The single fused kernel + jitted wrapper (plan row-offsets are baked in
# statically via closure, so the whole network is one pallas_call with
# 3 input DMAs and 1 lane-dense output DMA).
# ----------------------------------------------------------------------------
def make_forward(plan):
    enc_specs = plan["enc"]
    head_w_off, head_k, head_aux_off = plan["head"]
    dec_specs = plan["dec"]
    cls_specs = plan["cls"]

    def kernel(in_ref, w_ref, aux_ref, out_ref):
        def ln_lrelu(y, a, n_true):
            # bias-add + LayerNorm over the true features + LeakyReLU.
            # Lanes >= n_true are exactly 0 on entry (zero weight/bias columns)
            # and exactly 0 on exit (zero gamma/beta), so padding never leaks
            # into the statistics or into downstream matmuls.
            y = y + a[0:1, :]
            inv_d = 1.0 / n_true
            mu = jnp.sum(y, axis=-1, keepdims=True) * inv_d
            msq = jnp.sum(y * y, axis=-1, keepdims=True) * inv_d
            var = jnp.maximum(msq - mu * mu, 0.0)
            yn = (y - mu) * jax.lax.rsqrt(var + LN_EPS) * a[1:2, :] + a[2:3, :]
            return jnp.where(yn > 0, yn, NEG_SLOPE * yn)

        def ln_layer(h, spec):
            w_off, k, n_true, aux_off = spec
            w = w_ref[pl.ds(w_off, k), :]                  # [k, W_LANES] bf16
            a = aux_ref[pl.ds(aux_off, 8), :]              # bias/gamma/beta rows
            y = jnp.dot(h[:, :k].astype(jnp.bfloat16), w,
                        preferred_element_type=jnp.float32)
            return ln_lrelu(y, a, n_true)

        x_all = in_ref[...]                                # [Bp, IN_LANES] f32

        # ---- encoder: conv stack (block-Toeplitz matmuls) + linear stack ----
        h = x_all[:, :X_SECT]
        for spec in enc_specs:
            h = ln_layer(h, spec)

        # ---- fused mean|logvar head, reparameterization, [z | notev] assembly ----
        w_h = w_ref[pl.ds(head_w_off, head_k), :]
        b_h = aux_ref[pl.ds(head_aux_off, 8), :][0:1, :]
        mv = jnp.dot(h[:, :head_k].astype(jnp.bfloat16), w_h,
                     preferred_element_type=jnp.float32) + b_h
        m_a = mv[:, :LANE]                    # mean   in lanes [0, LATENT), else 0
        m_b = mv[:, LANE:2 * LANE]            # logvar in lanes [0, LATENT), else 0
        aux_in = x_all[:, X_SECT:X_SECT + LANE]            # [eps | notev | 0...]
        lane_id = jax.lax.broadcasted_iota(jnp.int32, m_a.shape, 1)
        # decoder lin0 input = [mean + exp(logvar/2)*eps | notev | 0...]
        # (exp(0)=1 passes notev through; zero lanes stay zero)
        d = jnp.where(lane_id < LATENT, m_a, 0.0) + jnp.exp(0.5 * m_b) * aux_in

        # ---- decoder: linears + transposed convs (block-Toeplitz matmuls) ----
        for spec in dec_specs:
            d = ln_layer(d, spec)
        out_ref[:, 0:DEC_OUT_PAD] = d[:, :DEC_OUT_PAD]     # raw (C,L)-flat decoder out

        # ---- classifier on the VMEM-resident decoder activation
        #      (crop + NCL->NLC permute already folded into its first conv) ----
        c = d
        for spec in cls_specs:
            c = ln_layer(c, spec)
        out_ref[:, CLS_OFF:CLS_OFF + LANE] = c[:, :LANE]
        out_ref[:, MEAN_OFF:MEAN_OFF + LANE] = m_a
        out_ref[:, VAR_OFF:VAR_OFF + LANE] = m_b

    def forward(w_slab, aux_slab, x, notev, eps):
        B = x.shape[0]
        bp = _round_up(B, 8)                               # full sublane tiles
        # [B, crop, Cin] -> (l,c)-flat; pure reshape (conv0 matrix is (l,c)-ordered).
        x_flat = x[:, :INPUT_CROP, :].reshape(B, X_TRUE)
        in_slab = jnp.zeros((bp, IN_LANES), jnp.float32)
        in_slab = in_slab.at[:B, :X_TRUE].set(x_flat)
        in_slab = in_slab.at[:B, EPS_COL:EPS_COL + LATENT].set(eps)
        in_slab = in_slab.at[:B, NOTEV_COL:NOTEV_COL + NOTEV_DIM].set(notev)

        out = pl.pallas_call(
            kernel,
            out_shape=jax.ShapeDtypeStruct((bp, OUT_LANES), jnp.float32),
        )(in_slab, w_slab, aux_slab)

        # crop + NCL->NLC permute of xhat outside the kernel (tiny, free)
        xhat = (out[:B, :DEC_OUT_TRUE]
                .reshape(B, DEC_CHANNELS[-1], DECONV_SIZES[-1])[:, :, :INPUT_CROP]
                .swapaxes(1, 2))
        xcls = out[:B, CLS_OFF:CLS_OFF + CLS_LIN_FULL[-1]]
        mean = out[:B, MEAN_OFF:MEAN_OFF + LATENT]
        # "var" is the raw self.var(x) output (log-variance), exactly like torch.
        var = out[:B, VAR_OFF:VAR_OFF + LATENT]
        return xhat, xcls, mean, var

    return jax.jit(forward)


# TODO(synk): Dropout(0.2) is implemented as identity (inference); training-mode
#             stochastic dropout masks are not reproduced.

if __name__ == "__main__":
    key = jax.random.PRNGKey(0)
    k_par, k_x, k_note, k_eps = jax.random.split(key, 4)

    params = init_params(k_par)
    packed = pack_params(params)          # one-time dense lowering + slab packing
    fwd = make_forward(packed["plan"])

    B = 2
    x = jax.random.normal(k_x, (B, INPUT_CROP, ENC_CHANNELS[0]), dtype=jnp.float32)
    notev = jax.random.normal(k_note, (B, NOTEV_DIM), dtype=jnp.float32)
    eps = jax.random.normal(k_eps, (B, LATENT), dtype=jnp.float32)

    xhat, xcls, mean, var = fwd(packed["w_slab"], packed["aux_slab"], x, notev, eps)
    jax.block_until_ready((xhat, xcls, mean, var))

    assert xhat.shape == (B, INPUT_CROP, DEC_CHANNELS[-1])
    assert xcls.shape == (B, CLS_LIN_FULL[-1])
    assert mean.shape == (B, LATENT) and var.shape == (B, LATENT)
    assert bool(jnp.all(jnp.isfinite(xhat))) and bool(jnp.all(jnp.isfinite(xcls)))
    assert bool(jnp.all(jnp.isfinite(mean))) and bool(jnp.all(jnp.isfinite(var)))
    print("KERNEL_OK")
</pallas_src>

<mosaic_0001>
module attributes {stable_mosaic.version = 11 : i64} {
  func.func @kernel(%arg0: memref<8x512xf32, #tpu.memory_space<vmem>>, %arg1: memref<3584x384xbf16, #tpu.memory_space<vmem>>, %arg2: memref<128x384xf32, #tpu.memory_space<vmem>>, %arg3: memref<8x768xf32, #tpu.memory_space<vmem>>) attributes {dimension_semantics = [], scalar_prefetch = 0 : i64, scratch_operands = 0 : i64, tpu.core_type = #tpu.core_type<tc>} {
    %c0 = arith.constant 0 : index
    %c0_0 = arith.constant 0 : index
    %0 = vector.load %arg0[%c0, %c0_0] : memref<8x512xf32, #tpu.memory_space<vmem>>, vector<8x512xf32>
    %1 = vector.extract_strided_slice %0 {offsets = [0, 0], sizes = [8, 384], strides = [1, 1]} : vector<8x512xf32> to vector<8x384xf32>
    %c0_1 = arith.constant 0 : index
    %c0_2 = arith.constant 0 : index
    %2 = vector.load %arg1[%c0_1, %c0_2] : memref<3584x384xbf16, #tpu.memory_space<vmem>>, vector<384x384xbf16>
    %c0_3 = arith.constant 0 : index
    %c0_4 = arith.constant 0 : index
    %3 = vector.load %arg2[%c0_3, %c0_4] : memref<128x384xf32, #tpu.memory_space<vmem>>, vector<8x384xf32>
    %4 = arith.truncf %1 : vector<8x384xf32> to vector<8x384xbf16>
    %cst = arith.constant dense<0.000000e+00> : vector<8x384xf32>
    %5 = tpu.matmul %4, %2, %cst {dimension_numbers = #tpu.dot_dimension_numbers<[1], [0], [0], [1], [0, 0, 1, 1], [], []>} : vector<8x384xbf16>, vector<384x384xbf16>, vector<8x384xf32> -> vector<8x384xf32>
    %6 = vector.extract_strided_slice %3 {offsets = [0, 0], sizes = [1, 384], strides = [1, 1]} : vector<8x384xf32> to vector<1x384xf32>
    %7 = vector.broadcast %6 : vector<1x384xf32> to vector<8x384xf32>
    %8 = arith.addf %5, %7 : vector<8x384xf32>
    %cst_5 = arith.constant dense<0.000000e+00> : vector<8xf32>
    %9 = vector.multi_reduction <add>, %8, %cst_5 [1] : vector<8x384xf32> to vector<8xf32>
    %10 = vector.shape_cast %9 : vector<8xf32> to vector<8x1xf32>
    %cst_6 = arith.constant 0.0036764706 : f32
    %11 = vector.broadcast %cst_6 : f32 to vector<8x1xf32>
    %12 = arith.mulf %10, %11 : vector<8x1xf32>
    %13 = arith.mulf %8, %8 : vector<8x384xf32>
    %cst_7 = arith.constant dense<0.000000e+00> : vector<8xf32>
    %14 = vector.multi_reduction <add>, %13, %cst_7 [1] : vector<8x384xf32> to vector<8xf32>
    %15 = vector.shape_cast %14 : vector<8xf32> to vector<8x1xf32>
    %cst_8 = arith.constant 0.0036764706 : f32
    %16 = vector.broadcast %cst_8 : f32 to vector<8x1xf32>
    %17 = arith.mulf %15, %16 : vector<8x1xf32>
    %18 = arith.mulf %12, %12 : vector<8x1xf32>
    %19 = arith.subf %17, %18 : vector<8x1xf32>
    %cst_9 = arith.constant 0.000000e+00 : f32
    %20 = vector.broadcast %cst_9 : f32 to vector<8x1xf32>
    %21 = arith.maximumf %19, %20 : vector<8x1xf32>
    %22 = vector.broadcast %12 : vector<8x1xf32> to vector<8x384xf32>
    %23 = arith.subf %8, %22 : vector<8x384xf32>
    %cst_10 = arith.constant 9.99999974E-6 : f32
    %24 = vector.broadcast %cst_10 : f32 to vector<8x1xf32>
    %25 = arith.addf %21, %24 : vector<8x1xf32>
    %26 = math.rsqrt %25 : vector<8x1xf32>
    %27 = vector.broadcast %26 : vector<8x1xf32> to vector<8x384xf32>
    %28 = arith.mulf %23, %27 : vector<8x384xf32>
    %29 = vector.extract_strided_slice %3 {offsets = [1, 0], sizes = [1, 384], strides = [1, 1]} : vector<8x384xf32> to vector<1x384xf32>
    %30 = vector.broadcast %29 : vector<1x384xf32> to vector<8x384xf32>
    %31 = arith.mulf %28, %30 : vector<8x384xf32>
    %32 = vector.extract_strided_slice %3 {offsets = [2, 0], sizes = [1, 384], strides = [1, 1]} : vector<8x384xf32> to vector<1x384xf32>
    %33 = vector.broadcast %32 : vector<1x384xf32> to vector<8x384xf32>
    %34 = arith.addf %31, %33 : vector<8x384xf32>
    %cst_11 = arith.constant 0.000000e+00 : f32
    %35 = vector.broadcast %cst_11 : f32 to vector<8x384xf32>
    %36 = arith.cmpf ogt, %34, %35 : vector<8x384xf32>
    %cst_12 = arith.constant 2.000000e-01 : f32
    %37 = vector.broadcast %cst_12 : f32 to vector<8x384xf32>
    %38 = arith.mulf %37, %34 : vector<8x384xf32>
    %39 = arith.select %36, %34, %38 : vector<8x384xi1>, vector<8x384xf32>
    %c384 = arith.constant 384 : index
    %c0_13 = arith.constant 0 : index
    %40 = vector.load %arg1[%c384, %c0_13] : memref<3584x384xbf16, #tpu.memory_space<vmem>>, vector<384x384xbf16>
    %c8 = arith.constant 8 : index
    %c0_14 = arith.constant 0 : index
    %41 = vector.load %arg2[%c8, %c0_14] : memref<128x384xf32, #tpu.memory_space<vmem>>, vector<8x384xf32>
    %42 = arith.truncf %39 : vector<8x384xf32> to vector<8x384xbf16>
    %cst_15 = arith.constant dense<0.000000e+00> : vector<8x384xf32>
    %43 = tpu.matmul %42, %40, %cst_15 {dimension_numbers = #tpu.dot_dimension_numbers<[1], [0], [0], [1], [0, 0, 1, 1], [], []>} : vector<8x384xbf16>, vector<384x384xbf16>, vector<8x384xf32> -> vector<8x384xf32>
    %44 = vector.extract_strided_slice %41 {offsets = [0, 0], sizes = [1, 384], strides = [1, 1]} : vector<8x384xf32> to vector<1x384xf32>
    %45 = vector.broadcast %44 : vector<1x384xf32> to vector<8x384xf32>
    %46 = arith.addf %43, %45 : vector<8x384xf32>
    %cst_16 = arith.constant dense<0.000000e+00> : vector<8xf32>
    %47 = vector.multi_reduction <add>, %46, %cst_16 [1] : vector<8x384xf32> to vector<8xf32>
    %48 = vector.shape_cast %47 : vector<8xf32> to vector<8x1xf32>
    %cst_17 = arith.constant 0.0069444445 : f32
    %49 = vector.broadcast %cst_17 : f32 to vector<8x1xf32>
    %50 = arith.mulf %48, %49 : vector<8x1xf32>
    %51 = arith.mulf %46, %46 : vector<8x384xf32>
    %cst_18 = arith.constant dense<0.000000e+00> : vector<8xf32>
    %52 = vector.multi_reduction <add>, %51, %cst_18 [1] : vector<8x384xf32> to vector<8xf32>
    %53 = vector.shape_cast %52 : vector<8xf32> to vector<8x1xf32>
    %cst_19 = arith.constant 0.0069444445 : f32
    %54 = vector.broadcast %cst_19 : f32 to vector<8x1xf32>
    %55 = arith.mulf %53, %54 : vector<8x1xf32>
    %56 = arith.mulf %50, %50 : vector<8x1xf32>
    %57 = arith.subf %55, %56 : vector<8x1xf32>
    %cst_20 = arith.constant 0.000000e+00 : f32
    %58 = vector.broadcast %cst_20 : f32 to vector<8x1xf32>
    %59 = arith.maximumf %57, %58 : vector<8x1xf32>
    %60 = vector.broadcast %50 : vector<8x1xf32> to vector<8x384xf32>
    %61 = arith.subf %46, %60 : vector<8x384xf32>
    %cst_21 = arith.constant 9.99999974E-6 : f32
    %62 = vector.broadcast %cst_21 : f32 to vector<8x1xf32>
    %63 = arith.addf %59, %62 : vector<8x1xf32>
    %64 = math.rsqrt %63 : vector<8x1xf32>
    %65 = vector.broadcast %64 : vector<8x1xf32> to vector<8x384xf32>
    %66 = arith.mulf %61, %65 : vector<8x384xf32>
    %67 = vector.extract_strided_slice %41 {offsets = [1, 0], sizes = [1, 384], strides = [1, 1]} : vector<8x384xf32> to vector<1x384xf32>
    %68 = vector.broadcast %67 : vector<1x384xf32> to vector<8x384xf32>
    %69 = arith.mulf %66, %68 : vector<8x384xf32>
    %70 = vector.extract_strided_slice %41 {offsets = [2, 0], sizes = [1, 384], strides = [1, 1]} : vector<8x384xf32> to vector<1x384xf32>
    %71 = vector.broadcast %70 : vector<1x384xf32> to vector<8x384xf32>
    %72 = arith.addf %69, %71 : vector<8x384xf32>
    %cst_22 = arith.constant 0.000000e+00 : f32
    %73 = vector.broadcast %cst_22 : f32 to vector<8x384xf32>
    %74 = arith.cmpf ogt, %72, %73 : vector<8x384xf32>
    %cst_23 = arith.constant 2.000000e-01 : f32
    %75 = vector.broadcast %cst_23 : f32 to vector<8x384xf32>
    %76 = arith.mulf %75, %72 : vector<8x384xf32>
    %77 = arith.select %74, %72, %76 : vector<8x384xi1>, vector<8x384xf32>
    %c768 = arith.constant 768 : index
    %c0_24 = arith.constant 0 : index
    %78 = vector.load %arg1[%c768, %c0_24] : memref<3584x384xbf16, #tpu.memory_space<vmem>>, vector<256x384xbf16>
    %c16 = arith.constant 16 : index
    %c0_25 = arith.constant 0 : index
    %79 = vector.load %arg2[%c16, %c0_25] : memref<128x384xf32, #tpu.memory_space<vmem>>, vector<8x384xf32>
    %80 = vector.extract_strided_slice %77 {offsets = [0, 0], sizes = [8, 256], strides = [1, 1]} : vector<8x384xf32> to vector<8x256xf32>
    %81 = arith.truncf %80 : vector<8x256xf32> to vector<8x256xbf16>
    %cst_26 = arith.constant dense<0.000000e+00> : vector<8x384xf32>
    %82 = tpu.matmul %81, %78, %cst_26 {dimension_numbers = #tpu.dot_dimension_numbers<[1], [0], [0], [1], [0, 0, 1, 1], [], []>} : vector<8x256xbf16>, vector<256x384xbf16>, vector<8x384xf32> -> vector<8x384xf32>
    %83 = vector.extract_strided_slice %79 {offsets = [0, 0], sizes = [1, 384], strides = [1, 1]} : vector<8x384xf32> to vector<1x384xf32>
    %84 = vector.broadcast %83 : vector<1x384xf32> to vector<8x384xf32>
    %85 = arith.addf %82, %84 : vector<8x384xf32>
    %cst_27 = arith.constant dense<0.000000e+00> : vector<8xf32>
    %86 = vector.multi_reduction <add>, %85, %cst_27 [1] : vector<8x384xf32> to vector<8xf32>
    %87 = vector.shape_cast %86 : vector<8xf32> to vector<8x1xf32>
    %cst_28 = arith.constant 2.500000e-02 : f32
    %88 = vector.broadcast %cst_28 : f32 to vector<8x1xf32>
    %89 = arith.mulf %87, %88 : vector<8x1xf32>
    %90 = arith.mulf %85, %85 : vector<8x384xf32>
    %cst_29 = arith.constant dense<0.000000e+00> : vector<8xf32>
    %91 = vector.multi_reduction <add>, %90, %cst_29 [1] : vector<8x384xf32> to vector<8xf32>
    %92 = vector.shape_cast %91 : vector<8xf32> to vector<8x1xf32>
    %cst_30 = arith.constant 2.500000e-02 : f32
    %93 = vector.broadcast %cst_30 : f32 to vector<8x1xf32>
    %94 = arith.mulf %92, %93 : vector<8x1xf32>
    %95 = arith.mulf %89, %89 : vector<8x1xf32>
    %96 = arith.subf %94, %95 : vector<8x1xf32>
    %cst_31 = arith.constant 0.000000e+00 : f32
    %97 = vector.broadcast %cst_31 : f32 to vector<8x1xf32>
    %98 = arith.maximumf %96, %97 : vector<8x1xf32>
    %99 = vector.broadcast %89 : vector<8x1xf32> to vector<8x384xf32>
    %100 = arith.subf %85, %99 : vector<8x384xf32>
    %cst_32 = arith.constant 9.99999974E-6 : f32
    %101 = vector.broadcast %cst_32 : f32 to vector<8x1xf32>
    %102 = arith.addf %98, %101 : vector<8x1xf32>
    %103 = math.rsqrt %102 : vector<8x1xf32>
    %104 = vector.broadcast %103 : vector<8x1xf32> to vector<8x384xf32>
    %105 = arith.mulf %100, %104 : vector<8x384xf32>
    %106 = vector.extract_strided_slice %79 {offsets = [1, 0], sizes = [1, 384], strides = [1, 1]} : vector<8x384xf32> to vector<1x384xf32>
    %107 = vector.broadcast %106 : vector<1x384xf32> to vector<8x384xf32>
    %108 = arith.mulf %105, %107 : vector<8x384xf32>
    %109 = vector.extract_strided_slice %79 {offsets = [2, 0], sizes = [1, 384], strides = [1, 1]} : vector<8x384xf32> to vector<1x384xf32>
    %110 = vector.broadcast %109 : vector<1x384xf32> to vector<8x384xf32>
    %111 = arith.addf %108, %110 : vector<8x384xf32>
    %cst_33 = arith.constant 0.000000e+00 : f32
    %112 = vector.broadcast %cst_33 : f32 to vector<8x384xf32>
    %113 = arith.cmpf ogt, %111, %112 : vector<8x384xf32>
    %cst_34 = arith.constant 2.000000e-01 : f32
    %114 = vector.broadcast %cst_34 : f32 to vector<8x384xf32>
    %115 = arith.mulf %114, %111 : vector<8x384xf32>
    %116 = arith.select %113, %111, %115 : vector<8x384xi1>, vector<8x384xf32>
    %c1024 = arith.constant 1024 : index
    %c0_35 = arith.constant 0 : index
    %117 = vector.load %arg1[%c1024, %c0_35] : memref<3584x384xbf16, #tpu.memory_space<vmem>>, vector<128x384xbf16>
    %c24 = arith.constant 24 : index
    %c0_36 = arith.constant 0 : index
    %118 = vector.load %arg2[%c24, %c0_36] : memref<128x384xf32, #tpu.memory_space<vmem>>, vector<8x384xf32>
    %119 = vector.extract_strided_slice %116 {offsets = [0, 0], sizes = [8, 128], strides = [1, 1]} : vector<8x384xf32> to vector<8x128xf32>
    %120 = arith.truncf %119 : vector<8x128xf32> to vector<8x128xbf16>
    %cst_37 = arith.constant dense<0.000000e+00> : vector<8x384xf32>
    %121 = tpu.matmul %120, %117, %cst_37 {dimension_numbers = #tpu.dot_dimension_numbers<[1], [0], [0], [1], [0, 0, 1, 1], [], []>} : vector<8x128xbf16>, vector<128x384xbf16>, vector<8x384xf32> -> vector<8x384xf32>
    %122 = vector.extract_strided_slice %118 {offsets = [0, 0], sizes = [1, 384], strides = [1, 1]} : vector<8x384xf32> to vector<1x384xf32>
    %123 = vector.broadcast %122 : vector<1x384xf32> to vector<8x384xf32>
    %124 = arith.addf %121, %123 : vector<8x384xf32>
    %cst_38 = arith.constant dense<0.000000e+00> : vector<8xf32>
    %125 = vector.multi_reduction <add>, %124, %cst_38 [1] : vector<8x384xf32> to vector<8xf32>
    %126 = vector.shape_cast %125 : vector<8xf32> to vector<8x1xf32>
    %cst_39 = arith.constant 3.125000e-02 : f32
    %127 = vector.broadcast %cst_39 : f32 to vector<8x1xf32>
    %128 = arith.mulf %126, %127 : vector<8x1xf32>
    %129 = arith.mulf %124, %124 : vector<8x384xf32>
    %cst_40 = arith.constant dense<0.000000e+00> : vector<8xf32>
    %130 = vector.multi_reduction <add>, %129, %cst_40 [1] : vector<8x384xf32> to vector<8xf32>
    %131 = vector.shape_cast %130 : vector<8xf32> to vector<8x1xf32>
    %cst_41 = arith.constant 3.125000e-02 : f32
    %132 = vector.broadcast %cst_41 : f32 to vector<8x1xf32>
    %133 = arith.mulf %131, %132 : vector<8x1xf32>
    %134 = arith.mulf %128, %128 : vector<8x1xf32>
    %135 = arith.subf %133, %134 : vector<8x1xf32>
    %cst_42 = arith.constant 0.000000e+00 : f32
    %136 = vector.broadcast %cst_42 : f32 to vector<8x1xf32>
    %137 = arith.maximumf %135, %136 : vector<8x1xf32>
    %138 = vector.broadcast %128 : vector<8x1xf32> to vector<8x384xf32>
    %139 = arith.subf %124, %138 : vector<8x384xf32>
    %cst_43 = arith.constant 9.99999974E-6 : f32
    %140 = vector.broadcast %cst_43 : f32 to vector<8x1xf32>
    %141 = arith.addf %137, %140 : vector<8x1xf32>
    %142 = math.rsqrt %141 : vector<8x1xf32>
    %143 = vector.broadcast %142 : vector<8x1xf32> to vector<8x384xf32>
    %144 = arith.mulf %139, %143 : vector<8x384xf32>
    %145 = vector.extract_strided_slice %118 {offsets = [1, 0], sizes = [1, 384], strides = [1, 1]} : vector<8x384xf32> to vector<1x384xf32>
    %146 = vector.broadcast %145 : vector<1x384xf32> to vector<8x384xf32>
    %147 = arith.mulf %144, %146 : vector<8x384xf32>
    %148 = vector.extract_strided_slice %118 {offsets = [2, 0], sizes = [1, 384], strides = [1, 1]} : vector<8x384xf32> to vector<1x384xf32>
    %149 = vector.broadcast %148 : vector<1x384xf32> to vector<8x384xf32>
    %150 = arith.addf %147, %149 : vector<8x384xf32>
    %cst_44 = arith.constant 0.000000e+00 : f32
    %151 = vector.broadcast %cst_44 : f32 to vector<8x384xf32>
    %152 = arith.cmpf ogt, %150, %151 : vector<8x384xf32>
    %cst_45 = arith.constant 2.000000e-01 : f32
    %153 = vector.broadcast %cst_45 : f32 to vector<8x384xf32>
    %154 = arith.mulf %153, %150 : vector<8x384xf32>
    %155 = arith.select %152, %150, %154 : vector<8x384xi1>, vector<8x384xf32>
    %c1152 = arith.constant 1152 : index
    %c0_46 = arith.constant 0 : index
    %156 = vector.load %arg1[%c1152, %c0_46] : memref<3584x384xbf16, #tpu.memory_space<vmem>>, vector<128x384xbf16>
    %c32 = arith.constant 32 : index
    %c0_47 = arith.constant 0 : index
    %157 = vector.load %arg2[%c32, %c0_47] : memref<128x384xf32, #tpu.memory_space<vmem>>, vector<8x384xf32>
    %158 = vector.extract_strided_slice %155 {offsets = [0, 0], sizes = [8, 128], strides = [1, 1]} : vector<8x384xf32> to vector<8x128xf32>
    %159 = arith.truncf %158 : vector<8x128xf32> to vector<8x128xbf16>
    %cst_48 = arith.constant dense<0.000000e+00> : vector<8x384xf32>
    %160 = tpu.matmul %159, %156, %cst_48 {dimension_numbers = #tpu.dot_dimension_numbers<[1], [0], [0], [1], [0, 0, 1, 1], [], []>} : vector<8x128xbf16>, vector<128x384xbf16>, vector<8x384xf32> -> vector<8x384xf32>
    %161 = vector.extract_strided_slice %157 {offsets = [0, 0], sizes = [1, 384], strides = [1, 1]} : vector<8x384xf32> to vector<1x384xf32>
    %162 = vector.broadcast %161 : vector<1x384xf32> to vector<8x384xf32>
    %163 = arith.addf %160, %162 : vector<8x384xf32>
    %cst_49 = arith.constant dense<0.000000e+00> : vector<8xf32>
    %164 = vector.multi_reduction <add>, %163, %cst_49 [1] : vector<8x384xf32> to vector<8xf32>
    %165 = vector.shape_cast %164 : vector<8xf32> to vector<8x1xf32>
    %cst_50 = arith.constant 6.250000e-02 : f32
    %166 = vector.broadcast %cst_50 : f32 to vector<8x1xf32>
    %167 = arith.mulf %165, %166 : vector<8x1xf32>
    %168 = arith.mulf %163, %163 : vector<8x384xf32>
    %cst_51 = arith.constant dense<0.000000e+00> : vector<8xf32>
    %169 = vector.multi_reduction <add>, %168, %cst_51 [1] : vector<8x384xf32> to vector<8xf32>
    %170 = vector.shape_cast %169 : vector<8xf32> to vector<8x1xf32>
    %cst_52 = arith.constant 6.250000e-02 : f32
    %171 = vector.broadcast %cst_52 : f32 to vector<8x1xf32>
    %172 = arith.mulf %170, %171 : vector<8x1xf32>
    %173 = arith.mulf %167, %167 : vector<8x1xf32>
    %174 = arith.subf %172, %173 : vector<8x1xf32>
    %cst_53 = arith.constant 0.000000e+00 : f32
    %175 = vector.broadcast %cst_53 : f32 to vector<8x1xf32>
    %176 = arith.maximumf %174, %175 : vector<8x1xf32>
    %177 = vector.broadcast %167 : vector<8x1xf32> to vector<8x384xf32>
    %178 = arith.subf %163, %177 : vector<8x384xf32>
    %cst_54 = arith.constant 9.99999974E-6 : f32
    %179 = vector.broadcast %cst_54 : f32 to vector<8x1xf32>
    %180 = arith.addf %176, %179 : vector<8x1xf32>
    %181 = math.rsqrt %180 : vector<8x1xf32>
    %182 = vector.broadcast %181 : vector<8x1xf32> to vector<8x384xf32>
    %183 = arith.mulf %178, %182 : vector<8x384xf32>
    %184 = vector.extract_strided_slice %157 {offsets = [1, 0], sizes = [1, 384], strides = [1, 1]} : vector<8x384xf32> to vector<1x384xf32>
    %185 = vector.broadcast %184 : vector<1x384xf32> to vector<8x384xf32>
    %186 = arith.mulf %183, %185 : vector<8x384xf32>
    %187 = vector.extract_strided_slice %157 {offsets = [2, 0], sizes = [1, 384], strides = [1, 1]} : vector<8x384xf32> to vector<1x384xf32>
    %188 = vector.broadcast %187 : vector<1x384xf32> to vector<8x384xf32>
    %189 = arith.addf %186, %188 : vector<8x384xf32>
    %cst_55 = arith.constant 0.000000e+00 : f32
    %190 = vector.broadcast %cst_55 : f32 to vector<8x384xf32>
    %191 = arith.cmpf ogt, %189, %190 : vector<8x384xf32>
    %cst_56 = arith.constant 2.000000e-01 : f32
    %192 = vector.broadcast %cst_56 : f32 to vector<8x384xf32>
    %193 = arith.mulf %192, %189 : vector<8x384xf32>
    %194 = arith.select %191, %189, %193 : vector<8x384xi1>, vector<8x384xf32>
    %c1280 = arith.constant 1280 : index
    %c0_57 = arith.constant 0 : index
    %195 = vector.load %arg1[%c1280, %c0_57] : memref<3584x384xbf16, #tpu.memory_space<vmem>>, vector<128x384xbf16>
    %c40 = arith.constant 40 : index
    %c0_58 = arith.constant 0 : index
    %196 = vector.load %arg2[%c40, %c0_58] : memref<128x384xf32, #tpu.memory_space<vmem>>, vector<8x384xf32>
    %197 = vector.extract_strided_slice %196 {offsets = [0, 0], sizes = [1, 384], strides = [1, 1]} : vector<8x384xf32> to vector<1x384xf32>
    %198 = vector.extract_strided_slice %194 {offsets = [0, 0], sizes = [8, 128], strides = [1, 1]} : vector<8x384xf32> to vector<8x128xf32>
    %199 = arith.truncf %198 : vector<8x128xf32> to vector<8x128xbf16>
    %cst_59 = arith.constant dense<0.000000e+00> : vector<8x384xf32>
    %200 = tpu.matmul %199, %195, %cst_59 {dimension_numbers = #tpu.dot_dimension_numbers<[1], [0], [0], [1], [0, 0, 1, 1], [], []>} : vector<8x128xbf16>, vector<128x384xbf16>, vector<8x384xf32> -> vector<8x384xf32>
    %201 = vector.broadcast %197 : vector<1x384xf32> to vector<8x384xf32>
    %202 = arith.addf %200, %201 : vector<8x384xf32>
    %203 = vector.extract_strided_slice %202 {offsets = [0, 0], sizes = [8, 128], strides = [1, 1]} : vector<8x384xf32> to vector<8x128xf32>
    %204 = vector.extract_strided_slice %202 {offsets = [0, 128], sizes = [8, 128], strides = [1, 1]} : vector<8x384xf32> to vector<8x128xf32>
    %205 = vector.extract_strided_slice %0 {offsets = [0, 384], sizes = [8, 128], strides = [1, 1]} : vector<8x512xf32> to vector<8x128xf32>
    %206 = tpu.iota {dimensions = array<i32: 1>} : vector<8x128xi32>
    %c4_i32 = arith.constant 4 : i32
    %207 = vector.broadcast %c4_i32 : i32 to vector<8x128xi32>
    %208 = arith.cmpi slt, %206, %207 : vector<8x128xi32>
    %cst_60 = arith.constant 0.000000e+00 : f32
    %209 = vector.broadcast %cst_60 : f32 to vector<8x128xf32>
    %210 = arith.select %208, %203, %209 : vector<8x128xi1>, vector<8x128xf32>
    %cst_61 = arith.constant 5.000000e-01 : f32
    %211 = vector.broadcast %cst_61 : f32 to vector<8x128xf32>
    %212 = arith.mulf %211, %204 : vector<8x128xf32>
    %213 = math.exp %212 : vector<8x128xf32>
    %214 = arith.mulf %213, %205 : vector<8x128xf32>
    %215 = arith.addf %210, %214 : vector<8x128xf32>
    %c1408 = arith.constant 1408 : index
    %c0_62 = arith.constant 0 : index
    %216 = vector.load %arg1[%c1408, %c0_62] : memref<3584x384xbf16, #tpu.memory_space<vmem>>, vector<128x384xbf16>
    %c48 = arith.constant 48 : index
    %c0_63 = arith.constant 0 : index
    %217 = vector.load %arg2[%c48, %c0_63] : memref<128x384xf32, #tpu.memory_space<vmem>>, vector<8x384xf32>
    %218 = arith.truncf %215 : vector<8x128xf32> to vector<8x128xbf16>
    %cst_64 = arith.constant dense<0.000000e+00> : vector<8x384xf32>
    %219 = tpu.matmul %218, %216, %cst_64 {dimension_numbers = #tpu.dot_dimension_numbers<[1], [0], [0], [1], [0, 0, 1, 1], [], []>} : vector<8x128xbf16>, vector<128x384xbf16>, vector<8x384xf32> -> vector<8x384xf32>
    %220 = vector.extract_strided_slice %217 {offsets = [0, 0], sizes = [1, 384], strides = [1, 1]} : vector<8x384xf32> to vector<1x384xf32>
    %221 = vector.broadcast %220 : vector<1x384xf32> to vector<8x384xf32>
    %222 = arith.addf %219, %221 : vector<8x384xf32>
    %cst_65 = arith.constant dense<0.000000e+00> : vector<8xf32>
    %223 = vector.multi_reduction <add>, %222, %cst_65 [1] : vector<8x384xf32> to vector<8xf32>
    %224 = vector.shape_cast %223 : vector<8xf32> to vector<8x1xf32>
    %cst_66 = arith.constant 0.0416666679 : f32
    %225 = vector.broadcast %cst_66 : f32 to vector<8x1xf32>
    %226 = arith.mulf %224, %225 : vector<8x1xf32>
    %227 = arith.mulf %222, %222 : vector<8x384xf32>
    %cst_67 = arith.constant dense<0.000000e+00> : vector<8xf32>
    %228 = vector.multi_reduction <add>, %227, %cst_67 [1] : vector<8x384xf32> to vector<8xf32>
    %229 = vector.shape_cast %228 : vector<8xf32> to vector<8x1xf32>
    %cst_68 = arith.constant 0.0416666679 : f32
    %230 = vector.broadcast %cst_68 : f32 to vector<8x1xf32>
    %231 = arith.mulf %229, %230 : vector<8x1xf32>
    %232 = arith.mulf %226, %226 : vector<8x1xf32>
    %233 = arith.subf %231, %232 : vector<8x1xf32>
    %cst_69 = arith.constant 0.000000e+00 : f32
    %234 = vector.broadcast %cst_69 : f32 to vector<8x1xf32>
    %235 = arith.maximumf %233, %234 : vector<8x1xf32>
    %236 = vector.broadcast %226 : vector<8x1xf32> to vector<8x384xf32>
    %237 = arith.subf %222, %236 : vector<8x384xf32>
    %cst_70 = arith.constant 9.99999974E-6 : f32
    %238 = vector.broadcast %cst_70 : f32 to vector<8x1xf32>
    %239 = arith.addf %235, %238 : vector<8x1xf32>
    %240 = math.rsqrt %239 : vector<8x1xf32>
    %241 = vector.broadcast %240 : vector<8x1xf32> to vector<8x384xf32>
    %242 = arith.mulf %237, %241 : vector<8x384xf32>
    %243 = vector.extract_strided_slice %217 {offsets = [1, 0], sizes = [1, 384], strides = [1, 1]} : vector<8x384xf32> to vector<1x384xf32>
    %244 = vector.broadcast %243 : vector<1x384xf32> to vector<8x384xf32>
    %245 = arith.mulf %242, %244 : vector<8x384xf32>
    %246 = vector.extract_strided_slice %217 {offsets = [2, 0], sizes = [1, 384], strides = [1, 1]} : vector<8x384xf32> to vector<1x384xf32>
    %247 = vector.broadcast %246 : vector<1x384xf32> to vector<8x384xf32>
    %248 = arith.addf %245, %247 : vector<8x384xf32>
    %cst_71 = arith.constant 0.000000e+00 : f32
    %249 = vector.broadcast %cst_71 : f32 to vector<8x384xf32>
    %250 = arith.cmpf ogt, %248, %249 : vector<8x384xf32>
    %cst_72 = arith.constant 2.000000e-01 : f32
    %251 = vector.broadcast %cst_72 : f32 to vector<8x384xf32>
    %252 = arith.mulf %251, %248 : vector<8x384xf32>
    %253 = arith.select %250, %248, %252 : vector<8x384xi1>, vector<8x384xf32>
    %c1536 = arith.constant 1536 : index
    %c0_73 = arith.constant 0 : index
    %254 = vector.load %arg1[%c1536, %c0_73] : memref<3584x384xbf16, #tpu.memory_space<vmem>>, vector<128x384xbf16>
    %c56 = arith.constant 56 : index
    %c0_74 = arith.constant 0 : index
    %255 = vector.load %arg2[%c56, %c0_74] : memref<128x384xf32, #tpu.memory_space<vmem>>, vector<8x384xf32>
    %256 = vector.extract_strided_slice %253 {offsets = [0, 0], sizes = [8, 128], strides = [1, 1]} : vector<8x384xf32> to vector<8x128xf32>
    %257 = arith.truncf %256 : vector<8x128xf32> to vector<8x128xbf16>
    %cst_75 = arith.constant dense<0.000000e+00> : vector<8x384xf32>
    %258 = tpu.matmul %257, %254, %cst_75 {dimension_numbers = #tpu.dot_dimension_numbers<[1], [0], [0], [1], [0, 0, 1, 1], [], []>} : vector<8x128xbf16>, vector<128x384xbf16>, vector<8x384xf32> -> vector<8x384xf32>
    %259 = vector.extract_strided_slice %255 {offsets = [0, 0], sizes = [1, 384], strides = [1, 1]} : vector<8x384xf32> to vector<1x384xf32>
    %260 = vector.broadcast %259 : vector<1x384xf32> to vector<8x384xf32>
    %261 = arith.addf %258, %260 : vector<8x384xf32>
    %cst_76 = arith.constant dense<0.000000e+00> : vector<8xf32>
    %262 = vector.multi_reduction <add>, %261, %cst_76 [1] : vector<8x384xf32> to vector<8xf32>
    %263 = vector.shape_cast %262 : vector<8xf32> to vector<8x1xf32>
    %cst_77 = arith.constant 2.500000e-02 : f32
    %264 = vector.broadcast %cst_77 : f32 to vector<8x1xf32>
    %265 = arith.mulf %263, %264 : vector<8x1xf32>
    %266 = arith.mulf %261, %261 : vector<8x384xf32>
    %cst_78 = arith.constant dense<0.000000e+00> : vector<8xf32>
    %267 = vector.multi_reduction <add>, %266, %cst_78 [1] : vector<8x384xf32> to vector<8xf32>
    %268 = vector.shape_cast %267 : vector<8xf32> to vector<8x1xf32>
    %cst_79 = arith.constant 2.500000e-02 : f32
    %269 = vector.broadcast %cst_79 : f32 to vector<8x1xf32>
    %270 = arith.mulf %268, %269 : vector<8x1xf32>
    %271 = arith.mulf %265, %265 : vector<8x1xf32>
    %272 = arith.subf %270, %271 : vector<8x1xf32>
    %cst_80 = arith.constant 0.000000e+00 : f32
    %273 = vector.broadcast %cst_80 : f32 to vector<8x1xf32>
    %274 = arith.maximumf %272, %273 : vector<8x1xf32>
    %275 = vector.broadcast %265 : vector<8x1xf32> to vector<8x384xf32>
    %276 = arith.subf %261, %275 : vector<8x384xf32>
    %cst_81 = arith.constant 9.99999974E-6 : f32
    %277 = vector.broadcast %cst_81 : f32 to vector<8x1xf32>
    %278 = arith.addf %274, %277 : vector<8x1xf32>
    %279 = math.rsqrt %278 : vector<8x1xf32>
    %280 = vector.broadcast %279 : vector<8x1xf32> to vector<8x384xf32>
    %281 = arith.mulf %276, %280 : vector<8x384xf32>
    %282 = vector.extract_strided_slice %255 {offsets = [1, 0], sizes = [1, 384], strides = [1, 1]} : vector<8x384xf32> to vector<1x384xf32>
    %283 = vector.broadcast %282 : vector<1x384xf32> to vector<8x384xf32>
    %284 = arith.mulf %281, %283 : vector<8x384xf32>
    %285 = vector.extract_strided_slice %255 {offsets = [2, 0], sizes = [1, 384], strides = [1, 1]} : vector<8x384xf32> to vector<1x384xf32>
    %286 = vector.broadcast %285 : vector<1x384xf32> to vector<8x384xf32>
    %287 = arith.addf %284, %286 : vector<8x384xf32>
    %cst_82 = arith.constant 0.000000e+00 : f32
    %288 = vector.broadcast %cst_82 : f32 to vector<8x384xf32>
    %289 = arith.cmpf ogt, %287, %288 : vector<8x384xf32>
    %cst_83 = arith.constant 2.000000e-01 : f32
    %290 = vector.broadcast %cst_83 : f32 to vector<8x384xf32>
    %291 = arith.mulf %290, %287 : vector<8x384xf32>
    %292 = arith.select %289, %287, %291 : vector<8x384xi1>, vector<8x384xf32>
    %c1664 = arith.constant 1664 : index
    %c0_84 = arith.constant 0 : index
    %293 = vector.load %arg1[%c1664, %c0_84] : memref<3584x384xbf16, #tpu.memory_space<vmem>>, vector<128x384xbf16>
    %c64 = arith.constant 64 : index
    %c0_85 = arith.constant 0 : index
    %294 = vector.load %arg2[%c64, %c0_85] : memref<128x384xf32, #tpu.memory_space<vmem>>, vector<8x384xf32>
    %295 = vector.extract_strided_slice %292 {offsets = [0, 0], sizes = [8, 128], strides = [1, 1]} : vector<8x384xf32> to vector<8x128xf32>
    %296 = arith.truncf %295 : vector<8x128xf32> to vector<8x128xbf16>
    %cst_86 = arith.constant dense<0.000000e+00> : vector<8x384xf32>
    %297 = tpu.matmul %296, %293, %cst_86 {dimension_numbers = #tpu.dot_dimension_numbers<[1], [0], [0], [1], [0, 0, 1, 1], [], []>} : vector<8x128xbf16>, vector<128x384xbf16>, vector<8x384xf32> -> vector<8x384xf32>
    %298 = vector.extract_strided_slice %294 {offsets = [0, 0], sizes = [1, 384], strides = [1, 1]} : vector<8x384xf32> to vector<1x384xf32>
    %299 = vector.broadcast %298 : vector<1x384xf32> to vector<8x384xf32>
    %300 = arith.addf %297, %299 : vector<8x384xf32>
    %cst_87 = arith.constant dense<0.000000e+00> : vector<8xf32>
    %301 = vector.multi_reduction <add>, %300, %cst_87 [1] : vector<8x384xf32> to vector<8xf32>
    %302 = vector.shape_cast %301 : vector<8xf32> to vector<8x1xf32>
    %cst_88 = arith.constant 6.250000e-03 : f32
    %303 = vector.broadcast %cst_88 : f32 to vector<8x1xf32>
    %304 = arith.mulf %302, %303 : vector<8x1xf32>
    %305 = arith.mulf %300, %300 : vector<8x384xf32>
    %cst_89 = arith.constant dense<0.000000e+00> : vector<8xf32>
    %306 = vector.multi_reduction <add>, %305, %cst_89 [1] : vector<8x384xf32> to vector<8xf32>
    %307 = vector.shape_cast %306 : vector<8xf32> to vector<8x1xf32>
    %cst_90 = arith.constant 6.250000e-03 : f32
    %308 = vector.broadcast %cst_90 : f32 to vector<8x1xf32>
    %309 = arith.mulf %307, %308 : vector<8x1xf32>
    %310 = arith.mulf %304, %304 : vector<8x1xf32>
    %311 = arith.subf %309, %310 : vector<8x1xf32>
    %cst_91 = arith.constant 0.000000e+00 : f32
    %312 = vector.broadcast %cst_91 : f32 to vector<8x1xf32>
    %313 = arith.maximumf %311, %312 : vector<8x1xf32>
    %314 = vector.broadcast %304 : vector<8x1xf32> to vector<8x384xf32>
    %315 = arith.subf %300, %314 : vector<8x384xf32>
    %cst_92 = arith.constant 9.99999974E-6 : f32
    %316 = vector.broadcast %cst_92 : f32 to vector<8x1xf32>
    %317 = arith.addf %313, %316 : vector<8x1xf32>
    %318 = math.rsqrt %317 : vector<8x1xf32>
    %319 = vector.broadcast %318 : vector<8x1xf32> to vector<8x384xf32>
    %320 = arith.mulf %315, %319 : vector<8x384xf32>
    %321 = vector.extract_strided_slice %294 {offsets = [1, 0], sizes = [1, 384], strides = [1, 1]} : vector<8x384xf32> to vector<1x384xf32>
    %322 = vector.broadcast %321 : vector<1x384xf32> to vector<8x384xf32>
    %323 = arith.mulf %320, %322 : vector<8x384xf32>
    %324 = vector.extract_strided_slice %294 {offsets = [2, 0], sizes = [1, 384], strides = [1, 1]} : vector<8x384xf32> to vector<1x384xf32>
    %325 = vector.broadcast %324 : vector<1x384xf32> to vector<8x384xf32>
    %326 = arith.addf %323, %325 : vector<8x384xf32>
    %cst_93 = arith.constant 0.000000e+00 : f32
    %327 = vector.broadcast %cst_93 : f32 to vector<8x384xf32>
    %328 = arith.cmpf ogt, %326, %327 : vector<8x384xf32>
    %cst_94 = arith.constant 2.000000e-01 : f32
    %329 = vector.broadcast %cst_94 : f32 to vector<8x384xf32>
    %330 = arith.mulf %329, %326 : vector<8x384xf32>
    %331 = arith.select %328, %326, %330 : vector<8x384xi1>, vector<8x384xf32>
    %c1792 = arith.constant 1792 : index
    %c0_95 = arith.constant 0 : index
    %332 = vector.load %arg1[%c1792, %c0_95] : memref<3584x384xbf16, #tpu.memory_space<vmem>>, vector<256x384xbf16>
    %c72 = arith.constant 72 : index
    %c0_96 = arith.constant 0 : index
    %333 = vector.load %arg2[%c72, %c0_96] : memref<128x384xf32, #tpu.memory_space<vmem>>, vector<8x384xf32>
    %334 = vector.extract_strided_slice %331 {offsets = [0, 0], sizes = [8, 256], strides = [1, 1]} : vector<8x384xf32> to vector<8x256xf32>
    %335 = arith.truncf %334 : vector<8x256xf32> to vector<8x256xbf16>
    %cst_97 = arith.constant dense<0.000000e+00> : vector<8x384xf32>
    %336 = tpu.matmul %335, %332, %cst_97 {dimension_numbers = #tpu.dot_dimension_numbers<[1], [0], [0], [1], [0, 0, 1, 1], [], []>} : vector<8x256xbf16>, vector<256x384xbf16>, vector<8x384xf32> -> vector<8x384xf32>
    %337 = vector.extract_strided_slice %333 {offsets = [0, 0], sizes = [1, 384], strides = [1, 1]} : vector<8x384xf32> to vector<1x384xf32>
    %338 = vector.broadcast %337 : vector<1x384xf32> to vector<8x384xf32>
    %339 = arith.addf %336, %338 : vector<8x384xf32>
    %cst_98 = arith.constant dense<0.000000e+00> : vector<8xf32>
    %340 = vector.multi_reduction <add>, %339, %cst_98 [1] : vector<8x384xf32> to vector<8xf32>
    %341 = vector.shape_cast %340 : vector<8xf32> to vector<8x1xf32>
    %cst_99 = arith.constant 3.125000e-03 : f32
    %342 = vector.broadcast %cst_99 : f32 to vector<8x1xf32>
    %343 = arith.mulf %341, %342 : vector<8x1xf32>
    %344 = arith.mulf %339, %339 : vector<8x384xf32>
    %cst_100 = arith.constant dense<0.000000e+00> : vector<8xf32>
    %345 = vector.multi_reduction <add>, %344, %cst_100 [1] : vector<8x384xf32> to vector<8xf32>
    %346 = vector.shape_cast %345 : vector<8xf32> to vector<8x1xf32>
    %cst_101 = arith.constant 3.125000e-03 : f32
    %347 = vector.broadcast %cst_101 : f32 to vector<8x1xf32>
    %348 = arith.mulf %346, %347 : vector<8x1xf32>
    %349 = arith.mulf %343, %343 : vector<8x1xf32>
    %350 = arith.subf %348, %349 : vector<8x1xf32>
    %cst_102 = arith.constant 0.000000e+00 : f32
    %351 = vector.broadcast %cst_102 : f32 to vector<8x1xf32>
    %352 = arith.maximumf %350, %351 : vector<8x1xf32>
    %353 = vector.broadcast %343 : vector<8x1xf32> to vector<8x384xf32>
    %354 = arith.subf %339, %353 : vector<8x384xf32>
    %cst_103 = arith.constant 9.99999974E-6 : f32
    %355 = vector.broadcast %cst_103 : f32 to vector<8x1xf32>
    %356 = arith.addf %352, %355 : vector<8x1xf32>
    %357 = math.rsqrt %356 : vector<8x1xf32>
    %358 = vector.broadcast %357 : vector<8x1xf32> to vector<8x384xf32>
    %359 = arith.mulf %354, %358 : vector<8x384xf32>
    %360 = vector.extract_strided_slice %333 {offsets = [1, 0], sizes = [1, 384], strides = [1, 1]} : vector<8x384xf32> to vector<1x384xf32>
    %361 = vector.broadcast %360 : vector<1x384xf32> to vector<8x384xf32>
    %362 = arith.mulf %359, %361 : vector<8x384xf32>
    %363 = vector.extract_strided_slice %333 {offsets = [2, 0], sizes = [1, 384], strides = [1, 1]} : vector<8x384xf32> to vector<1x384xf32>
    %364 = vector.broadcast %363 : vector<1x384xf32> to vector<8x384xf32>
    %365 = arith.addf %362, %364 : vector<8x384xf32>
    %cst_104 = arith.constant 0.000000e+00 : f32
    %366 = vector.broadcast %cst_104 : f32 to vector<8x384xf32>
    %367 = arith.cmpf ogt, %365, %366 : vector<8x384xf32>
    %cst_105 = arith.constant 2.000000e-01 : f32
    %368 = vector.broadcast %cst_105 : f32 to vector<8x384xf32>
    %369 = arith.mulf %368, %365 : vector<8x384xf32>
    %370 = arith.select %367, %365, %369 : vector<8x384xi1>, vector<8x384xf32>
    %c2048 = arith.constant 2048 : index
    %c0_106 = arith.constant 0 : index
    %371 = vector.load %arg1[%c2048, %c0_106] : memref<3584x384xbf16, #tpu.memory_space<vmem>>, vector<384x384xbf16>
    %c80 = arith.constant 80 : index
    %c0_107 = arith.constant 0 : index
    %372 = vector.load %arg2[%c80, %c0_107] : memref<128x384xf32, #tpu.memory_space<vmem>>, vector<8x384xf32>
    %373 = arith.truncf %370 : vector<8x384xf32> to vector<8x384xbf16>
    %cst_108 = arith.constant dense<0.000000e+00> : vector<8x384xf32>
    %374 = tpu.matmul %373, %371, %cst_108 {dimension_numbers = #tpu.dot_dimension_numbers<[1], [0], [0], [1], [0, 0, 1, 1], [], []>} : vector<8x384xbf16>, vector<384x384xbf16>, vector<8x384xf32> -> vector<8x384xf32>
    %375 = vector.extract_strided_slice %372 {offsets = [0, 0], sizes = [1, 384], strides = [1, 1]} : vector<8x384xf32> to vector<1x384xf32>
    %376 = vector.broadcast %375 : vector<1x384xf32> to vector<8x384xf32>
    %377 = arith.addf %374, %376 : vector<8x384xf32>
    %cst_109 = arith.constant dense<0.000000e+00> : vector<8xf32>
    %378 = vector.multi_reduction <add>, %377, %cst_109 [1] : vector<8x384xf32> to vector<8xf32>
    %379 = vector.shape_cast %378 : vector<8xf32> to vector<8x1xf32>
    %cst_110 = arith.constant 3.125000e-03 : f32
    %380 = vector.broadcast %cst_110 : f32 to vector<8x1xf32>
    %381 = arith.mulf %379, %380 : vector<8x1xf32>
    %382 = arith.mulf %377, %377 : vector<8x384xf32>
    %cst_111 = arith.constant dense<0.000000e+00> : vector<8xf32>
    %383 = vector.multi_reduction <add>, %382, %cst_111 [1] : vector<8x384xf32> to vector<8xf32>
    %384 = vector.shape_cast %383 : vector<8xf32> to vector<8x1xf32>
    %cst_112 = arith.constant 3.125000e-03 : f32
    %385 = vector.broadcast %cst_112 : f32 to vector<8x1xf32>
    %386 = arith.mulf %384, %385 : vector<8x1xf32>
    %387 = arith.mulf %381, %381 : vector<8x1xf32>
    %388 = arith.subf %386, %387 : vector<8x1xf32>
    %cst_113 = arith.constant 0.000000e+00 : f32
    %389 = vector.broadcast %cst_113 : f32 to vector<8x1xf32>
    %390 = arith.maximumf %388, %389 : vector<8x1xf32>
    %391 = vector.broadcast %381 : vector<8x1xf32> to vector<8x384xf32>
    %392 = arith.subf %377, %391 : vector<8x384xf32>
    %cst_114 = arith.constant 9.99999974E-6 : f32
    %393 = vector.broadcast %cst_114 : f32 to vector<8x1xf32>
    %394 = arith.addf %390, %393 : vector<8x1xf32>
    %395 = math.rsqrt %394 : vector<8x1xf32>
    %396 = vector.broadcast %395 : vector<8x1xf32> to vector<8x384xf32>
    %397 = arith.mulf %392, %396 : vector<8x384xf32>
    %398 = vector.extract_strided_slice %372 {offsets = [1, 0], sizes = [1, 384], strides = [1, 1]} : vector<8x384xf32> to vector<1x384xf32>
    %399 = vector.broadcast %398 : vector<1x384xf32> to vector<8x384xf32>
    %400 = arith.mulf %397, %399 : vector<8x384xf32>
    %401 = vector.extract_strided_slice %372 {offsets = [2, 0], sizes = [1, 384], strides = [1, 1]} : vector<8x384xf32> to vector<1x384xf32>
    %402 = vector.broadcast %401 : vector<1x384xf32> to vector<8x384xf32>
    %403 = arith.addf %400, %402 : vector<8x384xf32>
    %cst_115 = arith.constant 0.000000e+00 : f32
    %404 = vector.broadcast %cst_115 : f32 to vector<8x384xf32>
    %405 = arith.cmpf ogt, %403, %404 : vector<8x384xf32>
    %cst_116 = arith.constant 2.000000e-01 : f32
    %406 = vector.broadcast %cst_116 : f32 to vector<8x384xf32>
    %407 = arith.mulf %406, %403 : vector<8x384xf32>
    %408 = arith.select %405, %403, %407 : vector<8x384xi1>, vector<8x384xf32>
    %c0_117 = arith.constant 0 : index
    %c0_118 = arith.constant 0 : index
    %409 = vector.load %arg3[%c0_117, %c0_118] : memref<8x768xf32, #tpu.memory_space<vmem>>, vector<8x384xf32>
    tpu.vector_store %arg3[%c0_117, %c0_118], %408 {strides = array<i32>} : memref<8x768xf32, #tpu.memory_space<vmem>>, vector<8x384xf32>,
    %c2432 = arith.constant 2432 : index
    %c0_119 = arith.constant 0 : index
    %410 = vector.load %arg1[%c2432, %c0_119] : memref<3584x384xbf16, #tpu.memory_space<vmem>>, vector<384x384xbf16>
    %c88 = arith.constant 88 : index
    %c0_120 = arith.constant 0 : index
    %411 = vector.load %arg2[%c88, %c0_120] : memref<128x384xf32, #tpu.memory_space<vmem>>, vector<8x384xf32>
    %412 = arith.truncf %408 : vector<8x384xf32> to vector<8x384xbf16>
    %cst_121 = arith.constant dense<0.000000e+00> : vector<8x384xf32>
    %413 = tpu.matmul %412, %410, %cst_121 {dimension_numbers = #tpu.dot_dimension_numbers<[1], [0], [0], [1], [0, 0, 1, 1], [], []>} : vector<8x384xbf16>, vector<384x384xbf16>, vector<8x384xf32> -> vector<8x384xf32>
    %414 = vector.extract_strided_slice %411 {offsets = [0, 0], sizes = [1, 384], strides = [1, 1]} : vector<8x384xf32> to vector<1x384xf32>
    %415 = vector.broadcast %414 : vector<1x384xf32> to vector<8x384xf32>
    %416 = arith.addf %413, %415 : vector<8x384xf32>
    %cst_122 = arith.constant dense<0.000000e+00> : vector<8xf32>
    %417 = vector.multi_reduction <add>, %416, %cst_122 [1] : vector<8x384xf32> to vector<8xf32>
    %418 = vector.shape_cast %417 : vector<8xf32> to vector<8x1xf32>
    %cst_123 = arith.constant 0.0036764706 : f32
    %419 = vector.broadcast %cst_123 : f32 to vector<8x1xf32>
    %420 = arith.mulf %418, %419 : vector<8x1xf32>
    %421 = arith.mulf %416, %416 : vector<8x384xf32>
    %cst_124 = arith.constant dense<0.000000e+00> : vector<8xf32>
    %422 = vector.multi_reduction <add>, %421, %cst_124 [1] : vector<8x384xf32> to vector<8xf32>
    %423 = vector.shape_cast %422 : vector<8xf32> to vector<8x1xf32>
    %cst_125 = arith.constant 0.0036764706 : f32
    %424 = vector.broadcast %cst_125 : f32 to vector<8x1xf32>
    %425 = arith.mulf %423, %424 : vector<8x1xf32>
    %426 = arith.mulf %420, %420 : vector<8x1xf32>
    %427 = arith.subf %425, %426 : vector<8x1xf32>
    %cst_126 = arith.constant 0.000000e+00 : f32
    %428 = vector.broadcast %cst_126 : f32 to vector<8x1xf32>
    %429 = arith.maximumf %427, %428 : vector<8x1xf32>
    %430 = vector.broadcast %420 : vector<8x1xf32> to vector<8x384xf32>
    %431 = arith.subf %416, %430 : vector<8x384xf32>
    %cst_127 = arith.constant 9.99999974E-6 : f32
    %432 = vector.broadcast %cst_127 : f32 to vector<8x1xf32>
    %433 = arith.addf %429, %432 : vector<8x1xf32>
    %434 = math.rsqrt %433 : vector<8x1xf32>
    %435 = vector.broadcast %434 : vector<8x1xf32> to vector<8x384xf32>
    %436 = arith.mulf %431, %435 : vector<8x384xf32>
    %437 = vector.extract_strided_slice %411 {offsets = [1, 0], sizes = [1, 384], strides = [1, 1]} : vector<8x384xf32> to vector<1x384xf32>
    %438 = vector.broadcast %437 : vector<1x384xf32> to vector<8x384xf32>
    %439 = arith.mulf %436, %438 : vector<8x384xf32>
    %440 = vector.extract_strided_slice %411 {offsets = [2, 0], sizes = [1, 384], strides = [1, 1]} : vector<8x384xf32> to vector<1x384xf32>
    %441 = vector.broadcast %440 : vector<1x384xf32> to vector<8x384xf32>
    %442 = arith.addf %439, %441 : vector<8x384xf32>
    %cst_128 = arith.constant 0.000000e+00 : f32
    %443 = vector.broadcast %cst_128 : f32 to vector<8x384xf32>
    %444 = arith.cmpf ogt, %442, %443 : vector<8x384xf32>
    %cst_129 = arith.constant 2.000000e-01 : f32
    %445 = vector.broadcast %cst_129 : f32 to vector<8x384xf32>
    %446 = arith.mulf %445, %442 : vector<8x384xf32>
    %447 = arith.select %444, %442, %446 : vector<8x384xi1>, vector<8x384xf32>
    %c2816 = arith.constant 2816 : index
    %c0_130 = arith.constant 0 : index
    %448 = vector.load %arg1[%c2816, %c0_130] : memref<3584x384xbf16, #tpu.memory_space<vmem>>, vector<384x384xbf16>
    %c96 = arith.constant 96 : index
    %c0_131 = arith.constant 0 : index
    %449 = vector.load %arg2[%c96, %c0_131] : memref<128x384xf32, #tpu.memory_space<vmem>>, vector<8x384xf32>
    %450 = arith.truncf %447 : vector<8x384xf32> to vector<8x384xbf16>
    %cst_132 = arith.constant dense<0.000000e+00> : vector<8x384xf32>
    %451 = tpu.matmul %450, %448, %cst_132 {dimension_numbers = #tpu.dot_dimension_numbers<[1], [0], [0], [1], [0, 0, 1, 1], [], []>} : vector<8x384xbf16>, vector<384x384xbf16>, vector<8x384xf32> -> vector<8x384xf32>
    %452 = vector.extract_strided_slice %449 {offsets = [0, 0], sizes = [1, 384], strides = [1, 1]} : vector<8x384xf32> to vector<1x384xf32>
    %453 = vector.broadcast %452 : vector<1x384xf32> to vector<8x384xf32>
    %454 = arith.addf %451, %453 : vector<8x384xf32>
    %cst_133 = arith.constant dense<0.000000e+00> : vector<8xf32>
    %455 = vector.multi_reduction <add>, %454, %cst_133 [1] : vector<8x384xf32> to vector<8xf32>
    %456 = vector.shape_cast %455 : vector<8xf32> to vector<8x1xf32>
    %cst_134 = arith.constant 0.013888889 : f32
    %457 = vector.broadcast %cst_134 : f32 to vector<8x1xf32>
    %458 = arith.mulf %456, %457 : vector<8x1xf32>
    %459 = arith.mulf %454, %454 : vector<8x384xf32>
    %cst_135 = arith.constant dense<0.000000e+00> : vector<8xf32>
    %460 = vector.multi_reduction <add>, %459, %cst_135 [1] : vector<8x384xf32> to vector<8xf32>
    %461 = vector.shape_cast %460 : vector<8xf32> to vector<8x1xf32>
    %cst_136 = arith.constant 0.013888889 : f32
    %462 = vector.broadcast %cst_136 : f32 to vector<8x1xf32>
    %463 = arith.mulf %461, %462 : vector<8x1xf32>
    %464 = arith.mulf %458, %458 : vector<8x1xf32>
    %465 = arith.subf %463, %464 : vector<8x1xf32>
    %cst_137 = arith.constant 0.000000e+00 : f32
    %466 = vector.broadcast %cst_137 : f32 to vector<8x1xf32>
    %467 = arith.maximumf %465, %466 : vector<8x1xf32>
    %468 = vector.broadcast %458 : vector<8x1xf32> to vector<8x384xf32>
    %469 = arith.subf %454, %468 : vector<8x384xf32>
    %cst_138 = arith.constant 9.99999974E-6 : f32
    %470 = vector.broadcast %cst_138 : f32 to vector<8x1xf32>
    %471 = arith.addf %467, %470 : vector<8x1xf32>
    %472 = math.rsqrt %471 : vector<8x1xf32>
    %473 = vector.broadcast %472 : vector<8x1xf32> to vector<8x384xf32>
    %474 = arith.mulf %469, %473 : vector<8x384xf32>
    %475 = vector.extract_strided_slice %449 {offsets = [1, 0], sizes = [1, 384], strides = [1, 1]} : vector<8x384xf32> to vector<1x384xf32>
    %476 = vector.broadcast %475 : vector<1x384xf32> to vector<8x384xf32>
    %477 = arith.mulf %474, %476 : vector<8x384xf32>
    %478 = vector.extract_strided_slice %449 {offsets = [2, 0], sizes = [1, 384], strides = [1, 1]} : vector<8x384xf32> to vector<1x384xf32>
    %479 = vector.broadcast %478 : vector<1x384xf32> to vector<8x384xf32>
    %480 = arith.addf %477, %479 : vector<8x384xf32>
    %cst_139 = arith.constant 0.000000e+00 : f32
    %481 = vector.broadcast %cst_139 : f32 to vector<8x384xf32>
    %482 = arith.cmpf ogt, %480, %481 : vector<8x384xf32>
    %cst_140 = arith.constant 2.000000e-01 : f32
    %483 = vector.broadcast %cst_140 : f32 to vector<8x384xf32>
    %484 = arith.mulf %483, %480 : vector<8x384xf32>
    %485 = arith.select %482, %480, %484 : vector<8x384xi1>, vector<8x384xf32>
    %c3200 = arith.constant 3200 : index
    %c0_141 = arith.constant 0 : index
    %486 = vector.load %arg1[%c3200, %c0_141] : memref<3584x384xbf16, #tpu.memory_space<vmem>>, vector<128x384xbf16>
    %c104 = arith.constant 104 : index
    %c0_142 = arith.constant 0 : index
    %487 = vector.load %arg2[%c104, %c0_142] : memref<128x384xf32, #tpu.memory_space<vmem>>, vector<8x384xf32>
    %488 = vector.extract_strided_slice %485 {offsets = [0, 0], sizes = [8, 128], strides = [1, 1]} : vector<8x384xf32> to vector<8x128xf32>
    %489 = arith.truncf %488 : vector<8x128xf32> to vector<8x128xbf16>
    %cst_143 = arith.constant dense<0.000000e+00> : vector<8x384xf32>
    %490 = tpu.matmul %489, %486, %cst_143 {dimension_numbers = #tpu.dot_dimension_numbers<[1], [0], [0], [1], [0, 0, 1, 1], [], []>} : vector<8x128xbf16>, vector<128x384xbf16>, vector<8x384xf32> -> vector<8x384xf32>
    %491 = vector.extract_strided_slice %487 {offsets = [0, 0], sizes = [1, 384], strides = [1, 1]} : vector<8x384xf32> to vector<1x384xf32>
    %492 = vector.broadcast %491 : vector<1x384xf32> to vector<8x384xf32>
    %493 = arith.addf %490, %492 : vector<8x384xf32>
    %cst_144 = arith.constant dense<0.000000e+00> : vector<8xf32>
    %494 = vector.multi_reduction <add>, %493, %cst_144 [1] : vector<8x384xf32> to vector<8xf32>
    %495 = vector.shape_cast %494 : vector<8xf32> to vector<8x1xf32>
    %cst_145 = arith.constant 6.250000e-02 : f32
    %496 = vector.broadcast %cst_145 : f32 to vector<8x1xf32>
    %497 = arith.mulf %495, %496 : vector<8x1xf32>
    %498 = arith.mulf %493, %493 : vector<8x384xf32>
    %cst_146 = arith.constant dense<0.000000e+00> : vector<8xf32>
    %499 = vector.multi_reduction <add>, %498, %cst_146 [1] : vector<8x384xf32> to vector<8xf32>
    %500 = vector.shape_cast %499 : vector<8xf32> to vector<8x1xf32>
    %cst_147 = arith.constant 6.250000e-02 : f32
    %501 = vector.broadcast %cst_147 : f32 to vector<8x1xf32>
    %502 = arith.mulf %500, %501 : vector<8x1xf32>
    %503 = arith.mulf %497, %497 : vector<8x1xf32>
    %504 = arith.subf %502, %503 : vector<8x1xf32>
    %cst_148 = arith.constant 0.000000e+00 : f32
    %505 = vector.broadcast %cst_148 : f32 to vector<8x1xf32>
    %506 = arith.maximumf %504, %505 : vector<8x1xf32>
    %507 = vector.broadcast %497 : vector<8x1xf32> to vector<8x384xf32>
    %508 = arith.subf %493, %507 : vector<8x384xf32>
    %cst_149 = arith.constant 9.99999974E-6 : f32
    %509 = vector.broadcast %cst_149 : f32 to vector<8x1xf32>
    %510 = arith.addf %506, %509 : vector<8x1xf32>
    %511 = math.rsqrt %510 : vector<8x1xf32>
    %512 = vector.broadcast %511 : vector<8x1xf32> to vector<8x384xf32>
    %513 = arith.mulf %508, %512 : vector<8x384xf32>
    %514 = vector.extract_strided_slice %487 {offsets = [1, 0], sizes = [1, 384], strides = [1, 1]} : vector<8x384xf32> to vector<1x384xf32>
    %515 = vector.broadcast %514 : vector<1x384xf32> to vector<8x384xf32>
    %516 = arith.mulf %513, %515 : vector<8x384xf32>
    %517 = vector.extract_strided_slice %487 {offsets = [2, 0], sizes = [1, 384], strides = [1, 1]} : vector<8x384xf32> to vector<1x384xf32>
    %518 = vector.broadcast %517 : vector<1x384xf32> to vector<8x384xf32>
    %519 = arith.addf %516, %518 : vector<8x384xf32>
    %cst_150 = arith.constant 0.000000e+00 : f32
    %520 = vector.broadcast %cst_150 : f32 to vector<8x384xf32>
    %521 = arith.cmpf ogt, %519, %520 : vector<8x384xf32>
    %cst_151 = arith.constant 2.000000e-01 : f32
    %522 = vector.broadcast %cst_151 : f32 to vector<8x384xf32>
    %523 = arith.mulf %522, %519 : vector<8x384xf32>
    %524 = arith.select %521, %519, %523 : vector<8x384xi1>, vector<8x384xf32>
    %c3328 = arith.constant 3328 : index
    %c0_152 = arith.constant 0 : index
    %525 = vector.load %arg1[%c3328, %c0_152] : memref<3584x384xbf16, #tpu.memory_space<vmem>>, vector<128x384xbf16>
    %c112 = arith.constant 112 : index
    %c0_153 = arith.constant 0 : index
    %526 = vector.load %arg2[%c112, %c0_153] : memref<128x384xf32, #tpu.memory_space<vmem>>, vector<8x384xf32>
    %527 = vector.extract_strided_slice %524 {offsets = [0, 0], sizes = [8, 128], strides = [1, 1]} : vector<8x384xf32> to vector<8x128xf32>
    %528 = arith.truncf %527 : vector<8x128xf32> to vector<8x128xbf16>
    %cst_154 = arith.constant dense<0.000000e+00> : vector<8x384xf32>
    %529 = tpu.matmul %528, %525, %cst_154 {dimension_numbers = #tpu.dot_dimension_numbers<[1], [0], [0], [1], [0, 0, 1, 1], [], []>} : vector<8x128xbf16>, vector<128x384xbf16>, vector<8x384xf32> -> vector<8x384xf32>
    %530 = vector.extract_strided_slice %526 {offsets = [0, 0], sizes = [1, 384], strides = [1, 1]} : vector<8x384xf32> to vector<1x384xf32>
    %531 = vector.broadcast %530 : vector<1x384xf32> to vector<8x384xf32>
    %532 = arith.addf %529, %531 : vector<8x384xf32>
    %cst_155 = arith.constant dense<0.000000e+00> : vector<8xf32>
    %533 = vector.multi_reduction <add>, %532, %cst_155 [1] : vector<8x384xf32> to vector<8xf32>
    %534 = vector.shape_cast %533 : vector<8xf32> to vector<8x1xf32>
    %cst_156 = arith.constant 1.250000e-01 : f32
    %535 = vector.broadcast %cst_156 : f32 to vector<8x1xf32>
    %536 = arith.mulf %534, %535 : vector<8x1xf32>
    %537 = arith.mulf %532, %532 : vector<8x384xf32>
    %cst_157 = arith.constant dense<0.000000e+00> : vector<8xf32>
    %538 = vector.multi_reduction <add>, %537, %cst_157 [1] : vector<8x384xf32> to vector<8xf32>
    %539 = vector.shape_cast %538 : vector<8xf32> to vector<8x1xf32>
    %cst_158 = arith.constant 1.250000e-01 : f32
    %540 = vector.broadcast %cst_158 : f32 to vector<8x1xf32>
    %541 = arith.mulf %539, %540 : vector<8x1xf32>
    %542 = arith.mulf %536, %536 : vector<8x1xf32>
    %543 = arith.subf %541, %542 : vector<8x1xf32>
    %cst_159 = arith.constant 0.000000e+00 : f32
    %544 = vector.broadcast %cst_159 : f32 to vector<8x1xf32>
    %545 = arith.maximumf %543, %544 : vector<8x1xf32>
    %546 = vector.broadcast %536 : vector<8x1xf32> to vector<8x384xf32>
    %547 = arith.subf %532, %546 : vector<8x384xf32>
    %cst_160 = arith.constant 9.99999974E-6 : f32
    %548 = vector.broadcast %cst_160 : f32 to vector<8x1xf32>
    %549 = arith.addf %545, %548 : vector<8x1xf32>
    %550 = math.rsqrt %549 : vector<8x1xf32>
    %551 = vector.broadcast %550 : vector<8x1xf32> to vector<8x384xf32>
    %552 = arith.mulf %547, %551 : vector<8x384xf32>
    %553 = vector.extract_strided_slice %526 {offsets = [1, 0], sizes = [1, 384], strides = [1, 1]} : vector<8x384xf32> to vector<1x384xf32>
    %554 = vector.broadcast %553 : vector<1x384xf32> to vector<8x384xf32>
    %555 = arith.mulf %552, %554 : vector<8x384xf32>
    %556 = vector.extract_strided_slice %526 {offsets = [2, 0], sizes = [1, 384], strides = [1, 1]} : vector<8x384xf32> to vector<1x384xf32>
    %557 = vector.broadcast %556 : vector<1x384xf32> to vector<8x384xf32>
    %558 = arith.addf %555, %557 : vector<8x384xf32>
    %cst_161 = arith.constant 0.000000e+00 : f32
    %559 = vector.broadcast %cst_161 : f32 to vector<8x384xf32>
    %560 = arith.cmpf ogt, %558, %559 : vector<8x384xf32>
    %cst_162 = arith.constant 2.000000e-01 : f32
    %561 = vector.broadcast %cst_162 : f32 to vector<8x384xf32>
    %562 = arith.mulf %561, %558 : vector<8x384xf32>
    %563 = arith.select %560, %558, %562 : vector<8x384xi1>, vector<8x384xf32>
    %c3456 = arith.constant 3456 : index
    %c0_163 = arith.constant 0 : index
    %564 = vector.load %arg1[%c3456, %c0_163] : memref<3584x384xbf16, #tpu.memory_space<vmem>>, vector<128x384xbf16>
    %c120 = arith.constant 120 : index
    %c0_164 = arith.constant 0 : index
    %565 = vector.load %arg2[%c120, %c0_164] : memref<128x384xf32, #tpu.memory_space<vmem>>, vector<8x384xf32>
    %566 = vector.extract_strided_slice %563 {offsets = [0, 0], sizes = [8, 128], strides = [1, 1]} : vector<8x384xf32> to vector<8x128xf32>
    %567 = arith.truncf %566 : vector<8x128xf32> to vector<8x128xbf16>
    %cst_165 = arith.constant dense<0.000000e+00> : vector<8x384xf32>
    %568 = tpu.matmul %567, %564, %cst_165 {dimension_numbers = #tpu.dot_dimension_numbers<[1], [0], [0], [1], [0, 0, 1, 1], [], []>} : vector<8x128xbf16>, vector<128x384xbf16>, vector<8x384xf32> -> vector<8x384xf32>
    %569 = vector.extract_strided_slice %565 {offsets = [0, 0], sizes = [1, 384], strides = [1, 1]} : vector<8x384xf32> to vector<1x384xf32>
    %570 = vector.broadcast %569 : vector<1x384xf32> to vector<8x384xf32>
    %571 = arith.addf %568, %570 : vector<8x384xf32>
    %cst_166 = arith.constant dense<0.000000e+00> : vector<8xf32>
    %572 = vector.multi_reduction <add>, %571, %cst_166 [1] : vector<8x384xf32> to vector<8xf32>
    %573 = vector.shape_cast %572 : vector<8xf32> to vector<8x1xf32>
    %cst_167 = arith.constant 2.000000e-01 : f32
    %574 = vector.broadcast %cst_167 : f32 to vector<8x1xf32>
    %575 = arith.mulf %573, %574 : vector<8x1xf32>
    %576 = arith.mulf %571, %571 : vector<8x384xf32>
    %cst_168 = arith.constant dense<0.000000e+00> : vector<8xf32>
    %577 = vector.multi_reduction <add>, %576, %cst_168 [1] : vector<8x384xf32> to vector<8xf32>
    %578 = vector.shape_cast %577 : vector<8xf32> to vector<8x1xf32>
    %cst_169 = arith.constant 2.000000e-01 : f32
    %579 = vector.broadcast %cst_169 : f32 to vector<8x1xf32>
    %580 = arith.mulf %578, %579 : vector<8x1xf32>
    %581 = arith.mulf %575, %575 : vector<8x1xf32>
    %582 = arith.subf %580, %581 : vector<8x1xf32>
    %cst_170 = arith.constant 0.000000e+00 : f32
    %583 = vector.broadcast %cst_170 : f32 to vector<8x1xf32>
    %584 = arith.maximumf %582, %583 : vector<8x1xf32>
    %585 = vector.broadcast %575 : vector<8x1xf32> to vector<8x384xf32>
    %586 = arith.subf %571, %585 : vector<8x384xf32>
    %cst_171 = arith.constant 9.99999974E-6 : f32
    %587 = vector.broadcast %cst_171 : f32 to vector<8x1xf32>
    %588 = arith.addf %584, %587 : vector<8x1xf32>
    %589 = math.rsqrt %588 : vector<8x1xf32>
    %590 = vector.broadcast %589 : vector<8x1xf32> to vector<8x384xf32>
    %591 = arith.mulf %586, %590 : vector<8x384xf32>
    %592 = vector.extract_strided_slice %565 {offsets = [1, 0], sizes = [1, 384], strides = [1, 1]} : vector<8x384xf32> to vector<1x384xf32>
    %593 = vector.broadcast %592 : vector<1x384xf32> to vector<8x384xf32>
    %594 = arith.mulf %591, %593 : vector<8x384xf32>
    %595 = vector.extract_strided_slice %565 {offsets = [2, 0], sizes = [1, 384], strides = [1, 1]} : vector<8x384xf32> to vector<1x384xf32>
    %596 = vector.broadcast %595 : vector<1x384xf32> to vector<8x384xf32>
    %597 = arith.addf %594, %596 : vector<8x384xf32>
    %cst_172 = arith.constant 0.000000e+00 : f32
    %598 = vector.broadcast %cst_172 : f32 to vector<8x384xf32>
    %599 = arith.cmpf ogt, %597, %598 : vector<8x384xf32>
    %cst_173 = arith.constant 2.000000e-01 : f32
    %600 = vector.broadcast %cst_173 : f32 to vector<8x384xf32>
    %601 = arith.mulf %600, %597 : vector<8x384xf32>
    %602 = arith.select %599, %597, %601 : vector<8x384xi1>, vector<8x384xf32>
    %603 = vector.extract_strided_slice %602 {offsets = [0, 0], sizes = [8, 128], strides = [1, 1]} : vector<8x384xf32> to vector<8x128xf32>
    %c0_174 = arith.constant 0 : index
    %c384_175 = arith.constant 384 : index
    %604 = vector.load %arg3[%c0_174, %c384_175] : memref<8x768xf32, #tpu.memory_space<vmem>>, vector<8x128xf32>
    tpu.vector_store %arg3[%c0_174, %c384_175], %603 {strides = array<i32>} : memref<8x768xf32, #tpu.memory_space<vmem>>, vector<8x128xf32>,
    %c0_176 = arith.constant 0 : index
    %c512 = arith.constant 512 : index
    %605 = vector.load %arg3[%c0_176, %c512] : memref<8x768xf32, #tpu.memory_space<vmem>>, vector<8x128xf32>
    tpu.vector_store %arg3[%c0_176, %c512], %203 {strides = array<i32>} : memref<8x768xf32, #tpu.memory_space<vmem>>, vector<8x128xf32>,
    %c0_177 = arith.constant 0 : index
    %c640 = arith.constant 640 : index
    %606 = vector.load %arg3[%c0_177, %c640] : memref<8x768xf32, #tpu.memory_space<vmem>>, vector<8x128xf32>
    tpu.vector_store %arg3[%c0_177, %c640], %204 {strides = array<i32>} : memref<8x768xf32, #tpu.memory_space<vmem>>, vector<8x128xf32>,
    return
  }
}

</mosaic_0001>

<llo_original>
// kernel: forward.1
$region0: #{forward.1}
  #allocation0 [shape = 'u32[]', space=smem, size = 0x4, offset = 0x4, fixed_abs, tag = 'smem constant byte address 0x4 - core index']
  #allocation1 [shape = 'u32[144,128]{1,0:T(1,128)}', space=vmem, size = 0x12000, scoped, tag = 'internal scratch']
  %s0 = inlined_call_operand.vmem [shape: f32[8,512], index: 0, kind: input, shape index: {}]
  %s1 = inlined_call_operand.hbm [shape: bf16[3584,384], index: 1, kind: input, shape index: {}]
  %s2 = inlined_call_operand.hbm [shape: f32[128,384], index: 2, kind: input, shape index: {}]
  %s3 = inlined_call_operand.vmem [shape: f32[8,768], index: 3, kind: output, shape index: {}]
  %s4 = sld [smem:[#allocation0]]
  $region30: #{forward.1} parent=0
    _
  %s6 = ssub.s32 1, %s4
  %s7 = scalar_select 0, %s6, %s4
  $region1: #{forward.1} parent=0
    #allocation2 [shape = 'u8[2752512]{0}', space=vmem, size = 0x2a0000, scoped, tag = 'input window, operand 1, single buffered']
    #allocation3 [shape = 's32[1]{0}', space=sflag, size = 0x4, scoped, tag = 'scoped memory for forward.1']
    #allocation4 [shape = 'u8[196608]{0}', space=vmem, size = 0x30000, scoped, tag = 'input window, operand 2, single buffered']
    #allocation5 [shape = 's32[1]{0}', space=sflag, size = 0x4, scoped, tag = 'scoped memory for forward.1']
    %8 = vsyncpa [#allocation3], 0
    %9 = vsyncpa [#allocation5], 0
    // Predicated region
    $region2: #{forward.1} parent=1 // pred_check
      _
    $region3: #{forward.1} parent=1 // pred_check_branch
      %11 = sbr.rel (0) target = $region5
    $region4: #{forward.1} parent=1 // pred_region
      _
    $region5: #{forward.1} parent=1 // pred_fallthru
      _
    // Predicated region
    $region6: #{forward.1} parent=1 // pred_check
      _
    $region7: #{forward.1} parent=1 // pred_check_branch
      %13 = sbr.rel (0) target = $region9
    $region8: #{forward.1} parent=1 // pred_region
      %s15 = ssub.s32 86016, 86016
      %16 = vsyncadd [#allocation3], %s15
      %s17 = sshll.u32 [#allocation2], 4
      %s18 = int_to_ptr.vmem [resolvable:$true] %s17
      %23 = dma.hbm_to_vmem [thread:$0]  %s1, 86016, %s18, [#allocation3], 192, 192, 12
    $region9: #{forward.1} parent=1 // pred_fallthru
      _
    // Predicated region
    $region10: #{forward.1} parent=1 // pred_check
      _
    $region11: #{forward.1} parent=1 // pred_check_branch
      %25 = sbr.rel (0) target = $region13
    $region12: #{forward.1} parent=1 // pred_region
      %s27 = ssub.s32 6144, 6144
      %28 = vsyncadd [#allocation5], %s27
      %s29 = sshll.u32 [#allocation4], 4
      %s30 = int_to_ptr.vmem [resolvable:$true] %s29
      %35 = dma.hbm_to_vmem [thread:$0]  %s2, 6144, %s30, [#allocation5], 384, 384, 24
    $region13: #{forward.1} parent=1 // pred_fallthru
      _
    // Predicated region
    $region14: #{forward.1} parent=1 // pred_check
      _
    $region15: #{forward.1} parent=1 // pred_check_branch
      %37 = sbr.rel (0) target = $region17
    $region16: #{forward.1} parent=1 // pred_region
      %38 = dma.done [#allocation3], 86016
    $region17: #{forward.1} parent=1 // pred_fallthru
      _
    // Predicated region
    $region18: #{forward.1} parent=1 // pred_check
      _
    $region19: #{forward.1} parent=1 // pred_check_branch
      %40 = sbr.rel (0) target = $region21
    $region20: #{forward.1} parent=1 // pred_region
      %41 = dma.done [#allocation5], 6144
    $region21: #{forward.1} parent=1 // pred_fallthru
      _
    %v43 = vld [vmem:[%s0] sm:$0xff]
    %v44 = vld [vmem:[%s0 + $0x8] sm:$0xff]
    %v45 = vld [vmem:[%s0 + $0x10] sm:$0xff]
    %v46 = vld [vmem:[%s0 + $0x18] sm:$0xff]
    %v47 = vld [vmem:[#allocation2] sm:$0xff]
    %v48 = vld [vmem:[#allocation2 + $0x8] sm:$0xf]
    %v49 = vld [vmem:[#allocation2 + $0xc] sm:$0xff]
    %v50 = vld [vmem:[#allocation2 + $0x14] sm:$0xf]
    %v51 = vld [vmem:[#allocation2 + $0x18] sm:$0xff]
    %v52 = vld [vmem:[#allocation2 + $0x20] sm:$0xf]
    %v53 = vld [vmem:[#allocation2 + $0x24] sm:$0xff]
    %v54 = vld [vmem:[#allocation2 + $0x2c] sm:$0xf]
    %v55 = vld [vmem:[#allocation2 + $0x30] sm:$0xff]
    %v56 = vld [vmem:[#allocation2 + $0x38] sm:$0xf]
    %v57 = vld [vmem:[#allocation2 + $0x3c] sm:$0xff]
    %v58 = vld [vmem:[#allocation2 + $0x44] sm:$0xf]
    %v59 = vld [vmem:[#allocation2 + $0x48] sm:$0xff]
    %v60 = vld [vmem:[#allocation2 + $0x50] sm:$0xf]
    %v61 = vld [vmem:[#allocation2 + $0x54] sm:$0xff]
    %v62 = vld [vmem:[#allocation2 + $0x5c] sm:$0xf]
    %v63 = vld [vmem:[#allocation2 + $0x60] sm:$0xff]
    %v64 = vld [vmem:[#allocation2 + $0x68] sm:$0xf]
    %v65 = vld [vmem:[#allocation2 + $0x6c] sm:$0xff]
    %v66 = vld [vmem:[#allocation2 + $0x74] sm:$0xf]
    %v67 = vld [vmem:[#allocation2 + $0x78] sm:$0xff]
    %v68 = vld [vmem:[#allocation2 + $0x80] sm:$0xf]
    %v69 = vld [vmem:[#allocation2 + $0x84] sm:$0xff]
    %v70 = vld [vmem:[#allocation2 + $0x8c] sm:$0xf]
    %v71 = vld [vmem:[#allocation2 + $0x90] sm:$0xff]
    %v72 = vld [vmem:[#allocation2 + $0x98] sm:$0xf]
    %v73 = vld [vmem:[#allocation2 + $0x9c] sm:$0xff]
    %v74 = vld [vmem:[#allocation2 + $0xa4] sm:$0xf]
    %v75 = vld [vmem:[#allocation2 + $0xa8] sm:$0xff]
    %v76 = vld [vmem:[#allocation2 + $0xb0] sm:$0xf]
    %v77 = vld [vmem:[#allocation2 + $0xb4] sm:$0xff]
    %v78 = vld [vmem:[#allocation2 + $0xbc] sm:$0xf]
    %v79 = vld [vmem:[#allocation2 + $0xc0] sm:$0xff]
    %v80 = vld [vmem:[#allocation2 + $0xc8] sm:$0xf]
    %v81 = vld [vmem:[#allocation2 + $0xcc] sm:$0xff]
    %v82 = vld [vmem:[#allocation2 + $0xd4] sm:$0xf]
    %v83 = vld [vmem:[#allocation2 + $0xd8] sm:$0xff]
    %v84 = vld [vmem:[#allocation2 + $0xe0] sm:$0xf]
    %v85 = vld [vmem:[#allocation2 + $0xe4] sm:$0xff]
    %v86 = vld [vmem:[#allocation2 + $0xec] sm:$0xf]
    %v87 = vld [vmem:[#allocation2 + $0xf0] sm:$0xff]
    %v88 = vld [vmem:[#allocation2 + $0xf8] sm:$0xf]
    %v89 = vld [vmem:[#allocation2 + $0xfc] sm:$0xff]
    %v90 = vld [vmem:[#allocation2 + $0x104] sm:$0xf]
    %v91 = vld [vmem:[#allocation2 + $0x108] sm:$0xff]
    %v92 = vld [vmem:[#allocation2 + $0x110] sm:$0xf]
    %v93 = vld [vmem:[#allocation2 + $0x114] sm:$0xff]
    %v94 = vld [vmem:[#allocation2 + $0x11c] sm:$0xf]
    %v95 = vld [vmem:[#allocation2 + $0x120] sm:$0xff]
    %v96 = vld [vmem:[#allocation2 + $0x128] sm:$0xf]
    %v97 = vld [vmem:[#allocation2 + $0x12c] sm:$0xff]
    %v98 = vld [vmem:[#allocation2 + $0x134] sm:$0xf]
    %v99 = vld [vmem:[#allocation2 + $0x138] sm:$0xff]
    %v100 = vld [vmem:[#allocation2 + $0x140] sm:$0xf]
    %v101 = vld [vmem:[#allocation2 + $0x144] sm:$0xff]
    %v102 = vld [vmem:[#allocation2 + $0x14c] sm:$0xf]
    %v103 = vld [vmem:[#allocation2 + $0x150] sm:$0xff]
    %v104 = vld [vmem:[#allocation2 + $0x158] sm:$0xf]
    %v105 = vld [vmem:[#allocation2 + $0x15c] sm:$0xff]
    %v106 = vld [vmem:[#allocation2 + $0x164] sm:$0xf]
    %v107 = vld [vmem:[#allocation2 + $0x168] sm:$0xff]
    %v108 = vld [vmem:[#allocation2 + $0x170] sm:$0xf]
    %v109 = vld [vmem:[#allocation2 + $0x174] sm:$0xff]
    %v110 = vld [vmem:[#allocation2 + $0x17c] sm:$0xf]
    %v111 = vld [vmem:[#allocation2 + $0x180] sm:$0xff]
    %v112 = vld [vmem:[#allocation2 + $0x188] sm:$0xf]
    %v113 = vld [vmem:[#allocation2 + $0x18c] sm:$0xff]
    %v114 = vld [vmem:[#allocation2 + $0x194] sm:$0xf]
    %v115 = vld [vmem:[#allocation2 + $0x198] sm:$0xff]
    %v116 = vld [vmem:[#allocation2 + $0x1a0] sm:$0xf]
    %v117 = vld [vmem:[#allocation2 + $0x1a4] sm:$0xff]
    %v118 = vld [vmem:[#allocation2 + $0x1ac] sm:$0xf]
    %v119 = vld [vmem:[#allocation2 + $0x1b0] sm:$0xff]
    %v120 = vld [vmem:[#allocation2 + $0x1b8] sm:$0xf]
    %v121 = vld [vmem:[#allocation2 + $0x1bc] sm:$0xff]
    %v122 = vld [vmem:[#allocation2 + $0x1c4] sm:$0xf]
    %v123 = vld [vmem:[#allocation2 + $0x1c8] sm:$0xff]
    %v124 = vld [vmem:[#allocation2 + $0x1d0] sm:$0xf]
    %v125 = vld [vmem:[#allocation2 + $0x1d4] sm:$0xff]
    %v126 = vld [vmem:[#allocation2 + $0x1dc] sm:$0xf]
    %v127 = vld [vmem:[#allocation2 + $0x1e0] sm:$0xff]
    %v128 = vld [vmem:[#allocation2 + $0x1e8] sm:$0xf]
    %v129 = vld [vmem:[#allocation2 + $0x1ec] sm:$0xff]
    %v130 = vld [vmem:[#allocation2 + $0x1f4] sm:$0xf]
    %v131 = vld [vmem:[#allocation2 + $0x1f8] sm:$0xff]
    %v132 = vld [vmem:[#allocation2 + $0x200] sm:$0xf]
    %v133 = vld [vmem:[#allocation2 + $0x204] sm:$0xff]
    %v134 = vld [vmem:[#allocation2 + $0x20c] sm:$0xf]
    %v135 = vld [vmem:[#allocation2 + $0x210] sm:$0xff]
    %v136 = vld [vmem:[#allocation2 + $0x218] sm:$0xf]
    %v137 = vld [vmem:[#allocation2 + $0x21c] sm:$0xff]
    %v138 = vld [vmem:[#allocation2 + $0x224] sm:$0xf]
    %v139 = vld [vmem:[#allocation2 + $0x228] sm:$0xff]
    %v140 = vld [vmem:[#allocation2 + $0x230] sm:$0xf]
    %v141 = vld [vmem:[#allocation2 + $0x234] sm:$0xff]
    %v142 = vld [vmem:[#allocation2 + $0x23c] sm:$0xf]
    %v143 = vld [vmem:[#allocation4] sm:$0xff]
    %v144 = vld [vmem:[#allocation4 + $0x8] sm:$0xff]
    %v145 = vld [vmem:[#allocation4 + $0x10] sm:$0xff]
    %v146 = vpack.c.bf16 %v43, %v43
    %v147 = vpack.c.bf16 %v44, %v44
    %v148 = vpack.c.bf16 %v45, %v45
    %v149 = vlaneseq
    %v150 = vshrl.u32 %v149, 7
    %v151 = vsub.s32 0, %v150
    %v152 = vrot.slane %v143, %v151
    %v153 = vlaneseq
    %v154 = vshrl.u32 %v153, 7
    %v155 = vsub.s32 0, %v154
    %v156 = vrot.slane %v144, %v155
    %v157 = vlaneseq
    %v158 = vshrl.u32 %v157, 7
    %v159 = vsub.s32 0, %v158
    %v160 = vrot.slane %v145, %v159
    %v257 = vunpack.c.l.b16 %v47
    %v258 = vunpack.c.h.b16 %v47
    %v259 = vunpack.c.l.b16 %v48
    %v260 = vunpack.c.l.b16 %v49
    %v261 = vunpack.c.h.b16 %v49
    %v262 = vunpack.c.l.b16 %v50
    %v263 = vunpack.c.l.b16 %v51
    %v264 = vunpack.c.h.b16 %v51
    %v265 = vunpack.c.l.b16 %v52
    %v266 = vunpack.c.l.b16 %v53
    %v267 = vunpack.c.h.b16 %v53
    %v268 = vunpack.c.l.b16 %v54
    %v269 = vunpack.c.l.b16 %v55
    %v270 = vunpack.c.h.b16 %v55
    %v271 = vunpack.c.l.b16 %v56
    %v272 = vunpack.c.l.b16 %v57
    %v273 = vunpack.c.h.b16 %v57
    %v274 = vunpack.c.l.b16 %v58
    %v275 = vunpack.c.l.b16 %v59
    %v276 = vunpack.c.h.b16 %v59
    %v277 = vunpack.c.l.b16 %v60
    %v278 = vunpack.c.l.b16 %v61
    %v279 = vunpack.c.h.b16 %v61
    %v280 = vunpack.c.l.b16 %v62
    %v281 = vunpack.c.l.b16 %v63
    %v282 = vunpack.c.h.b16 %v63
    %v283 = vunpack.c.l.b16 %v64
    %v284 = vunpack.c.l.b16 %v65
    %v285 = vunpack.c.h.b16 %v65
    %v286 = vunpack.c.l.b16 %v66
    %v287 = vunpack.c.l.b16 %v67
    %v288 = vunpack.c.h.b16 %v67
    %v289 = vunpack.c.l.b16 %v68
    %v290 = vunpack.c.l.b16 %v69
    %v291 = vunpack.c.h.b16 %v69
    %v292 = vunpack.c.l.b16 %v70
    %v293 = vunpack.c.l.b16 %v71
    %v294 = vunpack.c.h.b16 %v71
    %v295 = vunpack.c.l.b16 %v72
    %v296 = vunpack.c.l.b16 %v73
    %v297 = vunpack.c.h.b16 %v73
    %v298 = vunpack.c.l.b16 %v74
    %v299 = vunpack.c.l.b16 %v75
    %v300 = vunpack.c.h.b16 %v75
    %v301 = vunpack.c.l.b16 %v76
    %v302 = vunpack.c.l.b16 %v77
    %v303 = vunpack.c.h.b16 %v77
    %v304 = vunpack.c.l.b16 %v78
    %v305 = vunpack.c.l.b16 %v79
    %v306 = vunpack.c.h.b16 %v79
    %v307 = vunpack.c.l.b16 %v80
    %v308 = vunpack.c.l.b16 %v81
    %v309 = vunpack.c.h.b16 %v81
    %v310 = vunpack.c.l.b16 %v82
    %v311 = vunpack.c.l.b16 %v83
    %v312 = vunpack.c.h.b16 %v83
    %v313 = vunpack.c.l.b16 %v84
    %v314 = vunpack.c.l.b16 %v85
    %v315 = vunpack.c.h.b16 %v85
    %v316 = vunpack.c.l.b16 %v86
    %v317 = vunpack.c.l.b16 %v87
    %v318 = vunpack.c.h.b16 %v87
    %v319 = vunpack.c.l.b16 %v88
    %v320 = vunpack.c.l.b16 %v89
    %v321 = vunpack.c.h.b16 %v89
    %v322 = vunpack.c.l.b16 %v90
    %v323 = vunpack.c.l.b16 %v91
    %v324 = vunpack.c.h.b16 %v91
    %v325 = vunpack.c.l.b16 %v92
    %v326 = vunpack.c.l.b16 %v93
    %v327 = vunpack.c.h.b16 %v93
    %v328 = vunpack.c.l.b16 %v94
    %v329 = vunpack.c.l.b16 %v95
    %v330 = vunpack.c.h.b16 %v95
    %v331 = vunpack.c.l.b16 %v96
    %v332 = vunpack.c.l.b16 %v97
    %v333 = vunpack.c.h.b16 %v97
    %v334 = vunpack.c.l.b16 %v98
    %v335 = vunpack.c.l.b16 %v99
    %v336 = vunpack.c.h.b16 %v99
    %v337 = vunpack.c.l.b16 %v100
    %v338 = vunpack.c.l.b16 %v101
    %v339 = vunpack.c.h.b16 %v101
    %v340 = vunpack.c.l.b16 %v102
    %v341 = vunpack.c.l.b16 %v103
    %v342 = vunpack.c.h.b16 %v103
    %v343 = vunpack.c.l.b16 %v104
    %v344 = vunpack.c.l.b16 %v105
    %v345 = vunpack.c.h.b16 %v105
    %v346 = vunpack.c.l.b16 %v106
    %v347 = vunpack.c.l.b16 %v107
    %v348 = vunpack.c.h.b16 %v107
    %v349 = vunpack.c.l.b16 %v108
    %v350 = vunpack.c.l.b16 %v109
    %v351 = vunpack.c.h.b16 %v109
    %v352 = vunpack.c.l.b16 %v110
    %v353 = vunpack.c.l.b16 %v111
    %v354 = vunpack.c.h.b16 %v111
    %v355 = vunpack.c.l.b16 %v112
    %v356 = vunpack.c.l.b16 %v113
    %v357 = vunpack.c.h.b16 %v113
    %v358 = vunpack.c.l.b16 %v114
    %v359 = vunpack.c.l.b16 %v115
    %v360 = vunpack.c.h.b16 %v115
    %v361 = vunpack.c.l.b16 %v116
    %v362 = vunpack.c.l.b16 %v117
    %v363 = vunpack.c.h.b16 %v117
    %v364 = vunpack.c.l.b16 %v118
    %v365 = vunpack.c.l.b16 %v119
    %v366 = vunpack.c.h.b16 %v119
    %v367 = vunpack.c.l.b16 %v120
    %v368 = vunpack.c.l.b16 %v121
    %v369 = vunpack.c.h.b16 %v121
    %v370 = vunpack.c.l.b16 %v122
    %v371 = vunpack.c.l.b16 %v123
    %v372 = vunpack.c.h.b16 %v123
    %v373 = vunpack.c.l.b16 %v124
    %v374 = vunpack.c.l.b16 %v125
    %v375 = vunpack.c.h.b16 %v125
    %v376 = vunpack.c.l.b16 %v126
    %v377 = vunpack.c.l.b16 %v127
    %v378 = vunpack.c.h.b16 %v127
    %v379 = vunpack.c.l.b16 %v128
    %v380 = vunpack.c.l.b16 %v129
    %v381 = vunpack.c.h.b16 %v129
    %v382 = vunpack.c.l.b16 %v130
    %v383 = vunpack.c.l.b16 %v131
    %v384 = vunpack.c.h.b16 %v131
    %v385 = vunpack.c.l.b16 %v132
    %v386 = vunpack.c.l.b16 %v133
    %v387 = vunpack.c.h.b16 %v133
    %v388 = vunpack.c.l.b16 %v134
    %v389 = vunpack.c.l.b16 %v135
    %v390 = vunpack.c.h.b16 %v135
    %v391 = vunpack.c.l.b16 %v136
    %v392 = vunpack.c.l.b16 %v137
    %v393 = vunpack.c.h.b16 %v137
    %v394 = vunpack.c.l.b16 %v138
    %v395 = vunpack.c.l.b16 %v139
    %v396 = vunpack.c.h.b16 %v139
    %v397 = vunpack.c.l.b16 %v140
    %v398 = vunpack.c.l.b16 %v141
    %v399 = vunpack.c.h.b16 %v141
    %v400 = vunpack.c.l.b16 %v142
    %v401 = vpack.c.b16 %v260, %v257
    %v402 = vpack.c.b16 %v261, %v258
    %v403 = vpack.c.b16 %v262, %v259
    %v404 = vpack.c.b16 %v266, %v263
    %v405 = vpack.c.b16 %v267, %v264
    %v406 = vpack.c.b16 %v268, %v265
    %v407 = vpack.c.b16 %v272, %v269
    %v408 = vpack.c.b16 %v273, %v270
    %v409 = vpack.c.b16 %v274, %v271
    %v410 = vpack.c.b16 %v278, %v275
    %v411 = vpack.c.b16 %v279, %v276
    %v412 = vpack.c.b16 %v280, %v277
    %v413 = vpack.c.b16 %v284, %v281
    %v414 = vpack.c.b16 %v285, %v282
    %v415 = vpack.c.b16 %v286, %v283
    %v416 = vpack.c.b16 %v290, %v287
    %v417 = vpack.c.b16 %v291, %v288
    %v418 = vpack.c.b16 %v292, %v289
    %v419 = vpack.c.b16 %v296, %v293
    %v420 = vpack.c.b16 %v297, %v294
    %v421 = vpack.c.b16 %v298, %v295
    %v422 = vpack.c.b16 %v302, %v299
    %v423 = vpack.c.b16 %v303, %v300
    %v424 = vpack.c.b16 %v304, %v301
    %v425 = vpack.c.b16 %v308, %v305
    %v426 = vpack.c.b16 %v309, %v306
    %v427 = vpack.c.b16 %v310, %v307
    %v428 = vpack.c.b16 %v314, %v311
    %v429 = vpack.c.b16 %v315, %v312
    %v430 = vpack.c.b16 %v316, %v313
    %v431 = vpack.c.b16 %v320, %v317
    %v432 = vpack.c.b16 %v321, %v318
    %v433 = vpack.c.b16 %v322, %v319
    %v434 = vpack.c.b16 %v326, %v323
    %v435 = vpack.c.b16 %v327, %v324
    %v436 = vpack.c.b16 %v328, %v325
    %v437 = vpack.c.b16 %v332, %v329
    %v438 = vpack.c.b16 %v333, %v330
    %v439 = vpack.c.b16 %v334, %v331
    %v440 = vpack.c.b16 %v338, %v335
    %v441 = vpack.c.b16 %v339, %v336
    %v442 = vpack.c.b16 %v340, %v337
    %v443 = vpack.c.b16 %v344, %v341
    %v444 = vpack.c.b16 %v345, %v342
    %v445 = vpack.c.b16 %v346, %v343
    %v446 = vpack.c.b16 %v350, %v347
    %v447 = vpack.c.b16 %v351, %v348
    %v448 = vpack.c.b16 %v352, %v349
    %v449 = vpack.c.b16 %v356, %v353
    %v450 = vpack.c.b16 %v357, %v354
    %v451 = vpack.c.b16 %v358, %v355
    %v452 = vpack.c.b16 %v362, %v359
    %v453 = vpack.c.b16 %v363, %v360
    %v454 = vpack.c.b16 %v364, %v361
    %v455 = vpack.c.b16 %v368, %v365
    %v456 = vpack.c.b16 %v369, %v366
    %v457 = vpack.c.b16 %v370, %v367
    %v458 = vpack.c.b16 %v374, %v371
    %v459 = vpack.c.b16 %v375, %v372
    %v460 = vpack.c.b16 %v376, %v373
    %v461 = vpack.c.b16 %v380, %v377
    %v462 = vpack.c.b16 %v381, %v378
    %v463 = vpack.c.b16 %v382, %v379
    %v464 = vpack.c.b16 %v386, %v383
    %v465 = vpack.c.b16 %v387, %v384
    %v466 = vpack.c.b16 %v388, %v385
    %v467 = vpack.c.b16 %v392, %v389
    %v468 = vpack.c.b16 %v393, %v390
    %v469 = vpack.c.b16 %v394, %v391
    %v470 = vpack.c.b16 %v398, %v395
    %v471 = vpack.c.b16 %v399, %v396
    %v472 = vpack.c.b16 %v400, %v397
    %545 = vmatprep.subr.bf16.mxu0 %v402
    %546 = vmatpush1.bf16.msra.mxu0 %v401
    %547 = vmatprep.subr.bf16.mxu0 %v405
    %548 = vmatpush1.bf16.msra.mxu0 %v404
    %549 = vmatprep.subr.bf16.mxu0 %v408
    %550 = vmatpush1.bf16.msra.mxu0 %v407
    %551 = vmatprep.subr.bf16.mxu0 %v411
    %552 = vmatpush1.bf16.msra.mxu0 %v410
    %553 = vmatprep.subr.bf16.mxu0 %v414
    %554 = vmatpush1.bf16.msra.mxu0 %v413
    %555 = vmatprep.subr.bf16.mxu0 %v417
    %556 = vmatpush1.bf16.msra.mxu0 %v416
    %557 = vmatprep.subr.bf16.mxu0 %v420
    %558 = vmatpush1.bf16.msra.mxu0 %v419
    %559 = vmatprep.subr.bf16.mxu0 %v423
    %560 = vmatpush1.bf16.msra.mxu0 %v422
    %561 = vmatprep.subr.bf16.mxu0 %v426
    %562 = vmatpush1.bf16.msra.mxu0 %v425
    %563 = vmatprep.subr.bf16.mxu0 %v429
    %564 = vmatpush1.bf16.msra.mxu0 %v428
    %565 = vmatprep.subr.bf16.mxu0 %v432
    %566 = vmatpush1.bf16.msra.mxu0 %v431
    %567 = vmatprep.subr.bf16.mxu0 %v435
    %568 = vmatpush1.bf16.msra.mxu0 %v434
    %569 = vmatprep.subr.bf16.mxu0 %v438
    %570 = vmatpush1.bf16.msra.mxu0 %v437
    %571 = vmatprep.subr.bf16.mxu0 %v441
    %572 = vmatpush1.bf16.msra.mxu0 %v440
    %573 = vmatprep.subr.bf16.mxu0 %v444
    %574 = vmatpush1.bf16.msra.mxu0 %v443
    %575 = vmatprep.subr.bf16.mxu0 %v447
    %576 = vmatpush1.bf16.msra.mxu0 %v446
    %577 = vmatprep.mubr.bf16.mxu0 %v147
    %578 = vmatmul.mubr.bf16.gmra.mrb[0].mxu0 %v146
    %v579 = vpop.f32.mrb[0].mxu0
    %v580 = vadd.f32 %v152, %v579
    %v581 = vpop.f32.mrb[0].mxu0
    %v582 = vadd.f32 %v156, %v581
    %v583 = vpop.f32.mrb[0].mxu0
    %v584 = vpop.f32.mrb[0].mxu0
    %585 = vdwg.mxu0
    %586 = vmatprep.subr.bf16.mxu0 %v450
    %587 = vmatpush1.bf16.msra.mxu0 %v449
    %588 = vmatprep.subr.bf16.mxu0 %v453
    %589 = vmatpush1.bf16.msra.mxu0 %v452
    %590 = vmatprep.subr.bf16.mxu0 %v456
    %591 = vmatpush1.bf16.msra.mxu0 %v455
    %592 = vmatprep.subr.bf16.mxu0 %v459
    %593 = vmatpush1.bf16.msra.mxu0 %v458
    %594 = vmatprep.subr.bf16.mxu0 %v462
    %595 = vmatpush1.bf16.msra.mxu0 %v461
    %596 = vmatprep.subr.bf16.mxu0 %v465
    %597 = vmatpush1.bf16.msra.mxu0 %v464
    %598 = vmatprep.subr.bf16.mxu0 %v468
    %599 = vmatpush1.bf16.msra.mxu0 %v467
    %600 = vmatprep.subr.bf16.mxu0 %v471
    %601 = vmatpush1.bf16.msra.mxu0 %v470
    %602 = vmatprep.subr.bf16.mxu0 0
    %603 = vmatpush1.bf16.msra.mxu0 0
    %604 = vmatprep.subr.bf16.mxu0 0
    %605 = vmatpush1.bf16.msra.mxu0 0
    %606 = vmatprep.subr.bf16.mxu0 0
    %607 = vmatpush1.bf16.msra.mxu0 0
    %608 = vmatprep.subr.bf16.mxu0 0
    %609 = vmatpush1.bf16.msra.mxu0 0
    %610 = vmatprep.subr.bf16.mxu0 0
    %611 = vmatpush1.bf16.msra.mxu0 0
    %612 = vmatprep.subr.bf16.mxu0 0
    %613 = vmatpush1.bf16.msra.mxu0 0
    %614 = vmatprep.subr.bf16.mxu0 0
    %615 = vmatpush1.bf16.msra.mxu0 0
    %616 = vmatprep.subr.bf16.mxu0 0
    %617 = vmatpush1.bf16.msra.mxu0 0
    %618 = vmatprep.mubr.bf16.mxu0 0
    %619 = vmatmul.mubr.bf16.gmra.mrb[0].mxu0 %v148
    %v620 = vpop.f32.mrb[0].mxu0
    %v621 = vadd.f32 %v580, %v620
    %v622 = vpop.f32.mrb[0].mxu0
    %v623 = vadd.f32 %v582, %v622
    %v624 = vpop.f32.mrb[0].mxu0
    %v625 = vpop.f32.mrb[0].mxu0
    %626 = vdwg.mxu0
    %627 = vmatprep.subr.bf16.mxu0 0
    %628 = vmatpush1.bf16.msra.mxu0 %v403
    %629 = vmatprep.subr.bf16.mxu0 0
    %630 = vmatpush1.bf16.msra.mxu0 %v406
    %631 = vmatprep.subr.bf16.mxu0 0
    %632 = vmatpush1.bf16.msra.mxu0 %v409
    %633 = vmatprep.subr.bf16.mxu0 0
    %634 = vmatpush1.bf16.msra.mxu0 %v412
    %635 = vmatprep.subr.bf16.mxu0 0
    %636 = vmatpush1.bf16.msra.mxu0 %v415
    %637 = vmatprep.subr.bf16.mxu0 0
    %638 = vmatpush1.bf16.msra.mxu0 %v418
    %639 = vmatprep.subr.bf16.mxu0 0
    %640 = vmatpush1.bf16.msra.mxu0 %v421
    %641 = vmatprep.subr.bf16.mxu0 0
    %642 = vmatpush1.bf16.msra.mxu0 %v424
    %643 = vmatprep.subr.bf16.mxu0 0
    %644 = vmatpush1.bf16.msra.mxu0 %v427
    %645 = vmatprep.subr.bf16.mxu0 0
    %646 = vmatpush1.bf16.msra.mxu0 %v430
    %647 = vmatprep.subr.bf16.mxu0 0
    %648 = vmatpush1.bf16.msra.mxu0 %v433
    %649 = vmatprep.subr.bf16.mxu0 0
    %650 = vmatpush1.bf16.msra.mxu0 %v436
    %651 = vmatprep.subr.bf16.mxu0 0
    %652 = vmatpush1.bf16.msra.mxu0 %v439
    %653 = vmatprep.subr.bf16.mxu0 0
    %654 = vmatpush1.bf16.msra.mxu0 %v442
    %655 = vmatprep.subr.bf16.mxu0 0
    %656 = vmatpush1.bf16.msra.mxu0 %v445
    %657 = vmatprep.subr.bf16.mxu0 0
    %658 = vmatpush1.bf16.msra.mxu0 %v448
    %659 = vmatprep.mubr.bf16.mxu0 %v147
    %660 = vmatmul.mubr.bf16.gmra.mrb[0].mxu0 %v146
    %v661 = vpop.f32.mrb[0].mxu0
    %v662 = vadd.f32 %v160, %v661
    %v663 = vpop.f32.mrb[0].mxu0
    %v664 = vpop.f32.mrb[0].mxu0
    %v665 = vpop.f32.mrb[0].mxu0
    %666 = vdwg.mxu0
    %667 = vmatprep.subr.bf16.mxu0 0
    %668 = vmatpush1.bf16.msra.mxu0 %v451
    %669 = vmatprep.subr.bf16.mxu0 0
    %670 = vmatpush1.bf16.msra.mxu0 %v454
    %671 = vmatprep.subr.bf16.mxu0 0
    %672 = vmatpush1.bf16.msra.mxu0 %v457
    %673 = vmatprep.subr.bf16.mxu0 0
    %674 = vmatpush1.bf16.msra.mxu0 %v460
    %675 = vmatprep.subr.bf16.mxu0 0
    %676 = vmatpush1.bf16.msra.mxu0 %v463
    %677 = vmatprep.subr.bf16.mxu0 0
    %678 = vmatpush1.bf16.msra.mxu0 %v466
    %679 = vmatprep.subr.bf16.mxu0 0
    %680 = vmatpush1.bf16.msra.mxu0 %v469
    %681 = vmatprep.subr.bf16.mxu0 0
    %682 = vmatpush1.bf16.msra.mxu0 %v472
    %683 = vmatprep.subr.bf16.mxu0 0
    %684 = vmatpush1.bf16.msra.mxu0 0
    %685 = vmatprep.subr.bf16.mxu0 0
    %686 = vmatpush1.bf16.msra.mxu0 0
    %687 = vmatprep.subr.bf16.mxu0 0
    %688 = vmatpush1.bf16.msra.mxu0 0
    %689 = vmatprep.subr.bf16.mxu0 0
    %690 = vmatpush1.bf16.msra.mxu0 0
    %691 = vmatprep.subr.bf16.mxu0 0
    %692 = vmatpush1.bf16.msra.mxu0 0
    %693 = vmatprep.subr.bf16.mxu0 0
    %694 = vmatpush1.bf16.msra.mxu0 0
    %695 = vmatprep.subr.bf16.mxu0 0
    %696 = vmatpush1.bf16.msra.mxu0 0
    %697 = vmatprep.subr.bf16.mxu0 0
    %698 = vmatpush1.bf16.msra.mxu0 0
    %699 = vmatprep.mubr.bf16.mxu0 0
    %700 = vmatmul.mubr.bf16.gmra.mrb[0].mxu0 %v148
    %v701 = vpop.f32.mrb[0].mxu0
    %v702 = vadd.f32 %v662, %v701
    %v703 = vpop.f32.mrb[0].mxu0
    %v704 = vpop.f32.mrb[0].mxu0
    %v705 = vpop.f32.mrb[0].mxu0
    %706 = vdwg.mxu0
    %v707 = vadd.f32 %v621, %v623
    %v708 = vadd.f32 %v707, %v702
    %709 = vadd.xlane.f32.xlu0 %v708
    %v710 = vpop.xlane.xlu0 %709
    %v711 = vmul.f32 %v710, 0.0036764706
    %v712 = vmul.f32 %v621, %v621
    %v713 = vmul.f32 %v623, %v623
    %v714 = vmul.f32 %v702, %v702
    %v715 = vadd.f32 %v712, %v713
    %v716 = vadd.f32 %v715, %v714
    %717 = vadd.xlane.f32.xlu0 %v716
    %v718 = vpop.xlane.xlu0 %717
    %v719 = vmul.f32 %v718, 0.0036764706
    %v720 = vmul.f32 %v711, %v711
    %v721 = vsub.f32 %v719, %v720
    %v722 = vmax.f32 %v721, 0.0
    %v723 = vsub.f32 %v621, %v711
    %v724 = vsub.f32 %v623, %v711
    %v725 = vsub.f32 %v702, %v711
    %v726 = vadd.f32 %v722, 1e-05
    %v727 = vrsqrt.pop %v726
    %v728 = vmul.f32 %v723, %v727
    %v729 = vmul.f32 %v724, %v727
    %v730 = vmul.f32 %v725, %v727
    %v731 = vlaneseq
    %v732 = vshrl.u32 %v731, 7
    %v733 = vsub.s32 1, %v732
    %v734 = vrot.slane %v143, %v733
    %v735 = vlaneseq
    %v736 = vshrl.u32 %v735, 7
    %v737 = vsub.s32 1, %v736
    %v738 = vrot.slane %v144, %v737
    %v739 = vlaneseq
    %v740 = vshrl.u32 %v739, 7
    %v741 = vsub.s32 1, %v740
    %v742 = vrot.slane %v145, %v741
    %v743 = vmul.f32 %v728, %v734
    %v744 = vmul.f32 %v729, %v738
    %v745 = vmul.f32 %v730, %v742
    %v746 = vlaneseq
    %v747 = vshrl.u32 %v746, 7
    %v748 = vsub.s32 2, %v747
    %v749 = vrot.slane %v143, %v748
    %v750 = vlaneseq
    %v751 = vshrl.u32 %v750, 7
    %v752 = vsub.s32 2, %v751
    %v753 = vrot.slane %v144, %v752
    %v754 = vlaneseq
    %v755 = vshrl.u32 %v754, 7
    %v756 = vsub.s32 2, %v755
    %v757 = vrot.slane %v145, %v756
    %v758 = vadd.f32 %v743, %v749
    %v759 = vadd.f32 %v744, %v753
    %v760 = vadd.f32 %v745, %v757
    %vm761 = vcmp.gt.f32.partialorder %v758, 0.0
    %vm762 = vcmp.gt.f32.partialorder %v759, 0.0
    %vm763 = vcmp.gt.f32.partialorder %v760, 0.0
    %v764 = vmul.f32 %v758, 0.2
    %v765 = vmul.f32 %v759, 0.2
    %v766 = vmul.f32 %v760, 0.2
    %v767 = vsel %vm761, %v758, %v764
    %v768 = vsel %vm762, %v759, %v765
    %v769 = vsel %vm763, %v760, %v766
    %v770 = vld [vmem:[#allocation2 + $0x240] sm:$0xff]
    %v771 = vld [vmem:[#allocation2 + $0x248] sm:$0xf]
    %v772 = vld [vmem:[#allocation2 + $0x24c] sm:$0xff]
    %v773 = vld [vmem:[#allocation2 + $0x254] sm:$0xf]
    %v774 = vld [vmem:[#allocation2 + $0x258] sm:$0xff]
    %v775 = vld [vmem:[#allocation2 + $0x260] sm:$0xf]
    %v776 = vld [vmem:[#allocation2 + $0x264] sm:$0xff]
    %v777 = vld [vmem:[#allocation2 + $0x26c] sm:$0xf]
    %v778 = vld [vmem:[#allocation2 + $0x270] sm:$0xff]
    %v779 = vld [vmem:[#allocation2 + $0x278] sm:$0xf]
    %v780 = vld [vmem:[#allocation2 + $0x27c] sm:$0xff]
    %v781 = vld [vmem:[#allocation2 + $0x284] sm:$0xf]
    %v782 = vld [vmem:[#allocation2 + $0x288] sm:$0xff]
    %v783 = vld [vmem:[#allocation2 + $0x290] sm:$0xf]
    %v784 = vld [vmem:[#allocation2 + $0x294] sm:$0xff]
    %v785 = vld [vmem:[#allocation2 + $0x29c] sm:$0xf]
    %v786 = vld [vmem:[#allocation2 + $0x2a0] sm:$0xff]
    %v787 = vld [vmem:[#allocation2 + $0x2a8] sm:$0xf]
    %v788 = vld [vmem:[#allocation2 + $0x2ac] sm:$0xff]
    %v789 = vld [vmem:[#allocation2 + $0x2b4] sm:$0xf]
    %v790 = vld [vmem:[#allocation2 + $0x2b8] sm:$0xff]
    %v791 = vld [vmem:[#allocation2 + $0x2c0] sm:$0xf]
    %v792 = vld [vmem:[#allocation2 + $0x2c4] sm:$0xff]
    %v793 = vld [vmem:[#allocation2 + $0x2cc] sm:$0xf]
    %v794 = vld [vmem:[#allocation2 + $0x2d0] sm:$0xff]
    %v795 = vld [vmem:[#allocation2 + $0x2d8] sm:$0xf]
    %v796 = vld [vmem:[#allocation2 + $0x2dc] sm:$0xff]
    %v797 = vld [vmem:[#allocation2 + $0x2e4] sm:$0xf]
    %v798 = vld [vmem:[#allocation2 + $0x2e8] sm:$0xff]
    %v799 = vld [vmem:[#allocation2 + $0x2f0] sm:$0xf]
    %v800 = vld [vmem:[#allocation2 + $0x2f4] sm:$0xff]
    %v801 = vld [vmem:[#allocation2 + $0x2fc] sm:$0xf]
    %v802 = vld [vmem:[#allocation2 + $0x300] sm:$0xff]
    %v803 = vld [vmem:[#allocation2 + $0x308] sm:$0xf]
    %v804 = vld [vmem:[#allocation2 + $0x30c] sm:$0xff]
    %v805 = vld [vmem:[#allocation2 + $0x314] sm:$0xf]
    %v806 = vld [vmem:[#allocation2 + $0x318] sm:$0xff]
    %v807 = vld [vmem:[#allocation2 + $0x320] sm:$0xf]
    %v808 = vld [vmem:[#allocation2 + $0x324] sm:$0xff]
    %v809 = vld [vmem:[#allocation2 + $0x32c] sm:$0xf]
    %v810 = vld [vmem:[#allocation2 + $0x330] sm:$0xff]
    %v811 = vld [vmem:[#allocation2 + $0x338] sm:$0xf]
    %v812 = vld [vmem:[#allocation2 + $0x33c] sm:$0xff]
    %v813 = vld [vmem:[#allocation2 + $0x344] sm:$0xf]
    %v814 = vld [vmem:[#allocation2 + $0x348] sm:$0xff]
    %v815 = vld [vmem:[#allocation2 + $0x350] sm:$0xf]
    %v816 = vld [vmem:[#allocation2 + $0x354] sm:$0xff]
    %v817 = vld [vmem:[#allocation2 + $0x35c] sm:$0xf]
    %v818 = vld [vmem:[#allocation2 + $0x360] sm:$0xff]
    %v819 = vld [vmem:[#allocation2 + $0x368] sm:$0xf]
    %v820 = vld [vmem:[#allocation2 + $0x36c] sm:$0xff]
    %v821 = vld [vmem:[#allocation2 + $0x374] sm:$0xf]
    %v822 = vld [vmem:[#allocation2 + $0x378] sm:$0xff]
    %v823 = vld [vmem:[#allocation2 + $0x380] sm:$0xf]
    %v824 = vld [vmem:[#allocation2 + $0x384] sm:$0xff]
    %v825 = vld [vmem:[#allocation2 + $0x38c] sm:$0xf]
    %v826 = vld [vmem:[#allocation2 + $0x390] sm:$0xff]
    %v827 = vld [vmem:[#allocation2 + $0x398] sm:$0xf]
    %v828 = vld [vmem:[#allocation2 + $0x39c] sm:$0xff]
    %v829 = vld [vmem:[#allocation2 + $0x3a4] sm:$0xf]
    %v830 = vld [vmem:[#allocation2 + $0x3a8] sm:$0xff]
    %v831 = vld [vmem:[#allocation2 + $0x3b0] sm:$0xf]
    %v832 = vld [vmem:[#allocation2 + $0x3b4] sm:$0xff]
    %v833 = vld [vmem:[#allocation2 + $0x3bc] sm:$0xf]
    %v834 = vld [vmem:[#allocation2 + $0x3c0] sm:$0xff]
    %v835 = vld [vmem:[#allocation2 + $0x3c8] sm:$0xf]
    %v836 = vld [vmem:[#allocation2 + $0x3cc] sm:$0xff]
    %v837 = vld [vmem:[#allocation2 + $0x3d4] sm:$0xf]
    %v838 = vld [vmem:[#allocation2 + $0x3d8] sm:$0xff]
    %v839 = vld [vmem:[#allocation2 + $0x3e0] sm:$0xf]
    %v840 = vld [vmem:[#allocation2 + $0x3e4] sm:$0xff]
    %v841 = vld [vmem:[#allocation2 + $0x3ec] sm:$0xf]
    %v842 = vld [vmem:[#allocation2 + $0x3f0] sm:$0xff]
    %v843 = vld [vmem:[#allocation2 + $0x3f8] sm:$0xf]
    %v844 = vld [vmem:[#allocation2 + $0x3fc] sm:$0xff]
    %v845 = vld [vmem:[#allocation2 + $0x404] sm:$0xf]
    %v846 = vld [vmem:[#allocation2 + $0x408] sm:$0xff]
    %v847 = vld [vmem:[#allocation2 + $0x410] sm:$0xf]
    %v848 = vld [vmem:[#allocation2 + $0x414] sm:$0xff]
    %v849 = vld [vmem:[#allocation2 + $0x41c] sm:$0xf]
    %v850 = vld [vmem:[#allocation2 + $0x420] sm:$0xff]
    %v851 = vld [vmem:[#allocation2 + $0x428] sm:$0xf]
    %v852 = vld [vmem:[#allocation2 + $0x42c] sm:$0xff]
    %v853 = vld [vmem:[#allocation2 + $0x434] sm:$0xf]
    %v854 = vld [vmem:[#allocation2 + $0x438] sm:$0xff]
    %v855 = vld [vmem:[#allocation2 + $0x440] sm:$0xf]
    %v856 = vld [vmem:[#allocation2 + $0x444] sm:$0xff]
    %v857 = vld [vmem:[#allocation2 + $0x44c] sm:$0xf]
    %v858 = vld [vmem:[#allocation2 + $0x450] sm:$0xff]
    %v859 = vld [vmem:[#allocation2 + $0x458] sm:$0xf]
    %v860 = vld [vmem:[#allocation2 + $0x45c] sm:$0xff]
    %v861 = vld [vmem:[#allocation2 + $0x464] sm:$0xf]
    %v862 = vld [vmem:[#allocation2 + $0x468] sm:$0xff]
    %v863 = vld [vmem:[#allocation2 + $0x470] sm:$0xf]
    %v864 = vld [vmem:[#allocation2 + $0x474] sm:$0xff]
    %v865 = vld [vmem:[#allocation2 + $0x47c] sm:$0xf]
    %v866 = vld [vmem:[#allocation4 + $0x18] sm:$0xff]
    %v867 = vld [vmem:[#allocation4 + $0x20] sm:$0xff]
    %v868 = vld [vmem:[#allocation4 + $0x28] sm:$0xff]
    %v869 = vpack.c.bf16 %v767, %v767
    %v870 = vpack.c.bf16 %v768, %v768
    %v871 = vpack.c.bf16 %v769, %v769
    %v872 = vlaneseq
    %v873 = vshrl.u32 %v872, 7
    %v874 = vsub.s32 0, %v873
    %v875 = vrot.slane %v866, %v874
    %v876 = vlaneseq
    %v877 = vshrl.u32 %v876, 7
    %v878 = vsub.s32 0, %v877
    %v879 = vrot.slane %v867, %v878
    %v880 = vlaneseq
    %v881 = vshrl.u32 %v880, 7
    %v882 = vsub.s32 0, %v881
    %v883 = vrot.slane %v868, %v882
    %v980 = vunpack.c.l.b16 %v770
    %v981 = vunpack.c.h.b16 %v770
    %v982 = vunpack.c.l.b16 %v771
    %v983 = vunpack.c.l.b16 %v772
    %v984 = vunpack.c.h.b16 %v772
    %v985 = vunpack.c.l.b16 %v773
    %v986 = vunpack.c.l.b16 %v774
    %v987 = vunpack.c.h.b16 %v774
    %v988 = vunpack.c.l.b16 %v775
    %v989 = vunpack.c.l.b16 %v776
    %v990 = vunpack.c.h.b16 %v776
    %v991 = vunpack.c.l.b16 %v777
    %v992 = vunpack.c.l.b16 %v778
    %v993 = vunpack.c.h.b16 %v778
    %v994 = vunpack.c.l.b16 %v779
    %v995 = vunpack.c.l.b16 %v780
    %v996 = vunpack.c.h.b16 %v780
    %v997 = vunpack.c.l.b16 %v781
    %v998 = vunpack.c.l.b16 %v782
    %v999 = vunpack.c.h.b16 %v782
    %v1000 = vunpack.c.l.b16 %v783
    %v1001 = vunpack.c.l.b16 %v784
    %v1002 = vunpack.c.h.b16 %v784
    %v1003 = vunpack.c.l.b16 %v785
    %v1004 = vunpack.c.l.b16 %v786
    %v1005 = vunpack.c.h.b16 %v786
    %v1006 = vunpack.c.l.b16 %v787
    %v1007 = vunpack.c.l.b16 %v788
    %v1008 = vunpack.c.h.b16 %v788
    %v1009 = vunpack.c.l.b16 %v789
    %v1010 = vunpack.c.l.b16 %v790
    %v1011 = vunpack.c.h.b16 %v790
    %v1012 = vunpack.c.l.b16 %v791
    %v1013 = vunpack.c.l.b16 %v792
    %v1014 = vunpack.c.h.b16 %v792
    %v1015 = vunpack.c.l.b16 %v793
    %v1016 = vunpack.c.l.b16 %v794
    %v1017 = vunpack.c.h.b16 %v794
    %v1018 = vunpack.c.l.b16 %v795
    %v1019 = vunpack.c.l.b16 %v796
    %v1020 = vunpack.c.h.b16 %v796
    %v1021 = vunpack.c.l.b16 %v797
    %v1022 = vunpack.c.l.b16 %v798
    %v1023 = vunpack.c.h.b16 %v798
    %v1024 = vunpack.c.l.b16 %v799
    %v1025 = vunpack.c.l.b16 %v800
    %v1026 = vunpack.c.h.b16 %v800
    %v1027 = vunpack.c.l.b16 %v801
    %v1028 = vunpack.c.l.b16 %v802
    %v1029 = vunpack.c.h.b16 %v802
    %v1030 = vunpack.c.l.b16 %v803
    %v1031 = vunpack.c.l.b16 %v804
    %v1032 = vunpack.c.h.b16 %v804
    %v1033 = vunpack.c.l.b16 %v805
    %v1034 = vunpack.c.l.b16 %v806
    %v1035 = vunpack.c.h.b16 %v806
    %v1036 = vunpack.c.l.b16 %v807
    %v1037 = vunpack.c.l.b16 %v808
    %v1038 = vunpack.c.h.b16 %v808
    %v1039 = vunpack.c.l.b16 %v809
    %v1040 = vunpack.c.l.b16 %v810
    %v1041 = vunpack.c.h.b16 %v810
    %v1042 = vunpack.c.l.b16 %v811
    %v1043 = vunpack.c.l.b16 %v812
    %v1044 = vunpack.c.h.b16 %v812
    %v1045 = vunpack.c.l.b16 %v813
    %v1046 = vunpack.c.l.b16 %v814
    %v1047 = vunpack.c.h.b16 %v814
    %v1048 = vunpack.c.l.b16 %v815
    %v1049 = vunpack.c.l.b16 %v816
    %v1050 = vunpack.c.h.b16 %v816
    %v1051 = vunpack.c.l.b16 %v817
    %v1052 = vunpack.c.l.b16 %v818
    %v1053 = vunpack.c.h.b16 %v818
    %v1054 = vunpack.c.l.b16 %v819
    %v1055 = vunpack.c.l.b16 %v820
    %v1056 = vunpack.c.h.b16 %v820
    %v1057 = vunpack.c.l.b16 %v821
    %v1058 = vunpack.c.l.b16 %v822
    %v1059 = vunpack.c.h.b16 %v822
    %v1060 = vunpack.c.l.b16 %v823
    %v1061 = vunpack.c.l.b16 %v824
    %v1062 = vunpack.c.h.b16 %v824
    %v1063 = vunpack.c.l.b16 %v825
    %v1064 = vunpack.c.l.b16 %v826
    %v1065 = vunpack.c.h.b16 %v826
    %v1066 = vunpack.c.l.b16 %v827
    %v1067 = vunpack.c.l.b16 %v828
    %v1068 = vunpack.c.h.b16 %v828
    %v1069 = vunpack.c.l.b16 %v829
    %v1070 = vunpack.c.l.b16 %v830
    %v1071 = vunpack.c.h.b16 %v830
    %v1072 = vunpack.c.l.b16 %v831
    %v1073 = vunpack.c.l.b16 %v832
    %v1074 = vunpack.c.h.b16 %v832
    %v1075 = vunpack.c.l.b16 %v833
    %v1076 = vunpack.c.l.b16 %v834
    %v1077 = vunpack.c.h.b16 %v834
    %v1078 = vunpack.c.l.b16 %v835
    %v1079 = vunpack.c.l.b16 %v836
    %v1080 = vunpack.c.h.b16 %v836
    %v1081 = vunpack.c.l.b16 %v837
    %v1082 = vunpack.c.l.b16 %v838
    %v1083 = vunpack.c.h.b16 %v838
    %v1084 = vunpack.c.l.b16 %v839
    %v1085 = vunpack.c.l.b16 %v840
    %v1086 = vunpack.c.h.b16 %v840
    %v1087 = vunpack.c.l.b16 %v841
    %v1088 = vunpack.c.l.b16 %v842
    %v1089 = vunpack.c.h.b16 %v842
    %v1090 = vunpack.c.l.b16 %v843
    %v1091 = vunpack.c.l.b16 %v844
    %v1092 = vunpack.c.h.b16 %v844
    %v1093 = vunpack.c.l.b16 %v845
    %v1094 = vunpack.c.l.b16 %v846
    %v1095 = vunpack.c.h.b16 %v846
    %v1096 = vunpack.c.l.b16 %v847
    %v1097 = vunpack.c.l.b16 %v848
    %v1098 = vunpack.c.h.b16 %v848
    %v1099 = vunpack.c.l.b16 %v849
    %v1100 = vunpack.c.l.b16 %v850
    %v1101 = vunpack.c.h.b16 %v850
    %v1102 = vunpack.c.l.b16 %v851
    %v1103 = vunpack.c.l.b16 %v852
    %v1104 = vunpack.c.h.b16 %v852
    %v1105 = vunpack.c.l.b16 %v853
    %v1106 = vunpack.c.l.b16 %v854
    %v1107 = vunpack.c.h.b16 %v854
    %v1108 = vunpack.c.l.b16 %v855
    %v1109 = vunpack.c.l.b16 %v856
    %v1110 = vunpack.c.h.b16 %v856
    %v1111 = vunpack.c.l.b16 %v857
    %v1112 = vunpack.c.l.b16 %v858
    %v1113 = vunpack.c.h.b16 %v858
    %v1114 = vunpack.c.l.b16 %v859
    %v1115 = vunpack.c.l.b16 %v860
    %v1116 = vunpack.c.h.b16 %v860
    %v1117 = vunpack.c.l.b16 %v861
    %v1118 = vunpack.c.l.b16 %v862
    %v1119 = vunpack.c.h.b16 %v862
    %v1120 = vunpack.c.l.b16 %v863
    %v1121 = vunpack.c.l.b16 %v864
    %v1122 = vunpack.c.h.b16 %v864
    %v1123 = vunpack.c.l.b16 %v865
    %v1124 = vpack.c.b16 %v983, %v980
    %v1125 = vpack.c.b16 %v984, %v981
    %v1126 = vpack.c.b16 %v985, %v982
    %v1127 = vpack.c.b16 %v989, %v986
    %v1128 = vpack.c.b16 %v990, %v987
    %v1129 = vpack.c.b16 %v991, %v988
    %v1130 = vpack.c.b16 %v995, %v992
    %v1131 = vpack.c.b16 %v996, %v993
    %v1132 = vpack.c.b16 %v997, %v994
    %v1133 = vpack.c.b16 %v1001, %v998
    %v1134 = vpack.c.b16 %v1002, %v999
    %v1135 = vpack.c.b16 %v1003, %v1000
    %v1136 = vpack.c.b16 %v1007, %v1004
    %v1137 = vpack.c.b16 %v1008, %v1005
    %v1138 = vpack.c.b16 %v1009, %v1006
    %v1139 = vpack.c.b16 %v1013, %v1010
    %v1140 = vpack.c.b16 %v1014, %v1011
    %v1141 = vpack.c.b16 %v1015, %v1012
    %v1142 = vpack.c.b16 %v1019, %v1016
    %v1143 = vpack.c.b16 %v1020, %v1017
    %v1144 = vpack.c.b16 %v1021, %v1018
    %v1145 = vpack.c.b16 %v1025, %v1022
    %v1146 = vpack.c.b16 %v1026, %v1023
    %v1147 = vpack.c.b16 %v1027, %v1024
    %v1148 = vpack.c.b16 %v1031, %v1028
    %v1149 = vpack.c.b16 %v1032, %v1029
    %v1150 = vpack.c.b16 %v1033, %v1030
    %v1151 = vpack.c.b16 %v1037, %v1034
    %v1152 = vpack.c.b16 %v1038, %v1035
    %v1153 = vpack.c.b16 %v1039, %v1036
    %v1154 = vpack.c.b16 %v1043, %v1040
    %v1155 = vpack.c.b16 %v1044, %v1041
    %v1156 = vpack.c.b16 %v1045, %v1042
    %v1157 = vpack.c.b16 %v1049, %v1046
    %v1158 = vpack.c.b16 %v1050, %v1047
    %v1159 = vpack.c.b16 %v1051, %v1048
    %v1160 = vpack.c.b16 %v1055, %v1052
    %v1161 = vpack.c.b16 %v1056, %v1053
    %v1162 = vpack.c.b16 %v1057, %v1054
    %v1163 = vpack.c.b16 %v1061, %v1058
    %v1164 = vpack.c.b16 %v1062, %v1059
    %v1165 = vpack.c.b16 %v1063, %v1060
    %v1166 = vpack.c.b16 %v1067, %v1064
    %v1167 = vpack.c.b16 %v1068, %v1065
    %v1168 = vpack.c.b16 %v1069, %v1066
    %v1169 = vpack.c.b16 %v1073, %v1070
    %v1170 = vpack.c.b16 %v1074, %v1071
    %v1171 = vpack.c.b16 %v1075, %v1072
    %v1172 = vpack.c.b16 %v1079, %v1076
    %v1173 = vpack.c.b16 %v1080, %v1077
    %v1174 = vpack.c.b16 %v1081, %v1078
    %v1175 = vpack.c.b16 %v1085, %v1082
    %v1176 = vpack.c.b16 %v1086, %v1083
    %v1177 = vpack.c.b16 %v1087, %v1084
    %v1178 = vpack.c.b16 %v1091, %v1088
    %v1179 = vpack.c.b16 %v1092, %v1089
    %v1180 = vpack.c.b16 %v1093, %v1090
    %v1181 = vpack.c.b16 %v1097, %v1094
    %v1182 = vpack.c.b16 %v1098, %v1095
    %v1183 = vpack.c.b16 %v1099, %v1096
    %v1184 = vpack.c.b16 %v1103, %v1100
    %v1185 = vpack.c.b16 %v1104, %v1101
    %v1186 = vpack.c.b16 %v1105, %v1102
    %v1187 = vpack.c.b16 %v1109, %v1106
    %v1188 = vpack.c.b16 %v1110, %v1107
    %v1189 = vpack.c.b16 %v1111, %v1108
    %v1190 = vpack.c.b16 %v1115, %v1112
    %v1191 = vpack.c.b16 %v1116, %v1113
    %v1192 = vpack.c.b16 %v1117, %v1114
    %v1193 = vpack.c.b16 %v1121, %v1118
    %v1194 = vpack.c.b16 %v1122, %v1119
    %v1195 = vpack.c.b16 %v1123, %v1120
    %1268 = vmatprep.subr.bf16.mxu0 %v1125
    %1269 = vmatpush1.bf16.msra.mxu0 %v1124
    %1270 = vmatprep.subr.bf16.mxu0 %v1128
    %1271 = vmatpush1.bf16.msra.mxu0 %v1127
    %1272 = vmatprep.subr.bf16.mxu0 %v1131
    %1273 = vmatpush1.bf16.msra.mxu0 %v1130
    %1274 = vmatprep.subr.bf16.mxu0 %v1134
    %1275 = vmatpush1.bf16.msra.mxu0 %v1133
    %1276 = vmatprep.subr.bf16.mxu0 %v1137
    %1277 = vmatpush1.bf16.msra.mxu0 %v1136
    %1278 = vmatprep.subr.bf16.mxu0 %v1140
    %1279 = vmatpush1.bf16.msra.mxu0 %v1139
    %1280 = vmatprep.subr.bf16.mxu0 %v1143
    %1281 = vmatpush1.bf16.msra.mxu0 %v1142
    %1282 = vmatprep.subr.bf16.mxu0 %v1146
    %1283 = vmatpush1.bf16.msra.mxu0 %v1145
    %1284 = vmatprep.subr.bf16.mxu0 %v1149
    %1285 = vmatpush1.bf16.msra.mxu0 %v1148
    %1286 = vmatprep.subr.bf16.mxu0 %v1152
    %1287 = vmatpush1.bf16.msra.mxu0 %v1151
    %1288 = vmatprep.subr.bf16.mxu0 %v1155
    %1289 = vmatpush1.bf16.msra.mxu0 %v1154
    %1290 = vmatprep.subr.bf16.mxu0 %v1158
    %1291 = vmatpush1.bf16.msra.mxu0 %v1157
    %1292 = vmatprep.subr.bf16.mxu0 %v1161
    %1293 = vmatpush1.bf16.msra.mxu0 %v1160
    %1294 = vmatprep.subr.bf16.mxu0 %v1164
    %1295 = vmatpush1.bf16.msra.mxu0 %v1163
    %1296 = vmatprep.subr.bf16.mxu0 %v1167
    %1297 = vmatpush1.bf16.msra.mxu0 %v1166
    %1298 = vmatprep.subr.bf16.mxu0 %v1170
    %1299 = vmatpush1.bf16.msra.mxu0 %v1169
    %1300 = vmatprep.mubr.bf16.mxu0 %v870
    %1301 = vmatmul.mubr.bf16.gmra.mrb[0].mxu0 %v869
    %v1302 = vpop.f32.mrb[0].mxu0
    %v1303 = vadd.f32 %v875, %v1302
    %v1304 = vpop.f32.mrb[0].mxu0
    %v1305 = vadd.f32 %v879, %v1304
    %v1306 = vpop.f32.mrb[0].mxu0
    %v1307 = vpop.f32.mrb[0].mxu0
    %1308 = vdwg.mxu0
    %1309 = vmatprep.subr.bf16.mxu0 %v1173
    %1310 = vmatpush1.bf16.msra.mxu0 %v1172
    %1311 = vmatprep.subr.bf16.mxu0 %v1176
    %1312 = vmatpush1.bf16.msra.mxu0 %v1175
    %1313 = vmatprep.subr.bf16.mxu0 %v1179
    %1314 = vmatpush1.bf16.msra.mxu0 %v1178
    %1315 = vmatprep.subr.bf16.mxu0 %v1182
    %1316 = vmatpush1.bf16.msra.mxu0 %v1181
    %1317 = vmatprep.subr.bf16.mxu0 %v1185
    %1318 = vmatpush1.bf16.msra.mxu0 %v1184
    %1319 = vmatprep.subr.bf16.mxu0 %v1188
    %1320 = vmatpush1.bf16.msra.mxu0 %v1187
    %1321 = vmatprep.subr.bf16.mxu0 %v1191
    %1322 = vmatpush1.bf16.msra.mxu0 %v1190
    %1323 = vmatprep.subr.bf16.mxu0 %v1194
    %1324 = vmatpush1.bf16.msra.mxu0 %v1193
    %1325 = vmatprep.subr.bf16.mxu0 0
    %1326 = vmatpush1.bf16.msra.mxu0 0
    %1327 = vmatprep.subr.bf16.mxu0 0
    %1328 = vmatpush1.bf16.msra.mxu0 0
    %1329 = vmatprep.subr.bf16.mxu0 0
    %1330 = vmatpush1.bf16.msra.mxu0 0
    %1331 = vmatprep.subr.bf16.mxu0 0
    %1332 = vmatpush1.bf16.msra.mxu0 0
    %1333 = vmatprep.subr.bf16.mxu0 0
    %1334 = vmatpush1.bf16.msra.mxu0 0
    %1335 = vmatprep.subr.bf16.mxu0 0
    %1336 = vmatpush1.bf16.msra.mxu0 0
    %1337 = vmatprep.subr.bf16.mxu0 0
    %1338 = vmatpush1.bf16.msra.mxu0 0
    %1339 = vmatprep.subr.bf16.mxu0 0
    %1340 = vmatpush1.bf16.msra.mxu0 0
    %1341 = vmatprep.mubr.bf16.mxu0 0
    %1342 = vmatmul.mubr.bf16.gmra.mrb[0].mxu0 %v871
    %v1343 = vpop.f32.mrb[0].mxu0
    %v1344 = vadd.f32 %v1303, %v1343
    %v1345 = vpop.f32.mrb[0].mxu0
    %v1346 = vadd.f32 %v1305, %v1345
    %v1347 = vpop.f32.mrb[0].mxu0
    %v1348 = vpop.f32.mrb[0].mxu0
    %1349 = vdwg.mxu0
    %1350 = vmatprep.subr.bf16.mxu0 0
    %1351 = vmatpush1.bf16.msra.mxu0 %v1126
    %1352 = vmatprep.subr.bf16.mxu0 0
    %1353 = vmatpush1.bf16.msra.mxu0 %v1129
    %1354 = vmatprep.subr.bf16.mxu0 0
    %1355 = vmatpush1.bf16.msra.mxu0 %v1132
    %1356 = vmatprep.subr.bf16.mxu0 0
    %1357 = vmatpush1.bf16.msra.mxu0 %v1135
    %1358 = vmatprep.subr.bf16.mxu0 0
    %1359 = vmatpush1.bf16.msra.mxu0 %v1138
    %1360 = vmatprep.subr.bf16.mxu0 0
    %1361 = vmatpush1.bf16.msra.mxu0 %v1141
    %1362 = vmatprep.subr.bf16.mxu0 0
    %1363 = vmatpush1.bf16.msra.mxu0 %v1144
    %1364 = vmatprep.subr.bf16.mxu0 0
    %1365 = vmatpush1.bf16.msra.mxu0 %v1147
    %1366 = vmatprep.subr.bf16.mxu0 0
    %1367 = vmatpush1.bf16.msra.mxu0 %v1150
    %1368 = vmatprep.subr.bf16.mxu0 0
    %1369 = vmatpush1.bf16.msra.mxu0 %v1153
    %1370 = vmatprep.subr.bf16.mxu0 0
    %1371 = vmatpush1.bf16.msra.mxu0 %v1156
    %1372 = vmatprep.subr.bf16.mxu0 0
    %1373 = vmatpush1.bf16.msra.mxu0 %v1159
    %1374 = vmatprep.subr.bf16.mxu0 0
    %1375 = vmatpush1.bf16.msra.mxu0 %v1162
    %1376 = vmatprep.subr.bf16.mxu0 0
    %1377 = vmatpush1.bf16.msra.mxu0 %v1165
    %1378 = vmatprep.subr.bf16.mxu0 0
    %1379 = vmatpush1.bf16.msra.mxu0 %v1168
    %1380 = vmatprep.subr.bf16.mxu0 0
    %1381 = vmatpush1.bf16.msra.mxu0 %v1171
    %1382 = vmatprep.mubr.bf16.mxu0 %v870
    %1383 = vmatmul.mubr.bf16.gmra.mrb[0].mxu0 %v869
    %v1384 = vpop.f32.mrb[0].mxu0
    %v1385 = vadd.f32 %v883, %v1384
    %v1386 = vpop.f32.mrb[0].mxu0
    %v1387 = vpop.f32.mrb[0].mxu0
    %v1388 = vpop.f32.mrb[0].mxu0
    %1389 = vdwg.mxu0
    %1390 = vmatprep.subr.bf16.mxu0 0
    %1391 = vmatpush1.bf16.msra.mxu0 %v1174
    %1392 = vmatprep.subr.bf16.mxu0 0
    %1393 = vmatpush1.bf16.msra.mxu0 %v1177
    %1394 = vmatprep.subr.bf16.mxu0 0
    %1395 = vmatpush1.bf16.msra.mxu0 %v1180
    %1396 = vmatprep.subr.bf16.mxu0 0
    %1397 = vmatpush1.bf16.msra.mxu0 %v1183
    %1398 = vmatprep.subr.bf16.mxu0 0
    %1399 = vmatpush1.bf16.msra.mxu0 %v1186
    %1400 = vmatprep.subr.bf16.mxu0 0
    %1401 = vmatpush1.bf16.msra.mxu0 %v1189
    %1402 = vmatprep.subr.bf16.mxu0 0
    %1403 = vmatpush1.bf16.msra.mxu0 %v1192
    %1404 = vmatprep.subr.bf16.mxu0 0
    %1405 = vmatpush1.bf16.msra.mxu0 %v1195
    %1406 = vmatprep.subr.bf16.mxu0 0
    %1407 = vmatpush1.bf16.msra.mxu0 0
    %1408 = vmatprep.subr.bf16.mxu0 0
    %1409 = vmatpush1.bf16.msra.mxu0 0
    %1410 = vmatprep.subr.bf16.mxu0 0
    %1411 = vmatpush1.bf16.msra.mxu0 0
    %1412 = vmatprep.subr.bf16.mxu0 0
    %1413 = vmatpush1.bf16.msra.mxu0 0
    %1414 = vmatprep.subr.bf16.mxu0 0
    %1415 = vmatpush1.bf16.msra.mxu0 0
    %1416 = vmatprep.subr.bf16.mxu0 0
    %1417 = vmatpush1.bf16.msra.mxu0 0
    %1418 = vmatprep.subr.bf16.mxu0 0
    %1419 = vmatpush1.bf16.msra.mxu0 0
    %1420 = vmatprep.subr.bf16.mxu0 0
    %1421 = vmatpush1.bf16.msra.mxu0 0
    %1422 = vmatprep.mubr.bf16.mxu0 0
    %1423 = vmatmul.mubr.bf16.gmra.mrb[0].mxu0 %v871
    %v1424 = vpop.f32.mrb[0].mxu0
    %v1425 = vadd.f32 %v1385, %v1424
    %v1426 = vpop.f32.mrb[0].mxu0
    %v1427 = vpop.f32.mrb[0].mxu0
    %v1428 = vpop.f32.mrb[0].mxu0
    %1429 = vdwg.mxu0
    %v1430 = vadd.f32 %v1344, %v1346
    %v1431 = vadd.f32 %v1430, %v1425
    %1432 = vadd.xlane.f32.xlu0 %v1431
    %v1433 = vpop.xlane.xlu0 %1432
    %v1434 = vmul.f32 %v1433, 0.0069444445
    %v1435 = vmul.f32 %v1344, %v1344
    %v1436 = vmul.f32 %v1346, %v1346
    %v1437 = vmul.f32 %v1425, %v1425
    %v1438 = vadd.f32 %v1435, %v1436
    %v1439 = vadd.f32 %v1438, %v1437
    %1440 = vadd.xlane.f32.xlu0 %v1439
    %v1441 = vpop.xlane.xlu0 %1440
    %v1442 = vmul.f32 %v1441, 0.0069444445
    %v1443 = vmul.f32 %v1434, %v1434
    %v1444 = vsub.f32 %v1442, %v1443
    %v1445 = vmax.f32 %v1444, 0.0
    %v1446 = vsub.f32 %v1344, %v1434
    %v1447 = vsub.f32 %v1346, %v1434
    %v1448 = vadd.f32 %v1445, 1e-05
    %v1449 = vrsqrt.pop %v1448
    %v1450 = vmul.f32 %v1446, %v1449
    %v1451 = vmul.f32 %v1447, %v1449
    %v1452 = vlaneseq
    %v1453 = vshrl.u32 %v1452, 7
    %v1454 = vsub.s32 1, %v1453
    %v1455 = vrot.slane %v866, %v1454
    %v1456 = vlaneseq
    %v1457 = vshrl.u32 %v1456, 7
    %v1458 = vsub.s32 1, %v1457
    %v1459 = vrot.slane %v867, %v1458
    %v1460 = vmul.f32 %v1450, %v1455
    %v1461 = vmul.f32 %v1451, %v1459
    %v1462 = vlaneseq
    %v1463 = vshrl.u32 %v1462, 7
    %v1464 = vsub.s32 2, %v1463
    %v1465 = vrot.slane %v866, %v1464
    %v1466 = vlaneseq
    %v1467 = vshrl.u32 %v1466, 7
    %v1468 = vsub.s32 2, %v1467
    %v1469 = vrot.slane %v867, %v1468
    %v1470 = vadd.f32 %v1460, %v1465
    %v1471 = vadd.f32 %v1461, %v1469
    %vm1472 = vcmp.gt.f32.partialorder %v1470, 0.0
    %vm1473 = vcmp.gt.f32.partialorder %v1471, 0.0
    %v1474 = vmul.f32 %v1470, 0.2
    %v1475 = vmul.f32 %v1471, 0.2
    %v1476 = vsel %vm1472, %v1470, %v1474
    %v1477 = vsel %vm1473, %v1471, %v1475
    %v1478 = vld [vmem:[#allocation2 + $0x480] sm:$0xff]
    %v1479 = vld [vmem:[#allocation2 + $0x488] sm:$0xf]
    %v1480 = vld [vmem:[#allocation2 + $0x48c] sm:$0xff]
    %v1481 = vld [vmem:[#allocation2 + $0x494] sm:$0xf]
    %v1482 = vld [vmem:[#allocation2 + $0x498] sm:$0xff]
    %v1483 = vld [vmem:[#allocation2 + $0x4a0] sm:$0xf]
    %v1484 = vld [vmem:[#allocation2 + $0x4a4] sm:$0xff]
    %v1485 = vld [vmem:[#allocation2 + $0x4ac] sm:$0xf]
    %v1486 = vld [vmem:[#allocation2 + $0x4b0] sm:$0xff]
    %v1487 = vld [vmem:[#allocation2 + $0x4b8] sm:$0xf]
    %v1488 = vld [vmem:[#allocation2 + $0x4bc] sm:$0xff]
    %v1489 = vld [vmem:[#allocation2 + $0x4c4] sm:$0xf]
    %v1490 = vld [vmem:[#allocation2 + $0x4c8] sm:$0xff]
    %v1491 = vld [vmem:[#allocation2 + $0x4d0] sm:$0xf]
    %v1492 = vld [vmem:[#allocation2 + $0x4d4] sm:$0xff]
    %v1493 = vld [vmem:[#allocation2 + $0x4dc] sm:$0xf]
    %v1494 = vld [vmem:[#allocation2 + $0x4e0] sm:$0xff]
    %v1495 = vld [vmem:[#allocation2 + $0x4e8] sm:$0xf]
    %v1496 = vld [vmem:[#allocation2 + $0x4ec] sm:$0xff]
    %v1497 = vld [vmem:[#allocation2 + $0x4f4] sm:$0xf]
    %v1498 = vld [vmem:[#allocation2 + $0x4f8] sm:$0xff]
    %v1499 = vld [vmem:[#allocation2 + $0x500] sm:$0xf]
    %v1500 = vld [vmem:[#allocation2 + $0x504] sm:$0xff]
    %v1501 = vld [vmem:[#allocation2 + $0x50c] sm:$0xf]
    %v1502 = vld [vmem:[#allocation2 + $0x510] sm:$0xff]
    %v1503 = vld [vmem:[#allocation2 + $0x518] sm:$0xf]
    %v1504 = vld [vmem:[#allocation2 + $0x51c] sm:$0xff]
    %v1505 = vld [vmem:[#allocation2 + $0x524] sm:$0xf]
    %v1506 = vld [vmem:[#allocation2 + $0x528] sm:$0xff]
    %v1507 = vld [vmem:[#allocation2 + $0x530] sm:$0xf]
    %v1508 = vld [vmem:[#allocation2 + $0x534] sm:$0xff]
    %v1509 = vld [vmem:[#allocation2 + $0x53c] sm:$0xf]
    %v1510 = vld [vmem:[#allocation2 + $0x540] sm:$0xff]
    %v1511 = vld [vmem:[#allocation2 + $0x548] sm:$0xf]
    %v1512 = vld [vmem:[#allocation2 + $0x54c] sm:$0xff]
    %v1513 = vld [vmem:[#allocation2 + $0x554] sm:$0xf]
    %v1514 = vld [vmem:[#allocation2 + $0x558] sm:$0xff]
    %v1515 = vld [vmem:[#allocation2 + $0x560] sm:$0xf]
    %v1516 = vld [vmem:[#allocation2 + $0x564] sm:$0xff]
    %v1517 = vld [vmem:[#allocation2 + $0x56c] sm:$0xf]
    %v1518 = vld [vmem:[#allocation2 + $0x570] sm:$0xff]
    %v1519 = vld [vmem:[#allocation2 + $0x578] sm:$0xf]
    %v1520 = vld [vmem:[#allocation2 + $0x57c] sm:$0xff]
    %v1521 = vld [vmem:[#allocation2 + $0x584] sm:$0xf]
    %v1522 = vld [vmem:[#allocation2 + $0x588] sm:$0xff]
    %v1523 = vld [vmem:[#allocation2 + $0x590] sm:$0xf]
    %v1524 = vld [vmem:[#allocation2 + $0x594] sm:$0xff]
    %v1525 = vld [vmem:[#allocation2 + $0x59c] sm:$0xf]
    %v1526 = vld [vmem:[#allocation2 + $0x5a0] sm:$0xff]
    %v1527 = vld [vmem:[#allocation2 + $0x5a8] sm:$0xf]
    %v1528 = vld [vmem:[#allocation2 + $0x5ac] sm:$0xff]
    %v1529 = vld [vmem:[#allocation2 + $0x5b4] sm:$0xf]
    %v1530 = vld [vmem:[#allocation2 + $0x5b8] sm:$0xff]
    %v1531 = vld [vmem:[#allocation2 + $0x5c0] sm:$0xf]
    %v1532 = vld [vmem:[#allocation2 + $0x5c4] sm:$0xff]
    %v1533 = vld [vmem:[#allocation2 + $0x5cc] sm:$0xf]
    %v1534 = vld [vmem:[#allocation2 + $0x5d0] sm:$0xff]
    %v1535 = vld [vmem:[#allocation2 + $0x5d8] sm:$0xf]
    %v1536 = vld [vmem:[#allocation2 + $0x5dc] sm:$0xff]
    %v1537 = vld [vmem:[#allocation2 + $0x5e4] sm:$0xf]
    %v1538 = vld [vmem:[#allocation2 + $0x5e8] sm:$0xff]
    %v1539 = vld [vmem:[#allocation2 + $0x5f0] sm:$0xf]
    %v1540 = vld [vmem:[#allocation2 + $0x5f4] sm:$0xff]
    %v1541 = vld [vmem:[#allocation2 + $0x5fc] sm:$0xf]
    %v1542 = vld [vmem:[#allocation4 + $0x30] sm:$0xff]
    %v1543 = vld [vmem:[#allocation4 + $0x38] sm:$0xff]
    %v1544 = vld [vmem:[#allocation4 + $0x40] sm:$0xff]
    %v1545 = vpack.c.bf16 %v1476, %v1476
    %v1546 = vpack.c.bf16 %v1477, %v1477
    %v1547 = vlaneseq
    %v1548 = vshrl.u32 %v1547, 7
    %v1549 = vsub.s32 0, %v1548
    %v1550 = vrot.slane %v1542, %v1549
    %v1551 = vlaneseq
    %v1552 = vshrl.u32 %v1551, 7
    %v1553 = vsub.s32 0, %v1552
    %v1554 = vrot.slane %v1543, %v1553
    %v1555 = vlaneseq
    %v1556 = vshrl.u32 %v1555, 7
    %v1557 = vsub.s32 0, %v1556
    %v1558 = vrot.slane %v1544, %v1557
    %v1623 = vunpack.c.l.b16 %v1478
    %v1624 = vunpack.c.h.b16 %v1478
    %v1625 = vunpack.c.l.b16 %v1479
    %v1626 = vunpack.c.l.b16 %v1480
    %v1627 = vunpack.c.h.b16 %v1480
    %v1628 = vunpack.c.l.b16 %v1481
    %v1629 = vunpack.c.l.b16 %v1482
    %v1630 = vunpack.c.h.b16 %v1482
    %v1631 = vunpack.c.l.b16 %v1483
    %v1632 = vunpack.c.l.b16 %v1484
    %v1633 = vunpack.c.h.b16 %v1484
    %v1634 = vunpack.c.l.b16 %v1485
    %v1635 = vunpack.c.l.b16 %v1486
    %v1636 = vunpack.c.h.b16 %v1486
    %v1637 = vunpack.c.l.b16 %v1487
    %v1638 = vunpack.c.l.b16 %v1488
    %v1639 = vunpack.c.h.b16 %v1488
    %v1640 = vunpack.c.l.b16 %v1489
    %v1641 = vunpack.c.l.b16 %v1490
    %v1642 = vunpack.c.h.b16 %v1490
    %v1643 = vunpack.c.l.b16 %v1491
    %v1644 = vunpack.c.l.b16 %v1492
    %v1645 = vunpack.c.h.b16 %v1492
    %v1646 = vunpack.c.l.b16 %v1493
    %v1647 = vunpack.c.l.b16 %v1494
    %v1648 = vunpack.c.h.b16 %v1494
    %v1649 = vunpack.c.l.b16 %v1495
    %v1650 = vunpack.c.l.b16 %v1496
    %v1651 = vunpack.c.h.b16 %v1496
    %v1652 = vunpack.c.l.b16 %v1497
    %v1653 = vunpack.c.l.b16 %v1498
    %v1654 = vunpack.c.h.b16 %v1498
    %v1655 = vunpack.c.l.b16 %v1499
    %v1656 = vunpack.c.l.b16 %v1500
    %v1657 = vunpack.c.h.b16 %v1500
    %v1658 = vunpack.c.l.b16 %v1501
    %v1659 = vunpack.c.l.b16 %v1502
    %v1660 = vunpack.c.h.b16 %v1502
    %v1661 = vunpack.c.l.b16 %v1503
    %v1662 = vunpack.c.l.b16 %v1504
    %v1663 = vunpack.c.h.b16 %v1504
    %v1664 = vunpack.c.l.b16 %v1505
    %v1665 = vunpack.c.l.b16 %v1506
    %v1666 = vunpack.c.h.b16 %v1506
    %v1667 = vunpack.c.l.b16 %v1507
    %v1668 = vunpack.c.l.b16 %v1508
    %v1669 = vunpack.c.h.b16 %v1508
    %v1670 = vunpack.c.l.b16 %v1509
    %v1671 = vunpack.c.l.b16 %v1510
    %v1672 = vunpack.c.h.b16 %v1510
    %v1673 = vunpack.c.l.b16 %v1511
    %v1674 = vunpack.c.l.b16 %v1512
    %v1675 = vunpack.c.h.b16 %v1512
    %v1676 = vunpack.c.l.b16 %v1513
    %v1677 = vunpack.c.l.b16 %v1514
    %v1678 = vunpack.c.h.b16 %v1514
    %v1679 = vunpack.c.l.b16 %v1515
    %v1680 = vunpack.c.l.b16 %v1516
    %v1681 = vunpack.c.h.b16 %v1516
    %v1682 = vunpack.c.l.b16 %v1517
    %v1683 = vunpack.c.l.b16 %v1518
    %v1684 = vunpack.c.h.b16 %v1518
    %v1685 = vunpack.c.l.b16 %v1519
    %v1686 = vunpack.c.l.b16 %v1520
    %v1687 = vunpack.c.h.b16 %v1520
    %v1688 = vunpack.c.l.b16 %v1521
    %v1689 = vunpack.c.l.b16 %v1522
    %v1690 = vunpack.c.h.b16 %v1522
    %v1691 = vunpack.c.l.b16 %v1523
    %v1692 = vunpack.c.l.b16 %v1524
    %v1693 = vunpack.c.h.b16 %v1524
    %v1694 = vunpack.c.l.b16 %v1525
    %v1695 = vunpack.c.l.b16 %v1526
    %v1696 = vunpack.c.h.b16 %v1526
    %v1697 = vunpack.c.l.b16 %v1527
    %v1698 = vunpack.c.l.b16 %v1528
    %v1699 = vunpack.c.h.b16 %v1528
    %v1700 = vunpack.c.l.b16 %v1529
    %v1701 = vunpack.c.l.b16 %v1530
    %v1702 = vunpack.c.h.b16 %v1530
    %v1703 = vunpack.c.l.b16 %v1531
    %v1704 = vunpack.c.l.b16 %v1532
    %v1705 = vunpack.c.h.b16 %v1532
    %v1706 = vunpack.c.l.b16 %v1533
    %v1707 = vunpack.c.l.b16 %v1534
    %v1708 = vunpack.c.h.b16 %v1534
    %v1709 = vunpack.c.l.b16 %v1535
    %v1710 = vunpack.c.l.b16 %v1536
    %v1711 = vunpack.c.h.b16 %v1536
    %v1712 = vunpack.c.l.b16 %v1537
    %v1713 = vunpack.c.l.b16 %v1538
    %v1714 = vunpack.c.h.b16 %v1538
    %v1715 = vunpack.c.l.b16 %v1539
    %v1716 = vunpack.c.l.b16 %v1540
    %v1717 = vunpack.c.h.b16 %v1540
    %v1718 = vunpack.c.l.b16 %v1541
    %v1719 = vpack.c.b16 %v1626, %v1623
    %v1720 = vpack.c.b16 %v1627, %v1624
    %v1721 = vpack.c.b16 %v1628, %v1625
    %v1722 = vpack.c.b16 %v1632, %v1629
    %v1723 = vpack.c.b16 %v1633, %v1630
    %v1724 = vpack.c.b16 %v1634, %v1631
    %v1725 = vpack.c.b16 %v1638, %v1635
    %v1726 = vpack.c.b16 %v1639, %v1636
    %v1727 = vpack.c.b16 %v1640, %v1637
    %v1728 = vpack.c.b16 %v1644, %v1641
    %v1729 = vpack.c.b16 %v1645, %v1642
    %v1730 = vpack.c.b16 %v1646, %v1643
    %v1731 = vpack.c.b16 %v1650, %v1647
    %v1732 = vpack.c.b16 %v1651, %v1648
    %v1733 = vpack.c.b16 %v1652, %v1649
    %v1734 = vpack.c.b16 %v1656, %v1653
    %v1735 = vpack.c.b16 %v1657, %v1654
    %v1736 = vpack.c.b16 %v1658, %v1655
    %v1737 = vpack.c.b16 %v1662, %v1659
    %v1738 = vpack.c.b16 %v1663, %v1660
    %v1739 = vpack.c.b16 %v1664, %v1661
    %v1740 = vpack.c.b16 %v1668, %v1665
    %v1741 = vpack.c.b16 %v1669, %v1666
    %v1742 = vpack.c.b16 %v1670, %v1667
    %v1743 = vpack.c.b16 %v1674, %v1671
    %v1744 = vpack.c.b16 %v1675, %v1672
    %v1745 = vpack.c.b16 %v1676, %v1673
    %v1746 = vpack.c.b16 %v1680, %v1677
    %v1747 = vpack.c.b16 %v1681, %v1678
    %v1748 = vpack.c.b16 %v1682, %v1679
    %v1749 = vpack.c.b16 %v1686, %v1683
    %v1750 = vpack.c.b16 %v1687, %v1684
    %v1751 = vpack.c.b16 %v1688, %v1685
    %v1752 = vpack.c.b16 %v1692, %v1689
    %v1753 = vpack.c.b16 %v1693, %v1690
    %v1754 = vpack.c.b16 %v1694, %v1691
    %v1755 = vpack.c.b16 %v1698, %v1695
    %v1756 = vpack.c.b16 %v1699, %v1696
    %v1757 = vpack.c.b16 %v1700, %v1697
    %v1758 = vpack.c.b16 %v1704, %v1701
    %v1759 = vpack.c.b16 %v1705, %v1702
    %v1760 = vpack.c.b16 %v1706, %v1703
    %v1761 = vpack.c.b16 %v1710, %v1707
    %v1762 = vpack.c.b16 %v1711, %v1708
    %v1763 = vpack.c.b16 %v1712, %v1709
    %v1764 = vpack.c.b16 %v1716, %v1713
    %v1765 = vpack.c.b16 %v1717, %v1714
    %v1766 = vpack.c.b16 %v1718, %v1715
    %1815 = vmatprep.subr.bf16.mxu0 %v1720
    %1816 = vmatpush1.bf16.msra.mxu0 %v1719
    %1817 = vmatprep.subr.bf16.mxu0 %v1723
    %1818 = vmatpush1.bf16.msra.mxu0 %v1722
    %1819 = vmatprep.subr.bf16.mxu0 %v1726
    %1820 = vmatpush1.bf16.msra.mxu0 %v1725
    %1821 = vmatprep.subr.bf16.mxu0 %v1729
    %1822 = vmatpush1.bf16.msra.mxu0 %v1728
    %1823 = vmatprep.subr.bf16.mxu0 %v1732
    %1824 = vmatpush1.bf16.msra.mxu0 %v1731
    %1825 = vmatprep.subr.bf16.mxu0 %v1735
    %1826 = vmatpush1.bf16.msra.mxu0 %v1734
    %1827 = vmatprep.subr.bf16.mxu0 %v1738
    %1828 = vmatpush1.bf16.msra.mxu0 %v1737
    %1829 = vmatprep.subr.bf16.mxu0 %v1741
    %1830 = vmatpush1.bf16.msra.mxu0 %v1740
    %1831 = vmatprep.subr.bf16.mxu0 %v1744
    %1832 = vmatpush1.bf16.msra.mxu0 %v1743
    %1833 = vmatprep.subr.bf16.mxu0 %v1747
    %1834 = vmatpush1.bf16.msra.mxu0 %v1746
    %1835 = vmatprep.subr.bf16.mxu0 %v1750
    %1836 = vmatpush1.bf16.msra.mxu0 %v1749
    %1837 = vmatprep.subr.bf16.mxu0 %v1753
    %1838 = vmatpush1.bf16.msra.mxu0 %v1752
    %1839 = vmatprep.subr.bf16.mxu0 %v1756
    %1840 = vmatpush1.bf16.msra.mxu0 %v1755
    %1841 = vmatprep.subr.bf16.mxu0 %v1759
    %1842 = vmatpush1.bf16.msra.mxu0 %v1758
    %1843 = vmatprep.subr.bf16.mxu0 %v1762
    %1844 = vmatpush1.bf16.msra.mxu0 %v1761
    %1845 = vmatprep.subr.bf16.mxu0 %v1765
    %1846 = vmatpush1.bf16.msra.mxu0 %v1764
    %1847 = vmatprep.mubr.bf16.mxu0 %v1546
    %1848 = vmatmul.mubr.bf16.gmra.mrb[0].mxu0 %v1545
    %v1849 = vpop.f32.mrb[0].mxu0
    %v1850 = vadd.f32 %v1550, %v1849
    %v1851 = vpop.f32.mrb[0].mxu0
    %v1852 = vadd.f32 %v1554, %v1851
    %v1853 = vpop.f32.mrb[0].mxu0
    %v1854 = vpop.f32.mrb[0].mxu0
    %1855 = vdwg.mxu0
    %1856 = vmatprep.subr.bf16.mxu0 0
    %1857 = vmatpush1.bf16.msra.mxu0 %v1721
    %1858 = vmatprep.subr.bf16.mxu0 0
    %1859 = vmatpush1.bf16.msra.mxu0 %v1724
    %1860 = vmatprep.subr.bf16.mxu0 0
    %1861 = vmatpush1.bf16.msra.mxu0 %v1727
    %1862 = vmatprep.subr.bf16.mxu0 0
    %1863 = vmatpush1.bf16.msra.mxu0 %v1730
    %1864 = vmatprep.subr.bf16.mxu0 0
    %1865 = vmatpush1.bf16.msra.mxu0 %v1733
    %1866 = vmatprep.subr.bf16.mxu0 0
    %1867 = vmatpush1.bf16.msra.mxu0 %v1736
    %1868 = vmatprep.subr.bf16.mxu0 0
    %1869 = vmatpush1.bf16.msra.mxu0 %v1739
    %1870 = vmatprep.subr.bf16.mxu0 0
    %1871 = vmatpush1.bf16.msra.mxu0 %v1742
    %1872 = vmatprep.subr.bf16.mxu0 0
    %1873 = vmatpush1.bf16.msra.mxu0 %v1745
    %1874 = vmatprep.subr.bf16.mxu0 0
    %1875 = vmatpush1.bf16.msra.mxu0 %v1748
    %1876 = vmatprep.subr.bf16.mxu0 0
    %1877 = vmatpush1.bf16.msra.mxu0 %v1751
    %1878 = vmatprep.subr.bf16.mxu0 0
    %1879 = vmatpush1.bf16.msra.mxu0 %v1754
    %1880 = vmatprep.subr.bf16.mxu0 0
    %1881 = vmatpush1.bf16.msra.mxu0 %v1757
    %1882 = vmatprep.subr.bf16.mxu0 0
    %1883 = vmatpush1.bf16.msra.mxu0 %v1760
    %1884 = vmatprep.subr.bf16.mxu0 0
    %1885 = vmatpush1.bf16.msra.mxu0 %v1763
    %1886 = vmatprep.subr.bf16.mxu0 0
    %1887 = vmatpush1.bf16.msra.mxu0 %v1766
    %1888 = vmatprep.mubr.bf16.mxu0 %v1546
    %1889 = vmatmul.mubr.bf16.gmra.mrb[0].mxu0 %v1545
    %v1890 = vpop.f32.mrb[0].mxu0
    %v1891 = vadd.f32 %v1558, %v1890
    %v1892 = vpop.f32.mrb[0].mxu0
    %v1893 = vpop.f32.mrb[0].mxu0
    %v1894 = vpop.f32.mrb[0].mxu0
    %1895 = vdwg.mxu0
    %v1896 = vadd.f32 %v1850, %v1852
    %v1897 = vadd.f32 %v1896, %v1891
    %1898 = vadd.xlane.f32.xlu0 %v1897
    %v1899 = vpop.xlane.xlu0 %1898
    %v1900 = vmul.f32 %v1899, 0.025
    %v1901 = vmul.f32 %v1850, %v1850
    %v1902 = vmul.f32 %v1852, %v1852
    %v1903 = vmul.f32 %v1891, %v1891
    %v1904 = vadd.f32 %v1901, %v1902
    %v1905 = vadd.f32 %v1904, %v1903
    %1906 = vadd.xlane.f32.xlu0 %v1905
    %v1907 = vpop.xlane.xlu0 %1906
    %v1908 = vmul.f32 %v1907, 0.025
    %v1909 = vmul.f32 %v1900, %v1900
    %v1910 = vsub.f32 %v1908, %v1909
    %v1911 = vmax.f32 %v1910, 0.0
    %v1912 = vsub.f32 %v1850, %v1900
    %v1913 = vadd.f32 %v1911, 1e-05
    %v1914 = vrsqrt.pop %v1913
    %v1915 = vmul.f32 %v1912, %v1914
    %v1916 = vlaneseq
    %v1917 = vshrl.u32 %v1916, 7
    %v1918 = vsub.s32 1, %v1917
    %v1919 = vrot.slane %v1542, %v1918
    %v1920 = vmul.f32 %v1915, %v1919
    %v1921 = vlaneseq
    %v1922 = vshrl.u32 %v1921, 7
    %v1923 = vsub.s32 2, %v1922
    %v1924 = vrot.slane %v1542, %v1923
    %v1925 = vadd.f32 %v1920, %v1924
    %vm1926 = vcmp.gt.f32.partialorder %v1925, 0.0
    %v1927 = vmul.f32 %v1925, 0.2
    %v1928 = vsel %vm1926, %v1925, %v1927
    %v1929 = vld [vmem:[#allocation2 + $0x600] sm:$0xff]
    %v1930 = vld [vmem:[#allocation2 + $0x608] sm:$0xf]
    %v1931 = vld [vmem:[#allocation2 + $0x60c] sm:$0xff]
    %v1932 = vld [vmem:[#allocation2 + $0x614] sm:$0xf]
    %v1933 = vld [vmem:[#allocation2 + $0x618] sm:$0xff]
    %v1934 = vld [vmem:[#allocation2 + $0x620] sm:$0xf]
    %v1935 = vld [vmem:[#allocation2 + $0x624] sm:$0xff]
    %v1936 = vld [vmem:[#allocation2 + $0x62c] sm:$0xf]
    %v1937 = vld [vmem:[#allocation2 + $0x630] sm:$0xff]
    %v1938 = vld [vmem:[#allocation2 + $0x638] sm:$0xf]
    %v1939 = vld [vmem:[#allocation2 + $0x63c] sm:$0xff]
    %v1940 = vld [vmem:[#allocation2 + $0x644] sm:$0xf]
    %v1941 = vld [vmem:[#allocation2 + $0x648] sm:$0xff]
    %v1942 = vld [vmem:[#allocation2 + $0x650] sm:$0xf]
    %v1943 = vld [vmem:[#allocation2 + $0x654] sm:$0xff]
    %v1944 = vld [vmem:[#allocation2 + $0x65c] sm:$0xf]
    %v1945 = vld [vmem:[#allocation2 + $0x660] sm:$0xff]
    %v1946 = vld [vmem:[#allocation2 + $0x668] sm:$0xf]
    %v1947 = vld [vmem:[#allocation2 + $0x66c] sm:$0xff]
    %v1948 = vld [vmem:[#allocation2 + $0x674] sm:$0xf]
    %v1949 = vld [vmem:[#allocation2 + $0x678] sm:$0xff]
    %v1950 = vld [vmem:[#allocation2 + $0x680] sm:$0xf]
    %v1951 = vld [vmem:[#allocation2 + $0x684] sm:$0xff]
    %v1952 = vld [vmem:[#allocation2 + $0x68c] sm:$0xf]
    %v1953 = vld [vmem:[#allocation2 + $0x690] sm:$0xff]
    %v1954 = vld [vmem:[#allocation2 + $0x698] sm:$0xf]
    %v1955 = vld [vmem:[#allocation2 + $0x69c] sm:$0xff]
    %v1956 = vld [vmem:[#allocation2 + $0x6a4] sm:$0xf]
    %v1957 = vld [vmem:[#allocation2 + $0x6a8] sm:$0xff]
    %v1958 = vld [vmem:[#allocation2 + $0x6b0] sm:$0xf]
    %v1959 = vld [vmem:[#allocation2 + $0x6b4] sm:$0xff]
    %v1960 = vld [vmem:[#allocation2 + $0x6bc] sm:$0xf]
    %v1961 = vld [vmem:[#allocation4 + $0x48] sm:$0xff]
    %v1962 = vld [vmem:[#allocation4 + $0x50] sm:$0xff]
    %v1963 = vld [vmem:[#allocation4 + $0x58] sm:$0xff]
    %v1964 = vpack.c.bf16 %v1928, %v1928
    %v1965 = vlaneseq
    %v1966 = vshrl.u32 %v1965, 7
    %v1967 = vsub.s32 0, %v1966
    %v1968 = vrot.slane %v1961, %v1967
    %v1969 = vlaneseq
    %v1970 = vshrl.u32 %v1969, 7
    %v1971 = vsub.s32 0, %v1970
    %v1972 = vrot.slane %v1962, %v1971
    %v1973 = vlaneseq
    %v1974 = vshrl.u32 %v1973, 7
    %v1975 = vsub.s32 0, %v1974
    %v1976 = vrot.slane %v1963, %v1975
    %v2009 = vunpack.c.l.b16 %v1929
    %v2010 = vunpack.c.h.b16 %v1929
    %v2011 = vunpack.c.l.b16 %v1930
    %v2012 = vunpack.c.l.b16 %v1931
    %v2013 = vunpack.c.h.b16 %v1931
    %v2014 = vunpack.c.l.b16 %v1932
    %v2015 = vunpack.c.l.b16 %v1933
    %v2016 = vunpack.c.h.b16 %v1933
    %v2017 = vunpack.c.l.b16 %v1934
    %v2018 = vunpack.c.l.b16 %v1935
    %v2019 = vunpack.c.h.b16 %v1935
    %v2020 = vunpack.c.l.b16 %v1936
    %v2021 = vunpack.c.l.b16 %v1937
    %v2022 = vunpack.c.h.b16 %v1937
    %v2023 = vunpack.c.l.b16 %v1938
    %v2024 = vunpack.c.l.b16 %v1939
    %v2025 = vunpack.c.h.b16 %v1939
    %v2026 = vunpack.c.l.b16 %v1940
    %v2027 = vunpack.c.l.b16 %v1941
    %v2028 = vunpack.c.h.b16 %v1941
    %v2029 = vunpack.c.l.b16 %v1942
    %v2030 = vunpack.c.l.b16 %v1943
    %v2031 = vunpack.c.h.b16 %v1943
    %v2032 = vunpack.c.l.b16 %v1944
    %v2033 = vunpack.c.l.b16 %v1945
    %v2034 = vunpack.c.h.b16 %v1945
    %v2035 = vunpack.c.l.b16 %v1946
    %v2036 = vunpack.c.l.b16 %v1947
    %v2037 = vunpack.c.h.b16 %v1947
    %v2038 = vunpack.c.l.b16 %v1948
    %v2039 = vunpack.c.l.b16 %v1949
    %v2040 = vunpack.c.h.b16 %v1949
    %v2041 = vunpack.c.l.b16 %v1950
    %v2042 = vunpack.c.l.b16 %v1951
    %v2043 = vunpack.c.h.b16 %v1951
    %v2044 = vunpack.c.l.b16 %v1952
    %v2045 = vunpack.c.l.b16 %v1953
    %v2046 = vunpack.c.h.b16 %v1953
    %v2047 = vunpack.c.l.b16 %v1954
    %v2048 = vunpack.c.l.b16 %v1955
    %v2049 = vunpack.c.h.b16 %v1955
    %v2050 = vunpack.c.l.b16 %v1956
    %v2051 = vunpack.c.l.b16 %v1957
    %v2052 = vunpack.c.h.b16 %v1957
    %v2053 = vunpack.c.l.b16 %v1958
    %v2054 = vunpack.c.l.b16 %v1959
    %v2055 = vunpack.c.h.b16 %v1959
    %v2056 = vunpack.c.l.b16 %v1960
    %v2057 = vpack.c.b16 %v2012, %v2009
    %v2058 = vpack.c.b16 %v2013, %v2010
    %v2059 = vpack.c.b16 %v2014, %v2011
    %v2060 = vpack.c.b16 %v2018, %v2015
    %v2061 = vpack.c.b16 %v2019, %v2016
    %v2062 = vpack.c.b16 %v2020, %v2017
    %v2063 = vpack.c.b16 %v2024, %v2021
    %v2064 = vpack.c.b16 %v2025, %v2022
    %v2065 = vpack.c.b16 %v2026, %v2023
    %v2066 = vpack.c.b16 %v2030, %v2027
    %v2067 = vpack.c.b16 %v2031, %v2028
    %v2068 = vpack.c.b16 %v2032, %v2029
    %v2069 = vpack.c.b16 %v2036, %v2033
    %v2070 = vpack.c.b16 %v2037, %v2034
    %v2071 = vpack.c.b16 %v2038, %v2035
    %v2072 = vpack.c.b16 %v2042, %v2039
    %v2073 = vpack.c.b16 %v2043, %v2040
    %v2074 = vpack.c.b16 %v2044, %v2041
    %v2075 = vpack.c.b16 %v2048, %v2045
    %v2076 = vpack.c.b16 %v2049, %v2046
    %v2077 = vpack.c.b16 %v2050, %v2047
    %v2078 = vpack.c.b16 %v2054, %v2051
    %v2079 = vpack.c.b16 %v2055, %v2052
    %v2080 = vpack.c.b16 %v2056, %v2053
    %2105 = vmatprep.subr.bf16.mxu0 %v2058
    %2106 = vmatpush1.bf16.msra.mxu0 %v2057
    %2107 = vmatprep.subr.bf16.mxu0 %v2061
    %2108 = vmatpush1.bf16.msra.mxu0 %v2060
    %2109 = vmatprep.subr.bf16.mxu0 %v2064
    %2110 = vmatpush1.bf16.msra.mxu0 %v2063
    %2111 = vmatprep.subr.bf16.mxu0 %v2067
    %2112 = vmatpush1.bf16.msra.mxu0 %v2066
    %2113 = vmatprep.subr.bf16.mxu0 %v2070
    %2114 = vmatpush1.bf16.msra.mxu0 %v2069
    %2115 = vmatprep.subr.bf16.mxu0 %v2073
    %2116 = vmatpush1.bf16.msra.mxu0 %v2072
    %2117 = vmatprep.subr.bf16.mxu0 %v2076
    %2118 = vmatpush1.bf16.msra.mxu0 %v2075
    %2119 = vmatprep.subr.bf16.mxu0 %v2079
    %2120 = vmatpush1.bf16.msra.mxu0 %v2078
    %2121 = vmatprep.subr.bf16.mxu0 0
    %2122 = vmatpush1.bf16.msra.mxu0 0
    %2123 = vmatprep.subr.bf16.mxu0 0
    %2124 = vmatpush1.bf16.msra.mxu0 0
    %2125 = vmatprep.subr.bf16.mxu0 0
    %2126 = vmatpush1.bf16.msra.mxu0 0
    %2127 = vmatprep.subr.bf16.mxu0 0
    %2128 = vmatpush1.bf16.msra.mxu0 0
    %2129 = vmatprep.subr.bf16.mxu0 0
    %2130 = vmatpush1.bf16.msra.mxu0 0
    %2131 = vmatprep.subr.bf16.mxu0 0
    %2132 = vmatpush1.bf16.msra.mxu0 0
    %2133 = vmatprep.subr.bf16.mxu0 0
    %2134 = vmatpush1.bf16.msra.mxu0 0
    %2135 = vmatprep.subr.bf16.mxu0 0
    %2136 = vmatpush1.bf16.msra.mxu0 0
    %2137 = vmatprep.mubr.bf16.mxu0 0
    %2138 = vmatmul.mubr.bf16.gmra.mrb[0].mxu0 %v1964
    %v2139 = vpop.f32.mrb[0].mxu0
    %v2140 = vadd.f32 %v1968, %v2139
    %v2141 = vpop.f32.mrb[0].mxu0
    %v2142 = vadd.f32 %v1972, %v2141
    %v2143 = vpop.f32.mrb[0].mxu0
    %v2144 = vpop.f32.mrb[0].mxu0
    %2145 = vdwg.mxu0
    %2146 = vmatprep.subr.bf16.mxu0 0
    %2147 = vmatpush1.bf16.msra.mxu0 %v2059
    %2148 = vmatprep.subr.bf16.mxu0 0
    %2149 = vmatpush1.bf16.msra.mxu0 %v2062
    %2150 = vmatprep.subr.bf16.mxu0 0
    %2151 = vmatpush1.bf16.msra.mxu0 %v2065
    %2152 = vmatprep.subr.bf16.mxu0 0
    %2153 = vmatpush1.bf16.msra.mxu0 %v2068
    %2154 = vmatprep.subr.bf16.mxu0 0
    %2155 = vmatpush1.bf16.msra.mxu0 %v2071
    %2156 = vmatprep.subr.bf16.mxu0 0
    %2157 = vmatpush1.bf16.msra.mxu0 %v2074
    %2158 = vmatprep.subr.bf16.mxu0 0
    %2159 = vmatpush1.bf16.msra.mxu0 %v2077
    %2160 = vmatprep.subr.bf16.mxu0 0
    %2161 = vmatpush1.bf16.msra.mxu0 %v2080
    %2162 = vmatprep.subr.bf16.mxu0 0
    %2163 = vmatpush1.bf16.msra.mxu0 0
    %2164 = vmatprep.subr.bf16.mxu0 0
    %2165 = vmatpush1.bf16.msra.mxu0 0
    %2166 = vmatprep.subr.bf16.mxu0 0
    %2167 = vmatpush1.bf16.msra.mxu0 0
    %2168 = vmatprep.subr.bf16.mxu0 0
    %2169 = vmatpush1.bf16.msra.mxu0 0
    %2170 = vmatprep.subr.bf16.mxu0 0
    %2171 = vmatpush1.bf16.msra.mxu0 0
    %2172 = vmatprep.subr.bf16.mxu0 0
    %2173 = vmatpush1.bf16.msra.mxu0 0
    %2174 = vmatprep.subr.bf16.mxu0 0
    %2175 = vmatpush1.bf16.msra.mxu0 0
    %2176 = vmatprep.subr.bf16.mxu0 0
    %2177 = vmatpush1.bf16.msra.mxu0 0
    %2178 = vmatprep.mubr.bf16.mxu0 0
    %2179 = vmatmul.mubr.bf16.gmra.mrb[0].mxu0 %v1964
    %v2180 = vpop.f32.mrb[0].mxu0
    %v2181 = vadd.f32 %v1976, %v2180
    %v2182 = vpop.f32.mrb[0].mxu0
    %v2183 = vpop.f32.mrb[0].mxu0
    %v2184 = vpop.f32.mrb[0].mxu0
    %2185 = vdwg.mxu0
    %v2186 = vadd.f32 %v2140, %v2142
    %v2187 = vadd.f32 %v2186, %v2181
    %2188 = vadd.xlane.f32.xlu0 %v2187
    %v2189 = vpop.xlane.xlu0 %2188
    %v2190 = vmul.f32 %v2189, 0.03125
    %v2191 = vmul.f32 %v2140, %v2140
    %v2192 = vmul.f32 %v2142, %v2142
    %v2193 = vmul.f32 %v2181, %v2181
    %v2194 = vadd.f32 %v2191, %v2192
    %v2195 = vadd.f32 %v2194, %v2193
    %2196 = vadd.xlane.f32.xlu0 %v2195
    %v2197 = vpop.xlane.xlu0 %2196
    %v2198 = vmul.f32 %v2197, 0.03125
    %v2199 = vmul.f32 %v2190, %v2190
    %v2200 = vsub.f32 %v2198, %v2199
    %v2201 = vmax.f32 %v2200, 0.0
    %v2202 = vsub.f32 %v2140, %v2190
    %v2203 = vadd.f32 %v2201, 1e-05
    %v2204 = vrsqrt.pop %v2203
    %v2205 = vmul.f32 %v2202, %v2204
    %v2206 = vlaneseq
    %v2207 = vshrl.u32 %v2206, 7
    %v2208 = vsub.s32 1, %v2207
    %v2209 = vrot.slane %v1961, %v2208
    %v2210 = vmul.f32 %v2205, %v2209
    %v2211 = vlaneseq
    %v2212 = vshrl.u32 %v2211, 7
    %v2213 = vsub.s32 2, %v2212
    %v2214 = vrot.slane %v1961, %v2213
    %v2215 = vadd.f32 %v2210, %v2214
    %vm2216 = vcmp.gt.f32.partialorder %v2215, 0.0
    %v2217 = vmul.f32 %v2215, 0.2
    %v2218 = vsel %vm2216, %v2215, %v2217
    %v2219 = vld [vmem:[#allocation2 + $0x6c0] sm:$0xff]
    %v2220 = vld [vmem:[#allocation2 + $0x6c8] sm:$0xf]
    %v2221 = vld [vmem:[#allocation2 + $0x6cc] sm:$0xff]
    %v2222 = vld [vmem:[#allocation2 + $0x6d4] sm:$0xf]
    %v2223 = vld [vmem:[#allocation2 + $0x6d8] sm:$0xff]
    %v2224 = vld [vmem:[#allocation2 + $0x6e0] sm:$0xf]
    %v2225 = vld [vmem:[#allocation2 + $0x6e4] sm:$0xff]
    %v2226 = vld [vmem:[#allocation2 + $0x6ec] sm:$0xf]
    %v2227 = vld [vmem:[#allocation2 + $0x6f0] sm:$0xff]
    %v2228 = vld [vmem:[#allocation2 + $0x6f8] sm:$0xf]
    %v2229 = vld [vmem:[#allocation2 + $0x6fc] sm:$0xff]
    %v2230 = vld [vmem:[#allocation2 + $0x704] sm:$0xf]
    %v2231 = vld [vmem:[#allocation2 + $0x708] sm:$0xff]
    %v2232 = vld [vmem:[#allocation2 + $0x710] sm:$0xf]
    %v2233 = vld [vmem:[#allocation2 + $0x714] sm:$0xff]
    %v2234 = vld [vmem:[#allocation2 + $0x71c] sm:$0xf]
    %v2235 = vld [vmem:[#allocation2 + $0x720] sm:$0xff]
    %v2236 = vld [vmem:[#allocation2 + $0x728] sm:$0xf]
    %v2237 = vld [vmem:[#allocation2 + $0x72c] sm:$0xff]
    %v2238 = vld [vmem:[#allocation2 + $0x734] sm:$0xf]
    %v2239 = vld [vmem:[#allocation2 + $0x738] sm:$0xff]
    %v2240 = vld [vmem:[#allocation2 + $0x740] sm:$0xf]
    %v2241 = vld [vmem:[#allocation2 + $0x744] sm:$0xff]
    %v2242 = vld [vmem:[#allocation2 + $0x74c] sm:$0xf]
    %v2243 = vld [vmem:[#allocation2 + $0x750] sm:$0xff]
    %v2244 = vld [vmem:[#allocation2 + $0x758] sm:$0xf]
    %v2245 = vld [vmem:[#allocation2 + $0x75c] sm:$0xff]
    %v2246 = vld [vmem:[#allocation2 + $0x764] sm:$0xf]
    %v2247 = vld [vmem:[#allocation2 + $0x768] sm:$0xff]
    %v2248 = vld [vmem:[#allocation2 + $0x770] sm:$0xf]
    %v2249 = vld [vmem:[#allocation2 + $0x774] sm:$0xff]
    %v2250 = vld [vmem:[#allocation2 + $0x77c] sm:$0xf]
    %v2251 = vld [vmem:[#allocation4 + $0x60] sm:$0xff]
    %v2252 = vld [vmem:[#allocation4 + $0x68] sm:$0xff]
    %v2253 = vld [vmem:[#allocation4 + $0x70] sm:$0xff]
    %v2254 = vpack.c.bf16 %v2218, %v2218
    %v2255 = vlaneseq
    %v2256 = vshrl.u32 %v2255, 7
    %v2257 = vsub.s32 0, %v2256
    %v2258 = vrot.slane %v2251, %v2257
    %v2259 = vlaneseq
    %v2260 = vshrl.u32 %v2259, 7
    %v2261 = vsub.s32 0, %v2260
    %v2262 = vrot.slane %v2252, %v2261
    %v2263 = vlaneseq
    %v2264 = vshrl.u32 %v2263, 7
    %v2265 = vsub.s32 0, %v2264
    %v2266 = vrot.slane %v2253, %v2265
    %v2299 = vunpack.c.l.b16 %v2219
    %v2300 = vunpack.c.h.b16 %v2219
    %v2301 = vunpack.c.l.b16 %v2220
    %v2302 = vunpack.c.l.b16 %v2221
    %v2303 = vunpack.c.h.b16 %v2221
    %v2304 = vunpack.c.l.b16 %v2222
    %v2305 = vunpack.c.l.b16 %v2223
    %v2306 = vunpack.c.h.b16 %v2223
    %v2307 = vunpack.c.l.b16 %v2224
    %v2308 = vunpack.c.l.b16 %v2225
    %v2309 = vunpack.c.h.b16 %v2225
    %v2310 = vunpack.c.l.b16 %v2226
    %v2311 = vunpack.c.l.b16 %v2227
    %v2312 = vunpack.c.h.b16 %v2227
    %v2313 = vunpack.c.l.b16 %v2228
    %v2314 = vunpack.c.l.b16 %v2229
    %v2315 = vunpack.c.h.b16 %v2229
    %v2316 = vunpack.c.l.b16 %v2230
    %v2317 = vunpack.c.l.b16 %v2231
    %v2318 = vunpack.c.h.b16 %v2231
    %v2319 = vunpack.c.l.b16 %v2232
    %v2320 = vunpack.c.l.b16 %v2233
    %v2321 = vunpack.c.h.b16 %v2233
    %v2322 = vunpack.c.l.b16 %v2234
    %v2323 = vunpack.c.l.b16 %v2235
    %v2324 = vunpack.c.h.b16 %v2235
    %v2325 = vunpack.c.l.b16 %v2236
    %v2326 = vunpack.c.l.b16 %v2237
    %v2327 = vunpack.c.h.b16 %v2237
    %v2328 = vunpack.c.l.b16 %v2238
    %v2329 = vunpack.c.l.b16 %v2239
    %v2330 = vunpack.c.h.b16 %v2239
    %v2331 = vunpack.c.l.b16 %v2240
    %v2332 = vunpack.c.l.b16 %v2241
    %v2333 = vunpack.c.h.b16 %v2241
    %v2334 = vunpack.c.l.b16 %v2242
    %v2335 = vunpack.c.l.b16 %v2243
    %v2336 = vunpack.c.h.b16 %v2243
    %v2337 = vunpack.c.l.b16 %v2244
    %v2338 = vunpack.c.l.b16 %v2245
    %v2339 = vunpack.c.h.b16 %v2245
    %v2340 = vunpack.c.l.b16 %v2246
    %v2341 = vunpack.c.l.b16 %v2247
    %v2342 = vunpack.c.h.b16 %v2247
    %v2343 = vunpack.c.l.b16 %v2248
    %v2344 = vunpack.c.l.b16 %v2249
    %v2345 = vunpack.c.h.b16 %v2249
    %v2346 = vunpack.c.l.b16 %v2250
    %v2347 = vpack.c.b16 %v2302, %v2299
    %v2348 = vpack.c.b16 %v2303, %v2300
    %v2349 = vpack.c.b16 %v2304, %v2301
    %v2350 = vpack.c.b16 %v2308, %v2305
    %v2351 = vpack.c.b16 %v2309, %v2306
    %v2352 = vpack.c.b16 %v2310, %v2307
    %v2353 = vpack.c.b16 %v2314, %v2311
    %v2354 = vpack.c.b16 %v2315, %v2312
    %v2355 = vpack.c.b16 %v2316, %v2313
    %v2356 = vpack.c.b16 %v2320, %v2317
    %v2357 = vpack.c.b16 %v2321, %v2318
    %v2358 = vpack.c.b16 %v2322, %v2319
    %v2359 = vpack.c.b16 %v2326, %v2323
    %v2360 = vpack.c.b16 %v2327, %v2324
    %v2361 = vpack.c.b16 %v2328, %v2325
    %v2362 = vpack.c.b16 %v2332, %v2329
    %v2363 = vpack.c.b16 %v2333, %v2330
    %v2364 = vpack.c.b16 %v2334, %v2331
    %v2365 = vpack.c.b16 %v2338, %v2335
    %v2366 = vpack.c.b16 %v2339, %v2336
    %v2367 = vpack.c.b16 %v2340, %v2337
    %v2368 = vpack.c.b16 %v2344, %v2341
    %v2369 = vpack.c.b16 %v2345, %v2342
    %v2370 = vpack.c.b16 %v2346, %v2343
    %2395 = vmatprep.subr.bf16.mxu0 %v2348
    %2396 = vmatpush1.bf16.msra.mxu0 %v2347
    %2397 = vmatprep.subr.bf16.mxu0 %v2351
    %2398 = vmatpush1.bf16.msra.mxu0 %v2350
    %2399 = vmatprep.subr.bf16.mxu0 %v2354
    %2400 = vmatpush1.bf16.msra.mxu0 %v2353
    %2401 = vmatprep.subr.bf16.mxu0 %v2357
    %2402 = vmatpush1.bf16.msra.mxu0 %v2356
    %2403 = vmatprep.subr.bf16.mxu0 %v2360
    %2404 = vmatpush1.bf16.msra.mxu0 %v2359
    %2405 = vmatprep.subr.bf16.mxu0 %v2363
    %2406 = vmatpush1.bf16.msra.mxu0 %v2362
    %2407 = vmatprep.subr.bf16.mxu0 %v2366
    %2408 = vmatpush1.bf16.msra.mxu0 %v2365
    %2409 = vmatprep.subr.bf16.mxu0 %v2369
    %2410 = vmatpush1.bf16.msra.mxu0 %v2368
    %2411 = vmatprep.subr.bf16.mxu0 0
    %2412 = vmatpush1.bf16.msra.mxu0 0
    %2413 = vmatprep.subr.bf16.mxu0 0
    %2414 = vmatpush1.bf16.msra.mxu0 0
    %2415 = vmatprep.subr.bf16.mxu0 0
    %2416 = vmatpush1.bf16.msra.mxu0 0
    %2417 = vmatprep.subr.bf16.mxu0 0
    %2418 = vmatpush1.bf16.msra.mxu0 0
    %2419 = vmatprep.subr.bf16.mxu0 0
    %2420 = vmatpush1.bf16.msra.mxu0 0
    %2421 = vmatprep.subr.bf16.mxu0 0
    %2422 = vmatpush1.bf16.msra.mxu0 0
    %2423 = vmatprep.subr.bf16.mxu0 0
    %2424 = vmatpush1.bf16.msra.mxu0 0
    %2425 = vmatprep.subr.bf16.mxu0 0
    %2426 = vmatpush1.bf16.msra.mxu0 0
    %2427 = vmatprep.mubr.bf16.mxu0 0
    %2428 = vmatmul.mubr.bf16.gmra.mrb[0].mxu0 %v2254
    %v2429 = vpop.f32.mrb[0].mxu0
    %v2430 = vadd.f32 %v2258, %v2429
    %v2431 = vpop.f32.mrb[0].mxu0
    %v2432 = vadd.f32 %v2262, %v2431
    %v2433 = vpop.f32.mrb[0].mxu0
    %v2434 = vpop.f32.mrb[0].mxu0
    %2435 = vdwg.mxu0
    %2436 = vmatprep.subr.bf16.mxu0 0
    %2437 = vmatpush1.bf16.msra.mxu0 %v2349
    %2438 = vmatprep.subr.bf16.mxu0 0
    %2439 = vmatpush1.bf16.msra.mxu0 %v2352
    %2440 = vmatprep.subr.bf16.mxu0 0
    %2441 = vmatpush1.bf16.msra.mxu0 %v2355
    %2442 = vmatprep.subr.bf16.mxu0 0
    %2443 = vmatpush1.bf16.msra.mxu0 %v2358
    %2444 = vmatprep.subr.bf16.mxu0 0
    %2445 = vmatpush1.bf16.msra.mxu0 %v2361
    %2446 = vmatprep.subr.bf16.mxu0 0
    %2447 = vmatpush1.bf16.msra.mxu0 %v2364
    %2448 = vmatprep.subr.bf16.mxu0 0
    %2449 = vmatpush1.bf16.msra.mxu0 %v2367
    %2450 = vmatprep.subr.bf16.mxu0 0
    %2451 = vmatpush1.bf16.msra.mxu0 %v2370
    %2452 = vmatprep.subr.bf16.mxu0 0
    %2453 = vmatpush1.bf16.msra.mxu0 0
    %2454 = vmatprep.subr.bf16.mxu0 0
    %2455 = vmatpush1.bf16.msra.mxu0 0
    %2456 = vmatprep.subr.bf16.mxu0 0
    %2457 = vmatpush1.bf16.msra.mxu0 0
    %2458 = vmatprep.subr.bf16.mxu0 0
    %2459 = vmatpush1.bf16.msra.mxu0 0
    %2460 = vmatprep.subr.bf16.mxu0 0
    %2461 = vmatpush1.bf16.msra.mxu0 0
    %2462 = vmatprep.subr.bf16.mxu0 0
    %2463 = vmatpush1.bf16.msra.mxu0 0
    %2464 = vmatprep.subr.bf16.mxu0 0
    %2465 = vmatpush1.bf16.msra.mxu0 0
    %2466 = vmatprep.subr.bf16.mxu0 0
    %2467 = vmatpush1.bf16.msra.mxu0 0
    %2468 = vmatprep.mubr.bf16.mxu0 0
    %2469 = vmatmul.mubr.bf16.gmra.mrb[0].mxu0 %v2254
    %v2470 = vpop.f32.mrb[0].mxu0
    %v2471 = vadd.f32 %v2266, %v2470
    %v2472 = vpop.f32.mrb[0].mxu0
    %v2473 = vpop.f32.mrb[0].mxu0
    %v2474 = vpop.f32.mrb[0].mxu0
    %2475 = vdwg.mxu0
    %v2476 = vadd.f32 %v2430, %v2432
    %v2477 = vadd.f32 %v2476, %v2471
    %2478 = vadd.xlane.f32.xlu0 %v2477
    %v2479 = vpop.xlane.xlu0 %2478
    %v2480 = vmul.f32 %v2479, 0.0625
    %v2481 = vmul.f32 %v2430, %v2430
    %v2482 = vmul.f32 %v2432, %v2432
    %v2483 = vmul.f32 %v2471, %v2471
    %v2484 = vadd.f32 %v2481, %v2482
    %v2485 = vadd.f32 %v2484, %v2483
    %2486 = vadd.xlane.f32.xlu0 %v2485
    %v2487 = vpop.xlane.xlu0 %2486
    %v2488 = vmul.f32 %v2487, 0.0625
    %v2489 = vmul.f32 %v2480, %v2480
    %v2490 = vsub.f32 %v2488, %v2489
    %v2491 = vmax.f32 %v2490, 0.0
    %v2492 = vsub.f32 %v2430, %v2480
    %v2493 = vadd.f32 %v2491, 1e-05
    %v2494 = vrsqrt.pop %v2493
    %v2495 = vmul.f32 %v2492, %v2494
    %v2496 = vlaneseq
    %v2497 = vshrl.u32 %v2496, 7
    %v2498 = vsub.s32 1, %v2497
    %v2499 = vrot.slane %v2251, %v2498
    %v2500 = vmul.f32 %v2495, %v2499
    %v2501 = vlaneseq
    %v2502 = vshrl.u32 %v2501, 7
    %v2503 = vsub.s32 2, %v2502
    %v2504 = vrot.slane %v2251, %v2503
    %v2505 = vadd.f32 %v2500, %v2504
    %vm2506 = vcmp.gt.f32.partialorder %v2505, 0.0
    %v2507 = vmul.f32 %v2505, 0.2
    %v2508 = vsel %vm2506, %v2505, %v2507
    %v2509 = vld [vmem:[#allocation2 + $0x780] sm:$0xff]
    %v2510 = vld [vmem:[#allocation2 + $0x78c] sm:$0xff]
    %v2511 = vld [vmem:[#allocation2 + $0x798] sm:$0xff]
    %v2512 = vld [vmem:[#allocation2 + $0x7a4] sm:$0xff]
    %v2513 = vld [vmem:[#allocation2 + $0x7b0] sm:$0xff]
    %v2514 = vld [vmem:[#allocation2 + $0x7bc] sm:$0xff]
    %v2515 = vld [vmem:[#allocation2 + $0x7c8] sm:$0xff]
    %v2516 = vld [vmem:[#allocation2 + $0x7d4] sm:$0xff]
    %v2517 = vld [vmem:[#allocation2 + $0x7e0] sm:$0xff]
    %v2518 = vld [vmem:[#allocation2 + $0x7ec] sm:$0xff]
    %v2519 = vld [vmem:[#allocation2 + $0x7f8] sm:$0xff]
    %v2520 = vld [vmem:[#allocation2 + $0x804] sm:$0xff]
    %v2521 = vld [vmem:[#allocation2 + $0x810] sm:$0xff]
    %v2522 = vld [vmem:[#allocation2 + $0x81c] sm:$0xff]
    %v2523 = vld [vmem:[#allocation2 + $0x828] sm:$0xff]
    %v2524 = vld [vmem:[#allocation2 + $0x834] sm:$0xff]
    %v2525 = vld [vmem:[#allocation4 + $0x78] sm:$0xff]
    %v2526 = vld [vmem:[#allocation4 + $0x80] sm:$0xff]
    %v2527 = vpack.c.bf16 %v2508, %v2508
    %v2528 = vlaneseq
    %v2529 = vshrl.u32 %v2528, 7
    %v2530 = vsub.s32 0, %v2529
    %v2531 = vrot.slane %v2525, %v2530
    %v2532 = vlaneseq
    %v2533 = vshrl.u32 %v2532, 7
    %v2534 = vsub.s32 0, %v2533
    %v2535 = vrot.slane %v2526, %v2534
    %v2552 = vunpack.c.l.b16 %v2509
    %v2553 = vunpack.c.h.b16 %v2509
    %v2554 = vunpack.c.l.b16 %v2510
    %v2555 = vunpack.c.h.b16 %v2510
    %v2556 = vunpack.c.l.b16 %v2511
    %v2557 = vunpack.c.h.b16 %v2511
    %v2558 = vunpack.c.l.b16 %v2512
    %v2559 = vunpack.c.h.b16 %v2512
    %v2560 = vunpack.c.l.b16 %v2513
    %v2561 = vunpack.c.h.b16 %v2513
    %v2562 = vunpack.c.l.b16 %v2514
    %v2563 = vunpack.c.h.b16 %v2514
    %v2564 = vunpack.c.l.b16 %v2515
    %v2565 = vunpack.c.h.b16 %v2515
    %v2566 = vunpack.c.l.b16 %v2516
    %v2567 = vunpack.c.h.b16 %v2516
    %v2568 = vunpack.c.l.b16 %v2517
    %v2569 = vunpack.c.h.b16 %v2517
    %v2570 = vunpack.c.l.b16 %v2518
    %v2571 = vunpack.c.h.b16 %v2518
    %v2572 = vunpack.c.l.b16 %v2519
    %v2573 = vunpack.c.h.b16 %v2519
    %v2574 = vunpack.c.l.b16 %v2520
    %v2575 = vunpack.c.h.b16 %v2520
    %v2576 = vunpack.c.l.b16 %v2521
    %v2577 = vunpack.c.h.b16 %v2521
    %v2578 = vunpack.c.l.b16 %v2522
    %v2579 = vunpack.c.h.b16 %v2522
    %v2580 = vunpack.c.l.b16 %v2523
    %v2581 = vunpack.c.h.b16 %v2523
    %v2582 = vunpack.c.l.b16 %v2524
    %v2583 = vunpack.c.h.b16 %v2524
    %v2584 = vpack.c.b16 %v2554, %v2552
    %v2585 = vpack.c.b16 %v2555, %v2553
    %v2586 = vpack.c.b16 %v2558, %v2556
    %v2587 = vpack.c.b16 %v2559, %v2557
    %v2588 = vpack.c.b16 %v2562, %v2560
    %v2589 = vpack.c.b16 %v2563, %v2561
    %v2590 = vpack.c.b16 %v2566, %v2564
    %v2591 = vpack.c.b16 %v2567, %v2565
    %v2592 = vpack.c.b16 %v2570, %v2568
    %v2593 = vpack.c.b16 %v2571, %v2569
    %v2594 = vpack.c.b16 %v2574, %v2572
    %v2595 = vpack.c.b16 %v2575, %v2573
    %v2596 = vpack.c.b16 %v2578, %v2576
    %v2597 = vpack.c.b16 %v2579, %v2577
    %v2598 = vpack.c.b16 %v2582, %v2580
    %v2599 = vpack.c.b16 %v2583, %v2581
    %2616 = vmatprep.subr.bf16.mxu0 %v2585
    %2617 = vmatpush1.bf16.msra.mxu0 %v2584
    %2618 = vmatprep.subr.bf16.mxu0 %v2587
    %2619 = vmatpush1.bf16.msra.mxu0 %v2586
    %2620 = vmatprep.subr.bf16.mxu0 %v2589
    %2621 = vmatpush1.bf16.msra.mxu0 %v2588
    %2622 = vmatprep.subr.bf16.mxu0 %v2591
    %2623 = vmatpush1.bf16.msra.mxu0 %v2590
    %2624 = vmatprep.subr.bf16.mxu0 %v2593
    %2625 = vmatpush1.bf16.msra.mxu0 %v2592
    %2626 = vmatprep.subr.bf16.mxu0 %v2595
    %2627 = vmatpush1.bf16.msra.mxu0 %v2594
    %2628 = vmatprep.subr.bf16.mxu0 %v2597
    %2629 = vmatpush1.bf16.msra.mxu0 %v2596
    %2630 = vmatprep.subr.bf16.mxu0 %v2599
    %2631 = vmatpush1.bf16.msra.mxu0 %v2598
    %2632 = vmatprep.subr.bf16.mxu0 0
    %2633 = vmatpush1.bf16.msra.mxu0 0
    %2634 = vmatprep.subr.bf16.mxu0 0
    %2635 = vmatpush1.bf16.msra.mxu0 0
    %2636 = vmatprep.subr.bf16.mxu0 0
    %2637 = vmatpush1.bf16.msra.mxu0 0
    %2638 = vmatprep.subr.bf16.mxu0 0
    %2639 = vmatpush1.bf16.msra.mxu0 0
    %2640 = vmatprep.subr.bf16.mxu0 0
    %2641 = vmatpush1.bf16.msra.mxu0 0
    %2642 = vmatprep.subr.bf16.mxu0 0
    %2643 = vmatpush1.bf16.msra.mxu0 0
    %2644 = vmatprep.subr.bf16.mxu0 0
    %2645 = vmatpush1.bf16.msra.mxu0 0
    %2646 = vmatprep.subr.bf16.mxu0 0
    %2647 = vmatpush1.bf16.msra.mxu0 0
    %2648 = vmatprep.mubr.bf16.mxu0 0
    %2649 = vmatmul.mubr.bf16.gmra.mrb[0].mxu0 %v2527
    %v2650 = vpop.f32.mrb[0].mxu0
    %v2651 = vadd.f32 %v2531, %v2650
    %v2652 = vpop.f32.mrb[0].mxu0
    %v2653 = vadd.f32 %v2535, %v2652
    %v2654 = vpop.f32.mrb[0].mxu0
    %v2655 = vpop.f32.mrb[0].mxu0
    %2656 = vdwg.mxu0
    %v2657 = vlaneseq
    %v2658 = vand.u32 %v2657, 127
    %vm2659 = vcmp.lt.s32.totalorder %v2658, 4
    %v2660 = vsel %vm2659, %v2651, 0.0
    %v2661 = vmul.f32 %v2653, 0.5
    %v2662 = vmul.f32 %v2661, 1.442695
    %v2663 = vpow.pop %v2662
    %v2664 = vmul.f32 %v2663, %v46
    %v2665 = vadd.f32 %v2660, %v2664
    %v2666 = vld [vmem:[#allocation2 + $0x840] sm:$0xff]
    %v2667 = vld [vmem:[#allocation2 + $0x848] sm:$0xf]
    %v2668 = vld [vmem:[#allocation2 + $0x84c] sm:$0xff]
    %v2669 = vld [vmem:[#allocation2 + $0x854] sm:$0xf]
    %v2670 = vld [vmem:[#allocation2 + $0x858] sm:$0xff]
    %v2671 = vld [vmem:[#allocation2 + $0x860] sm:$0xf]
    %v2672 = vld [vmem:[#allocation2 + $0x864] sm:$0xff]
    %v2673 = vld [vmem:[#allocation2 + $0x86c] sm:$0xf]
    %v2674 = vld [vmem:[#allocation2 + $0x870] sm:$0xff]
    %v2675 = vld [vmem:[#allocation2 + $0x878] sm:$0xf]
    %v2676 = vld [vmem:[#allocation2 + $0x87c] sm:$0xff]
    %v2677 = vld [vmem:[#allocation2 + $0x884] sm:$0xf]
    %v2678 = vld [vmem:[#allocation2 + $0x888] sm:$0xff]
    %v2679 = vld [vmem:[#allocation2 + $0x890] sm:$0xf]
    %v2680 = vld [vmem:[#allocation2 + $0x894] sm:$0xff]
    %v2681 = vld [vmem:[#allocation2 + $0x89c] sm:$0xf]
    %v2682 = vld [vmem:[#allocation2 + $0x8a0] sm:$0xff]
    %v2683 = vld [vmem:[#allocation2 + $0x8a8] sm:$0xf]
    %v2684 = vld [vmem:[#allocation2 + $0x8ac] sm:$0xff]
    %v2685 = vld [vmem:[#allocation2 + $0x8b4] sm:$0xf]
    %v2686 = vld [vmem:[#allocation2 + $0x8b8] sm:$0xff]
    %v2687 = vld [vmem:[#allocation2 + $0x8c0] sm:$0xf]
    %v2688 = vld [vmem:[#allocation2 + $0x8c4] sm:$0xff]
    %v2689 = vld [vmem:[#allocation2 + $0x8cc] sm:$0xf]
    %v2690 = vld [vmem:[#allocation2 + $0x8d0] sm:$0xff]
    %v2691 = vld [vmem:[#allocation2 + $0x8d8] sm:$0xf]
    %v2692 = vld [vmem:[#allocation2 + $0x8dc] sm:$0xff]
    %v2693 = vld [vmem:[#allocation2 + $0x8e4] sm:$0xf]
    %v2694 = vld [vmem:[#allocation2 + $0x8e8] sm:$0xff]
    %v2695 = vld [vmem:[#allocation2 + $0x8f0] sm:$0xf]
    %v2696 = vld [vmem:[#allocation2 + $0x8f4] sm:$0xff]
    %v2697 = vld [vmem:[#allocation2 + $0x8fc] sm:$0xf]
    %v2698 = vld [vmem:[#allocation4 + $0x90] sm:$0xff]
    %v2699 = vld [vmem:[#allocation4 + $0x98] sm:$0xff]
    %v2700 = vld [vmem:[#allocation4 + $0xa0] sm:$0xff]
    %v2701 = vpack.c.bf16 %v2665, %v2665
    %v2702 = vlaneseq
    %v2703 = vshrl.u32 %v2702, 7
    %v2704 = vsub.s32 0, %v2703
    %v2705 = vrot.slane %v2698, %v2704
    %v2706 = vlaneseq
    %v2707 = vshrl.u32 %v2706, 7
    %v2708 = vsub.s32 0, %v2707
    %v2709 = vrot.slane %v2699, %v2708
    %v2710 = vlaneseq
    %v2711 = vshrl.u32 %v2710, 7
    %v2712 = vsub.s32 0, %v2711
    %v2713 = vrot.slane %v2700, %v2712
    %v2746 = vunpack.c.l.b16 %v2666
    %v2747 = vunpack.c.h.b16 %v2666
    %v2748 = vunpack.c.l.b16 %v2667
    %v2749 = vunpack.c.l.b16 %v2668
    %v2750 = vunpack.c.h.b16 %v2668
    %v2751 = vunpack.c.l.b16 %v2669
    %v2752 = vunpack.c.l.b16 %v2670
    %v2753 = vunpack.c.h.b16 %v2670
    %v2754 = vunpack.c.l.b16 %v2671
    %v2755 = vunpack.c.l.b16 %v2672
    %v2756 = vunpack.c.h.b16 %v2672
    %v2757 = vunpack.c.l.b16 %v2673
    %v2758 = vunpack.c.l.b16 %v2674
    %v2759 = vunpack.c.h.b16 %v2674
    %v2760 = vunpack.c.l.b16 %v2675
    %v2761 = vunpack.c.l.b16 %v2676
    %v2762 = vunpack.c.h.b16 %v2676
    %v2763 = vunpack.c.l.b16 %v2677
    %v2764 = vunpack.c.l.b16 %v2678
    %v2765 = vunpack.c.h.b16 %v2678
    %v2766 = vunpack.c.l.b16 %v2679
    %v2767 = vunpack.c.l.b16 %v2680
    %v2768 = vunpack.c.h.b16 %v2680
    %v2769 = vunpack.c.l.b16 %v2681
    %v2770 = vunpack.c.l.b16 %v2682
    %v2771 = vunpack.c.h.b16 %v2682
    %v2772 = vunpack.c.l.b16 %v2683
    %v2773 = vunpack.c.l.b16 %v2684
    %v2774 = vunpack.c.h.b16 %v2684
    %v2775 = vunpack.c.l.b16 %v2685
    %v2776 = vunpack.c.l.b16 %v2686
    %v2777 = vunpack.c.h.b16 %v2686
    %v2778 = vunpack.c.l.b16 %v2687
    %v2779 = vunpack.c.l.b16 %v2688
    %v2780 = vunpack.c.h.b16 %v2688
    %v2781 = vunpack.c.l.b16 %v2689
    %v2782 = vunpack.c.l.b16 %v2690
    %v2783 = vunpack.c.h.b16 %v2690
    %v2784 = vunpack.c.l.b16 %v2691
    %v2785 = vunpack.c.l.b16 %v2692
    %v2786 = vunpack.c.h.b16 %v2692
    %v2787 = vunpack.c.l.b16 %v2693
    %v2788 = vunpack.c.l.b16 %v2694
    %v2789 = vunpack.c.h.b16 %v2694
    %v2790 = vunpack.c.l.b16 %v2695
    %v2791 = vunpack.c.l.b16 %v2696
    %v2792 = vunpack.c.h.b16 %v2696
    %v2793 = vunpack.c.l.b16 %v2697
    %v2794 = vpack.c.b16 %v2749, %v2746
    %v2795 = vpack.c.b16 %v2750, %v2747
    %v2796 = vpack.c.b16 %v2751, %v2748
    %v2797 = vpack.c.b16 %v2755, %v2752
    %v2798 = vpack.c.b16 %v2756, %v2753
    %v2799 = vpack.c.b16 %v2757, %v2754
    %v2800 = vpack.c.b16 %v2761, %v2758
    %v2801 = vpack.c.b16 %v2762, %v2759
    %v2802 = vpack.c.b16 %v2763, %v2760
    %v2803 = vpack.c.b16 %v2767, %v2764
    %v2804 = vpack.c.b16 %v2768, %v2765
    %v2805 = vpack.c.b16 %v2769, %v2766
    %v2806 = vpack.c.b16 %v2773, %v2770
    %v2807 = vpack.c.b16 %v2774, %v2771
    %v2808 = vpack.c.b16 %v2775, %v2772
    %v2809 = vpack.c.b16 %v2779, %v2776
    %v2810 = vpack.c.b16 %v2780, %v2777
    %v2811 = vpack.c.b16 %v2781, %v2778
    %v2812 = vpack.c.b16 %v2785, %v2782
    %v2813 = vpack.c.b16 %v2786, %v2783
    %v2814 = vpack.c.b16 %v2787, %v2784
    %v2815 = vpack.c.b16 %v2791, %v2788
    %v2816 = vpack.c.b16 %v2792, %v2789
    %v2817 = vpack.c.b16 %v2793, %v2790
    %2842 = vmatprep.subr.bf16.mxu0 %v2795
    %2843 = vmatpush1.bf16.msra.mxu0 %v2794
    %2844 = vmatprep.subr.bf16.mxu0 %v2798
    %2845 = vmatpush1.bf16.msra.mxu0 %v2797
    %2846 = vmatprep.subr.bf16.mxu0 %v2801
    %2847 = vmatpush1.bf16.msra.mxu0 %v2800
    %2848 = vmatprep.subr.bf16.mxu0 %v2804
    %2849 = vmatpush1.bf16.msra.mxu0 %v2803
    %2850 = vmatprep.subr.bf16.mxu0 %v2807
    %2851 = vmatpush1.bf16.msra.mxu0 %v2806
    %2852 = vmatprep.subr.bf16.mxu0 %v2810
    %2853 = vmatpush1.bf16.msra.mxu0 %v2809
    %2854 = vmatprep.subr.bf16.mxu0 %v2813
    %2855 = vmatpush1.bf16.msra.mxu0 %v2812
    %2856 = vmatprep.subr.bf16.mxu0 %v2816
    %2857 = vmatpush1.bf16.msra.mxu0 %v2815
    %2858 = vmatprep.subr.bf16.mxu0 0
    %2859 = vmatpush1.bf16.msra.mxu0 0
    %2860 = vmatprep.subr.bf16.mxu0 0
    %2861 = vmatpush1.bf16.msra.mxu0 0
    %2862 = vmatprep.subr.bf16.mxu0 0
    %2863 = vmatpush1.bf16.msra.mxu0 0
    %2864 = vmatprep.subr.bf16.mxu0 0
    %2865 = vmatpush1.bf16.msra.mxu0 0
    %2866 = vmatprep.subr.bf16.mxu0 0
    %2867 = vmatpush1.bf16.msra.mxu0 0
    %2868 = vmatprep.subr.bf16.mxu0 0
    %2869 = vmatpush1.bf16.msra.mxu0 0
    %2870 = vmatprep.subr.bf16.mxu0 0
    %2871 = vmatpush1.bf16.msra.mxu0 0
    %2872 = vmatprep.subr.bf16.mxu0 0
    %2873 = vmatpush1.bf16.msra.mxu0 0
    %2874 = vmatprep.mubr.bf16.mxu0 0
    %2875 = vmatmul.mubr.bf16.gmra.mrb[0].mxu0 %v2701
    %v2876 = vpop.f32.mrb[0].mxu0
    %v2877 = vadd.f32 %v2705, %v2876
    %v2878 = vpop.f32.mrb[0].mxu0
    %v2879 = vadd.f32 %v2709, %v2878
    %v2880 = vpop.f32.mrb[0].mxu0
    %v2881 = vpop.f32.mrb[0].mxu0
    %2882 = vdwg.mxu0
    %2883 = vmatprep.subr.bf16.mxu0 0
    %2884 = vmatpush1.bf16.msra.mxu0 %v2796
    %2885 = vmatprep.subr.bf16.mxu0 0
    %2886 = vmatpush1.bf16.msra.mxu0 %v2799
    %2887 = vmatprep.subr.bf16.mxu0 0
    %2888 = vmatpush1.bf16.msra.mxu0 %v2802
    %2889 = vmatprep.subr.bf16.mxu0 0
    %2890 = vmatpush1.bf16.msra.mxu0 %v2805
    %2891 = vmatprep.subr.bf16.mxu0 0
    %2892 = vmatpush1.bf16.msra.mxu0 %v2808
    %2893 = vmatprep.subr.bf16.mxu0 0
    %2894 = vmatpush1.bf16.msra.mxu0 %v2811
    %2895 = vmatprep.subr.bf16.mxu0 0
    %2896 = vmatpush1.bf16.msra.mxu0 %v2814
    %2897 = vmatprep.subr.bf16.mxu0 0
    %2898 = vmatpush1.bf16.msra.mxu0 %v2817
    %2899 = vmatprep.subr.bf16.mxu0 0
    %2900 = vmatpush1.bf16.msra.mxu0 0
    %2901 = vmatprep.subr.bf16.mxu0 0
    %2902 = vmatpush1.bf16.msra.mxu0 0
    %2903 = vmatprep.subr.bf16.mxu0 0
    %2904 = vmatpush1.bf16.msra.mxu0 0
    %2905 = vmatprep.subr.bf16.mxu0 0
    %2906 = vmatpush1.bf16.msra.mxu0 0
    %2907 = vmatprep.subr.bf16.mxu0 0
    %2908 = vmatpush1.bf16.msra.mxu0 0
    %2909 = vmatprep.subr.bf16.mxu0 0
    %2910 = vmatpush1.bf16.msra.mxu0 0
    %2911 = vmatprep.subr.bf16.mxu0 0
    %2912 = vmatpush1.bf16.msra.mxu0 0
    %2913 = vmatprep.subr.bf16.mxu0 0
    %2914 = vmatpush1.bf16.msra.mxu0 0
    %2915 = vmatprep.mubr.bf16.mxu0 0
    %2916 = vmatmul.mubr.bf16.gmra.mrb[0].mxu0 %v2701
    %v2917 = vpop.f32.mrb[0].mxu0
    %v2918 = vadd.f32 %v2713, %v2917
    %v2919 = vpop.f32.mrb[0].mxu0
    %v2920 = vpop.f32.mrb[0].mxu0
    %v2921 = vpop.f32.mrb[0].mxu0
    %2922 = vdwg.mxu0
    %v2923 = vadd.f32 %v2877, %v2879
    %v2924 = vadd.f32 %v2923, %v2918
    %2925 = vadd.xlane.f32.xlu0 %v2924
    %v2926 = vpop.xlane.xlu0 %2925
    %v2927 = vmul.f32 %v2926, 0.041666668
    %v2928 = vmul.f32 %v2877, %v2877
    %v2929 = vmul.f32 %v2879, %v2879
    %v2930 = vmul.f32 %v2918, %v2918
    %v2931 = vadd.f32 %v2928, %v2929
    %v2932 = vadd.f32 %v2931, %v2930
    %2933 = vadd.xlane.f32.xlu0 %v2932
    %v2934 = vpop.xlane.xlu0 %2933
    %v2935 = vmul.f32 %v2934, 0.041666668
    %v2936 = vmul.f32 %v2927, %v2927
    %v2937 = vsub.f32 %v2935, %v2936
    %v2938 = vmax.f32 %v2937, 0.0
    %v2939 = vsub.f32 %v2877, %v2927
    %v2940 = vadd.f32 %v2938, 1e-05
    %v2941 = vrsqrt.pop %v2940
    %v2942 = vmul.f32 %v2939, %v2941
    %v2943 = vlaneseq
    %v2944 = vshrl.u32 %v2943, 7
    %v2945 = vsub.s32 1, %v2944
    %v2946 = vrot.slane %v2698, %v2945
    %v2947 = vmul.f32 %v2942, %v2946
    %v2948 = vlaneseq
    %v2949 = vshrl.u32 %v2948, 7
    %v2950 = vsub.s32 2, %v2949
    %v2951 = vrot.slane %v2698, %v2950
    %v2952 = vadd.f32 %v2947, %v2951
    %vm2953 = vcmp.gt.f32.partialorder %v2952, 0.0
    %v2954 = vmul.f32 %v2952, 0.2
    %v2955 = vsel %vm2953, %v2952, %v2954
    %v2956 = vld [vmem:[#allocation2 + $0x900] sm:$0xff]
    %v2957 = vld [vmem:[#allocation2 + $0x908] sm:$0xf]
    %v2958 = vld [vmem:[#allocation2 + $0x90c] sm:$0xff]
    %v2959 = vld [vmem:[#allocation2 + $0x914] sm:$0xf]
    %v2960 = vld [vmem:[#allocation2 + $0x918] sm:$0xff]
    %v2961 = vld [vmem:[#allocation2 + $0x920] sm:$0xf]
    %v2962 = vld [vmem:[#allocation2 + $0x924] sm:$0xff]
    %v2963 = vld [vmem:[#allocation2 + $0x92c] sm:$0xf]
    %v2964 = vld [vmem:[#allocation2 + $0x930] sm:$0xff]
    %v2965 = vld [vmem:[#allocation2 + $0x938] sm:$0xf]
    %v2966 = vld [vmem:[#allocation2 + $0x93c] sm:$0xff]
    %v2967 = vld [vmem:[#allocation2 + $0x944] sm:$0xf]
    %v2968 = vld [vmem:[#allocation2 + $0x948] sm:$0xff]
    %v2969 = vld [vmem:[#allocation2 + $0x950] sm:$0xf]
    %v2970 = vld [vmem:[#allocation2 + $0x954] sm:$0xff]
    %v2971 = vld [vmem:[#allocation2 + $0x95c] sm:$0xf]
    %v2972 = vld [vmem:[#allocation2 + $0x960] sm:$0xff]
    %v2973 = vld [vmem:[#allocation2 + $0x968] sm:$0xf]
    %v2974 = vld [vmem:[#allocation2 + $0x96c] sm:$0xff]
    %v2975 = vld [vmem:[#allocation2 + $0x974] sm:$0xf]
    %v2976 = vld [vmem:[#allocation2 + $0x978] sm:$0xff]
    %v2977 = vld [vmem:[#allocation2 + $0x980] sm:$0xf]
    %v2978 = vld [vmem:[#allocation2 + $0x984] sm:$0xff]
    %v2979 = vld [vmem:[#allocation2 + $0x98c] sm:$0xf]
    %v2980 = vld [vmem:[#allocation2 + $0x990] sm:$0xff]
    %v2981 = vld [vmem:[#allocation2 + $0x998] sm:$0xf]
    %v2982 = vld [vmem:[#allocation2 + $0x99c] sm:$0xff]
    %v2983 = vld [vmem:[#allocation2 + $0x9a4] sm:$0xf]
    %v2984 = vld [vmem:[#allocation2 + $0x9a8] sm:$0xff]
    %v2985 = vld [vmem:[#allocation2 + $0x9b0] sm:$0xf]
    %v2986 = vld [vmem:[#allocation2 + $0x9b4] sm:$0xff]
    %v2987 = vld [vmem:[#allocation2 + $0x9bc] sm:$0xf]
    %v2988 = vld [vmem:[#allocation4 + $0xa8] sm:$0xff]
    %v2989 = vld [vmem:[#allocation4 + $0xb0] sm:$0xff]
    %v2990 = vld [vmem:[#allocation4 + $0xb8] sm:$0xff]
    %v2991 = vpack.c.bf16 %v2955, %v2955
    %v2992 = vlaneseq
    %v2993 = vshrl.u32 %v2992, 7
    %v2994 = vsub.s32 0, %v2993
    %v2995 = vrot.slane %v2988, %v2994
    %v2996 = vlaneseq
    %v2997 = vshrl.u32 %v2996, 7
    %v2998 = vsub.s32 0, %v2997
    %v2999 = vrot.slane %v2989, %v2998
    %v3000 = vlaneseq
    %v3001 = vshrl.u32 %v3000, 7
    %v3002 = vsub.s32 0, %v3001
    %v3003 = vrot.slane %v2990, %v3002
    %v3036 = vunpack.c.l.b16 %v2956
    %v3037 = vunpack.c.h.b16 %v2956
    %v3038 = vunpack.c.l.b16 %v2957
    %v3039 = vunpack.c.l.b16 %v2958
    %v3040 = vunpack.c.h.b16 %v2958
    %v3041 = vunpack.c.l.b16 %v2959
    %v3042 = vunpack.c.l.b16 %v2960
    %v3043 = vunpack.c.h.b16 %v2960
    %v3044 = vunpack.c.l.b16 %v2961
    %v3045 = vunpack.c.l.b16 %v2962
    %v3046 = vunpack.c.h.b16 %v2962
    %v3047 = vunpack.c.l.b16 %v2963
    %v3048 = vunpack.c.l.b16 %v2964
    %v3049 = vunpack.c.h.b16 %v2964
    %v3050 = vunpack.c.l.b16 %v2965
    %v3051 = vunpack.c.l.b16 %v2966
    %v3052 = vunpack.c.h.b16 %v2966
    %v3053 = vunpack.c.l.b16 %v2967
    %v3054 = vunpack.c.l.b16 %v2968
    %v3055 = vunpack.c.h.b16 %v2968
    %v3056 = vunpack.c.l.b16 %v2969
    %v3057 = vunpack.c.l.b16 %v2970
    %v3058 = vunpack.c.h.b16 %v2970
    %v3059 = vunpack.c.l.b16 %v2971
    %v3060 = vunpack.c.l.b16 %v2972
    %v3061 = vunpack.c.h.b16 %v2972
    %v3062 = vunpack.c.l.b16 %v2973
    %v3063 = vunpack.c.l.b16 %v2974
    %v3064 = vunpack.c.h.b16 %v2974
    %v3065 = vunpack.c.l.b16 %v2975
    %v3066 = vunpack.c.l.b16 %v2976
    %v3067 = vunpack.c.h.b16 %v2976
    %v3068 = vunpack.c.l.b16 %v2977
    %v3069 = vunpack.c.l.b16 %v2978
    %v3070 = vunpack.c.h.b16 %v2978
    %v3071 = vunpack.c.l.b16 %v2979
    %v3072 = vunpack.c.l.b16 %v2980
    %v3073 = vunpack.c.h.b16 %v2980
    %v3074 = vunpack.c.l.b16 %v2981
    %v3075 = vunpack.c.l.b16 %v2982
    %v3076 = vunpack.c.h.b16 %v2982
    %v3077 = vunpack.c.l.b16 %v2983
    %v3078 = vunpack.c.l.b16 %v2984
    %v3079 = vunpack.c.h.b16 %v2984
    %v3080 = vunpack.c.l.b16 %v2985
    %v3081 = vunpack.c.l.b16 %v2986
    %v3082 = vunpack.c.h.b16 %v2986
    %v3083 = vunpack.c.l.b16 %v2987
    %v3084 = vpack.c.b16 %v3039, %v3036
    %v3085 = vpack.c.b16 %v3040, %v3037
    %v3086 = vpack.c.b16 %v3041, %v3038
    %v3087 = vpack.c.b16 %v3045, %v3042
    %v3088 = vpack.c.b16 %v3046, %v3043
    %v3089 = vpack.c.b16 %v3047, %v3044
    %v3090 = vpack.c.b16 %v3051, %v3048
    %v3091 = vpack.c.b16 %v3052, %v3049
    %v3092 = vpack.c.b16 %v3053, %v3050
    %v3093 = vpack.c.b16 %v3057, %v3054
    %v3094 = vpack.c.b16 %v3058, %v3055
    %v3095 = vpack.c.b16 %v3059, %v3056
    %v3096 = vpack.c.b16 %v3063, %v3060
    %v3097 = vpack.c.b16 %v3064, %v3061
    %v3098 = vpack.c.b16 %v3065, %v3062
    %v3099 = vpack.c.b16 %v3069, %v3066
    %v3100 = vpack.c.b16 %v3070, %v3067
    %v3101 = vpack.c.b16 %v3071, %v3068
    %v3102 = vpack.c.b16 %v3075, %v3072
    %v3103 = vpack.c.b16 %v3076, %v3073
    %v3104 = vpack.c.b16 %v3077, %v3074
    %v3105 = vpack.c.b16 %v3081, %v3078
    %v3106 = vpack.c.b16 %v3082, %v3079
    %v3107 = vpack.c.b16 %v3083, %v3080
    %3132 = vmatprep.subr.bf16.mxu0 %v3085
    %3133 = vmatpush1.bf16.msra.mxu0 %v3084
    %3134 = vmatprep.subr.bf16.mxu0 %v3088
    %3135 = vmatpush1.bf16.msra.mxu0 %v3087
    %3136 = vmatprep.subr.bf16.mxu0 %v3091
    %3137 = vmatpush1.bf16.msra.mxu0 %v3090
    %3138 = vmatprep.subr.bf16.mxu0 %v3094
    %3139 = vmatpush1.bf16.msra.mxu0 %v3093
    %3140 = vmatprep.subr.bf16.mxu0 %v3097
    %3141 = vmatpush1.bf16.msra.mxu0 %v3096
    %3142 = vmatprep.subr.bf16.mxu0 %v3100
    %3143 = vmatpush1.bf16.msra.mxu0 %v3099
    %3144 = vmatprep.subr.bf16.mxu0 %v3103
    %3145 = vmatpush1.bf16.msra.mxu0 %v3102
    %3146 = vmatprep.subr.bf16.mxu0 %v3106
    %3147 = vmatpush1.bf16.msra.mxu0 %v3105
    %3148 = vmatprep.subr.bf16.mxu0 0
    %3149 = vmatpush1.bf16.msra.mxu0 0
    %3150 = vmatprep.subr.bf16.mxu0 0
    %3151 = vmatpush1.bf16.msra.mxu0 0
    %3152 = vmatprep.subr.bf16.mxu0 0
    %3153 = vmatpush1.bf16.msra.mxu0 0
    %3154 = vmatprep.subr.bf16.mxu0 0
    %3155 = vmatpush1.bf16.msra.mxu0 0
    %3156 = vmatprep.subr.bf16.mxu0 0
    %3157 = vmatpush1.bf16.msra.mxu0 0
    %3158 = vmatprep.subr.bf16.mxu0 0
    %3159 = vmatpush1.bf16.msra.mxu0 0
    %3160 = vmatprep.subr.bf16.mxu0 0
    %3161 = vmatpush1.bf16.msra.mxu0 0
    %3162 = vmatprep.subr.bf16.mxu0 0
    %3163 = vmatpush1.bf16.msra.mxu0 0
    %3164 = vmatprep.mubr.bf16.mxu0 0
    %3165 = vmatmul.mubr.bf16.gmra.mrb[0].mxu0 %v2991
    %v3166 = vpop.f32.mrb[0].mxu0
    %v3167 = vadd.f32 %v2995, %v3166
    %v3168 = vpop.f32.mrb[0].mxu0
    %v3169 = vadd.f32 %v2999, %v3168
    %v3170 = vpop.f32.mrb[0].mxu0
    %v3171 = vpop.f32.mrb[0].mxu0
    %3172 = vdwg.mxu0
    %3173 = vmatprep.subr.bf16.mxu0 0
    %3174 = vmatpush1.bf16.msra.mxu0 %v3086
    %3175 = vmatprep.subr.bf16.mxu0 0
    %3176 = vmatpush1.bf16.msra.mxu0 %v3089
    %3177 = vmatprep.subr.bf16.mxu0 0
    %3178 = vmatpush1.bf16.msra.mxu0 %v3092
    %3179 = vmatprep.subr.bf16.mxu0 0
    %3180 = vmatpush1.bf16.msra.mxu0 %v3095
    %3181 = vmatprep.subr.bf16.mxu0 0
    %3182 = vmatpush1.bf16.msra.mxu0 %v3098
    %3183 = vmatprep.subr.bf16.mxu0 0
    %3184 = vmatpush1.bf16.msra.mxu0 %v3101
    %3185 = vmatprep.subr.bf16.mxu0 0
    %3186 = vmatpush1.bf16.msra.mxu0 %v3104
    %3187 = vmatprep.subr.bf16.mxu0 0
    %3188 = vmatpush1.bf16.msra.mxu0 %v3107
    %3189 = vmatprep.subr.bf16.mxu0 0
    %3190 = vmatpush1.bf16.msra.mxu0 0
    %3191 = vmatprep.subr.bf16.mxu0 0
    %3192 = vmatpush1.bf16.msra.mxu0 0
    %3193 = vmatprep.subr.bf16.mxu0 0
    %3194 = vmatpush1.bf16.msra.mxu0 0
    %3195 = vmatprep.subr.bf16.mxu0 0
    %3196 = vmatpush1.bf16.msra.mxu0 0
    %3197 = vmatprep.subr.bf16.mxu0 0
    %3198 = vmatpush1.bf16.msra.mxu0 0
    %3199 = vmatprep.subr.bf16.mxu0 0
    %3200 = vmatpush1.bf16.msra.mxu0 0
    %3201 = vmatprep.subr.bf16.mxu0 0
    %3202 = vmatpush1.bf16.msra.mxu0 0
    %3203 = vmatprep.subr.bf16.mxu0 0
    %3204 = vmatpush1.bf16.msra.mxu0 0
    %3205 = vmatprep.mubr.bf16.mxu0 0
    %3206 = vmatmul.mubr.bf16.gmra.mrb[0].mxu0 %v2991
    %v3207 = vpop.f32.mrb[0].mxu0
    %v3208 = vadd.f32 %v3003, %v3207
    %v3209 = vpop.f32.mrb[0].mxu0
    %v3210 = vpop.f32.mrb[0].mxu0
    %v3211 = vpop.f32.mrb[0].mxu0
    %3212 = vdwg.mxu0
    %v3213 = vadd.f32 %v3167, %v3169
    %v3214 = vadd.f32 %v3213, %v3208
    %3215 = vadd.xlane.f32.xlu0 %v3214
    %v3216 = vpop.xlane.xlu0 %3215
    %v3217 = vmul.f32 %v3216, 0.025
    %v3218 = vmul.f32 %v3167, %v3167
    %v3219 = vmul.f32 %v3169, %v3169
    %v3220 = vmul.f32 %v3208, %v3208
    %v3221 = vadd.f32 %v3218, %v3219
    %v3222 = vadd.f32 %v3221, %v3220
    %3223 = vadd.xlane.f32.xlu0 %v3222
    %v3224 = vpop.xlane.xlu0 %3223
    %v3225 = vmul.f32 %v3224, 0.025
    %v3226 = vmul.f32 %v3217, %v3217
    %v3227 = vsub.f32 %v3225, %v3226
    %v3228 = vmax.f32 %v3227, 0.0
    %v3229 = vsub.f32 %v3167, %v3217
    %v3230 = vadd.f32 %v3228, 1e-05
    %v3231 = vrsqrt.pop %v3230
    %v3232 = vmul.f32 %v3229, %v3231
    %v3233 = vlaneseq
    %v3234 = vshrl.u32 %v3233, 7
    %v3235 = vsub.s32 1, %v3234
    %v3236 = vrot.slane %v2988, %v3235
    %v3237 = vmul.f32 %v3232, %v3236
    %v3238 = vlaneseq
    %v3239 = vshrl.u32 %v3238, 7
    %v3240 = vsub.s32 2, %v3239
    %v3241 = vrot.slane %v2988, %v3240
    %v3242 = vadd.f32 %v3237, %v3241
    %vm3243 = vcmp.gt.f32.partialorder %v3242, 0.0
    %v3244 = vmul.f32 %v3242, 0.2
    %v3245 = vsel %vm3243, %v3242, %v3244
    %v3246 = vld [vmem:[#allocation2 + $0x9c0] sm:$0xff]
    %v3247 = vld [vmem:[#allocation2 + $0x9c8] sm:$0xf]
    %v3248 = vld [vmem:[#allocation2 + $0x9cc] sm:$0xff]
    %v3249 = vld [vmem:[#allocation2 + $0x9d4] sm:$0xf]
    %v3250 = vld [vmem:[#allocation2 + $0x9d8] sm:$0xff]
    %v3251 = vld [vmem:[#allocation2 + $0x9e0] sm:$0xf]
    %v3252 = vld [vmem:[#allocation2 + $0x9e4] sm:$0xff]
    %v3253 = vld [vmem:[#allocation2 + $0x9ec] sm:$0xf]
    %v3254 = vld [vmem:[#allocation2 + $0x9f0] sm:$0xff]
    %v3255 = vld [vmem:[#allocation2 + $0x9f8] sm:$0xf]
    %v3256 = vld [vmem:[#allocation2 + $0x9fc] sm:$0xff]
    %v3257 = vld [vmem:[#allocation2 + $0xa04] sm:$0xf]
    %v3258 = vld [vmem:[#allocation2 + $0xa08] sm:$0xff]
    %v3259 = vld [vmem:[#allocation2 + $0xa10] sm:$0xf]
    %v3260 = vld [vmem:[#allocation2 + $0xa14] sm:$0xff]
    %v3261 = vld [vmem:[#allocation2 + $0xa1c] sm:$0xf]
    %v3262 = vld [vmem:[#allocation2 + $0xa20] sm:$0xff]
    %v3263 = vld [vmem:[#allocation2 + $0xa28] sm:$0xf]
    %v3264 = vld [vmem:[#allocation2 + $0xa2c] sm:$0xff]
    %v3265 = vld [vmem:[#allocation2 + $0xa34] sm:$0xf]
    %v3266 = vld [vmem:[#allocation2 + $0xa38] sm:$0xff]
    %v3267 = vld [vmem:[#allocation2 + $0xa40] sm:$0xf]
    %v3268 = vld [vmem:[#allocation2 + $0xa44] sm:$0xff]
    %v3269 = vld [vmem:[#allocation2 + $0xa4c] sm:$0xf]
    %v3270 = vld [vmem:[#allocation2 + $0xa50] sm:$0xff]
    %v3271 = vld [vmem:[#allocation2 + $0xa58] sm:$0xf]
    %v3272 = vld [vmem:[#allocation2 + $0xa5c] sm:$0xff]
    %v3273 = vld [vmem:[#allocation2 + $0xa64] sm:$0xf]
    %v3274 = vld [vmem:[#allocation2 + $0xa68] sm:$0xff]
    %v3275 = vld [vmem:[#allocation2 + $0xa70] sm:$0xf]
    %v3276 = vld [vmem:[#allocation2 + $0xa74] sm:$0xff]
    %v3277 = vld [vmem:[#allocation2 + $0xa7c] sm:$0xf]
    %v3278 = vld [vmem:[#allocation4 + $0xc0] sm:$0xff]
    %v3279 = vld [vmem:[#allocation4 + $0xc8] sm:$0xff]
    %v3280 = vld [vmem:[#allocation4 + $0xd0] sm:$0xff]
    %v3281 = vpack.c.bf16 %v3245, %v3245
    %v3282 = vlaneseq
    %v3283 = vshrl.u32 %v3282, 7
    %v3284 = vsub.s32 0, %v3283
    %v3285 = vrot.slane %v3278, %v3284
    %v3286 = vlaneseq
    %v3287 = vshrl.u32 %v3286, 7
    %v3288 = vsub.s32 0, %v3287
    %v3289 = vrot.slane %v3279, %v3288
    %v3290 = vlaneseq
    %v3291 = vshrl.u32 %v3290, 7
    %v3292 = vsub.s32 0, %v3291
    %v3293 = vrot.slane %v3280, %v3292
    %v3326 = vunpack.c.l.b16 %v3246
    %v3327 = vunpack.c.h.b16 %v3246
    %v3328 = vunpack.c.l.b16 %v3247
    %v3329 = vunpack.c.l.b16 %v3248
    %v3330 = vunpack.c.h.b16 %v3248
    %v3331 = vunpack.c.l.b16 %v3249
    %v3332 = vunpack.c.l.b16 %v3250
    %v3333 = vunpack.c.h.b16 %v3250
    %v3334 = vunpack.c.l.b16 %v3251
    %v3335 = vunpack.c.l.b16 %v3252
    %v3336 = vunpack.c.h.b16 %v3252
    %v3337 = vunpack.c.l.b16 %v3253
    %v3338 = vunpack.c.l.b16 %v3254
    %v3339 = vunpack.c.h.b16 %v3254
    %v3340 = vunpack.c.l.b16 %v3255
    %v3341 = vunpack.c.l.b16 %v3256
    %v3342 = vunpack.c.h.b16 %v3256
    %v3343 = vunpack.c.l.b16 %v3257
    %v3344 = vunpack.c.l.b16 %v3258
    %v3345 = vunpack.c.h.b16 %v3258
    %v3346 = vunpack.c.l.b16 %v3259
    %v3347 = vunpack.c.l.b16 %v3260
    %v3348 = vunpack.c.h.b16 %v3260
    %v3349 = vunpack.c.l.b16 %v3261
    %v3350 = vunpack.c.l.b16 %v3262
    %v3351 = vunpack.c.h.b16 %v3262
    %v3352 = vunpack.c.l.b16 %v3263
    %v3353 = vunpack.c.l.b16 %v3264
    %v3354 = vunpack.c.h.b16 %v3264
    %v3355 = vunpack.c.l.b16 %v3265
    %v3356 = vunpack.c.l.b16 %v3266
    %v3357 = vunpack.c.h.b16 %v3266
    %v3358 = vunpack.c.l.b16 %v3267
    %v3359 = vunpack.c.l.b16 %v3268
    %v3360 = vunpack.c.h.b16 %v3268
    %v3361 = vunpack.c.l.b16 %v3269
    %v3362 = vunpack.c.l.b16 %v3270
    %v3363 = vunpack.c.h.b16 %v3270
    %v3364 = vunpack.c.l.b16 %v3271
    %v3365 = vunpack.c.l.b16 %v3272
    %v3366 = vunpack.c.h.b16 %v3272
    %v3367 = vunpack.c.l.b16 %v3273
    %v3368 = vunpack.c.l.b16 %v3274
    %v3369 = vunpack.c.h.b16 %v3274
    %v3370 = vunpack.c.l.b16 %v3275
    %v3371 = vunpack.c.l.b16 %v3276
    %v3372 = vunpack.c.h.b16 %v3276
    %v3373 = vunpack.c.l.b16 %v3277
    %v3374 = vpack.c.b16 %v3329, %v3326
    %v3375 = vpack.c.b16 %v3330, %v3327
    %v3376 = vpack.c.b16 %v3331, %v3328
    %v3377 = vpack.c.b16 %v3335, %v3332
    %v3378 = vpack.c.b16 %v3336, %v3333
    %v3379 = vpack.c.b16 %v3337, %v3334
    %v3380 = vpack.c.b16 %v3341, %v3338
    %v3381 = vpack.c.b16 %v3342, %v3339
    %v3382 = vpack.c.b16 %v3343, %v3340
    %v3383 = vpack.c.b16 %v3347, %v3344
    %v3384 = vpack.c.b16 %v3348, %v3345
    %v3385 = vpack.c.b16 %v3349, %v3346
    %v3386 = vpack.c.b16 %v3353, %v3350
    %v3387 = vpack.c.b16 %v3354, %v3351
    %v3388 = vpack.c.b16 %v3355, %v3352
    %v3389 = vpack.c.b16 %v3359, %v3356
    %v3390 = vpack.c.b16 %v3360, %v3357
    %v3391 = vpack.c.b16 %v3361, %v3358
    %v3392 = vpack.c.b16 %v3365, %v3362
    %v3393 = vpack.c.b16 %v3366, %v3363
    %v3394 = vpack.c.b16 %v3367, %v3364
    %v3395 = vpack.c.b16 %v3371, %v3368
    %v3396 = vpack.c.b16 %v3372, %v3369
    %v3397 = vpack.c.b16 %v3373, %v3370
    %3422 = vmatprep.subr.bf16.mxu0 %v3375
    %3423 = vmatpush1.bf16.msra.mxu0 %v3374
    %3424 = vmatprep.subr.bf16.mxu0 %v3378
    %3425 = vmatpush1.bf16.msra.mxu0 %v3377
    %3426 = vmatprep.subr.bf16.mxu0 %v3381
    %3427 = vmatpush1.bf16.msra.mxu0 %v3380
    %3428 = vmatprep.subr.bf16.mxu0 %v3384
    %3429 = vmatpush1.bf16.msra.mxu0 %v3383
    %3430 = vmatprep.subr.bf16.mxu0 %v3387
    %3431 = vmatpush1.bf16.msra.mxu0 %v3386
    %3432 = vmatprep.subr.bf16.mxu0 %v3390
    %3433 = vmatpush1.bf16.msra.mxu0 %v3389
    %3434 = vmatprep.subr.bf16.mxu0 %v3393
    %3435 = vmatpush1.bf16.msra.mxu0 %v3392
    %3436 = vmatprep.subr.bf16.mxu0 %v3396
    %3437 = vmatpush1.bf16.msra.mxu0 %v3395
    %3438 = vmatprep.subr.bf16.mxu0 0
    %3439 = vmatpush1.bf16.msra.mxu0 0
    %3440 = vmatprep.subr.bf16.mxu0 0
    %3441 = vmatpush1.bf16.msra.mxu0 0
    %3442 = vmatprep.subr.bf16.mxu0 0
    %3443 = vmatpush1.bf16.msra.mxu0 0
    %3444 = vmatprep.subr.bf16.mxu0 0
    %3445 = vmatpush1.bf16.msra.mxu0 0
    %3446 = vmatprep.subr.bf16.mxu0 0
    %3447 = vmatpush1.bf16.msra.mxu0 0
    %3448 = vmatprep.subr.bf16.mxu0 0
    %3449 = vmatpush1.bf16.msra.mxu0 0
    %3450 = vmatprep.subr.bf16.mxu0 0
    %3451 = vmatpush1.bf16.msra.mxu0 0
    %3452 = vmatprep.subr.bf16.mxu0 0
    %3453 = vmatpush1.bf16.msra.mxu0 0
    %3454 = vmatprep.mubr.bf16.mxu0 0
    %3455 = vmatmul.mubr.bf16.gmra.mrb[0].mxu0 %v3281
    %v3456 = vpop.f32.mrb[0].mxu0
    %v3457 = vadd.f32 %v3285, %v3456
    %v3458 = vpop.f32.mrb[0].mxu0
    %v3459 = vadd.f32 %v3289, %v3458
    %v3460 = vpop.f32.mrb[0].mxu0
    %v3461 = vpop.f32.mrb[0].mxu0
    %3462 = vdwg.mxu0
    %3463 = vmatprep.subr.bf16.mxu0 0
    %3464 = vmatpush1.bf16.msra.mxu0 %v3376
    %3465 = vmatprep.subr.bf16.mxu0 0
    %3466 = vmatpush1.bf16.msra.mxu0 %v3379
    %3467 = vmatprep.subr.bf16.mxu0 0
    %3468 = vmatpush1.bf16.msra.mxu0 %v3382
    %3469 = vmatprep.subr.bf16.mxu0 0
    %3470 = vmatpush1.bf16.msra.mxu0 %v3385
    %3471 = vmatprep.subr.bf16.mxu0 0
    %3472 = vmatpush1.bf16.msra.mxu0 %v3388
    %3473 = vmatprep.subr.bf16.mxu0 0
    %3474 = vmatpush1.bf16.msra.mxu0 %v3391
    %3475 = vmatprep.subr.bf16.mxu0 0
    %3476 = vmatpush1.bf16.msra.mxu0 %v3394
    %3477 = vmatprep.subr.bf16.mxu0 0
    %3478 = vmatpush1.bf16.msra.mxu0 %v3397
    %3479 = vmatprep.subr.bf16.mxu0 0
    %3480 = vmatpush1.bf16.msra.mxu0 0
    %3481 = vmatprep.subr.bf16.mxu0 0
    %3482 = vmatpush1.bf16.msra.mxu0 0
    %3483 = vmatprep.subr.bf16.mxu0 0
    %3484 = vmatpush1.bf16.msra.mxu0 0
    %3485 = vmatprep.subr.bf16.mxu0 0
    %3486 = vmatpush1.bf16.msra.mxu0 0
    %3487 = vmatprep.subr.bf16.mxu0 0
    %3488 = vmatpush1.bf16.msra.mxu0 0
    %3489 = vmatprep.subr.bf16.mxu0 0
    %3490 = vmatpush1.bf16.msra.mxu0 0
    %3491 = vmatprep.subr.bf16.mxu0 0
    %3492 = vmatpush1.bf16.msra.mxu0 0
    %3493 = vmatprep.subr.bf16.mxu0 0
    %3494 = vmatpush1.bf16.msra.mxu0 0
    %3495 = vmatprep.mubr.bf16.mxu0 0
    %3496 = vmatmul.mubr.bf16.gmra.mrb[0].mxu0 %v3281
    %v3497 = vpop.f32.mrb[0].mxu0
    %v3498 = vadd.f32 %v3293, %v3497
    %v3499 = vpop.f32.mrb[0].mxu0
    %v3500 = vpop.f32.mrb[0].mxu0
    %v3501 = vpop.f32.mrb[0].mxu0
    %3502 = vdwg.mxu0
    %v3503 = vadd.f32 %v3457, %v3459
    %v3504 = vadd.f32 %v3503, %v3498
    %3505 = vadd.xlane.f32.xlu0 %v3504
    %v3506 = vpop.xlane.xlu0 %3505
    %v3507 = vmul.f32 %v3506, 0.00625
    %v3508 = vmul.f32 %v3457, %v3457
    %v3509 = vmul.f32 %v3459, %v3459
    %v3510 = vmul.f32 %v3498, %v3498
    %v3511 = vadd.f32 %v3508, %v3509
    %v3512 = vadd.f32 %v3511, %v3510
    %3513 = vadd.xlane.f32.xlu0 %v3512
    %v3514 = vpop.xlane.xlu0 %3513
    %v3515 = vmul.f32 %v3514, 0.00625
    %v3516 = vmul.f32 %v3507, %v3507
    %v3517 = vsub.f32 %v3515, %v3516
    %v3518 = vmax.f32 %v3517, 0.0
    %v3519 = vsub.f32 %v3457, %v3507
    %v3520 = vsub.f32 %v3459, %v3507
    %v3521 = vadd.f32 %v3518, 1e-05
    %v3522 = vrsqrt.pop %v3521
    %v3523 = vmul.f32 %v3519, %v3522
    %v3524 = vmul.f32 %v3520, %v3522
    %v3525 = vlaneseq
    %v3526 = vshrl.u32 %v3525, 7
    %v3527 = vsub.s32 1, %v3526
    %v3528 = vrot.slane %v3278, %v3527
    %v3529 = vlaneseq
    %v3530 = vshrl.u32 %v3529, 7
    %v3531 = vsub.s32 1, %v3530
    %v3532 = vrot.slane %v3279, %v3531
    %v3533 = vmul.f32 %v3523, %v3528
    %v3534 = vmul.f32 %v3524, %v3532
    %v3535 = vlaneseq
    %v3536 = vshrl.u32 %v3535, 7
    %v3537 = vsub.s32 2, %v3536
    %v3538 = vrot.slane %v3278, %v3537
    %v3539 = vlaneseq
    %v3540 = vshrl.u32 %v3539, 7
    %v3541 = vsub.s32 2, %v3540
    %v3542 = vrot.slane %v3279, %v3541
    %v3543 = vadd.f32 %v3533, %v3538
    %v3544 = vadd.f32 %v3534, %v3542
    %vm3545 = vcmp.gt.f32.partialorder %v3543, 0.0
    %vm3546 = vcmp.gt.f32.partialorder %v3544, 0.0
    %v3547 = vmul.f32 %v3543, 0.2
    %v3548 = vmul.f32 %v3544, 0.2
    %v3549 = vsel %vm3545, %v3543, %v3547
    %v3550 = vsel %vm3546, %v3544, %v3548
    %v3551 = vld [vmem:[#allocation2 + $0xa80] sm:$0xff]
    %v3552 = vld [vmem:[#allocation2 + $0xa88] sm:$0xf]
    %v3553 = vld [vmem:[#allocation2 + $0xa8c] sm:$0xff]
    %v3554 = vld [vmem:[#allocation2 + $0xa94] sm:$0xf]
    %v3555 = vld [vmem:[#allocation2 + $0xa98] sm:$0xff]
    %v3556 = vld [vmem:[#allocation2 + $0xaa0] sm:$0xf]
    %v3557 = vld [vmem:[#allocation2 + $0xaa4] sm:$0xff]
    %v3558 = vld [vmem:[#allocation2 + $0xaac] sm:$0xf]
    %v3559 = vld [vmem:[#allocation2 + $0xab0] sm:$0xff]
    %v3560 = vld [vmem:[#allocation2 + $0xab8] sm:$0xf]
    %v3561 = vld [vmem:[#allocation2 + $0xabc] sm:$0xff]
    %v3562 = vld [vmem:[#allocation2 + $0xac4] sm:$0xf]
    %v3563 = vld [vmem:[#allocation2 + $0xac8] sm:$0xff]
    %v3564 = vld [vmem:[#allocation2 + $0xad0] sm:$0xf]
    %v3565 = vld [vmem:[#allocation2 + $0xad4] sm:$0xff]
    %v3566 = vld [vmem:[#allocation2 + $0xadc] sm:$0xf]
    %v3567 = vld [vmem:[#allocation2 + $0xae0] sm:$0xff]
    %v3568 = vld [vmem:[#allocation2 + $0xae8] sm:$0xf]
    %v3569 = vld [vmem:[#allocation2 + $0xaec] sm:$0xff]
    %v3570 = vld [vmem:[#allocation2 + $0xaf4] sm:$0xf]
    %v3571 = vld [vmem:[#allocation2 + $0xaf8] sm:$0xff]
    %v3572 = vld [vmem:[#allocation2 + $0xb00] sm:$0xf]
    %v3573 = vld [vmem:[#allocation2 + $0xb04] sm:$0xff]
    %v3574 = vld [vmem:[#allocation2 + $0xb0c] sm:$0xf]
    %v3575 = vld [vmem:[#allocation2 + $0xb10] sm:$0xff]
    %v3576 = vld [vmem:[#allocation2 + $0xb18] sm:$0xf]
    %v3577 = vld [vmem:[#allocation2 + $0xb1c] sm:$0xff]
    %v3578 = vld [vmem:[#allocation2 + $0xb24] sm:$0xf]
    %v3579 = vld [vmem:[#allocation2 + $0xb28] sm:$0xff]
    %v3580 = vld [vmem:[#allocation2 + $0xb30] sm:$0xf]
    %v3581 = vld [vmem:[#allocation2 + $0xb34] sm:$0xff]
    %v3582 = vld [vmem:[#allocation2 + $0xb3c] sm:$0xf]
    %v3583 = vld [vmem:[#allocation2 + $0xb40] sm:$0xff]
    %v3584 = vld [vmem:[#allocation2 + $0xb48] sm:$0xf]
    %v3585 = vld [vmem:[#allocation2 + $0xb4c] sm:$0xff]
    %v3586 = vld [vmem:[#allocation2 + $0xb54] sm:$0xf]
    %v3587 = vld [vmem:[#allocation2 + $0xb58] sm:$0xff]
    %v3588 = vld [vmem:[#allocation2 + $0xb60] sm:$0xf]
    %v3589 = vld [vmem:[#allocation2 + $0xb64] sm:$0xff]
    %v3590 = vld [vmem:[#allocation2 + $0xb6c] sm:$0xf]
    %v3591 = vld [vmem:[#allocation2 + $0xb70] sm:$0xff]
    %v3592 = vld [vmem:[#allocation2 + $0xb78] sm:$0xf]
    %v3593 = vld [vmem:[#allocation2 + $0xb7c] sm:$0xff]
    %v3594 = vld [vmem:[#allocation2 + $0xb84] sm:$0xf]
    %v3595 = vld [vmem:[#allocation2 + $0xb88] sm:$0xff]
    %v3596 = vld [vmem:[#allocation2 + $0xb90] sm:$0xf]
    %v3597 = vld [vmem:[#allocation2 + $0xb94] sm:$0xff]
    %v3598 = vld [vmem:[#allocation2 + $0xb9c] sm:$0xf]
    %v3599 = vld [vmem:[#allocation2 + $0xba0] sm:$0xff]
    %v3600 = vld [vmem:[#allocation2 + $0xba8] sm:$0xf]
    %v3601 = vld [vmem:[#allocation2 + $0xbac] sm:$0xff]
    %v3602 = vld [vmem:[#allocation2 + $0xbb4] sm:$0xf]
    %v3603 = vld [vmem:[#allocation2 + $0xbb8] sm:$0xff]
    %v3604 = vld [vmem:[#allocation2 + $0xbc0] sm:$0xf]
    %v3605 = vld [vmem:[#allocation2 + $0xbc4] sm:$0xff]
    %v3606 = vld [vmem:[#allocation2 + $0xbcc] sm:$0xf]
    %v3607 = vld [vmem:[#allocation2 + $0xbd0] sm:$0xff]
    %v3608 = vld [vmem:[#allocation2 + $0xbd8] sm:$0xf]
    %v3609 = vld [vmem:[#allocation2 + $0xbdc] sm:$0xff]
    %v3610 = vld [vmem:[#allocation2 + $0xbe4] sm:$0xf]
    %v3611 = vld [vmem:[#allocation2 + $0xbe8] sm:$0xff]
    %v3612 = vld [vmem:[#allocation2 + $0xbf0] sm:$0xf]
    %v3613 = vld [vmem:[#allocation2 + $0xbf4] sm:$0xff]
    %v3614 = vld [vmem:[#allocation2 + $0xbfc] sm:$0xf]
    %v3615 = vld [vmem:[#allocation4 + $0xd8] sm:$0xff]
    %v3616 = vld [vmem:[#allocation4 + $0xe0] sm:$0xff]
    %v3617 = vld [vmem:[#allocation4 + $0xe8] sm:$0xff]
    %v3618 = vpack.c.bf16 %v3549, %v3549
    %v3619 = vpack.c.bf16 %v3550, %v3550
    %v3620 = vlaneseq
    %v3621 = vshrl.u32 %v3620, 7
    %v3622 = vsub.s32 0, %v3621
    %v3623 = vrot.slane %v3615, %v3622
    %v3624 = vlaneseq
    %v3625 = vshrl.u32 %v3624, 7
    %v3626 = vsub.s32 0, %v3625
    %v3627 = vrot.slane %v3616, %v3626
    %v3628 = vlaneseq
    %v3629 = vshrl.u32 %v3628, 7
    %v3630 = vsub.s32 0, %v3629
    %v3631 = vrot.slane %v3617, %v3630
    %v3696 = vunpack.c.l.b16 %v3551
    %v3697 = vunpack.c.h.b16 %v3551
    %v3698 = vunpack.c.l.b16 %v3552
    %v3699 = vunpack.c.l.b16 %v3553
    %v3700 = vunpack.c.h.b16 %v3553
    %v3701 = vunpack.c.l.b16 %v3554
    %v3702 = vunpack.c.l.b16 %v3555
    %v3703 = vunpack.c.h.b16 %v3555
    %v3704 = vunpack.c.l.b16 %v3556
    %v3705 = vunpack.c.l.b16 %v3557
    %v3706 = vunpack.c.h.b16 %v3557
    %v3707 = vunpack.c.l.b16 %v3558
    %v3708 = vunpack.c.l.b16 %v3559
    %v3709 = vunpack.c.h.b16 %v3559
    %v3710 = vunpack.c.l.b16 %v3560
    %v3711 = vunpack.c.l.b16 %v3561
    %v3712 = vunpack.c.h.b16 %v3561
    %v3713 = vunpack.c.l.b16 %v3562
    %v3714 = vunpack.c.l.b16 %v3563
    %v3715 = vunpack.c.h.b16 %v3563
    %v3716 = vunpack.c.l.b16 %v3564
    %v3717 = vunpack.c.l.b16 %v3565
    %v3718 = vunpack.c.h.b16 %v3565
    %v3719 = vunpack.c.l.b16 %v3566
    %v3720 = vunpack.c.l.b16 %v3567
    %v3721 = vunpack.c.h.b16 %v3567
    %v3722 = vunpack.c.l.b16 %v3568
    %v3723 = vunpack.c.l.b16 %v3569
    %v3724 = vunpack.c.h.b16 %v3569
    %v3725 = vunpack.c.l.b16 %v3570
    %v3726 = vunpack.c.l.b16 %v3571
    %v3727 = vunpack.c.h.b16 %v3571
    %v3728 = vunpack.c.l.b16 %v3572
    %v3729 = vunpack.c.l.b16 %v3573
    %v3730 = vunpack.c.h.b16 %v3573
    %v3731 = vunpack.c.l.b16 %v3574
    %v3732 = vunpack.c.l.b16 %v3575
    %v3733 = vunpack.c.h.b16 %v3575
    %v3734 = vunpack.c.l.b16 %v3576
    %v3735 = vunpack.c.l.b16 %v3577
    %v3736 = vunpack.c.h.b16 %v3577
    %v3737 = vunpack.c.l.b16 %v3578
    %v3738 = vunpack.c.l.b16 %v3579
    %v3739 = vunpack.c.h.b16 %v3579
    %v3740 = vunpack.c.l.b16 %v3580
    %v3741 = vunpack.c.l.b16 %v3581
    %v3742 = vunpack.c.h.b16 %v3581
    %v3743 = vunpack.c.l.b16 %v3582
    %v3744 = vunpack.c.l.b16 %v3583
    %v3745 = vunpack.c.h.b16 %v3583
    %v3746 = vunpack.c.l.b16 %v3584
    %v3747 = vunpack.c.l.b16 %v3585
    %v3748 = vunpack.c.h.b16 %v3585
    %v3749 = vunpack.c.l.b16 %v3586
    %v3750 = vunpack.c.l.b16 %v3587
    %v3751 = vunpack.c.h.b16 %v3587
    %v3752 = vunpack.c.l.b16 %v3588
    %v3753 = vunpack.c.l.b16 %v3589
    %v3754 = vunpack.c.h.b16 %v3589
    %v3755 = vunpack.c.l.b16 %v3590
    %v3756 = vunpack.c.l.b16 %v3591
    %v3757 = vunpack.c.h.b16 %v3591
    %v3758 = vunpack.c.l.b16 %v3592
    %v3759 = vunpack.c.l.b16 %v3593
    %v3760 = vunpack.c.h.b16 %v3593
    %v3761 = vunpack.c.l.b16 %v3594
    %v3762 = vunpack.c.l.b16 %v3595
    %v3763 = vunpack.c.h.b16 %v3595
    %v3764 = vunpack.c.l.b16 %v3596
    %v3765 = vunpack.c.l.b16 %v3597
    %v3766 = vunpack.c.h.b16 %v3597
    %v3767 = vunpack.c.l.b16 %v3598
    %v3768 = vunpack.c.l.b16 %v3599
    %v3769 = vunpack.c.h.b16 %v3599
    %v3770 = vunpack.c.l.b16 %v3600
    %v3771 = vunpack.c.l.b16 %v3601
    %v3772 = vunpack.c.h.b16 %v3601
    %v3773 = vunpack.c.l.b16 %v3602
    %v3774 = vunpack.c.l.b16 %v3603
    %v3775 = vunpack.c.h.b16 %v3603
    %v3776 = vunpack.c.l.b16 %v3604
    %v3777 = vunpack.c.l.b16 %v3605
    %v3778 = vunpack.c.h.b16 %v3605
    %v3779 = vunpack.c.l.b16 %v3606
    %v3780 = vunpack.c.l.b16 %v3607
    %v3781 = vunpack.c.h.b16 %v3607
    %v3782 = vunpack.c.l.b16 %v3608
    %v3783 = vunpack.c.l.b16 %v3609
    %v3784 = vunpack.c.h.b16 %v3609
    %v3785 = vunpack.c.l.b16 %v3610
    %v3786 = vunpack.c.l.b16 %v3611
    %v3787 = vunpack.c.h.b16 %v3611
    %v3788 = vunpack.c.l.b16 %v3612
    %v3789 = vunpack.c.l.b16 %v3613
    %v3790 = vunpack.c.h.b16 %v3613
    %v3791 = vunpack.c.l.b16 %v3614
    %v3792 = vpack.c.b16 %v3699, %v3696
    %v3793 = vpack.c.b16 %v3700, %v3697
    %v3794 = vpack.c.b16 %v3701, %v3698
    %v3795 = vpack.c.b16 %v3705, %v3702
    %v3796 = vpack.c.b16 %v3706, %v3703
    %v3797 = vpack.c.b16 %v3707, %v3704
    %v3798 = vpack.c.b16 %v3711, %v3708
    %v3799 = vpack.c.b16 %v3712, %v3709
    %v3800 = vpack.c.b16 %v3713, %v3710
    %v3801 = vpack.c.b16 %v3717, %v3714
    %v3802 = vpack.c.b16 %v3718, %v3715
    %v3803 = vpack.c.b16 %v3719, %v3716
    %v3804 = vpack.c.b16 %v3723, %v3720
    %v3805 = vpack.c.b16 %v3724, %v3721
    %v3806 = vpack.c.b16 %v3725, %v3722
    %v3807 = vpack.c.b16 %v3729, %v3726
    %v3808 = vpack.c.b16 %v3730, %v3727
    %v3809 = vpack.c.b16 %v3731, %v3728
    %v3810 = vpack.c.b16 %v3735, %v3732
    %v3811 = vpack.c.b16 %v3736, %v3733
    %v3812 = vpack.c.b16 %v3737, %v3734
    %v3813 = vpack.c.b16 %v3741, %v3738
    %v3814 = vpack.c.b16 %v3742, %v3739
    %v3815 = vpack.c.b16 %v3743, %v3740
    %v3816 = vpack.c.b16 %v3747, %v3744
    %v3817 = vpack.c.b16 %v3748, %v3745
    %v3818 = vpack.c.b16 %v3749, %v3746
    %v3819 = vpack.c.b16 %v3753, %v3750
    %v3820 = vpack.c.b16 %v3754, %v3751
    %v3821 = vpack.c.b16 %v3755, %v3752
    %v3822 = vpack.c.b16 %v3759, %v3756
    %v3823 = vpack.c.b16 %v3760, %v3757
    %v3824 = vpack.c.b16 %v3761, %v3758
    %v3825 = vpack.c.b16 %v3765, %v3762
    %v3826 = vpack.c.b16 %v3766, %v3763
    %v3827 = vpack.c.b16 %v3767, %v3764
    %v3828 = vpack.c.b16 %v3771, %v3768
    %v3829 = vpack.c.b16 %v3772, %v3769
    %v3830 = vpack.c.b16 %v3773, %v3770
    %v3831 = vpack.c.b16 %v3777, %v3774
    %v3832 = vpack.c.b16 %v3778, %v3775
    %v3833 = vpack.c.b16 %v3779, %v3776
    %v3834 = vpack.c.b16 %v3783, %v3780
    %v3835 = vpack.c.b16 %v3784, %v3781
    %v3836 = vpack.c.b16 %v3785, %v3782
    %v3837 = vpack.c.b16 %v3789, %v3786
    %v3838 = vpack.c.b16 %v3790, %v3787
    %v3839 = vpack.c.b16 %v3791, %v3788
    %3888 = vmatprep.subr.bf16.mxu0 %v3793
    %3889 = vmatpush1.bf16.msra.mxu0 %v3792
    %3890 = vmatprep.subr.bf16.mxu0 %v3796
    %3891 = vmatpush1.bf16.msra.mxu0 %v3795
    %3892 = vmatprep.subr.bf16.mxu0 %v3799
    %3893 = vmatpush1.bf16.msra.mxu0 %v3798
    %3894 = vmatprep.subr.bf16.mxu0 %v3802
    %3895 = vmatpush1.bf16.msra.mxu0 %v3801
    %3896 = vmatprep.subr.bf16.mxu0 %v3805
    %3897 = vmatpush1.bf16.msra.mxu0 %v3804
    %3898 = vmatprep.subr.bf16.mxu0 %v3808
    %3899 = vmatpush1.bf16.msra.mxu0 %v3807
    %3900 = vmatprep.subr.bf16.mxu0 %v3811
    %3901 = vmatpush1.bf16.msra.mxu0 %v3810
    %3902 = vmatprep.subr.bf16.mxu0 %v3814
    %3903 = vmatpush1.bf16.msra.mxu0 %v3813
    %3904 = vmatprep.subr.bf16.mxu0 %v3817
    %3905 = vmatpush1.bf16.msra.mxu0 %v3816
    %3906 = vmatprep.subr.bf16.mxu0 %v3820
    %3907 = vmatpush1.bf16.msra.mxu0 %v3819
    %3908 = vmatprep.subr.bf16.mxu0 %v3823
    %3909 = vmatpush1.bf16.msra.mxu0 %v3822
    %3910 = vmatprep.subr.bf16.mxu0 %v3826
    %3911 = vmatpush1.bf16.msra.mxu0 %v3825
    %3912 = vmatprep.subr.bf16.mxu0 %v3829
    %3913 = vmatpush1.bf16.msra.mxu0 %v3828
    %3914 = vmatprep.subr.bf16.mxu0 %v3832
    %3915 = vmatpush1.bf16.msra.mxu0 %v3831
    %3916 = vmatprep.subr.bf16.mxu0 %v3835
    %3917 = vmatpush1.bf16.msra.mxu0 %v3834
    %3918 = vmatprep.subr.bf16.mxu0 %v3838
    %3919 = vmatpush1.bf16.msra.mxu0 %v3837
    %3920 = vmatprep.mubr.bf16.mxu0 %v3619
    %3921 = vmatmul.mubr.bf16.gmra.mrb[0].mxu0 %v3618
    %v3922 = vpop.f32.mrb[0].mxu0
    %v3923 = vadd.f32 %v3623, %v3922
    %v3924 = vpop.f32.mrb[0].mxu0
    %v3925 = vadd.f32 %v3627, %v3924
    %v3926 = vpop.f32.mrb[0].mxu0
    %v3927 = vpop.f32.mrb[0].mxu0
    %3928 = vdwg.mxu0
    %3929 = vmatprep.subr.bf16.mxu0 0
    %3930 = vmatpush1.bf16.msra.mxu0 %v3794
    %3931 = vmatprep.subr.bf16.mxu0 0
    %3932 = vmatpush1.bf16.msra.mxu0 %v3797
    %3933 = vmatprep.subr.bf16.mxu0 0
    %3934 = vmatpush1.bf16.msra.mxu0 %v3800
    %3935 = vmatprep.subr.bf16.mxu0 0
    %3936 = vmatpush1.bf16.msra.mxu0 %v3803
    %3937 = vmatprep.subr.bf16.mxu0 0
    %3938 = vmatpush1.bf16.msra.mxu0 %v3806
    %3939 = vmatprep.subr.bf16.mxu0 0
    %3940 = vmatpush1.bf16.msra.mxu0 %v3809
    %3941 = vmatprep.subr.bf16.mxu0 0
    %3942 = vmatpush1.bf16.msra.mxu0 %v3812
    %3943 = vmatprep.subr.bf16.mxu0 0
    %3944 = vmatpush1.bf16.msra.mxu0 %v3815
    %3945 = vmatprep.subr.bf16.mxu0 0
    %3946 = vmatpush1.bf16.msra.mxu0 %v3818
    %3947 = vmatprep.subr.bf16.mxu0 0
    %3948 = vmatpush1.bf16.msra.mxu0 %v3821
    %3949 = vmatprep.subr.bf16.mxu0 0
    %3950 = vmatpush1.bf16.msra.mxu0 %v3824
    %3951 = vmatprep.subr.bf16.mxu0 0
    %3952 = vmatpush1.bf16.msra.mxu0 %v3827
    %3953 = vmatprep.subr.bf16.mxu0 0
    %3954 = vmatpush1.bf16.msra.mxu0 %v3830
    %3955 = vmatprep.subr.bf16.mxu0 0
    %3956 = vmatpush1.bf16.msra.mxu0 %v3833
    %3957 = vmatprep.subr.bf16.mxu0 0
    %3958 = vmatpush1.bf16.msra.mxu0 %v3836
    %3959 = vmatprep.subr.bf16.mxu0 0
    %3960 = vmatpush1.bf16.msra.mxu0 %v3839
    %3961 = vmatprep.mubr.bf16.mxu0 %v3619
    %3962 = vmatmul.mubr.bf16.gmra.mrb[0].mxu0 %v3618
    %v3963 = vpop.f32.mrb[0].mxu0
    %v3964 = vadd.f32 %v3631, %v3963
    %v3965 = vpop.f32.mrb[0].mxu0
    %v3966 = vpop.f32.mrb[0].mxu0
    %v3967 = vpop.f32.mrb[0].mxu0
    %3968 = vdwg.mxu0
    %v3969 = vadd.f32 %v3923, %v3925
    %v3970 = vadd.f32 %v3969, %v3964
    %3971 = vadd.xlane.f32.xlu0 %v3970
    %v3972 = vpop.xlane.xlu0 %3971
    %v3973 = vmul.f32 %v3972, 0.003125
    %v3974 = vmul.f32 %v3923, %v3923
    %v3975 = vmul.f32 %v3925, %v3925
    %v3976 = vmul.f32 %v3964, %v3964
    %v3977 = vadd.f32 %v3974, %v3975
    %v3978 = vadd.f32 %v3977, %v3976
    %3979 = vadd.xlane.f32.xlu0 %v3978
    %v3980 = vpop.xlane.xlu0 %3979
    %v3981 = vmul.f32 %v3980, 0.003125
    %v3982 = vmul.f32 %v3973, %v3973
    %v3983 = vsub.f32 %v3981, %v3982
    %v3984 = vmax.f32 %v3983, 0.0
    %v3985 = vsub.f32 %v3923, %v3973
    %v3986 = vsub.f32 %v3925, %v3973
    %v3987 = vsub.f32 %v3964, %v3973
    %v3988 = vadd.f32 %v3984, 1e-05
    %v3989 = vrsqrt.pop %v3988
    %v3990 = vmul.f32 %v3985, %v3989
    %v3991 = vmul.f32 %v3986, %v3989
    %v3992 = vmul.f32 %v3987, %v3989
    %v3993 = vlaneseq
    %v3994 = vshrl.u32 %v3993, 7
    %v3995 = vsub.s32 1, %v3994
    %v3996 = vrot.slane %v3615, %v3995
    %v3997 = vlaneseq
    %v3998 = vshrl.u32 %v3997, 7
    %v3999 = vsub.s32 1, %v3998
    %v4000 = vrot.slane %v3616, %v3999
    %v4001 = vlaneseq
    %v4002 = vshrl.u32 %v4001, 7
    %v4003 = vsub.s32 1, %v4002
    %v4004 = vrot.slane %v3617, %v4003
    %v4005 = vmul.f32 %v3990, %v3996
    %v4006 = vmul.f32 %v3991, %v4000
    %v4007 = vmul.f32 %v3992, %v4004
    %v4008 = vlaneseq
    %v4009 = vshrl.u32 %v4008, 7
    %v4010 = vsub.s32 2, %v4009
    %v4011 = vrot.slane %v3615, %v4010
    %v4012 = vlaneseq
    %v4013 = vshrl.u32 %v4012, 7
    %v4014 = vsub.s32 2, %v4013
    %v4015 = vrot.slane %v3616, %v4014
    %v4016 = vlaneseq
    %v4017 = vshrl.u32 %v4016, 7
    %v4018 = vsub.s32 2, %v4017
    %v4019 = vrot.slane %v3617, %v4018
    %v4020 = vadd.f32 %v4005, %v4011
    %v4021 = vadd.f32 %v4006, %v4015
    %v4022 = vadd.f32 %v4007, %v4019
    %vm4023 = vcmp.gt.f32.partialorder %v4020, 0.0
    %vm4024 = vcmp.gt.f32.partialorder %v4021, 0.0
    %vm4025 = vcmp.gt.f32.partialorder %v4022, 0.0
    %v4026 = vmul.f32 %v4020, 0.2
    %v4027 = vmul.f32 %v4021, 0.2
    %v4028 = vmul.f32 %v4022, 0.2
    %v4029 = vsel %vm4023, %v4020, %v4026
    %v4030 = vsel %vm4024, %v4021, %v4027
    %v4031 = vsel %vm4025, %v4022, %v4028
    %v4032 = vld [vmem:[#allocation2 + $0xc00] sm:$0xff]
    %v4033 = vld [vmem:[#allocation2 + $0xc08] sm:$0xf]
    %v4034 = vld [vmem:[#allocation2 + $0xc0c] sm:$0xff]
    %v4035 = vld [vmem:[#allocation2 + $0xc14] sm:$0xf]
    %v4036 = vld [vmem:[#allocation2 + $0xc18] sm:$0xff]
    %v4037 = vld [vmem:[#allocation2 + $0xc20] sm:$0xf]
    %v4038 = vld [vmem:[#allocation2 + $0xc24] sm:$0xff]
    %v4039 = vld [vmem:[#allocation2 + $0xc2c] sm:$0xf]
    %v4040 = vld [vmem:[#allocation2 + $0xc30] sm:$0xff]
    %v4041 = vld [vmem:[#allocation2 + $0xc38] sm:$0xf]
    %v4042 = vld [vmem:[#allocation2 + $0xc3c] sm:$0xff]
    %v4043 = vld [vmem:[#allocation2 + $0xc44] sm:$0xf]
    %v4044 = vld [vmem:[#allocation2 + $0xc48] sm:$0xff]
    %v4045 = vld [vmem:[#allocation2 + $0xc50] sm:$0xf]
    %v4046 = vld [vmem:[#allocation2 + $0xc54] sm:$0xff]
    %v4047 = vld [vmem:[#allocation2 + $0xc5c] sm:$0xf]
    %v4048 = vld [vmem:[#allocation2 + $0xc60] sm:$0xff]
    %v4049 = vld [vmem:[#allocation2 + $0xc68] sm:$0xf]
    %v4050 = vld [vmem:[#allocation2 + $0xc6c] sm:$0xff]
    %v4051 = vld [vmem:[#allocation2 + $0xc74] sm:$0xf]
    %v4052 = vld [vmem:[#allocation2 + $0xc78] sm:$0xff]
    %v4053 = vld [vmem:[#allocation2 + $0xc80] sm:$0xf]
    %v4054 = vld [vmem:[#allocation2 + $0xc84] sm:$0xff]
    %v4055 = vld [vmem:[#allocation2 + $0xc8c] sm:$0xf]
    %v4056 = vld [vmem:[#allocation2 + $0xc90] sm:$0xff]
    %v4057 = vld [vmem:[#allocation2 + $0xc98] sm:$0xf]
    %v4058 = vld [vmem:[#allocation2 + $0xc9c] sm:$0xff]
    %v4059 = vld [vmem:[#allocation2 + $0xca4] sm:$0xf]
    %v4060 = vld [vmem:[#allocation2 + $0xca8] sm:$0xff]
    %v4061 = vld [vmem:[#allocation2 + $0xcb0] sm:$0xf]
    %v4062 = vld [vmem:[#allocation2 + $0xcb4] sm:$0xff]
    %v4063 = vld [vmem:[#allocation2 + $0xcbc] sm:$0xf]
    %v4064 = vld [vmem:[#allocation2 + $0xcc0] sm:$0xff]
    %v4065 = vld [vmem:[#allocation2 + $0xcc8] sm:$0xf]
    %v4066 = vld [vmem:[#allocation2 + $0xccc] sm:$0xff]
    %v4067 = vld [vmem:[#allocation2 + $0xcd4] sm:$0xf]
    %v4068 = vld [vmem:[#allocation2 + $0xcd8] sm:$0xff]
    %v4069 = vld [vmem:[#allocation2 + $0xce0] sm:$0xf]
    %v4070 = vld [vmem:[#allocation2 + $0xce4] sm:$0xff]
    %v4071 = vld [vmem:[#allocation2 + $0xcec] sm:$0xf]
    %v4072 = vld [vmem:[#allocation2 + $0xcf0] sm:$0xff]
    %v4073 = vld [vmem:[#allocation2 + $0xcf8] sm:$0xf]
    %v4074 = vld [vmem:[#allocation2 + $0xcfc] sm:$0xff]
    %v4075 = vld [vmem:[#allocation2 + $0xd04] sm:$0xf]
    %v4076 = vld [vmem:[#allocation2 + $0xd08] sm:$0xff]
    %v4077 = vld [vmem:[#allocation2 + $0xd10] sm:$0xf]
    %v4078 = vld [vmem:[#allocation2 + $0xd14] sm:$0xff]
    %v4079 = vld [vmem:[#allocation2 + $0xd1c] sm:$0xf]
    %v4080 = vld [vmem:[#allocation2 + $0xd20] sm:$0xff]
    %v4081 = vld [vmem:[#allocation2 + $0xd28] sm:$0xf]
    %v4082 = vld [vmem:[#allocation2 + $0xd2c] sm:$0xff]
    %v4083 = vld [vmem:[#allocation2 + $0xd34] sm:$0xf]
    %v4084 = vld [vmem:[#allocation2 + $0xd38] sm:$0xff]
    %v4085 = vld [vmem:[#allocation2 + $0xd40] sm:$0xf]
    %v4086 = vld [vmem:[#allocation2 + $0xd44] sm:$0xff]
    %v4087 = vld [vmem:[#allocation2 + $0xd4c] sm:$0xf]
    %v4088 = vld [vmem:[#allocation2 + $0xd50] sm:$0xff]
    %v4089 = vld [vmem:[#allocation2 + $0xd58] sm:$0xf]
    %v4090 = vld [vmem:[#allocation2 + $0xd5c] sm:$0xff]
    %v4091 = vld [vmem:[#allocation2 + $0xd64] sm:$0xf]
    %v4092 = vld [vmem:[#allocation2 + $0xd68] sm:$0xff]
    %v4093 = vld [vmem:[#allocation2 + $0xd70] sm:$0xf]
    %v4094 = vld [vmem:[#allocation2 + $0xd74] sm:$0xff]
    %v4095 = vld [vmem:[#allocation2 + $0xd7c] sm:$0xf]
    %v4096 = vld [vmem:[#allocation2 + $0xd80] sm:$0xff]
    %v4097 = vld [vmem:[#allocation2 + $0xd88] sm:$0xf]
    %v4098 = vld [vmem:[#allocation2 + $0xd8c] sm:$0xff]
    %v4099 = vld [vmem:[#allocation2 + $0xd94] sm:$0xf]
    %v4100 = vld [vmem:[#allocation2 + $0xd98] sm:$0xff]
    %v4101 = vld [vmem:[#allocation2 + $0xda0] sm:$0xf]
    %v4102 = vld [vmem:[#allocation2 + $0xda4] sm:$0xff]
    %v4103 = vld [vmem:[#allocation2 + $0xdac] sm:$0xf]
    %v4104 = vld [vmem:[#allocation2 + $0xdb0] sm:$0xff]
    %v4105 = vld [vmem:[#allocation2 + $0xdb8] sm:$0xf]
    %v4106 = vld [vmem:[#allocation2 + $0xdbc] sm:$0xff]
    %v4107 = vld [vmem:[#allocation2 + $0xdc4] sm:$0xf]
    %v4108 = vld [vmem:[#allocation2 + $0xdc8] sm:$0xff]
    %v4109 = vld [vmem:[#allocation2 + $0xdd0] sm:$0xf]
    %v4110 = vld [vmem:[#allocation2 + $0xdd4] sm:$0xff]
    %v4111 = vld [vmem:[#allocation2 + $0xddc] sm:$0xf]
    %v4112 = vld [vmem:[#allocation2 + $0xde0] sm:$0xff]
    %v4113 = vld [vmem:[#allocation2 + $0xde8] sm:$0xf]
    %v4114 = vld [vmem:[#allocation2 + $0xdec] sm:$0xff]
    %v4115 = vld [vmem:[#allocation2 + $0xdf4] sm:$0xf]
    %v4116 = vld [vmem:[#allocation2 + $0xdf8] sm:$0xff]
    %v4117 = vld [vmem:[#allocation2 + $0xe00] sm:$0xf]
    %v4118 = vld [vmem:[#allocation2 + $0xe04] sm:$0xff]
    %v4119 = vld [vmem:[#allocation2 + $0xe0c] sm:$0xf]
    %v4120 = vld [vmem:[#allocation2 + $0xe10] sm:$0xff]
    %v4121 = vld [vmem:[#allocation2 + $0xe18] sm:$0xf]
    %v4122 = vld [vmem:[#allocation2 + $0xe1c] sm:$0xff]
    %v4123 = vld [vmem:[#allocation2 + $0xe24] sm:$0xf]
    %v4124 = vld [vmem:[#allocation2 + $0xe28] sm:$0xff]
    %v4125 = vld [vmem:[#allocation2 + $0xe30] sm:$0xf]
    %v4126 = vld [vmem:[#allocation2 + $0xe34] sm:$0xff]
    %v4127 = vld [vmem:[#allocation2 + $0xe3c] sm:$0xf]
    %v4128 = vld [vmem:[#allocation4 + $0xf0] sm:$0xff]
    %v4129 = vld [vmem:[#allocation4 + $0xf8] sm:$0xff]
    %v4130 = vld [vmem:[#allocation4 + $0x100] sm:$0xff]
    %v4131 = vpack.c.bf16 %v4029, %v4029
    %v4132 = vpack.c.bf16 %v4030, %v4030
    %v4133 = vpack.c.bf16 %v4031, %v4031
    %v4134 = vlaneseq
    %v4135 = vshrl.u32 %v4134, 7
    %v4136 = vsub.s32 0, %v4135
    %v4137 = vrot.slane %v4128, %v4136
    %v4138 = vlaneseq
    %v4139 = vshrl.u32 %v4138, 7
    %v4140 = vsub.s32 0, %v4139
    %v4141 = vrot.slane %v4129, %v4140
    %v4142 = vlaneseq
    %v4143 = vshrl.u32 %v4142, 7
    %v4144 = vsub.s32 0, %v4143
    %v4145 = vrot.slane %v4130, %v4144
    %v4242 = vunpack.c.l.b16 %v4032
    %v4243 = vunpack.c.h.b16 %v4032
    %v4244 = vunpack.c.l.b16 %v4033
    %v4245 = vunpack.c.l.b16 %v4034
    %v4246 = vunpack.c.h.b16 %v4034
    %v4247 = vunpack.c.l.b16 %v4035
    %v4248 = vunpack.c.l.b16 %v4036
    %v4249 = vunpack.c.h.b16 %v4036
    %v4250 = vunpack.c.l.b16 %v4037
    %v4251 = vunpack.c.l.b16 %v4038
    %v4252 = vunpack.c.h.b16 %v4038
    %v4253 = vunpack.c.l.b16 %v4039
    %v4254 = vunpack.c.l.b16 %v4040
    %v4255 = vunpack.c.h.b16 %v4040
    %v4256 = vunpack.c.l.b16 %v4041
    %v4257 = vunpack.c.l.b16 %v4042
    %v4258 = vunpack.c.h.b16 %v4042
    %v4259 = vunpack.c.l.b16 %v4043
    %v4260 = vunpack.c.l.b16 %v4044
    %v4261 = vunpack.c.h.b16 %v4044
    %v4262 = vunpack.c.l.b16 %v4045
    %v4263 = vunpack.c.l.b16 %v4046
    %v4264 = vunpack.c.h.b16 %v4046
    %v4265 = vunpack.c.l.b16 %v4047
    %v4266 = vunpack.c.l.b16 %v4048
    %v4267 = vunpack.c.h.b16 %v4048
    %v4268 = vunpack.c.l.b16 %v4049
    %v4269 = vunpack.c.l.b16 %v4050
    %v4270 = vunpack.c.h.b16 %v4050
    %v4271 = vunpack.c.l.b16 %v4051
    %v4272 = vunpack.c.l.b16 %v4052
    %v4273 = vunpack.c.h.b16 %v4052
    %v4274 = vunpack.c.l.b16 %v4053
    %v4275 = vunpack.c.l.b16 %v4054
    %v4276 = vunpack.c.h.b16 %v4054
    %v4277 = vunpack.c.l.b16 %v4055
    %v4278 = vunpack.c.l.b16 %v4056
    %v4279 = vunpack.c.h.b16 %v4056
    %v4280 = vunpack.c.l.b16 %v4057
    %v4281 = vunpack.c.l.b16 %v4058
    %v4282 = vunpack.c.h.b16 %v4058
    %v4283 = vunpack.c.l.b16 %v4059
    %v4284 = vunpack.c.l.b16 %v4060
    %v4285 = vunpack.c.h.b16 %v4060
    %v4286 = vunpack.c.l.b16 %v4061
    %v4287 = vunpack.c.l.b16 %v4062
    %v4288 = vunpack.c.h.b16 %v4062
    %v4289 = vunpack.c.l.b16 %v4063
    %v4290 = vunpack.c.l.b16 %v4064
    %v4291 = vunpack.c.h.b16 %v4064
    %v4292 = vunpack.c.l.b16 %v4065
    %v4293 = vunpack.c.l.b16 %v4066
    %v4294 = vunpack.c.h.b16 %v4066
    %v4295 = vunpack.c.l.b16 %v4067
    %v4296 = vunpack.c.l.b16 %v4068
    %v4297 = vunpack.c.h.b16 %v4068
    %v4298 = vunpack.c.l.b16 %v4069
    %v4299 = vunpack.c.l.b16 %v4070
    %v4300 = vunpack.c.h.b16 %v4070
    %v4301 = vunpack.c.l.b16 %v4071
    %v4302 = vunpack.c.l.b16 %v4072
    %v4303 = vunpack.c.h.b16 %v4072
    %v4304 = vunpack.c.l.b16 %v4073
    %v4305 = vunpack.c.l.b16 %v4074
    %v4306 = vunpack.c.h.b16 %v4074
    %v4307 = vunpack.c.l.b16 %v4075
    %v4308 = vunpack.c.l.b16 %v4076
    %v4309 = vunpack.c.h.b16 %v4076
    %v4310 = vunpack.c.l.b16 %v4077
    %v4311 = vunpack.c.l.b16 %v4078
    %v4312 = vunpack.c.h.b16 %v4078
    %v4313 = vunpack.c.l.b16 %v4079
    %v4314 = vunpack.c.l.b16 %v4080
    %v4315 = vunpack.c.h.b16 %v4080
    %v4316 = vunpack.c.l.b16 %v4081
    %v4317 = vunpack.c.l.b16 %v4082
    %v4318 = vunpack.c.h.b16 %v4082
    %v4319 = vunpack.c.l.b16 %v4083
    %v4320 = vunpack.c.l.b16 %v4084
    %v4321 = vunpack.c.h.b16 %v4084
    %v4322 = vunpack.c.l.b16 %v4085
    %v4323 = vunpack.c.l.b16 %v4086
    %v4324 = vunpack.c.h.b16 %v4086
    %v4325 = vunpack.c.l.b16 %v4087
    %v4326 = vunpack.c.l.b16 %v4088
    %v4327 = vunpack.c.h.b16 %v4088
    %v4328 = vunpack.c.l.b16 %v4089
    %v4329 = vunpack.c.l.b16 %v4090
    %v4330 = vunpack.c.h.b16 %v4090
    %v4331 = vunpack.c.l.b16 %v4091
    %v4332 = vunpack.c.l.b16 %v4092
    %v4333 = vunpack.c.h.b16 %v4092
    %v4334 = vunpack.c.l.b16 %v4093
    %v4335 = vunpack.c.l.b16 %v4094
    %v4336 = vunpack.c.h.b16 %v4094
    %v4337 = vunpack.c.l.b16 %v4095
    %v4338 = vunpack.c.l.b16 %v4096
    %v4339 = vunpack.c.h.b16 %v4096
    %v4340 = vunpack.c.l.b16 %v4097
    %v4341 = vunpack.c.l.b16 %v4098
    %v4342 = vunpack.c.h.b16 %v4098
    %v4343 = vunpack.c.l.b16 %v4099
    %v4344 = vunpack.c.l.b16 %v4100
    %v4345 = vunpack.c.h.b16 %v4100
    %v4346 = vunpack.c.l.b16 %v4101
    %v4347 = vunpack.c.l.b16 %v4102
    %v4348 = vunpack.c.h.b16 %v4102
    %v4349 = vunpack.c.l.b16 %v4103
    %v4350 = vunpack.c.l.b16 %v4104
    %v4351 = vunpack.c.h.b16 %v4104
    %v4352 = vunpack.c.l.b16 %v4105
    %v4353 = vunpack.c.l.b16 %v4106
    %v4354 = vunpack.c.h.b16 %v4106
    %v4355 = vunpack.c.l.b16 %v4107
    %v4356 = vunpack.c.l.b16 %v4108
    %v4357 = vunpack.c.h.b16 %v4108
    %v4358 = vunpack.c.l.b16 %v4109
    %v4359 = vunpack.c.l.b16 %v4110
    %v4360 = vunpack.c.h.b16 %v4110
    %v4361 = vunpack.c.l.b16 %v4111
    %v4362 = vunpack.c.l.b16 %v4112
    %v4363 = vunpack.c.h.b16 %v4112
    %v4364 = vunpack.c.l.b16 %v4113
    %v4365 = vunpack.c.l.b16 %v4114
    %v4366 = vunpack.c.h.b16 %v4114
    %v4367 = vunpack.c.l.b16 %v4115
    %v4368 = vunpack.c.l.b16 %v4116
    %v4369 = vunpack.c.h.b16 %v4116
    %v4370 = vunpack.c.l.b16 %v4117
    %v4371 = vunpack.c.l.b16 %v4118
    %v4372 = vunpack.c.h.b16 %v4118
    %v4373 = vunpack.c.l.b16 %v4119
    %v4374 = vunpack.c.l.b16 %v4120
    %v4375 = vunpack.c.h.b16 %v4120
    %v4376 = vunpack.c.l.b16 %v4121
    %v4377 = vunpack.c.l.b16 %v4122
    %v4378 = vunpack.c.h.b16 %v4122
    %v4379 = vunpack.c.l.b16 %v4123
    %v4380 = vunpack.c.l.b16 %v4124
    %v4381 = vunpack.c.h.b16 %v4124
    %v4382 = vunpack.c.l.b16 %v4125
    %v4383 = vunpack.c.l.b16 %v4126
    %v4384 = vunpack.c.h.b16 %v4126
    %v4385 = vunpack.c.l.b16 %v4127
    %v4386 = vpack.c.b16 %v4245, %v4242
    %v4387 = vpack.c.b16 %v4246, %v4243
    %v4388 = vpack.c.b16 %v4247, %v4244
    %v4389 = vpack.c.b16 %v4251, %v4248
    %v4390 = vpack.c.b16 %v4252, %v4249
    %v4391 = vpack.c.b16 %v4253, %v4250
    %v4392 = vpack.c.b16 %v4257, %v4254
    %v4393 = vpack.c.b16 %v4258, %v4255
    %v4394 = vpack.c.b16 %v4259, %v4256
    %v4395 = vpack.c.b16 %v4263, %v4260
    %v4396 = vpack.c.b16 %v4264, %v4261
    %v4397 = vpack.c.b16 %v4265, %v4262
    %v4398 = vpack.c.b16 %v4269, %v4266
    %v4399 = vpack.c.b16 %v4270, %v4267
    %v4400 = vpack.c.b16 %v4271, %v4268
    %v4401 = vpack.c.b16 %v4275, %v4272
    %v4402 = vpack.c.b16 %v4276, %v4273
    %v4403 = vpack.c.b16 %v4277, %v4274
    %v4404 = vpack.c.b16 %v4281, %v4278
    %v4405 = vpack.c.b16 %v4282, %v4279
    %v4406 = vpack.c.b16 %v4283, %v4280
    %v4407 = vpack.c.b16 %v4287, %v4284
    %v4408 = vpack.c.b16 %v4288, %v4285
    %v4409 = vpack.c.b16 %v4289, %v4286
    %v4410 = vpack.c.b16 %v4293, %v4290
    %v4411 = vpack.c.b16 %v4294, %v4291
    %v4412 = vpack.c.b16 %v4295, %v4292
    %v4413 = vpack.c.b16 %v4299, %v4296
    %v4414 = vpack.c.b16 %v4300, %v4297
    %v4415 = vpack.c.b16 %v4301, %v4298
    %v4416 = vpack.c.b16 %v4305, %v4302
    %v4417 = vpack.c.b16 %v4306, %v4303
    %v4418 = vpack.c.b16 %v4307, %v4304
    %v4419 = vpack.c.b16 %v4311, %v4308
    %v4420 = vpack.c.b16 %v4312, %v4309
    %v4421 = vpack.c.b16 %v4313, %v4310
    %v4422 = vpack.c.b16 %v4317, %v4314
    %v4423 = vpack.c.b16 %v4318, %v4315
    %v4424 = vpack.c.b16 %v4319, %v4316
    %v4425 = vpack.c.b16 %v4323, %v4320
    %v4426 = vpack.c.b16 %v4324, %v4321
    %v4427 = vpack.c.b16 %v4325, %v4322
    %v4428 = vpack.c.b16 %v4329, %v4326
    %v4429 = vpack.c.b16 %v4330, %v4327
    %v4430 = vpack.c.b16 %v4331, %v4328
    %v4431 = vpack.c.b16 %v4335, %v4332
    %v4432 = vpack.c.b16 %v4336, %v4333
    %v4433 = vpack.c.b16 %v4337, %v4334
    %v4434 = vpack.c.b16 %v4341, %v4338
    %v4435 = vpack.c.b16 %v4342, %v4339
    %v4436 = vpack.c.b16 %v4343, %v4340
    %v4437 = vpack.c.b16 %v4347, %v4344
    %v4438 = vpack.c.b16 %v4348, %v4345
    %v4439 = vpack.c.b16 %v4349, %v4346
    %v4440 = vpack.c.b16 %v4353, %v4350
    %v4441 = vpack.c.b16 %v4354, %v4351
    %v4442 = vpack.c.b16 %v4355, %v4352
    %v4443 = vpack.c.b16 %v4359, %v4356
    %v4444 = vpack.c.b16 %v4360, %v4357
    %v4445 = vpack.c.b16 %v4361, %v4358
    %v4446 = vpack.c.b16 %v4365, %v4362
    %v4447 = vpack.c.b16 %v4366, %v4363
    %v4448 = vpack.c.b16 %v4367, %v4364
    %v4449 = vpack.c.b16 %v4371, %v4368
    %v4450 = vpack.c.b16 %v4372, %v4369
    %v4451 = vpack.c.b16 %v4373, %v4370
    %v4452 = vpack.c.b16 %v4377, %v4374
    %v4453 = vpack.c.b16 %v4378, %v4375
    %v4454 = vpack.c.b16 %v4379, %v4376
    %v4455 = vpack.c.b16 %v4383, %v4380
    %v4456 = vpack.c.b16 %v4384, %v4381
    %v4457 = vpack.c.b16 %v4385, %v4382
    %4530 = vmatprep.subr.bf16.mxu0 %v4387
    %4531 = vmatpush1.bf16.msra.mxu0 %v4386
    %4532 = vmatprep.subr.bf16.mxu0 %v4390
    %4533 = vmatpush1.bf16.msra.mxu0 %v4389
    %4534 = vmatprep.subr.bf16.mxu0 %v4393
    %4535 = vmatpush1.bf16.msra.mxu0 %v4392
    %4536 = vmatprep.subr.bf16.mxu0 %v4396
    %4537 = vmatpush1.bf16.msra.mxu0 %v4395
    %4538 = vmatprep.subr.bf16.mxu0 %v4399
    %4539 = vmatpush1.bf16.msra.mxu0 %v4398
    %4540 = vmatprep.subr.bf16.mxu0 %v4402
    %4541 = vmatpush1.bf16.msra.mxu0 %v4401
    %4542 = vmatprep.subr.bf16.mxu0 %v4405
    %4543 = vmatpush1.bf16.msra.mxu0 %v4404
    %4544 = vmatprep.subr.bf16.mxu0 %v4408
    %4545 = vmatpush1.bf16.msra.mxu0 %v4407
    %4546 = vmatprep.subr.bf16.mxu0 %v4411
    %4547 = vmatpush1.bf16.msra.mxu0 %v4410
    %4548 = vmatprep.subr.bf16.mxu0 %v4414
    %4549 = vmatpush1.bf16.msra.mxu0 %v4413
    %4550 = vmatprep.subr.bf16.mxu0 %v4417
    %4551 = vmatpush1.bf16.msra.mxu0 %v4416
    %4552 = vmatprep.subr.bf16.mxu0 %v4420
    %4553 = vmatpush1.bf16.msra.mxu0 %v4419
    %4554 = vmatprep.subr.bf16.mxu0 %v4423
    %4555 = vmatpush1.bf16.msra.mxu0 %v4422
    %4556 = vmatprep.subr.bf16.mxu0 %v4426
    %4557 = vmatpush1.bf16.msra.mxu0 %v4425
    %4558 = vmatprep.subr.bf16.mxu0 %v4429
    %4559 = vmatpush1.bf16.msra.mxu0 %v4428
    %4560 = vmatprep.subr.bf16.mxu0 %v4432
    %4561 = vmatpush1.bf16.msra.mxu0 %v4431
    %4562 = vmatprep.mubr.bf16.mxu0 %v4132
    %4563 = vmatmul.mubr.bf16.gmra.mrb[0].mxu0 %v4131
    %v4564 = vpop.f32.mrb[0].mxu0
    %v4565 = vadd.f32 %v4137, %v4564
    %v4566 = vpop.f32.mrb[0].mxu0
    %v4567 = vadd.f32 %v4141, %v4566
    %v4568 = vpop.f32.mrb[0].mxu0
    %v4569 = vpop.f32.mrb[0].mxu0
    %4570 = vdwg.mxu0
    %4571 = vmatprep.subr.bf16.mxu0 %v4435
    %4572 = vmatpush1.bf16.msra.mxu0 %v4434
    %4573 = vmatprep.subr.bf16.mxu0 %v4438
    %4574 = vmatpush1.bf16.msra.mxu0 %v4437
    %4575 = vmatprep.subr.bf16.mxu0 %v4441
    %4576 = vmatpush1.bf16.msra.mxu0 %v4440
    %4577 = vmatprep.subr.bf16.mxu0 %v4444
    %4578 = vmatpush1.bf16.msra.mxu0 %v4443
    %4579 = vmatprep.subr.bf16.mxu0 %v4447
    %4580 = vmatpush1.bf16.msra.mxu0 %v4446
    %4581 = vmatprep.subr.bf16.mxu0 %v4450
    %4582 = vmatpush1.bf16.msra.mxu0 %v4449
    %4583 = vmatprep.subr.bf16.mxu0 %v4453
    %4584 = vmatpush1.bf16.msra.mxu0 %v4452
    %4585 = vmatprep.subr.bf16.mxu0 %v4456
    %4586 = vmatpush1.bf16.msra.mxu0 %v4455
    %4587 = vmatprep.subr.bf16.mxu0 0
    %4588 = vmatpush1.bf16.msra.mxu0 0
    %4589 = vmatprep.subr.bf16.mxu0 0
    %4590 = vmatpush1.bf16.msra.mxu0 0
    %4591 = vmatprep.subr.bf16.mxu0 0
    %4592 = vmatpush1.bf16.msra.mxu0 0
    %4593 = vmatprep.subr.bf16.mxu0 0
    %4594 = vmatpush1.bf16.msra.mxu0 0
    %4595 = vmatprep.subr.bf16.mxu0 0
    %4596 = vmatpush1.bf16.msra.mxu0 0
    %4597 = vmatprep.subr.bf16.mxu0 0
    %4598 = vmatpush1.bf16.msra.mxu0 0
    %4599 = vmatprep.subr.bf16.mxu0 0
    %4600 = vmatpush1.bf16.msra.mxu0 0
    %4601 = vmatprep.subr.bf16.mxu0 0
    %4602 = vmatpush1.bf16.msra.mxu0 0
    %4603 = vmatprep.mubr.bf16.mxu0 0
    %4604 = vmatmul.mubr.bf16.gmra.mrb[0].mxu0 %v4133
    %v4605 = vpop.f32.mrb[0].mxu0
    %v4606 = vadd.f32 %v4565, %v4605
    %v4607 = vpop.f32.mrb[0].mxu0
    %v4608 = vadd.f32 %v4567, %v4607
    %v4609 = vpop.f32.mrb[0].mxu0
    %v4610 = vpop.f32.mrb[0].mxu0
    %4611 = vdwg.mxu0
    %4612 = vmatprep.subr.bf16.mxu0 0
    %4613 = vmatpush1.bf16.msra.mxu0 %v4388
    %4614 = vmatprep.subr.bf16.mxu0 0
    %4615 = vmatpush1.bf16.msra.mxu0 %v4391
    %4616 = vmatprep.subr.bf16.mxu0 0
    %4617 = vmatpush1.bf16.msra.mxu0 %v4394
    %4618 = vmatprep.subr.bf16.mxu0 0
    %4619 = vmatpush1.bf16.msra.mxu0 %v4397
    %4620 = vmatprep.subr.bf16.mxu0 0
    %4621 = vmatpush1.bf16.msra.mxu0 %v4400
    %4622 = vmatprep.subr.bf16.mxu0 0
    %4623 = vmatpush1.bf16.msra.mxu0 %v4403
    %4624 = vmatprep.subr.bf16.mxu0 0
    %4625 = vmatpush1.bf16.msra.mxu0 %v4406
    %4626 = vmatprep.subr.bf16.mxu0 0
    %4627 = vmatpush1.bf16.msra.mxu0 %v4409
    %4628 = vmatprep.subr.bf16.mxu0 0
    %4629 = vmatpush1.bf16.msra.mxu0 %v4412
    %4630 = vmatprep.subr.bf16.mxu0 0
    %4631 = vmatpush1.bf16.msra.mxu0 %v4415
    %4632 = vmatprep.subr.bf16.mxu0 0
    %4633 = vmatpush1.bf16.msra.mxu0 %v4418
    %4634 = vmatprep.subr.bf16.mxu0 0
    %4635 = vmatpush1.bf16.msra.mxu0 %v4421
    %4636 = vmatprep.subr.bf16.mxu0 0
    %4637 = vmatpush1.bf16.msra.mxu0 %v4424
    %4638 = vmatprep.subr.bf16.mxu0 0
    %4639 = vmatpush1.bf16.msra.mxu0 %v4427
    %4640 = vmatprep.subr.bf16.mxu0 0
    %4641 = vmatpush1.bf16.msra.mxu0 %v4430
    %4642 = vmatprep.subr.bf16.mxu0 0
    %4643 = vmatpush1.bf16.msra.mxu0 %v4433
    %4644 = vmatprep.mubr.bf16.mxu0 %v4132
    %4645 = vmatmul.mubr.bf16.gmra.mrb[0].mxu0 %v4131
    %v4646 = vpop.f32.mrb[0].mxu0
    %v4647 = vadd.f32 %v4145, %v4646
    %v4648 = vpop.f32.mrb[0].mxu0
    %v4649 = vpop.f32.mrb[0].mxu0
    %v4650 = vpop.f32.mrb[0].mxu0
    %4651 = vdwg.mxu0
    %4652 = vmatprep.subr.bf16.mxu0 0
    %4653 = vmatpush1.bf16.msra.mxu0 %v4436
    %4654 = vmatprep.subr.bf16.mxu0 0
    %4655 = vmatpush1.bf16.msra.mxu0 %v4439
    %4656 = vmatprep.subr.bf16.mxu0 0
    %4657 = vmatpush1.bf16.msra.mxu0 %v4442
    %4658 = vmatprep.subr.bf16.mxu0 0
    %4659 = vmatpush1.bf16.msra.mxu0 %v4445
    %4660 = vmatprep.subr.bf16.mxu0 0
    %4661 = vmatpush1.bf16.msra.mxu0 %v4448
    %4662 = vmatprep.subr.bf16.mxu0 0
    %4663 = vmatpush1.bf16.msra.mxu0 %v4451
    %4664 = vmatprep.subr.bf16.mxu0 0
    %4665 = vmatpush1.bf16.msra.mxu0 %v4454
    %4666 = vmatprep.subr.bf16.mxu0 0
    %4667 = vmatpush1.bf16.msra.mxu0 %v4457
    %4668 = vmatprep.subr.bf16.mxu0 0
    %4669 = vmatpush1.bf16.msra.mxu0 0
    %4670 = vmatprep.subr.bf16.mxu0 0
    %4671 = vmatpush1.bf16.msra.mxu0 0
    %4672 = vmatprep.subr.bf16.mxu0 0
    %4673 = vmatpush1.bf16.msra.mxu0 0
    %4674 = vmatprep.subr.bf16.mxu0 0
    %4675 = vmatpush1.bf16.msra.mxu0 0
    %4676 = vmatprep.subr.bf16.mxu0 0
    %4677 = vmatpush1.bf16.msra.mxu0 0
    %4678 = vmatprep.subr.bf16.mxu0 0
    %4679 = vmatpush1.bf16.msra.mxu0 0
    %4680 = vmatprep.subr.bf16.mxu0 0
    %4681 = vmatpush1.bf16.msra.mxu0 0
    %4682 = vmatprep.subr.bf16.mxu0 0
    %4683 = vmatpush1.bf16.msra.mxu0 0
    %4684 = vmatprep.mubr.bf16.mxu0 0
    %4685 = vmatmul.mubr.bf16.gmra.mrb[0].mxu0 %v4133
    %v4686 = vpop.f32.mrb[0].mxu0
    %v4687 = vadd.f32 %v4647, %v4686
    %v4688 = vpop.f32.mrb[0].mxu0
    %v4689 = vpop.f32.mrb[0].mxu0
    %v4690 = vpop.f32.mrb[0].mxu0
    %4691 = vdwg.mxu0
    %v4692 = vadd.f32 %v4606, %v4608
    %v4693 = vadd.f32 %v4692, %v4687
    %4694 = vadd.xlane.f32.xlu0 %v4693
    %v4695 = vpop.xlane.xlu0 %4694
    %v4696 = vmul.f32 %v4695, 0.003125
    %v4697 = vmul.f32 %v4606, %v4606
    %v4698 = vmul.f32 %v4608, %v4608
    %v4699 = vmul.f32 %v4687, %v4687
    %v4700 = vadd.f32 %v4697, %v4698
    %v4701 = vadd.f32 %v4700, %v4699
    %4702 = vadd.xlane.f32.xlu0 %v4701
    %v4703 = vpop.xlane.xlu0 %4702
    %v4704 = vmul.f32 %v4703, 0.003125
    %v4705 = vmul.f32 %v4696, %v4696
    %v4706 = vsub.f32 %v4704, %v4705
    %v4707 = vmax.f32 %v4706, 0.0
    %v4708 = vsub.f32 %v4606, %v4696
    %v4709 = vsub.f32 %v4608, %v4696
    %v4710 = vsub.f32 %v4687, %v4696
    %v4711 = vadd.f32 %v4707, 1e-05
    %v4712 = vrsqrt.pop %v4711
    %v4713 = vmul.f32 %v4708, %v4712
    %v4714 = vmul.f32 %v4709, %v4712
    %v4715 = vmul.f32 %v4710, %v4712
    %v4716 = vlaneseq
    %v4717 = vshrl.u32 %v4716, 7
    %v4718 = vsub.s32 1, %v4717
    %v4719 = vrot.slane %v4128, %v4718
    %v4720 = vlaneseq
    %v4721 = vshrl.u32 %v4720, 7
    %v4722 = vsub.s32 1, %v4721
    %v4723 = vrot.slane %v4129, %v4722
    %v4724 = vlaneseq
    %v4725 = vshrl.u32 %v4724, 7
    %v4726 = vsub.s32 1, %v4725
    %v4727 = vrot.slane %v4130, %v4726
    %v4728 = vmul.f32 %v4713, %v4719
    %v4729 = vmul.f32 %v4714, %v4723
    %v4730 = vmul.f32 %v4715, %v4727
    %v4731 = vlaneseq
    %v4732 = vshrl.u32 %v4731, 7
    %v4733 = vsub.s32 2, %v4732
    %v4734 = vrot.slane %v4128, %v4733
    %v4735 = vlaneseq
    %v4736 = vshrl.u32 %v4735, 7
    %v4737 = vsub.s32 2, %v4736
    %v4738 = vrot.slane %v4129, %v4737
    %v4739 = vlaneseq
    %v4740 = vshrl.u32 %v4739, 7
    %v4741 = vsub.s32 2, %v4740
    %v4742 = vrot.slane %v4130, %v4741
    %v4743 = vadd.f32 %v4728, %v4734
    %v4744 = vadd.f32 %v4729, %v4738
    %v4745 = vadd.f32 %v4730, %v4742
    %vm4746 = vcmp.gt.f32.partialorder %v4743, 0.0
    %vm4747 = vcmp.gt.f32.partialorder %v4744, 0.0
    %vm4748 = vcmp.gt.f32.partialorder %v4745, 0.0
    %v4749 = vmul.f32 %v4743, 0.2
    %v4750 = vmul.f32 %v4744, 0.2
    %v4751 = vmul.f32 %v4745, 0.2
    %v4752 = vsel %vm4746, %v4743, %v4749
    %v4753 = vsel %vm4747, %v4744, %v4750
    %v4754 = vsel %vm4748, %v4745, %v4751
    %4755 = vst [vmem:[%s3] sm:$0xff] %v4752
    %4756 = vst [vmem:[%s3 + $0x8] sm:$0xff] %v4753
    %4757 = vst [vmem:[%s3 + $0x10] sm:$0xff] %v4754
    %v4758 = vld [vmem:[#allocation2 + $0xe40] sm:$0xff]
    %v4759 = vld [vmem:[#allocation2 + $0xe48] sm:$0xf]
    %v4760 = vld [vmem:[#allocation2 + $0xe4c] sm:$0xff]
    %v4761 = vld [vmem:[#allocation2 + $0xe54] sm:$0xf]
    %v4762 = vld [vmem:[#allocation2 + $0xe58] sm:$0xff]
    %v4763 = vld [vmem:[#allocation2 + $0xe60] sm:$0xf]
    %v4764 = vld [vmem:[#allocation2 + $0xe64] sm:$0xff]
    %v4765 = vld [vmem:[#allocation2 + $0xe6c] sm:$0xf]
    %v4766 = vld [vmem:[#allocation2 + $0xe70] sm:$0xff]
    %v4767 = vld [vmem:[#allocation2 + $0xe78] sm:$0xf]
    %v4768 = vld [vmem:[#allocation2 + $0xe7c] sm:$0xff]
    %v4769 = vld [vmem:[#allocation2 + $0xe84] sm:$0xf]
    %v4770 = vld [vmem:[#allocation2 + $0xe88] sm:$0xff]
    %v4771 = vld [vmem:[#allocation2 + $0xe90] sm:$0xf]
    %v4772 = vld [vmem:[#allocation2 + $0xe94] sm:$0xff]
    %v4773 = vld [vmem:[#allocation2 + $0xe9c] sm:$0xf]
    %v4774 = vld [vmem:[#allocation2 + $0xea0] sm:$0xff]
    %v4775 = vld [vmem:[#allocation2 + $0xea8] sm:$0xf]
    %v4776 = vld [vmem:[#allocation2 + $0xeac] sm:$0xff]
    %v4777 = vld [vmem:[#allocation2 + $0xeb4] sm:$0xf]
    %v4778 = vld [vmem:[#allocation2 + $0xeb8] sm:$0xff]
    %v4779 = vld [vmem:[#allocation2 + $0xec0] sm:$0xf]
    %v4780 = vld [vmem:[#allocation2 + $0xec4] sm:$0xff]
    %v4781 = vld [vmem:[#allocation2 + $0xecc] sm:$0xf]
    %v4782 = vld [vmem:[#allocation2 + $0xed0] sm:$0xff]
    %v4783 = vld [vmem:[#allocation2 + $0xed8] sm:$0xf]
    %v4784 = vld [vmem:[#allocation2 + $0xedc] sm:$0xff]
    %v4785 = vld [vmem:[#allocation2 + $0xee4] sm:$0xf]
    %v4786 = vld [vmem:[#allocation2 + $0xee8] sm:$0xff]
    %v4787 = vld [vmem:[#allocation2 + $0xef0] sm:$0xf]
    %v4788 = vld [vmem:[#allocation2 + $0xef4] sm:$0xff]
    %v4789 = vld [vmem:[#allocation2 + $0xefc] sm:$0xf]
    %v4790 = vld [vmem:[#allocation2 + $0xf00] sm:$0xff]
    %v4791 = vld [vmem:[#allocation2 + $0xf08] sm:$0xf]
    %v4792 = vld [vmem:[#allocation2 + $0xf0c] sm:$0xff]
    %v4793 = vld [vmem:[#allocation2 + $0xf14] sm:$0xf]
    %v4794 = vld [vmem:[#allocation2 + $0xf18] sm:$0xff]
    %v4795 = vld [vmem:[#allocation2 + $0xf20] sm:$0xf]
    %v4796 = vld [vmem:[#allocation2 + $0xf24] sm:$0xff]
    %v4797 = vld [vmem:[#allocation2 + $0xf2c] sm:$0xf]
    %v4798 = vld [vmem:[#allocation2 + $0xf30] sm:$0xff]
    %v4799 = vld [vmem:[#allocation2 + $0xf38] sm:$0xf]
    %v4800 = vld [vmem:[#allocation2 + $0xf3c] sm:$0xff]
    %v4801 = vld [vmem:[#allocation2 + $0xf44] sm:$0xf]
    %v4802 = vld [vmem:[#allocation2 + $0xf48] sm:$0xff]
    %v4803 = vld [vmem:[#allocation2 + $0xf50] sm:$0xf]
    %v4804 = vld [vmem:[#allocation2 + $0xf54] sm:$0xff]
    %v4805 = vld [vmem:[#allocation2 + $0xf5c] sm:$0xf]
    %v4806 = vld [vmem:[#allocation2 + $0xf60] sm:$0xff]
    %v4807 = vld [vmem:[#allocation2 + $0xf68] sm:$0xf]
    %v4808 = vld [vmem:[#allocation2 + $0xf6c] sm:$0xff]
    %v4809 = vld [vmem:[#allocation2 + $0xf74] sm:$0xf]
    %v4810 = vld [vmem:[#allocation2 + $0xf78] sm:$0xff]
    %v4811 = vld [vmem:[#allocation2 + $0xf80] sm:$0xf]
    %v4812 = vld [vmem:[#allocation2 + $0xf84] sm:$0xff]
    %v4813 = vld [vmem:[#allocation2 + $0xf8c] sm:$0xf]
    %v4814 = vld [vmem:[#allocation2 + $0xf90] sm:$0xff]
    %v4815 = vld [vmem:[#allocation2 + $0xf98] sm:$0xf]
    %v4816 = vld [vmem:[#allocation2 + $0xf9c] sm:$0xff]
    %v4817 = vld [vmem:[#allocation2 + $0xfa4] sm:$0xf]
    %v4818 = vld [vmem:[#allocation2 + $0xfa8] sm:$0xff]
    %v4819 = vld [vmem:[#allocation2 + $0xfb0] sm:$0xf]
    %v4820 = vld [vmem:[#allocation2 + $0xfb4] sm:$0xff]
    %v4821 = vld [vmem:[#allocation2 + $0xfbc] sm:$0xf]
    %v4822 = vld [vmem:[#allocation2 + $0xfc0] sm:$0xff]
    %v4823 = vld [vmem:[#allocation2 + $0xfc8] sm:$0xf]
    %v4824 = vld [vmem:[#allocation2 + $0xfcc] sm:$0xff]
    %v4825 = vld [vmem:[#allocation2 + $0xfd4] sm:$0xf]
    %v4826 = vld [vmem:[#allocation2 + $0xfd8] sm:$0xff]
    %v4827 = vld [vmem:[#allocation2 + $0xfe0] sm:$0xf]
    %v4828 = vld [vmem:[#allocation2 + $0xfe4] sm:$0xff]
    %v4829 = vld [vmem:[#allocation2 + $0xfec] sm:$0xf]
    %v4830 = vld [vmem:[#allocation2 + $0xff0] sm:$0xff]
    %v4831 = vld [vmem:[#allocation2 + $0xff8] sm:$0xf]
    %v4832 = vld [vmem:[#allocation2 + $0xffc] sm:$0xff]
    %v4833 = vld [vmem:[#allocation2 + $0x1004] sm:$0xf]
    %v4834 = vld [vmem:[#allocation2 + $0x1008] sm:$0xff]
    %v4835 = vld [vmem:[#allocation2 + $0x1010] sm:$0xf]
    %v4836 = vld [vmem:[#allocation2 + $0x1014] sm:$0xff]
    %v4837 = vld [vmem:[#allocation2 + $0x101c] sm:$0xf]
    %v4838 = vld [vmem:[#allocation2 + $0x1020] sm:$0xff]
    %v4839 = vld [vmem:[#allocation2 + $0x1028] sm:$0xf]
    %v4840 = vld [vmem:[#allocation2 + $0x102c] sm:$0xff]
    %v4841 = vld [vmem:[#allocation2 + $0x1034] sm:$0xf]
    %v4842 = vld [vmem:[#allocation2 + $0x1038] sm:$0xff]
    %v4843 = vld [vmem:[#allocation2 + $0x1040] sm:$0xf]
    %v4844 = vld [vmem:[#allocation2 + $0x1044] sm:$0xff]
    %v4845 = vld [vmem:[#allocation2 + $0x104c] sm:$0xf]
    %v4846 = vld [vmem:[#allocation2 + $0x1050] sm:$0xff]
    %v4847 = vld [vmem:[#allocation2 + $0x1058] sm:$0xf]
    %v4848 = vld [vmem:[#allocation2 + $0x105c] sm:$0xff]
    %v4849 = vld [vmem:[#allocation2 + $0x1064] sm:$0xf]
    %v4850 = vld [vmem:[#allocation2 + $0x1068] sm:$0xff]
    %v4851 = vld [vmem:[#allocation2 + $0x1070] sm:$0xf]
    %v4852 = vld [vmem:[#allocation2 + $0x1074] sm:$0xff]
    %v4853 = vld [vmem:[#allocation2 + $0x107c] sm:$0xf]
    %v4854 = vld [vmem:[#allocation4 + $0x108] sm:$0xff]
    %v4855 = vld [vmem:[#allocation4 + $0x110] sm:$0xff]
    %v4856 = vld [vmem:[#allocation4 + $0x118] sm:$0xff]
    %v4857 = vpack.c.bf16 %v4752, %v4752
    %v4858 = vpack.c.bf16 %v4753, %v4753
    %v4859 = vpack.c.bf16 %v4754, %v4754
    %v4860 = vlaneseq
    %v4861 = vshrl.u32 %v4860, 7
    %v4862 = vsub.s32 0, %v4861
    %v4863 = vrot.slane %v4854, %v4862
    %v4864 = vlaneseq
    %v4865 = vshrl.u32 %v4864, 7
    %v4866 = vsub.s32 0, %v4865
    %v4867 = vrot.slane %v4855, %v4866
    %v4868 = vlaneseq
    %v4869 = vshrl.u32 %v4868, 7
    %v4870 = vsub.s32 0, %v4869
    %v4871 = vrot.slane %v4856, %v4870
    %v4968 = vunpack.c.l.b16 %v4758
    %v4969 = vunpack.c.h.b16 %v4758
    %v4970 = vunpack.c.l.b16 %v4759
    %v4971 = vunpack.c.l.b16 %v4760
    %v4972 = vunpack.c.h.b16 %v4760
    %v4973 = vunpack.c.l.b16 %v4761
    %v4974 = vunpack.c.l.b16 %v4762
    %v4975 = vunpack.c.h.b16 %v4762
    %v4976 = vunpack.c.l.b16 %v4763
    %v4977 = vunpack.c.l.b16 %v4764
    %v4978 = vunpack.c.h.b16 %v4764
    %v4979 = vunpack.c.l.b16 %v4765
    %v4980 = vunpack.c.l.b16 %v4766
    %v4981 = vunpack.c.h.b16 %v4766
    %v4982 = vunpack.c.l.b16 %v4767
    %v4983 = vunpack.c.l.b16 %v4768
    %v4984 = vunpack.c.h.b16 %v4768
    %v4985 = vunpack.c.l.b16 %v4769
    %v4986 = vunpack.c.l.b16 %v4770
    %v4987 = vunpack.c.h.b16 %v4770
    %v4988 = vunpack.c.l.b16 %v4771
    %v4989 = vunpack.c.l.b16 %v4772
    %v4990 = vunpack.c.h.b16 %v4772
    %v4991 = vunpack.c.l.b16 %v4773
    %v4992 = vunpack.c.l.b16 %v4774
    %v4993 = vunpack.c.h.b16 %v4774
    %v4994 = vunpack.c.l.b16 %v4775
    %v4995 = vunpack.c.l.b16 %v4776
    %v4996 = vunpack.c.h.b16 %v4776
    %v4997 = vunpack.c.l.b16 %v4777
    %v4998 = vunpack.c.l.b16 %v4778
    %v4999 = vunpack.c.h.b16 %v4778
    %v5000 = vunpack.c.l.b16 %v4779
    %v5001 = vunpack.c.l.b16 %v4780
    %v5002 = vunpack.c.h.b16 %v4780
    %v5003 = vunpack.c.l.b16 %v4781
    %v5004 = vunpack.c.l.b16 %v4782
    %v5005 = vunpack.c.h.b16 %v4782
    %v5006 = vunpack.c.l.b16 %v4783
    %v5007 = vunpack.c.l.b16 %v4784
    %v5008 = vunpack.c.h.b16 %v4784
    %v5009 = vunpack.c.l.b16 %v4785
    %v5010 = vunpack.c.l.b16 %v4786
    %v5011 = vunpack.c.h.b16 %v4786
    %v5012 = vunpack.c.l.b16 %v4787
    %v5013 = vunpack.c.l.b16 %v4788
    %v5014 = vunpack.c.h.b16 %v4788
    %v5015 = vunpack.c.l.b16 %v4789
    %v5016 = vunpack.c.l.b16 %v4790
    %v5017 = vunpack.c.h.b16 %v4790
    %v5018 = vunpack.c.l.b16 %v4791
    %v5019 = vunpack.c.l.b16 %v4792
    %v5020 = vunpack.c.h.b16 %v4792
    %v5021 = vunpack.c.l.b16 %v4793
    %v5022 = vunpack.c.l.b16 %v4794
    %v5023 = vunpack.c.h.b16 %v4794
    %v5024 = vunpack.c.l.b16 %v4795
    %v5025 = vunpack.c.l.b16 %v4796
    %v5026 = vunpack.c.h.b16 %v4796
    %v5027 = vunpack.c.l.b16 %v4797
    %v5028 = vunpack.c.l.b16 %v4798
    %v5029 = vunpack.c.h.b16 %v4798
    %v5030 = vunpack.c.l.b16 %v4799
    %v5031 = vunpack.c.l.b16 %v4800
    %v5032 = vunpack.c.h.b16 %v4800
    %v5033 = vunpack.c.l.b16 %v4801
    %v5034 = vunpack.c.l.b16 %v4802
    %v5035 = vunpack.c.h.b16 %v4802
    %v5036 = vunpack.c.l.b16 %v4803
    %v5037 = vunpack.c.l.b16 %v4804
    %v5038 = vunpack.c.h.b16 %v4804
    %v5039 = vunpack.c.l.b16 %v4805
    %v5040 = vunpack.c.l.b16 %v4806
    %v5041 = vunpack.c.h.b16 %v4806
    %v5042 = vunpack.c.l.b16 %v4807
    %v5043 = vunpack.c.l.b16 %v4808
    %v5044 = vunpack.c.h.b16 %v4808
    %v5045 = vunpack.c.l.b16 %v4809
    %v5046 = vunpack.c.l.b16 %v4810
    %v5047 = vunpack.c.h.b16 %v4810
    %v5048 = vunpack.c.l.b16 %v4811
    %v5049 = vunpack.c.l.b16 %v4812
    %v5050 = vunpack.c.h.b16 %v4812
    %v5051 = vunpack.c.l.b16 %v4813
    %v5052 = vunpack.c.l.b16 %v4814
    %v5053 = vunpack.c.h.b16 %v4814
    %v5054 = vunpack.c.l.b16 %v4815
    %v5055 = vunpack.c.l.b16 %v4816
    %v5056 = vunpack.c.h.b16 %v4816
    %v5057 = vunpack.c.l.b16 %v4817
    %v5058 = vunpack.c.l.b16 %v4818
    %v5059 = vunpack.c.h.b16 %v4818
    %v5060 = vunpack.c.l.b16 %v4819
    %v5061 = vunpack.c.l.b16 %v4820
    %v5062 = vunpack.c.h.b16 %v4820
    %v5063 = vunpack.c.l.b16 %v4821
    %v5064 = vunpack.c.l.b16 %v4822
    %v5065 = vunpack.c.h.b16 %v4822
    %v5066 = vunpack.c.l.b16 %v4823
    %v5067 = vunpack.c.l.b16 %v4824
    %v5068 = vunpack.c.h.b16 %v4824
    %v5069 = vunpack.c.l.b16 %v4825
    %v5070 = vunpack.c.l.b16 %v4826
    %v5071 = vunpack.c.h.b16 %v4826
    %v5072 = vunpack.c.l.b16 %v4827
    %v5073 = vunpack.c.l.b16 %v4828
    %v5074 = vunpack.c.h.b16 %v4828
    %v5075 = vunpack.c.l.b16 %v4829
    %v5076 = vunpack.c.l.b16 %v4830
    %v5077 = vunpack.c.h.b16 %v4830
    %v5078 = vunpack.c.l.b16 %v4831
    %v5079 = vunpack.c.l.b16 %v4832
    %v5080 = vunpack.c.h.b16 %v4832
    %v5081 = vunpack.c.l.b16 %v4833
    %v5082 = vunpack.c.l.b16 %v4834
    %v5083 = vunpack.c.h.b16 %v4834
    %v5084 = vunpack.c.l.b16 %v4835
    %v5085 = vunpack.c.l.b16 %v4836
    %v5086 = vunpack.c.h.b16 %v4836
    %v5087 = vunpack.c.l.b16 %v4837
    %v5088 = vunpack.c.l.b16 %v4838
    %v5089 = vunpack.c.h.b16 %v4838
    %v5090 = vunpack.c.l.b16 %v4839
    %v5091 = vunpack.c.l.b16 %v4840
    %v5092 = vunpack.c.h.b16 %v4840
    %v5093 = vunpack.c.l.b16 %v4841
    %v5094 = vunpack.c.l.b16 %v4842
    %v5095 = vunpack.c.h.b16 %v4842
    %v5096 = vunpack.c.l.b16 %v4843
    %v5097 = vunpack.c.l.b16 %v4844
    %v5098 = vunpack.c.h.b16 %v4844
    %v5099 = vunpack.c.l.b16 %v4845
    %v5100 = vunpack.c.l.b16 %v4846
    %v5101 = vunpack.c.h.b16 %v4846
    %v5102 = vunpack.c.l.b16 %v4847
    %v5103 = vunpack.c.l.b16 %v4848
    %v5104 = vunpack.c.h.b16 %v4848
    %v5105 = vunpack.c.l.b16 %v4849
    %v5106 = vunpack.c.l.b16 %v4850
    %v5107 = vunpack.c.h.b16 %v4850
    %v5108 = vunpack.c.l.b16 %v4851
    %v5109 = vunpack.c.l.b16 %v4852
    %v5110 = vunpack.c.h.b16 %v4852
    %v5111 = vunpack.c.l.b16 %v4853
    %v5112 = vpack.c.b16 %v4971, %v4968
    %v5113 = vpack.c.b16 %v4972, %v4969
    %v5114 = vpack.c.b16 %v4973, %v4970
    %v5115 = vpack.c.b16 %v4977, %v4974
    %v5116 = vpack.c.b16 %v4978, %v4975
    %v5117 = vpack.c.b16 %v4979, %v4976
    %v5118 = vpack.c.b16 %v4983, %v4980
    %v5119 = vpack.c.b16 %v4984, %v4981
    %v5120 = vpack.c.b16 %v4985, %v4982
    %v5121 = vpack.c.b16 %v4989, %v4986
    %v5122 = vpack.c.b16 %v4990, %v4987
    %v5123 = vpack.c.b16 %v4991, %v4988
    %v5124 = vpack.c.b16 %v4995, %v4992
    %v5125 = vpack.c.b16 %v4996, %v4993
    %v5126 = vpack.c.b16 %v4997, %v4994
    %v5127 = vpack.c.b16 %v5001, %v4998
    %v5128 = vpack.c.b16 %v5002, %v4999
    %v5129 = vpack.c.b16 %v5003, %v5000
    %v5130 = vpack.c.b16 %v5007, %v5004
    %v5131 = vpack.c.b16 %v5008, %v5005
    %v5132 = vpack.c.b16 %v5009, %v5006
    %v5133 = vpack.c.b16 %v5013, %v5010
    %v5134 = vpack.c.b16 %v5014, %v5011
    %v5135 = vpack.c.b16 %v5015, %v5012
    %v5136 = vpack.c.b16 %v5019, %v5016
    %v5137 = vpack.c.b16 %v5020, %v5017
    %v5138 = vpack.c.b16 %v5021, %v5018
    %v5139 = vpack.c.b16 %v5025, %v5022
    %v5140 = vpack.c.b16 %v5026, %v5023
    %v5141 = vpack.c.b16 %v5027, %v5024
    %v5142 = vpack.c.b16 %v5031, %v5028
    %v5143 = vpack.c.b16 %v5032, %v5029
    %v5144 = vpack.c.b16 %v5033, %v5030
    %v5145 = vpack.c.b16 %v5037, %v5034
    %v5146 = vpack.c.b16 %v5038, %v5035
    %v5147 = vpack.c.b16 %v5039, %v5036
    %v5148 = vpack.c.b16 %v5043, %v5040
    %v5149 = vpack.c.b16 %v5044, %v5041
    %v5150 = vpack.c.b16 %v5045, %v5042
    %v5151 = vpack.c.b16 %v5049, %v5046
    %v5152 = vpack.c.b16 %v5050, %v5047
    %v5153 = vpack.c.b16 %v5051, %v5048
    %v5154 = vpack.c.b16 %v5055, %v5052
    %v5155 = vpack.c.b16 %v5056, %v5053
    %v5156 = vpack.c.b16 %v5057, %v5054
    %v5157 = vpack.c.b16 %v5061, %v5058
    %v5158 = vpack.c.b16 %v5062, %v5059
    %v5159 = vpack.c.b16 %v5063, %v5060
    %v5160 = vpack.c.b16 %v5067, %v5064
    %v5161 = vpack.c.b16 %v5068, %v5065
    %v5162 = vpack.c.b16 %v5069, %v5066
    %v5163 = vpack.c.b16 %v5073, %v5070
    %v5164 = vpack.c.b16 %v5074, %v5071
    %v5165 = vpack.c.b16 %v5075, %v5072
    %v5166 = vpack.c.b16 %v5079, %v5076
    %v5167 = vpack.c.b16 %v5080, %v5077
    %v5168 = vpack.c.b16 %v5081, %v5078
    %v5169 = vpack.c.b16 %v5085, %v5082
    %v5170 = vpack.c.b16 %v5086, %v5083
    %v5171 = vpack.c.b16 %v5087, %v5084
    %v5172 = vpack.c.b16 %v5091, %v5088
    %v5173 = vpack.c.b16 %v5092, %v5089
    %v5174 = vpack.c.b16 %v5093, %v5090
    %v5175 = vpack.c.b16 %v5097, %v5094
    %v5176 = vpack.c.b16 %v5098, %v5095
    %v5177 = vpack.c.b16 %v5099, %v5096
    %v5178 = vpack.c.b16 %v5103, %v5100
    %v5179 = vpack.c.b16 %v5104, %v5101
    %v5180 = vpack.c.b16 %v5105, %v5102
    %v5181 = vpack.c.b16 %v5109, %v5106
    %v5182 = vpack.c.b16 %v5110, %v5107
    %v5183 = vpack.c.b16 %v5111, %v5108
    %5256 = vmatprep.subr.bf16.mxu0 %v5113
    %5257 = vmatpush1.bf16.msra.mxu0 %v5112
    %5258 = vmatprep.subr.bf16.mxu0 %v5116
    %5259 = vmatpush1.bf16.msra.mxu0 %v5115
    %5260 = vmatprep.subr.bf16.mxu0 %v5119
    %5261 = vmatpush1.bf16.msra.mxu0 %v5118
    %5262 = vmatprep.subr.bf16.mxu0 %v5122
    %5263 = vmatpush1.bf16.msra.mxu0 %v5121
    %5264 = vmatprep.subr.bf16.mxu0 %v5125
    %5265 = vmatpush1.bf16.msra.mxu0 %v5124
    %5266 = vmatprep.subr.bf16.mxu0 %v5128
    %5267 = vmatpush1.bf16.msra.mxu0 %v5127
    %5268 = vmatprep.subr.bf16.mxu0 %v5131
    %5269 = vmatpush1.bf16.msra.mxu0 %v5130
    %5270 = vmatprep.subr.bf16.mxu0 %v5134
    %5271 = vmatpush1.bf16.msra.mxu0 %v5133
    %5272 = vmatprep.subr.bf16.mxu0 %v5137
    %5273 = vmatpush1.bf16.msra.mxu0 %v5136
    %5274 = vmatprep.subr.bf16.mxu0 %v5140
    %5275 = vmatpush1.bf16.msra.mxu0 %v5139
    %5276 = vmatprep.subr.bf16.mxu0 %v5143
    %5277 = vmatpush1.bf16.msra.mxu0 %v5142
    %5278 = vmatprep.subr.bf16.mxu0 %v5146
    %5279 = vmatpush1.bf16.msra.mxu0 %v5145
    %5280 = vmatprep.subr.bf16.mxu0 %v5149
    %5281 = vmatpush1.bf16.msra.mxu0 %v5148
    %5282 = vmatprep.subr.bf16.mxu0 %v5152
    %5283 = vmatpush1.bf16.msra.mxu0 %v5151
    %5284 = vmatprep.subr.bf16.mxu0 %v5155
    %5285 = vmatpush1.bf16.msra.mxu0 %v5154
    %5286 = vmatprep.subr.bf16.mxu0 %v5158
    %5287 = vmatpush1.bf16.msra.mxu0 %v5157
    %5288 = vmatprep.mubr.bf16.mxu0 %v4858
    %5289 = vmatmul.mubr.bf16.gmra.mrb[0].mxu0 %v4857
    %v5290 = vpop.f32.mrb[0].mxu0
    %v5291 = vadd.f32 %v4863, %v5290
    %v5292 = vpop.f32.mrb[0].mxu0
    %v5293 = vadd.f32 %v4867, %v5292
    %v5294 = vpop.f32.mrb[0].mxu0
    %v5295 = vpop.f32.mrb[0].mxu0
    %5296 = vdwg.mxu0
    %5297 = vmatprep.subr.bf16.mxu0 %v5161
    %5298 = vmatpush1.bf16.msra.mxu0 %v5160
    %5299 = vmatprep.subr.bf16.mxu0 %v5164
    %5300 = vmatpush1.bf16.msra.mxu0 %v5163
    %5301 = vmatprep.subr.bf16.mxu0 %v5167
    %5302 = vmatpush1.bf16.msra.mxu0 %v5166
    %5303 = vmatprep.subr.bf16.mxu0 %v5170
    %5304 = vmatpush1.bf16.msra.mxu0 %v5169
    %5305 = vmatprep.subr.bf16.mxu0 %v5173
    %5306 = vmatpush1.bf16.msra.mxu0 %v5172
    %5307 = vmatprep.subr.bf16.mxu0 %v5176
    %5308 = vmatpush1.bf16.msra.mxu0 %v5175
    %5309 = vmatprep.subr.bf16.mxu0 %v5179
    %5310 = vmatpush1.bf16.msra.mxu0 %v5178
    %5311 = vmatprep.subr.bf16.mxu0 %v5182
    %5312 = vmatpush1.bf16.msra.mxu0 %v5181
    %5313 = vmatprep.subr.bf16.mxu0 0
    %5314 = vmatpush1.bf16.msra.mxu0 0
    %5315 = vmatprep.subr.bf16.mxu0 0
    %5316 = vmatpush1.bf16.msra.mxu0 0
    %5317 = vmatprep.subr.bf16.mxu0 0
    %5318 = vmatpush1.bf16.msra.mxu0 0
    %5319 = vmatprep.subr.bf16.mxu0 0
    %5320 = vmatpush1.bf16.msra.mxu0 0
    %5321 = vmatprep.subr.bf16.mxu0 0
    %5322 = vmatpush1.bf16.msra.mxu0 0
    %5323 = vmatprep.subr.bf16.mxu0 0
    %5324 = vmatpush1.bf16.msra.mxu0 0
    %5325 = vmatprep.subr.bf16.mxu0 0
    %5326 = vmatpush1.bf16.msra.mxu0 0
    %5327 = vmatprep.subr.bf16.mxu0 0
    %5328 = vmatpush1.bf16.msra.mxu0 0
    %5329 = vmatprep.mubr.bf16.mxu0 0
    %5330 = vmatmul.mubr.bf16.gmra.mrb[0].mxu0 %v4859
    %v5331 = vpop.f32.mrb[0].mxu0
    %v5332 = vadd.f32 %v5291, %v5331
    %v5333 = vpop.f32.mrb[0].mxu0
    %v5334 = vadd.f32 %v5293, %v5333
    %v5335 = vpop.f32.mrb[0].mxu0
    %v5336 = vpop.f32.mrb[0].mxu0
    %5337 = vdwg.mxu0
    %5338 = vmatprep.subr.bf16.mxu0 0
    %5339 = vmatpush1.bf16.msra.mxu0 %v5114
    %5340 = vmatprep.subr.bf16.mxu0 0
    %5341 = vmatpush1.bf16.msra.mxu0 %v5117
    %5342 = vmatprep.subr.bf16.mxu0 0
    %5343 = vmatpush1.bf16.msra.mxu0 %v5120
    %5344 = vmatprep.subr.bf16.mxu0 0
    %5345 = vmatpush1.bf16.msra.mxu0 %v5123
    %5346 = vmatprep.subr.bf16.mxu0 0
    %5347 = vmatpush1.bf16.msra.mxu0 %v5126
    %5348 = vmatprep.subr.bf16.mxu0 0
    %5349 = vmatpush1.bf16.msra.mxu0 %v5129
    %5350 = vmatprep.subr.bf16.mxu0 0
    %5351 = vmatpush1.bf16.msra.mxu0 %v5132
    %5352 = vmatprep.subr.bf16.mxu0 0
    %5353 = vmatpush1.bf16.msra.mxu0 %v5135
    %5354 = vmatprep.subr.bf16.mxu0 0
    %5355 = vmatpush1.bf16.msra.mxu0 %v5138
    %5356 = vmatprep.subr.bf16.mxu0 0
    %5357 = vmatpush1.bf16.msra.mxu0 %v5141
    %5358 = vmatprep.subr.bf16.mxu0 0
    %5359 = vmatpush1.bf16.msra.mxu0 %v5144
    %5360 = vmatprep.subr.bf16.mxu0 0
    %5361 = vmatpush1.bf16.msra.mxu0 %v5147
    %5362 = vmatprep.subr.bf16.mxu0 0
    %5363 = vmatpush1.bf16.msra.mxu0 %v5150
    %5364 = vmatprep.subr.bf16.mxu0 0
    %5365 = vmatpush1.bf16.msra.mxu0 %v5153
    %5366 = vmatprep.subr.bf16.mxu0 0
    %5367 = vmatpush1.bf16.msra.mxu0 %v5156
    %5368 = vmatprep.subr.bf16.mxu0 0
    %5369 = vmatpush1.bf16.msra.mxu0 %v5159
    %5370 = vmatprep.mubr.bf16.mxu0 %v4858
    %5371 = vmatmul.mubr.bf16.gmra.mrb[0].mxu0 %v4857
    %v5372 = vpop.f32.mrb[0].mxu0
    %v5373 = vadd.f32 %v4871, %v5372
    %v5374 = vpop.f32.mrb[0].mxu0
    %v5375 = vpop.f32.mrb[0].mxu0
    %v5376 = vpop.f32.mrb[0].mxu0
    %5377 = vdwg.mxu0
    %5378 = vmatprep.subr.bf16.mxu0 0
    %5379 = vmatpush1.bf16.msra.mxu0 %v5162
    %5380 = vmatprep.subr.bf16.mxu0 0
    %5381 = vmatpush1.bf16.msra.mxu0 %v5165
    %5382 = vmatprep.subr.bf16.mxu0 0
    %5383 = vmatpush1.bf16.msra.mxu0 %v5168
    %5384 = vmatprep.subr.bf16.mxu0 0
    %5385 = vmatpush1.bf16.msra.mxu0 %v5171
    %5386 = vmatprep.subr.bf16.mxu0 0
    %5387 = vmatpush1.bf16.msra.mxu0 %v5174
    %5388 = vmatprep.subr.bf16.mxu0 0
    %5389 = vmatpush1.bf16.msra.mxu0 %v5177
    %5390 = vmatprep.subr.bf16.mxu0 0
    %5391 = vmatpush1.bf16.msra.mxu0 %v5180
    %5392 = vmatprep.subr.bf16.mxu0 0
    %5393 = vmatpush1.bf16.msra.mxu0 %v5183
    %5394 = vmatprep.subr.bf16.mxu0 0
    %5395 = vmatpush1.bf16.msra.mxu0 0
    %5396 = vmatprep.subr.bf16.mxu0 0
    %5397 = vmatpush1.bf16.msra.mxu0 0
    %5398 = vmatprep.subr.bf16.mxu0 0
    %5399 = vmatpush1.bf16.msra.mxu0 0
    %5400 = vmatprep.subr.bf16.mxu0 0
    %5401 = vmatpush1.bf16.msra.mxu0 0
    %5402 = vmatprep.subr.bf16.mxu0 0
    %5403 = vmatpush1.bf16.msra.mxu0 0
    %5404 = vmatprep.subr.bf16.mxu0 0
    %5405 = vmatpush1.bf16.msra.mxu0 0
    %5406 = vmatprep.subr.bf16.mxu0 0
    %5407 = vmatpush1.bf16.msra.mxu0 0
    %5408 = vmatprep.subr.bf16.mxu0 0
    %5409 = vmatpush1.bf16.msra.mxu0 0
    %5410 = vmatprep.mubr.bf16.mxu0 0
    %5411 = vmatmul.mubr.bf16.gmra.mrb[0].mxu0 %v4859
    %v5412 = vpop.f32.mrb[0].mxu0
    %v5413 = vadd.f32 %v5373, %v5412
    %v5414 = vpop.f32.mrb[0].mxu0
    %v5415 = vpop.f32.mrb[0].mxu0
    %v5416 = vpop.f32.mrb[0].mxu0
    %5417 = vdwg.mxu0
    %v5418 = vadd.f32 %v5332, %v5334
    %v5419 = vadd.f32 %v5418, %v5413
    %5420 = vadd.xlane.f32.xlu0 %v5419
    %v5421 = vpop.xlane.xlu0 %5420
    %v5422 = vmul.f32 %v5421, 0.0036764706
    %v5423 = vmul.f32 %v5332, %v5332
    %v5424 = vmul.f32 %v5334, %v5334
    %v5425 = vmul.f32 %v5413, %v5413
    %v5426 = vadd.f32 %v5423, %v5424
    %v5427 = vadd.f32 %v5426, %v5425
    %5428 = vadd.xlane.f32.xlu0 %v5427
    %v5429 = vpop.xlane.xlu0 %5428
    %v5430 = vmul.f32 %v5429, 0.0036764706
    %v5431 = vmul.f32 %v5422, %v5422
    %v5432 = vsub.f32 %v5430, %v5431
    %v5433 = vmax.f32 %v5432, 0.0
    %v5434 = vsub.f32 %v5332, %v5422
    %v5435 = vsub.f32 %v5334, %v5422
    %v5436 = vsub.f32 %v5413, %v5422
    %v5437 = vadd.f32 %v5433, 1e-05
    %v5438 = vrsqrt.pop %v5437
    %v5439 = vmul.f32 %v5434, %v5438
    %v5440 = vmul.f32 %v5435, %v5438
    %v5441 = vmul.f32 %v5436, %v5438
    %v5442 = vlaneseq
    %v5443 = vshrl.u32 %v5442, 7
    %v5444 = vsub.s32 1, %v5443
    %v5445 = vrot.slane %v4854, %v5444
    %v5446 = vlaneseq
    %v5447 = vshrl.u32 %v5446, 7
    %v5448 = vsub.s32 1, %v5447
    %v5449 = vrot.slane %v4855, %v5448
    %v5450 = vlaneseq
    %v5451 = vshrl.u32 %v5450, 7
    %v5452 = vsub.s32 1, %v5451
    %v5453 = vrot.slane %v4856, %v5452
    %v5454 = vmul.f32 %v5439, %v5445
    %v5455 = vmul.f32 %v5440, %v5449
    %v5456 = vmul.f32 %v5441, %v5453
    %v5457 = vlaneseq
    %v5458 = vshrl.u32 %v5457, 7
    %v5459 = vsub.s32 2, %v5458
    %v5460 = vrot.slane %v4854, %v5459
    %v5461 = vlaneseq
    %v5462 = vshrl.u32 %v5461, 7
    %v5463 = vsub.s32 2, %v5462
    %v5464 = vrot.slane %v4855, %v5463
    %v5465 = vlaneseq
    %v5466 = vshrl.u32 %v5465, 7
    %v5467 = vsub.s32 2, %v5466
    %v5468 = vrot.slane %v4856, %v5467
    %v5469 = vadd.f32 %v5454, %v5460
    %v5470 = vadd.f32 %v5455, %v5464
    %v5471 = vadd.f32 %v5456, %v5468
    %vm5472 = vcmp.gt.f32.partialorder %v5469, 0.0
    %vm5473 = vcmp.gt.f32.partialorder %v5470, 0.0
    %vm5474 = vcmp.gt.f32.partialorder %v5471, 0.0
    %v5475 = vmul.f32 %v5469, 0.2
    %v5476 = vmul.f32 %v5470, 0.2
    %v5477 = vmul.f32 %v5471, 0.2
    %v5478 = vsel %vm5472, %v5469, %v5475
    %v5479 = vsel %vm5473, %v5470, %v5476
    %v5480 = vsel %vm5474, %v5471, %v5477
    %v5481 = vld [vmem:[#allocation2 + $0x1080] sm:$0xff]
    %v5482 = vld [vmem:[#allocation2 + $0x1088] sm:$0xf]
    %v5483 = vld [vmem:[#allocation2 + $0x108c] sm:$0xff]
    %v5484 = vld [vmem:[#allocation2 + $0x1094] sm:$0xf]
    %v5485 = vld [vmem:[#allocation2 + $0x1098] sm:$0xff]
    %v5486 = vld [vmem:[#allocation2 + $0x10a0] sm:$0xf]
    %v5487 = vld [vmem:[#allocation2 + $0x10a4] sm:$0xff]
    %v5488 = vld [vmem:[#allocation2 + $0x10ac] sm:$0xf]
    %v5489 = vld [vmem:[#allocation2 + $0x10b0] sm:$0xff]
    %v5490 = vld [vmem:[#allocation2 + $0x10b8] sm:$0xf]
    %v5491 = vld [vmem:[#allocation2 + $0x10bc] sm:$0xff]
    %v5492 = vld [vmem:[#allocation2 + $0x10c4] sm:$0xf]
    %v5493 = vld [vmem:[#allocation2 + $0x10c8] sm:$0xff]
    %v5494 = vld [vmem:[#allocation2 + $0x10d0] sm:$0xf]
    %v5495 = vld [vmem:[#allocation2 + $0x10d4] sm:$0xff]
    %v5496 = vld [vmem:[#allocation2 + $0x10dc] sm:$0xf]
    %v5497 = vld [vmem:[#allocation2 + $0x10e0] sm:$0xff]
    %v5498 = vld [vmem:[#allocation2 + $0x10e8] sm:$0xf]
    %v5499 = vld [vmem:[#allocation2 + $0x10ec] sm:$0xff]
    %v5500 = vld [vmem:[#allocation2 + $0x10f4] sm:$0xf]
    %v5501 = vld [vmem:[#allocation2 + $0x10f8] sm:$0xff]
    %v5502 = vld [vmem:[#allocation2 + $0x1100] sm:$0xf]
    %v5503 = vld [vmem:[#allocation2 + $0x1104] sm:$0xff]
    %v5504 = vld [vmem:[#allocation2 + $0x110c] sm:$0xf]
    %v5505 = vld [vmem:[#allocation2 + $0x1110] sm:$0xff]
    %v5506 = vld [vmem:[#allocation2 + $0x1118] sm:$0xf]
    %v5507 = vld [vmem:[#allocation2 + $0x111c] sm:$0xff]
    %v5508 = vld [vmem:[#allocation2 + $0x1124] sm:$0xf]
    %v5509 = vld [vmem:[#allocation2 + $0x1128] sm:$0xff]
    %v5510 = vld [vmem:[#allocation2 + $0x1130] sm:$0xf]
    %v5511 = vld [vmem:[#allocation2 + $0x1134] sm:$0xff]
    %v5512 = vld [vmem:[#allocation2 + $0x113c] sm:$0xf]
    %v5513 = vld [vmem:[#allocation2 + $0x1140] sm:$0xff]
    %v5514 = vld [vmem:[#allocation2 + $0x1148] sm:$0xf]
    %v5515 = vld [vmem:[#allocation2 + $0x114c] sm:$0xff]
    %v5516 = vld [vmem:[#allocation2 + $0x1154] sm:$0xf]
    %v5517 = vld [vmem:[#allocation2 + $0x1158] sm:$0xff]
    %v5518 = vld [vmem:[#allocation2 + $0x1160] sm:$0xf]
    %v5519 = vld [vmem:[#allocation2 + $0x1164] sm:$0xff]
    %v5520 = vld [vmem:[#allocation2 + $0x116c] sm:$0xf]
    %v5521 = vld [vmem:[#allocation2 + $0x1170] sm:$0xff]
    %v5522 = vld [vmem:[#allocation2 + $0x1178] sm:$0xf]
    %v5523 = vld [vmem:[#allocation2 + $0x117c] sm:$0xff]
    %v5524 = vld [vmem:[#allocation2 + $0x1184] sm:$0xf]
    %v5525 = vld [vmem:[#allocation2 + $0x1188] sm:$0xff]
    %v5526 = vld [vmem:[#allocation2 + $0x1190] sm:$0xf]
    %v5527 = vld [vmem:[#allocation2 + $0x1194] sm:$0xff]
    %v5528 = vld [vmem:[#allocation2 + $0x119c] sm:$0xf]
    %v5529 = vld [vmem:[#allocation2 + $0x11a0] sm:$0xff]
    %v5530 = vld [vmem:[#allocation2 + $0x11a8] sm:$0xf]
    %v5531 = vld [vmem:[#allocation2 + $0x11ac] sm:$0xff]
    %v5532 = vld [vmem:[#allocation2 + $0x11b4] sm:$0xf]
    %v5533 = vld [vmem:[#allocation2 + $0x11b8] sm:$0xff]
    %v5534 = vld [vmem:[#allocation2 + $0x11c0] sm:$0xf]
    %v5535 = vld [vmem:[#allocation2 + $0x11c4] sm:$0xff]
    %v5536 = vld [vmem:[#allocation2 + $0x11cc] sm:$0xf]
    %v5537 = vld [vmem:[#allocation2 + $0x11d0] sm:$0xff]
    %v5538 = vld [vmem:[#allocation2 + $0x11d8] sm:$0xf]
    %v5539 = vld [vmem:[#allocation2 + $0x11dc] sm:$0xff]
    %v5540 = vld [vmem:[#allocation2 + $0x11e4] sm:$0xf]
    %v5541 = vld [vmem:[#allocation2 + $0x11e8] sm:$0xff]
    %v5542 = vld [vmem:[#allocation2 + $0x11f0] sm:$0xf]
    %v5543 = vld [vmem:[#allocation2 + $0x11f4] sm:$0xff]
    %v5544 = vld [vmem:[#allocation2 + $0x11fc] sm:$0xf]
    %v5545 = vld [vmem:[#allocation2 + $0x1200] sm:$0xff]
    %v5546 = vld [vmem:[#allocation2 + $0x1208] sm:$0xf]
    %v5547 = vld [vmem:[#allocation2 + $0x120c] sm:$0xff]
    %v5548 = vld [vmem:[#allocation2 + $0x1214] sm:$0xf]
    %v5549 = vld [vmem:[#allocation2 + $0x1218] sm:$0xff]
    %v5550 = vld [vmem:[#allocation2 + $0x1220] sm:$0xf]
    %v5551 = vld [vmem:[#allocation2 + $0x1224] sm:$0xff]
    %v5552 = vld [vmem:[#allocation2 + $0x122c] sm:$0xf]
    %v5553 = vld [vmem:[#allocation2 + $0x1230] sm:$0xff]
    %v5554 = vld [vmem:[#allocation2 + $0x1238] sm:$0xf]
    %v5555 = vld [vmem:[#allocation2 + $0x123c] sm:$0xff]
    %v5556 = vld [vmem:[#allocation2 + $0x1244] sm:$0xf]
    %v5557 = vld [vmem:[#allocation2 + $0x1248] sm:$0xff]
    %v5558 = vld [vmem:[#allocation2 + $0x1250] sm:$0xf]
    %v5559 = vld [vmem:[#allocation2 + $0x1254] sm:$0xff]
    %v5560 = vld [vmem:[#allocation2 + $0x125c] sm:$0xf]
    %v5561 = vld [vmem:[#allocation2 + $0x1260] sm:$0xff]
    %v5562 = vld [vmem:[#allocation2 + $0x1268] sm:$0xf]
    %v5563 = vld [vmem:[#allocation2 + $0x126c] sm:$0xff]
    %v5564 = vld [vmem:[#allocation2 + $0x1274] sm:$0xf]
    %v5565 = vld [vmem:[#allocation2 + $0x1278] sm:$0xff]
    %v5566 = vld [vmem:[#allocation2 + $0x1280] sm:$0xf]
    %v5567 = vld [vmem:[#allocation2 + $0x1284] sm:$0xff]
    %v5568 = vld [vmem:[#allocation2 + $0x128c] sm:$0xf]
    %v5569 = vld [vmem:[#allocation2 + $0x1290] sm:$0xff]
    %v5570 = vld [vmem:[#allocation2 + $0x1298] sm:$0xf]
    %v5571 = vld [vmem:[#allocation2 + $0x129c] sm:$0xff]
    %v5572 = vld [vmem:[#allocation2 + $0x12a4] sm:$0xf]
    %v5573 = vld [vmem:[#allocation2 + $0x12a8] sm:$0xff]
    %v5574 = vld [vmem:[#allocation2 + $0x12b0] sm:$0xf]
    %v5575 = vld [vmem:[#allocation2 + $0x12b4] sm:$0xff]
    %v5576 = vld [vmem:[#allocation2 + $0x12bc] sm:$0xf]
    %v5577 = vld [vmem:[#allocation4 + $0x120] sm:$0xff]
    %v5578 = vld [vmem:[#allocation4 + $0x128] sm:$0xff]
    %v5579 = vld [vmem:[#allocation4 + $0x130] sm:$0xff]
    %v5580 = vpack.c.bf16 %v5478, %v5478
    %v5581 = vpack.c.bf16 %v5479, %v5479
    %v5582 = vpack.c.bf16 %v5480, %v5480
    %v5583 = vlaneseq
    %v5584 = vshrl.u32 %v5583, 7
    %v5585 = vsub.s32 0, %v5584
    %v5586 = vrot.slane %v5577, %v5585
    %v5587 = vlaneseq
    %v5588 = vshrl.u32 %v5587, 7
    %v5589 = vsub.s32 0, %v5588
    %v5590 = vrot.slane %v5578, %v5589
    %v5591 = vlaneseq
    %v5592 = vshrl.u32 %v5591, 7
    %v5593 = vsub.s32 0, %v5592
    %v5594 = vrot.slane %v5579, %v5593
    %v5691 = vunpack.c.l.b16 %v5481
    %v5692 = vunpack.c.h.b16 %v5481
    %v5693 = vunpack.c.l.b16 %v5482
    %v5694 = vunpack.c.l.b16 %v5483
    %v5695 = vunpack.c.h.b16 %v5483
    %v5696 = vunpack.c.l.b16 %v5484
    %v5697 = vunpack.c.l.b16 %v5485
    %v5698 = vunpack.c.h.b16 %v5485
    %v5699 = vunpack.c.l.b16 %v5486
    %v5700 = vunpack.c.l.b16 %v5487
    %v5701 = vunpack.c.h.b16 %v5487
    %v5702 = vunpack.c.l.b16 %v5488
    %v5703 = vunpack.c.l.b16 %v5489
    %v5704 = vunpack.c.h.b16 %v5489
    %v5705 = vunpack.c.l.b16 %v5490
    %v5706 = vunpack.c.l.b16 %v5491
    %v5707 = vunpack.c.h.b16 %v5491
    %v5708 = vunpack.c.l.b16 %v5492
    %v5709 = vunpack.c.l.b16 %v5493
    %v5710 = vunpack.c.h.b16 %v5493
    %v5711 = vunpack.c.l.b16 %v5494
    %v5712 = vunpack.c.l.b16 %v5495
    %v5713 = vunpack.c.h.b16 %v5495
    %v5714 = vunpack.c.l.b16 %v5496
    %v5715 = vunpack.c.l.b16 %v5497
    %v5716 = vunpack.c.h.b16 %v5497
    %v5717 = vunpack.c.l.b16 %v5498
    %v5718 = vunpack.c.l.b16 %v5499
    %v5719 = vunpack.c.h.b16 %v5499
    %v5720 = vunpack.c.l.b16 %v5500
    %v5721 = vunpack.c.l.b16 %v5501
    %v5722 = vunpack.c.h.b16 %v5501
    %v5723 = vunpack.c.l.b16 %v5502
    %v5724 = vunpack.c.l.b16 %v5503
    %v5725 = vunpack.c.h.b16 %v5503
    %v5726 = vunpack.c.l.b16 %v5504
    %v5727 = vunpack.c.l.b16 %v5505
    %v5728 = vunpack.c.h.b16 %v5505
    %v5729 = vunpack.c.l.b16 %v5506
    %v5730 = vunpack.c.l.b16 %v5507
    %v5731 = vunpack.c.h.b16 %v5507
    %v5732 = vunpack.c.l.b16 %v5508
    %v5733 = vunpack.c.l.b16 %v5509
    %v5734 = vunpack.c.h.b16 %v5509
    %v5735 = vunpack.c.l.b16 %v5510
    %v5736 = vunpack.c.l.b16 %v5511
    %v5737 = vunpack.c.h.b16 %v5511
    %v5738 = vunpack.c.l.b16 %v5512
    %v5739 = vunpack.c.l.b16 %v5513
    %v5740 = vunpack.c.h.b16 %v5513
    %v5741 = vunpack.c.l.b16 %v5514
    %v5742 = vunpack.c.l.b16 %v5515
    %v5743 = vunpack.c.h.b16 %v5515
    %v5744 = vunpack.c.l.b16 %v5516
    %v5745 = vunpack.c.l.b16 %v5517
    %v5746 = vunpack.c.h.b16 %v5517
    %v5747 = vunpack.c.l.b16 %v5518
    %v5748 = vunpack.c.l.b16 %v5519
    %v5749 = vunpack.c.h.b16 %v5519
    %v5750 = vunpack.c.l.b16 %v5520
    %v5751 = vunpack.c.l.b16 %v5521
    %v5752 = vunpack.c.h.b16 %v5521
    %v5753 = vunpack.c.l.b16 %v5522
    %v5754 = vunpack.c.l.b16 %v5523
    %v5755 = vunpack.c.h.b16 %v5523
    %v5756 = vunpack.c.l.b16 %v5524
    %v5757 = vunpack.c.l.b16 %v5525
    %v5758 = vunpack.c.h.b16 %v5525
    %v5759 = vunpack.c.l.b16 %v5526
    %v5760 = vunpack.c.l.b16 %v5527
    %v5761 = vunpack.c.h.b16 %v5527
    %v5762 = vunpack.c.l.b16 %v5528
    %v5763 = vunpack.c.l.b16 %v5529
    %v5764 = vunpack.c.h.b16 %v5529
    %v5765 = vunpack.c.l.b16 %v5530
    %v5766 = vunpack.c.l.b16 %v5531
    %v5767 = vunpack.c.h.b16 %v5531
    %v5768 = vunpack.c.l.b16 %v5532
    %v5769 = vunpack.c.l.b16 %v5533
    %v5770 = vunpack.c.h.b16 %v5533
    %v5771 = vunpack.c.l.b16 %v5534
    %v5772 = vunpack.c.l.b16 %v5535
    %v5773 = vunpack.c.h.b16 %v5535
    %v5774 = vunpack.c.l.b16 %v5536
    %v5775 = vunpack.c.l.b16 %v5537
    %v5776 = vunpack.c.h.b16 %v5537
    %v5777 = vunpack.c.l.b16 %v5538
    %v5778 = vunpack.c.l.b16 %v5539
    %v5779 = vunpack.c.h.b16 %v5539
    %v5780 = vunpack.c.l.b16 %v5540
    %v5781 = vunpack.c.l.b16 %v5541
    %v5782 = vunpack.c.h.b16 %v5541
    %v5783 = vunpack.c.l.b16 %v5542
    %v5784 = vunpack.c.l.b16 %v5543
    %v5785 = vunpack.c.h.b16 %v5543
    %v5786 = vunpack.c.l.b16 %v5544
    %v5787 = vunpack.c.l.b16 %v5545
    %v5788 = vunpack.c.h.b16 %v5545
    %v5789 = vunpack.c.l.b16 %v5546
    %v5790 = vunpack.c.l.b16 %v5547
    %v5791 = vunpack.c.h.b16 %v5547
    %v5792 = vunpack.c.l.b16 %v5548
    %v5793 = vunpack.c.l.b16 %v5549
    %v5794 = vunpack.c.h.b16 %v5549
    %v5795 = vunpack.c.l.b16 %v5550
    %v5796 = vunpack.c.l.b16 %v5551
    %v5797 = vunpack.c.h.b16 %v5551
    %v5798 = vunpack.c.l.b16 %v5552
    %v5799 = vunpack.c.l.b16 %v5553
    %v5800 = vunpack.c.h.b16 %v5553
    %v5801 = vunpack.c.l.b16 %v5554
    %v5802 = vunpack.c.l.b16 %v5555
    %v5803 = vunpack.c.h.b16 %v5555
    %v5804 = vunpack.c.l.b16 %v5556
    %v5805 = vunpack.c.l.b16 %v5557
    %v5806 = vunpack.c.h.b16 %v5557
    %v5807 = vunpack.c.l.b16 %v5558
    %v5808 = vunpack.c.l.b16 %v5559
    %v5809 = vunpack.c.h.b16 %v5559
    %v5810 = vunpack.c.l.b16 %v5560
    %v5811 = vunpack.c.l.b16 %v5561
    %v5812 = vunpack.c.h.b16 %v5561
    %v5813 = vunpack.c.l.b16 %v5562
    %v5814 = vunpack.c.l.b16 %v5563
    %v5815 = vunpack.c.h.b16 %v5563
    %v5816 = vunpack.c.l.b16 %v5564
    %v5817 = vunpack.c.l.b16 %v5565
    %v5818 = vunpack.c.h.b16 %v5565
    %v5819 = vunpack.c.l.b16 %v5566
    %v5820 = vunpack.c.l.b16 %v5567
    %v5821 = vunpack.c.h.b16 %v5567
    %v5822 = vunpack.c.l.b16 %v5568
    %v5823 = vunpack.c.l.b16 %v5569
    %v5824 = vunpack.c.h.b16 %v5569
    %v5825 = vunpack.c.l.b16 %v5570
    %v5826 = vunpack.c.l.b16 %v5571
    %v5827 = vunpack.c.h.b16 %v5571
    %v5828 = vunpack.c.l.b16 %v5572
    %v5829 = vunpack.c.l.b16 %v5573
    %v5830 = vunpack.c.h.b16 %v5573
    %v5831 = vunpack.c.l.b16 %v5574
    %v5832 = vunpack.c.l.b16 %v5575
    %v5833 = vunpack.c.h.b16 %v5575
    %v5834 = vunpack.c.l.b16 %v5576
    %v5835 = vpack.c.b16 %v5694, %v5691
    %v5836 = vpack.c.b16 %v5695, %v5692
    %v5837 = vpack.c.b16 %v5696, %v5693
    %v5838 = vpack.c.b16 %v5700, %v5697
    %v5839 = vpack.c.b16 %v5701, %v5698
    %v5840 = vpack.c.b16 %v5702, %v5699
    %v5841 = vpack.c.b16 %v5706, %v5703
    %v5842 = vpack.c.b16 %v5707, %v5704
    %v5843 = vpack.c.b16 %v5708, %v5705
    %v5844 = vpack.c.b16 %v5712, %v5709
    %v5845 = vpack.c.b16 %v5713, %v5710
    %v5846 = vpack.c.b16 %v5714, %v5711
    %v5847 = vpack.c.b16 %v5718, %v5715
    %v5848 = vpack.c.b16 %v5719, %v5716
    %v5849 = vpack.c.b16 %v5720, %v5717
    %v5850 = vpack.c.b16 %v5724, %v5721
    %v5851 = vpack.c.b16 %v5725, %v5722
    %v5852 = vpack.c.b16 %v5726, %v5723
    %v5853 = vpack.c.b16 %v5730, %v5727
    %v5854 = vpack.c.b16 %v5731, %v5728
    %v5855 = vpack.c.b16 %v5732, %v5729
    %v5856 = vpack.c.b16 %v5736, %v5733
    %v5857 = vpack.c.b16 %v5737, %v5734
    %v5858 = vpack.c.b16 %v5738, %v5735
    %v5859 = vpack.c.b16 %v5742, %v5739
    %v5860 = vpack.c.b16 %v5743, %v5740
    %v5861 = vpack.c.b16 %v5744, %v5741
    %v5862 = vpack.c.b16 %v5748, %v5745
    %v5863 = vpack.c.b16 %v5749, %v5746
    %v5864 = vpack.c.b16 %v5750, %v5747
    %v5865 = vpack.c.b16 %v5754, %v5751
    %v5866 = vpack.c.b16 %v5755, %v5752
    %v5867 = vpack.c.b16 %v5756, %v5753
    %v5868 = vpack.c.b16 %v5760, %v5757
    %v5869 = vpack.c.b16 %v5761, %v5758
    %v5870 = vpack.c.b16 %v5762, %v5759
    %v5871 = vpack.c.b16 %v5766, %v5763
    %v5872 = vpack.c.b16 %v5767, %v5764
    %v5873 = vpack.c.b16 %v5768, %v5765
    %v5874 = vpack.c.b16 %v5772, %v5769
    %v5875 = vpack.c.b16 %v5773, %v5770
    %v5876 = vpack.c.b16 %v5774, %v5771
    %v5877 = vpack.c.b16 %v5778, %v5775
    %v5878 = vpack.c.b16 %v5779, %v5776
    %v5879 = vpack.c.b16 %v5780, %v5777
    %v5880 = vpack.c.b16 %v5784, %v5781
    %v5881 = vpack.c.b16 %v5785, %v5782
    %v5882 = vpack.c.b16 %v5786, %v5783
    %v5883 = vpack.c.b16 %v5790, %v5787
    %v5884 = vpack.c.b16 %v5791, %v5788
    %v5885 = vpack.c.b16 %v5792, %v5789
    %v5886 = vpack.c.b16 %v5796, %v5793
    %v5887 = vpack.c.b16 %v5797, %v5794
    %v5888 = vpack.c.b16 %v5798, %v5795
    %v5889 = vpack.c.b16 %v5802, %v5799
    %v5890 = vpack.c.b16 %v5803, %v5800
    %v5891 = vpack.c.b16 %v5804, %v5801
    %v5892 = vpack.c.b16 %v5808, %v5805
    %v5893 = vpack.c.b16 %v5809, %v5806
    %v5894 = vpack.c.b16 %v5810, %v5807
    %v5895 = vpack.c.b16 %v5814, %v5811
    %v5896 = vpack.c.b16 %v5815, %v5812
    %v5897 = vpack.c.b16 %v5816, %v5813
    %v5898 = vpack.c.b16 %v5820, %v5817
    %v5899 = vpack.c.b16 %v5821, %v5818
    %v5900 = vpack.c.b16 %v5822, %v5819
    %v5901 = vpack.c.b16 %v5826, %v5823
    %v5902 = vpack.c.b16 %v5827, %v5824
    %v5903 = vpack.c.b16 %v5828, %v5825
    %v5904 = vpack.c.b16 %v5832, %v5829
    %v5905 = vpack.c.b16 %v5833, %v5830
    %v5906 = vpack.c.b16 %v5834, %v5831
    %5979 = vmatprep.subr.bf16.mxu0 %v5836
    %5980 = vmatpush1.bf16.msra.mxu0 %v5835
    %5981 = vmatprep.subr.bf16.mxu0 %v5839
    %5982 = vmatpush1.bf16.msra.mxu0 %v5838
    %5983 = vmatprep.subr.bf16.mxu0 %v5842
    %5984 = vmatpush1.bf16.msra.mxu0 %v5841
    %5985 = vmatprep.subr.bf16.mxu0 %v5845
    %5986 = vmatpush1.bf16.msra.mxu0 %v5844
    %5987 = vmatprep.subr.bf16.mxu0 %v5848
    %5988 = vmatpush1.bf16.msra.mxu0 %v5847
    %5989 = vmatprep.subr.bf16.mxu0 %v5851
    %5990 = vmatpush1.bf16.msra.mxu0 %v5850
    %5991 = vmatprep.subr.bf16.mxu0 %v5854
    %5992 = vmatpush1.bf16.msra.mxu0 %v5853
    %5993 = vmatprep.subr.bf16.mxu0 %v5857
    %5994 = vmatpush1.bf16.msra.mxu0 %v5856
    %5995 = vmatprep.subr.bf16.mxu0 %v5860
    %5996 = vmatpush1.bf16.msra.mxu0 %v5859
    %5997 = vmatprep.subr.bf16.mxu0 %v5863
    %5998 = vmatpush1.bf16.msra.mxu0 %v5862
    %5999 = vmatprep.subr.bf16.mxu0 %v5866
    %6000 = vmatpush1.bf16.msra.mxu0 %v5865
    %6001 = vmatprep.subr.bf16.mxu0 %v5869
    %6002 = vmatpush1.bf16.msra.mxu0 %v5868
    %6003 = vmatprep.subr.bf16.mxu0 %v5872
    %6004 = vmatpush1.bf16.msra.mxu0 %v5871
    %6005 = vmatprep.subr.bf16.mxu0 %v5875
    %6006 = vmatpush1.bf16.msra.mxu0 %v5874
    %6007 = vmatprep.subr.bf16.mxu0 %v5878
    %6008 = vmatpush1.bf16.msra.mxu0 %v5877
    %6009 = vmatprep.subr.bf16.mxu0 %v5881
    %6010 = vmatpush1.bf16.msra.mxu0 %v5880
    %6011 = vmatprep.mubr.bf16.mxu0 %v5581
    %6012 = vmatmul.mubr.bf16.gmra.mrb[0].mxu0 %v5580
    %v6013 = vpop.f32.mrb[0].mxu0
    %v6014 = vadd.f32 %v5586, %v6013
    %v6015 = vpop.f32.mrb[0].mxu0
    %v6016 = vadd.f32 %v5590, %v6015
    %v6017 = vpop.f32.mrb[0].mxu0
    %v6018 = vpop.f32.mrb[0].mxu0
    %6019 = vdwg.mxu0
    %6020 = vmatprep.subr.bf16.mxu0 %v5884
    %6021 = vmatpush1.bf16.msra.mxu0 %v5883
    %6022 = vmatprep.subr.bf16.mxu0 %v5887
    %6023 = vmatpush1.bf16.msra.mxu0 %v5886
    %6024 = vmatprep.subr.bf16.mxu0 %v5890
    %6025 = vmatpush1.bf16.msra.mxu0 %v5889
    %6026 = vmatprep.subr.bf16.mxu0 %v5893
    %6027 = vmatpush1.bf16.msra.mxu0 %v5892
    %6028 = vmatprep.subr.bf16.mxu0 %v5896
    %6029 = vmatpush1.bf16.msra.mxu0 %v5895
    %6030 = vmatprep.subr.bf16.mxu0 %v5899
    %6031 = vmatpush1.bf16.msra.mxu0 %v5898
    %6032 = vmatprep.subr.bf16.mxu0 %v5902
    %6033 = vmatpush1.bf16.msra.mxu0 %v5901
    %6034 = vmatprep.subr.bf16.mxu0 %v5905
    %6035 = vmatpush1.bf16.msra.mxu0 %v5904
    %6036 = vmatprep.subr.bf16.mxu0 0
    %6037 = vmatpush1.bf16.msra.mxu0 0
    %6038 = vmatprep.subr.bf16.mxu0 0
    %6039 = vmatpush1.bf16.msra.mxu0 0
    %6040 = vmatprep.subr.bf16.mxu0 0
    %6041 = vmatpush1.bf16.msra.mxu0 0
    %6042 = vmatprep.subr.bf16.mxu0 0
    %6043 = vmatpush1.bf16.msra.mxu0 0
    %6044 = vmatprep.subr.bf16.mxu0 0
    %6045 = vmatpush1.bf16.msra.mxu0 0
    %6046 = vmatprep.subr.bf16.mxu0 0
    %6047 = vmatpush1.bf16.msra.mxu0 0
    %6048 = vmatprep.subr.bf16.mxu0 0
    %6049 = vmatpush1.bf16.msra.mxu0 0
    %6050 = vmatprep.subr.bf16.mxu0 0
    %6051 = vmatpush1.bf16.msra.mxu0 0
    %6052 = vmatprep.mubr.bf16.mxu0 0
    %6053 = vmatmul.mubr.bf16.gmra.mrb[0].mxu0 %v5582
    %v6054 = vpop.f32.mrb[0].mxu0
    %v6055 = vadd.f32 %v6014, %v6054
    %v6056 = vpop.f32.mrb[0].mxu0
    %v6057 = vadd.f32 %v6016, %v6056
    %v6058 = vpop.f32.mrb[0].mxu0
    %v6059 = vpop.f32.mrb[0].mxu0
    %6060 = vdwg.mxu0
    %6061 = vmatprep.subr.bf16.mxu0 0
    %6062 = vmatpush1.bf16.msra.mxu0 %v5837
    %6063 = vmatprep.subr.bf16.mxu0 0
    %6064 = vmatpush1.bf16.msra.mxu0 %v5840
    %6065 = vmatprep.subr.bf16.mxu0 0
    %6066 = vmatpush1.bf16.msra.mxu0 %v5843
    %6067 = vmatprep.subr.bf16.mxu0 0
    %6068 = vmatpush1.bf16.msra.mxu0 %v5846
    %6069 = vmatprep.subr.bf16.mxu0 0
    %6070 = vmatpush1.bf16.msra.mxu0 %v5849
    %6071 = vmatprep.subr.bf16.mxu0 0
    %6072 = vmatpush1.bf16.msra.mxu0 %v5852
    %6073 = vmatprep.subr.bf16.mxu0 0
    %6074 = vmatpush1.bf16.msra.mxu0 %v5855
    %6075 = vmatprep.subr.bf16.mxu0 0
    %6076 = vmatpush1.bf16.msra.mxu0 %v5858
    %6077 = vmatprep.subr.bf16.mxu0 0
    %6078 = vmatpush1.bf16.msra.mxu0 %v5861
    %6079 = vmatprep.subr.bf16.mxu0 0
    %6080 = vmatpush1.bf16.msra.mxu0 %v5864
    %6081 = vmatprep.subr.bf16.mxu0 0
    %6082 = vmatpush1.bf16.msra.mxu0 %v5867
    %6083 = vmatprep.subr.bf16.mxu0 0
    %6084 = vmatpush1.bf16.msra.mxu0 %v5870
    %6085 = vmatprep.subr.bf16.mxu0 0
    %6086 = vmatpush1.bf16.msra.mxu0 %v5873
    %6087 = vmatprep.subr.bf16.mxu0 0
    %6088 = vmatpush1.bf16.msra.mxu0 %v5876
    %6089 = vmatprep.subr.bf16.mxu0 0
    %6090 = vmatpush1.bf16.msra.mxu0 %v5879
    %6091 = vmatprep.subr.bf16.mxu0 0
    %6092 = vmatpush1.bf16.msra.mxu0 %v5882
    %6093 = vmatprep.mubr.bf16.mxu0 %v5581
    %6094 = vmatmul.mubr.bf16.gmra.mrb[0].mxu0 %v5580
    %v6095 = vpop.f32.mrb[0].mxu0
    %v6096 = vadd.f32 %v5594, %v6095
    %v6097 = vpop.f32.mrb[0].mxu0
    %v6098 = vpop.f32.mrb[0].mxu0
    %v6099 = vpop.f32.mrb[0].mxu0
    %6100 = vdwg.mxu0
    %6101 = vmatprep.subr.bf16.mxu0 0
    %6102 = vmatpush1.bf16.msra.mxu0 %v5885
    %6103 = vmatprep.subr.bf16.mxu0 0
    %6104 = vmatpush1.bf16.msra.mxu0 %v5888
    %6105 = vmatprep.subr.bf16.mxu0 0
    %6106 = vmatpush1.bf16.msra.mxu0 %v5891
    %6107 = vmatprep.subr.bf16.mxu0 0
    %6108 = vmatpush1.bf16.msra.mxu0 %v5894
    %6109 = vmatprep.subr.bf16.mxu0 0
    %6110 = vmatpush1.bf16.msra.mxu0 %v5897
    %6111 = vmatprep.subr.bf16.mxu0 0
    %6112 = vmatpush1.bf16.msra.mxu0 %v5900
    %6113 = vmatprep.subr.bf16.mxu0 0
    %6114 = vmatpush1.bf16.msra.mxu0 %v5903
    %6115 = vmatprep.subr.bf16.mxu0 0
    %6116 = vmatpush1.bf16.msra.mxu0 %v5906
    %6117 = vmatprep.subr.bf16.mxu0 0
    %6118 = vmatpush1.bf16.msra.mxu0 0
    %6119 = vmatprep.subr.bf16.mxu0 0
    %6120 = vmatpush1.bf16.msra.mxu0 0
    %6121 = vmatprep.subr.bf16.mxu0 0
    %6122 = vmatpush1.bf16.msra.mxu0 0
    %6123 = vmatprep.subr.bf16.mxu0 0
    %6124 = vmatpush1.bf16.msra.mxu0 0
    %6125 = vmatprep.subr.bf16.mxu0 0
    %6126 = vmatpush1.bf16.msra.mxu0 0
    %6127 = vmatprep.subr.bf16.mxu0 0
    %6128 = vmatpush1.bf16.msra.mxu0 0
    %6129 = vmatprep.subr.bf16.mxu0 0
    %6130 = vmatpush1.bf16.msra.mxu0 0
    %6131 = vmatprep.subr.bf16.mxu0 0
    %6132 = vmatpush1.bf16.msra.mxu0 0
    %6133 = vmatprep.mubr.bf16.mxu0 0
    %6134 = vmatmul.mubr.bf16.gmra.mrb[0].mxu0 %v5582
    %v6135 = vpop.f32.mrb[0].mxu0
    %v6136 = vadd.f32 %v6096, %v6135
    %v6137 = vpop.f32.mrb[0].mxu0
    %v6138 = vpop.f32.mrb[0].mxu0
    %v6139 = vpop.f32.mrb[0].mxu0
    %6140 = vdwg.mxu0
    %v6141 = vadd.f32 %v6055, %v6057
    %v6142 = vadd.f32 %v6141, %v6136
    %6143 = vadd.xlane.f32.xlu0 %v6142
    %v6144 = vpop.xlane.xlu0 %6143
    %v6145 = vmul.f32 %v6144, 0.013888889
    %v6146 = vmul.f32 %v6055, %v6055
    %v6147 = vmul.f32 %v6057, %v6057
    %v6148 = vmul.f32 %v6136, %v6136
    %v6149 = vadd.f32 %v6146, %v6147
    %v6150 = vadd.f32 %v6149, %v6148
    %6151 = vadd.xlane.f32.xlu0 %v6150
    %v6152 = vpop.xlane.xlu0 %6151
    %v6153 = vmul.f32 %v6152, 0.013888889
    %v6154 = vmul.f32 %v6145, %v6145
    %v6155 = vsub.f32 %v6153, %v6154
    %v6156 = vmax.f32 %v6155, 0.0
    %v6157 = vsub.f32 %v6055, %v6145
    %v6158 = vadd.f32 %v6156, 1e-05
    %v6159 = vrsqrt.pop %v6158
    %v6160 = vmul.f32 %v6157, %v6159
    %v6161 = vlaneseq
    %v6162 = vshrl.u32 %v6161, 7
    %v6163 = vsub.s32 1, %v6162
    %v6164 = vrot.slane %v5577, %v6163
    %v6165 = vmul.f32 %v6160, %v6164
    %v6166 = vlaneseq
    %v6167 = vshrl.u32 %v6166, 7
    %v6168 = vsub.s32 2, %v6167
    %v6169 = vrot.slane %v5577, %v6168
    %v6170 = vadd.f32 %v6165, %v6169
    %vm6171 = vcmp.gt.f32.partialorder %v6170, 0.0
    %v6172 = vmul.f32 %v6170, 0.2
    %v6173 = vsel %vm6171, %v6170, %v6172
    %v6174 = vld [vmem:[#allocation2 + $0x12c0] sm:$0xff]
    %v6175 = vld [vmem:[#allocation2 + $0x12c8] sm:$0xf]
    %v6176 = vld [vmem:[#allocation2 + $0x12cc] sm:$0xff]
    %v6177 = vld [vmem:[#allocation2 + $0x12d4] sm:$0xf]
    %v6178 = vld [vmem:[#allocation2 + $0x12d8] sm:$0xff]
    %v6179 = vld [vmem:[#allocation2 + $0x12e0] sm:$0xf]
    %v6180 = vld [vmem:[#allocation2 + $0x12e4] sm:$0xff]
    %v6181 = vld [vmem:[#allocation2 + $0x12ec] sm:$0xf]
    %v6182 = vld [vmem:[#allocation2 + $0x12f0] sm:$0xff]
    %v6183 = vld [vmem:[#allocation2 + $0x12f8] sm:$0xf]
    %v6184 = vld [vmem:[#allocation2 + $0x12fc] sm:$0xff]
    %v6185 = vld [vmem:[#allocation2 + $0x1304] sm:$0xf]
    %v6186 = vld [vmem:[#allocation2 + $0x1308] sm:$0xff]
    %v6187 = vld [vmem:[#allocation2 + $0x1310] sm:$0xf]
    %v6188 = vld [vmem:[#allocation2 + $0x1314] sm:$0xff]
    %v6189 = vld [vmem:[#allocation2 + $0x131c] sm:$0xf]
    %v6190 = vld [vmem:[#allocation2 + $0x1320] sm:$0xff]
    %v6191 = vld [vmem:[#allocation2 + $0x1328] sm:$0xf]
    %v6192 = vld [vmem:[#allocation2 + $0x132c] sm:$0xff]
    %v6193 = vld [vmem:[#allocation2 + $0x1334] sm:$0xf]
    %v6194 = vld [vmem:[#allocation2 + $0x1338] sm:$0xff]
    %v6195 = vld [vmem:[#allocation2 + $0x1340] sm:$0xf]
    %v6196 = vld [vmem:[#allocation2 + $0x1344] sm:$0xff]
    %v6197 = vld [vmem:[#allocation2 + $0x134c] sm:$0xf]
    %v6198 = vld [vmem:[#allocation2 + $0x1350] sm:$0xff]
    %v6199 = vld [vmem:[#allocation2 + $0x1358] sm:$0xf]
    %v6200 = vld [vmem:[#allocation2 + $0x135c] sm:$0xff]
    %v6201 = vld [vmem:[#allocation2 + $0x1364] sm:$0xf]
    %v6202 = vld [vmem:[#allocation2 + $0x1368] sm:$0xff]
    %v6203 = vld [vmem:[#allocation2 + $0x1370] sm:$0xf]
    %v6204 = vld [vmem:[#allocation2 + $0x1374] sm:$0xff]
    %v6205 = vld [vmem:[#allocation2 + $0x137c] sm:$0xf]
    %v6206 = vld [vmem:[#allocation4 + $0x138] sm:$0xff]
    %v6207 = vld [vmem:[#allocation4 + $0x140] sm:$0xff]
    %v6208 = vld [vmem:[#allocation4 + $0x148] sm:$0xff]
    %v6209 = vpack.c.bf16 %v6173, %v6173
    %v6210 = vlaneseq
    %v6211 = vshrl.u32 %v6210, 7
    %v6212 = vsub.s32 0, %v6211
    %v6213 = vrot.slane %v6206, %v6212
    %v6214 = vlaneseq
    %v6215 = vshrl.u32 %v6214, 7
    %v6216 = vsub.s32 0, %v6215
    %v6217 = vrot.slane %v6207, %v6216
    %v6218 = vlaneseq
    %v6219 = vshrl.u32 %v6218, 7
    %v6220 = vsub.s32 0, %v6219
    %v6221 = vrot.slane %v6208, %v6220
    %v6254 = vunpack.c.l.b16 %v6174
    %v6255 = vunpack.c.h.b16 %v6174
    %v6256 = vunpack.c.l.b16 %v6175
    %v6257 = vunpack.c.l.b16 %v6176
    %v6258 = vunpack.c.h.b16 %v6176
    %v6259 = vunpack.c.l.b16 %v6177
    %v6260 = vunpack.c.l.b16 %v6178
    %v6261 = vunpack.c.h.b16 %v6178
    %v6262 = vunpack.c.l.b16 %v6179
    %v6263 = vunpack.c.l.b16 %v6180
    %v6264 = vunpack.c.h.b16 %v6180
    %v6265 = vunpack.c.l.b16 %v6181
    %v6266 = vunpack.c.l.b16 %v6182
    %v6267 = vunpack.c.h.b16 %v6182
    %v6268 = vunpack.c.l.b16 %v6183
    %v6269 = vunpack.c.l.b16 %v6184
    %v6270 = vunpack.c.h.b16 %v6184
    %v6271 = vunpack.c.l.b16 %v6185
    %v6272 = vunpack.c.l.b16 %v6186
    %v6273 = vunpack.c.h.b16 %v6186
    %v6274 = vunpack.c.l.b16 %v6187
    %v6275 = vunpack.c.l.b16 %v6188
    %v6276 = vunpack.c.h.b16 %v6188
    %v6277 = vunpack.c.l.b16 %v6189
    %v6278 = vunpack.c.l.b16 %v6190
    %v6279 = vunpack.c.h.b16 %v6190
    %v6280 = vunpack.c.l.b16 %v6191
    %v6281 = vunpack.c.l.b16 %v6192
    %v6282 = vunpack.c.h.b16 %v6192
    %v6283 = vunpack.c.l.b16 %v6193
    %v6284 = vunpack.c.l.b16 %v6194
    %v6285 = vunpack.c.h.b16 %v6194
    %v6286 = vunpack.c.l.b16 %v6195
    %v6287 = vunpack.c.l.b16 %v6196
    %v6288 = vunpack.c.h.b16 %v6196
    %v6289 = vunpack.c.l.b16 %v6197
    %v6290 = vunpack.c.l.b16 %v6198
    %v6291 = vunpack.c.h.b16 %v6198
    %v6292 = vunpack.c.l.b16 %v6199
    %v6293 = vunpack.c.l.b16 %v6200
    %v6294 = vunpack.c.h.b16 %v6200
    %v6295 = vunpack.c.l.b16 %v6201
    %v6296 = vunpack.c.l.b16 %v6202
    %v6297 = vunpack.c.h.b16 %v6202
    %v6298 = vunpack.c.l.b16 %v6203
    %v6299 = vunpack.c.l.b16 %v6204
    %v6300 = vunpack.c.h.b16 %v6204
    %v6301 = vunpack.c.l.b16 %v6205
    %v6302 = vpack.c.b16 %v6257, %v6254
    %v6303 = vpack.c.b16 %v6258, %v6255
    %v6304 = vpack.c.b16 %v6259, %v6256
    %v6305 = vpack.c.b16 %v6263, %v6260
    %v6306 = vpack.c.b16 %v6264, %v6261
    %v6307 = vpack.c.b16 %v6265, %v6262
    %v6308 = vpack.c.b16 %v6269, %v6266
    %v6309 = vpack.c.b16 %v6270, %v6267
    %v6310 = vpack.c.b16 %v6271, %v6268
    %v6311 = vpack.c.b16 %v6275, %v6272
    %v6312 = vpack.c.b16 %v6276, %v6273
    %v6313 = vpack.c.b16 %v6277, %v6274
    %v6314 = vpack.c.b16 %v6281, %v6278
    %v6315 = vpack.c.b16 %v6282, %v6279
    %v6316 = vpack.c.b16 %v6283, %v6280
    %v6317 = vpack.c.b16 %v6287, %v6284
    %v6318 = vpack.c.b16 %v6288, %v6285
    %v6319 = vpack.c.b16 %v6289, %v6286
    %v6320 = vpack.c.b16 %v6293, %v6290
    %v6321 = vpack.c.b16 %v6294, %v6291
    %v6322 = vpack.c.b16 %v6295, %v6292
    %v6323 = vpack.c.b16 %v6299, %v6296
    %v6324 = vpack.c.b16 %v6300, %v6297
    %v6325 = vpack.c.b16 %v6301, %v6298
    %6350 = vmatprep.subr.bf16.mxu0 %v6303
    %6351 = vmatpush1.bf16.msra.mxu0 %v6302
    %6352 = vmatprep.subr.bf16.mxu0 %v6306
    %6353 = vmatpush1.bf16.msra.mxu0 %v6305
    %6354 = vmatprep.subr.bf16.mxu0 %v6309
    %6355 = vmatpush1.bf16.msra.mxu0 %v6308
    %6356 = vmatprep.subr.bf16.mxu0 %v6312
    %6357 = vmatpush1.bf16.msra.mxu0 %v6311
    %6358 = vmatprep.subr.bf16.mxu0 %v6315
    %6359 = vmatpush1.bf16.msra.mxu0 %v6314
    %6360 = vmatprep.subr.bf16.mxu0 %v6318
    %6361 = vmatpush1.bf16.msra.mxu0 %v6317
    %6362 = vmatprep.subr.bf16.mxu0 %v6321
    %6363 = vmatpush1.bf16.msra.mxu0 %v6320
    %6364 = vmatprep.subr.bf16.mxu0 %v6324
    %6365 = vmatpush1.bf16.msra.mxu0 %v6323
    %6366 = vmatprep.subr.bf16.mxu0 0
    %6367 = vmatpush1.bf16.msra.mxu0 0
    %6368 = vmatprep.subr.bf16.mxu0 0
    %6369 = vmatpush1.bf16.msra.mxu0 0
    %6370 = vmatprep.subr.bf16.mxu0 0
    %6371 = vmatpush1.bf16.msra.mxu0 0
    %6372 = vmatprep.subr.bf16.mxu0 0
    %6373 = vmatpush1.bf16.msra.mxu0 0
    %6374 = vmatprep.subr.bf16.mxu0 0
    %6375 = vmatpush1.bf16.msra.mxu0 0
    %6376 = vmatprep.subr.bf16.mxu0 0
    %6377 = vmatpush1.bf16.msra.mxu0 0
    %6378 = vmatprep.subr.bf16.mxu0 0
    %6379 = vmatpush1.bf16.msra.mxu0 0
    %6380 = vmatprep.subr.bf16.mxu0 0
    %6381 = vmatpush1.bf16.msra.mxu0 0
    %6382 = vmatprep.mubr.bf16.mxu0 0
    %6383 = vmatmul.mubr.bf16.gmra.mrb[0].mxu0 %v6209
    %v6384 = vpop.f32.mrb[0].mxu0
    %v6385 = vadd.f32 %v6213, %v6384
    %v6386 = vpop.f32.mrb[0].mxu0
    %v6387 = vadd.f32 %v6217, %v6386
    %v6388 = vpop.f32.mrb[0].mxu0
    %v6389 = vpop.f32.mrb[0].mxu0
    %6390 = vdwg.mxu0
    %6391 = vmatprep.subr.bf16.mxu0 0
    %6392 = vmatpush1.bf16.msra.mxu0 %v6304
    %6393 = vmatprep.subr.bf16.mxu0 0
    %6394 = vmatpush1.bf16.msra.mxu0 %v6307
    %6395 = vmatprep.subr.bf16.mxu0 0
    %6396 = vmatpush1.bf16.msra.mxu0 %v6310
    %6397 = vmatprep.subr.bf16.mxu0 0
    %6398 = vmatpush1.bf16.msra.mxu0 %v6313
    %6399 = vmatprep.subr.bf16.mxu0 0
    %6400 = vmatpush1.bf16.msra.mxu0 %v6316
    %6401 = vmatprep.subr.bf16.mxu0 0
    %6402 = vmatpush1.bf16.msra.mxu0 %v6319
    %6403 = vmatprep.subr.bf16.mxu0 0
    %6404 = vmatpush1.bf16.msra.mxu0 %v6322
    %6405 = vmatprep.subr.bf16.mxu0 0
    %6406 = vmatpush1.bf16.msra.mxu0 %v6325
    %6407 = vmatprep.subr.bf16.mxu0 0
    %6408 = vmatpush1.bf16.msra.mxu0 0
    %6409 = vmatprep.subr.bf16.mxu0 0
    %6410 = vmatpush1.bf16.msra.mxu0 0
    %6411 = vmatprep.subr.bf16.mxu0 0
    %6412 = vmatpush1.bf16.msra.mxu0 0
    %6413 = vmatprep.subr.bf16.mxu0 0
    %6414 = vmatpush1.bf16.msra.mxu0 0
    %6415 = vmatprep.subr.bf16.mxu0 0
    %6416 = vmatpush1.bf16.msra.mxu0 0
    %6417 = vmatprep.subr.bf16.mxu0 0
    %6418 = vmatpush1.bf16.msra.mxu0 0
    %6419 = vmatprep.subr.bf16.mxu0 0
    %6420 = vmatpush1.bf16.msra.mxu0 0
    %6421 = vmatprep.subr.bf16.mxu0 0
    %6422 = vmatpush1.bf16.msra.mxu0 0
    %6423 = vmatprep.mubr.bf16.mxu0 0
    %6424 = vmatmul.mubr.bf16.gmra.mrb[0].mxu0 %v6209
    %v6425 = vpop.f32.mrb[0].mxu0
    %v6426 = vadd.f32 %v6221, %v6425
    %v6427 = vpop.f32.mrb[0].mxu0
    %v6428 = vpop.f32.mrb[0].mxu0
    %v6429 = vpop.f32.mrb[0].mxu0
    %6430 = vdwg.mxu0
    %v6431 = vadd.f32 %v6385, %v6387
    %v6432 = vadd.f32 %v6431, %v6426
    %6433 = vadd.xlane.f32.xlu0 %v6432
    %v6434 = vpop.xlane.xlu0 %6433
    %v6435 = vmul.f32 %v6434, 0.0625
    %v6436 = vmul.f32 %v6385, %v6385
    %v6437 = vmul.f32 %v6387, %v6387
    %v6438 = vmul.f32 %v6426, %v6426
    %v6439 = vadd.f32 %v6436, %v6437
    %v6440 = vadd.f32 %v6439, %v6438
    %6441 = vadd.xlane.f32.xlu0 %v6440
    %v6442 = vpop.xlane.xlu0 %6441
    %v6443 = vmul.f32 %v6442, 0.0625
    %v6444 = vmul.f32 %v6435, %v6435
    %v6445 = vsub.f32 %v6443, %v6444
    %v6446 = vmax.f32 %v6445, 0.0
    %v6447 = vsub.f32 %v6385, %v6435
    %v6448 = vadd.f32 %v6446, 1e-05
    %v6449 = vrsqrt.pop %v6448
    %v6450 = vmul.f32 %v6447, %v6449
    %v6451 = vlaneseq
    %v6452 = vshrl.u32 %v6451, 7
    %v6453 = vsub.s32 1, %v6452
    %v6454 = vrot.slane %v6206, %v6453
    %v6455 = vmul.f32 %v6450, %v6454
    %v6456 = vlaneseq
    %v6457 = vshrl.u32 %v6456, 7
    %v6458 = vsub.s32 2, %v6457
    %v6459 = vrot.slane %v6206, %v6458
    %v6460 = vadd.f32 %v6455, %v6459
    %vm6461 = vcmp.gt.f32.partialorder %v6460, 0.0
    %v6462 = vmul.f32 %v6460, 0.2
    %v6463 = vsel %vm6461, %v6460, %v6462
    %v6464 = vld [vmem:[#allocation2 + $0x1380] sm:$0xff]
    %v6465 = vld [vmem:[#allocation2 + $0x1388] sm:$0xf]
    %v6466 = vld [vmem:[#allocation2 + $0x138c] sm:$0xff]
    %v6467 = vld [vmem:[#allocation2 + $0x1394] sm:$0xf]
    %v6468 = vld [vmem:[#allocation2 + $0x1398] sm:$0xff]
    %v6469 = vld [vmem:[#allocation2 + $0x13a0] sm:$0xf]
    %v6470 = vld [vmem:[#allocation2 + $0x13a4] sm:$0xff]
    %v6471 = vld [vmem:[#allocation2 + $0x13ac] sm:$0xf]
    %v6472 = vld [vmem:[#allocation2 + $0x13b0] sm:$0xff]
    %v6473 = vld [vmem:[#allocation2 + $0x13b8] sm:$0xf]
    %v6474 = vld [vmem:[#allocation2 + $0x13bc] sm:$0xff]
    %v6475 = vld [vmem:[#allocation2 + $0x13c4] sm:$0xf]
    %v6476 = vld [vmem:[#allocation2 + $0x13c8] sm:$0xff]
    %v6477 = vld [vmem:[#allocation2 + $0x13d0] sm:$0xf]
    %v6478 = vld [vmem:[#allocation2 + $0x13d4] sm:$0xff]
    %v6479 = vld [vmem:[#allocation2 + $0x13dc] sm:$0xf]
    %v6480 = vld [vmem:[#allocation2 + $0x13e0] sm:$0xff]
    %v6481 = vld [vmem:[#allocation2 + $0x13e8] sm:$0xf]
    %v6482 = vld [vmem:[#allocation2 + $0x13ec] sm:$0xff]
    %v6483 = vld [vmem:[#allocation2 + $0x13f4] sm:$0xf]
    %v6484 = vld [vmem:[#allocation2 + $0x13f8] sm:$0xff]
    %v6485 = vld [vmem:[#allocation2 + $0x1400] sm:$0xf]
    %v6486 = vld [vmem:[#allocation2 + $0x1404] sm:$0xff]
    %v6487 = vld [vmem:[#allocation2 + $0x140c] sm:$0xf]
    %v6488 = vld [vmem:[#allocation2 + $0x1410] sm:$0xff]
    %v6489 = vld [vmem:[#allocation2 + $0x1418] sm:$0xf]
    %v6490 = vld [vmem:[#allocation2 + $0x141c] sm:$0xff]
    %v6491 = vld [vmem:[#allocation2 + $0x1424] sm:$0xf]
    %v6492 = vld [vmem:[#allocation2 + $0x1428] sm:$0xff]
    %v6493 = vld [vmem:[#allocation2 + $0x1430] sm:$0xf]
    %v6494 = vld [vmem:[#allocation2 + $0x1434] sm:$0xff]
    %v6495 = vld [vmem:[#allocation2 + $0x143c] sm:$0xf]
    %v6496 = vld [vmem:[#allocation4 + $0x150] sm:$0xff]
    %v6497 = vld [vmem:[#allocation4 + $0x158] sm:$0xff]
    %v6498 = vld [vmem:[#allocation4 + $0x160] sm:$0xff]
    %v6499 = vpack.c.bf16 %v6463, %v6463
    %v6500 = vlaneseq
    %v6501 = vshrl.u32 %v6500, 7
    %v6502 = vsub.s32 0, %v6501
    %v6503 = vrot.slane %v6496, %v6502
    %v6504 = vlaneseq
    %v6505 = vshrl.u32 %v6504, 7
    %v6506 = vsub.s32 0, %v6505
    %v6507 = vrot.slane %v6497, %v6506
    %v6508 = vlaneseq
    %v6509 = vshrl.u32 %v6508, 7
    %v6510 = vsub.s32 0, %v6509
    %v6511 = vrot.slane %v6498, %v6510
    %v6544 = vunpack.c.l.b16 %v6464
    %v6545 = vunpack.c.h.b16 %v6464
    %v6546 = vunpack.c.l.b16 %v6465
    %v6547 = vunpack.c.l.b16 %v6466
    %v6548 = vunpack.c.h.b16 %v6466
    %v6549 = vunpack.c.l.b16 %v6467
    %v6550 = vunpack.c.l.b16 %v6468
    %v6551 = vunpack.c.h.b16 %v6468
    %v6552 = vunpack.c.l.b16 %v6469
    %v6553 = vunpack.c.l.b16 %v6470
    %v6554 = vunpack.c.h.b16 %v6470
    %v6555 = vunpack.c.l.b16 %v6471
    %v6556 = vunpack.c.l.b16 %v6472
    %v6557 = vunpack.c.h.b16 %v6472
    %v6558 = vunpack.c.l.b16 %v6473
    %v6559 = vunpack.c.l.b16 %v6474
    %v6560 = vunpack.c.h.b16 %v6474
    %v6561 = vunpack.c.l.b16 %v6475
    %v6562 = vunpack.c.l.b16 %v6476
    %v6563 = vunpack.c.h.b16 %v6476
    %v6564 = vunpack.c.l.b16 %v6477
    %v6565 = vunpack.c.l.b16 %v6478
    %v6566 = vunpack.c.h.b16 %v6478
    %v6567 = vunpack.c.l.b16 %v6479
    %v6568 = vunpack.c.l.b16 %v6480
    %v6569 = vunpack.c.h.b16 %v6480
    %v6570 = vunpack.c.l.b16 %v6481
    %v6571 = vunpack.c.l.b16 %v6482
    %v6572 = vunpack.c.h.b16 %v6482
    %v6573 = vunpack.c.l.b16 %v6483
    %v6574 = vunpack.c.l.b16 %v6484
    %v6575 = vunpack.c.h.b16 %v6484
    %v6576 = vunpack.c.l.b16 %v6485
    %v6577 = vunpack.c.l.b16 %v6486
    %v6578 = vunpack.c.h.b16 %v6486
    %v6579 = vunpack.c.l.b16 %v6487
    %v6580 = vunpack.c.l.b16 %v6488
    %v6581 = vunpack.c.h.b16 %v6488
    %v6582 = vunpack.c.l.b16 %v6489
    %v6583 = vunpack.c.l.b16 %v6490
    %v6584 = vunpack.c.h.b16 %v6490
    %v6585 = vunpack.c.l.b16 %v6491
    %v6586 = vunpack.c.l.b16 %v6492
    %v6587 = vunpack.c.h.b16 %v6492
    %v6588 = vunpack.c.l.b16 %v6493
    %v6589 = vunpack.c.l.b16 %v6494
    %v6590 = vunpack.c.h.b16 %v6494
    %v6591 = vunpack.c.l.b16 %v6495
    %v6592 = vpack.c.b16 %v6547, %v6544
    %v6593 = vpack.c.b16 %v6548, %v6545
    %v6594 = vpack.c.b16 %v6549, %v6546
    %v6595 = vpack.c.b16 %v6553, %v6550
    %v6596 = vpack.c.b16 %v6554, %v6551
    %v6597 = vpack.c.b16 %v6555, %v6552
    %v6598 = vpack.c.b16 %v6559, %v6556
    %v6599 = vpack.c.b16 %v6560, %v6557
    %v6600 = vpack.c.b16 %v6561, %v6558
    %v6601 = vpack.c.b16 %v6565, %v6562
    %v6602 = vpack.c.b16 %v6566, %v6563
    %v6603 = vpack.c.b16 %v6567, %v6564
    %v6604 = vpack.c.b16 %v6571, %v6568
    %v6605 = vpack.c.b16 %v6572, %v6569
    %v6606 = vpack.c.b16 %v6573, %v6570
    %v6607 = vpack.c.b16 %v6577, %v6574
    %v6608 = vpack.c.b16 %v6578, %v6575
    %v6609 = vpack.c.b16 %v6579, %v6576
    %v6610 = vpack.c.b16 %v6583, %v6580
    %v6611 = vpack.c.b16 %v6584, %v6581
    %v6612 = vpack.c.b16 %v6585, %v6582
    %v6613 = vpack.c.b16 %v6589, %v6586
    %v6614 = vpack.c.b16 %v6590, %v6587
    %v6615 = vpack.c.b16 %v6591, %v6588
    %6640 = vmatprep.subr.bf16.mxu0 %v6593
    %6641 = vmatpush1.bf16.msra.mxu0 %v6592
    %6642 = vmatprep.subr.bf16.mxu0 %v6596
    %6643 = vmatpush1.bf16.msra.mxu0 %v6595
    %6644 = vmatprep.subr.bf16.mxu0 %v6599
    %6645 = vmatpush1.bf16.msra.mxu0 %v6598
    %6646 = vmatprep.subr.bf16.mxu0 %v6602
    %6647 = vmatpush1.bf16.msra.mxu0 %v6601
    %6648 = vmatprep.subr.bf16.mxu0 %v6605
    %6649 = vmatpush1.bf16.msra.mxu0 %v6604
    %6650 = vmatprep.subr.bf16.mxu0 %v6608
    %6651 = vmatpush1.bf16.msra.mxu0 %v6607
    %6652 = vmatprep.subr.bf16.mxu0 %v6611
    %6653 = vmatpush1.bf16.msra.mxu0 %v6610
    %6654 = vmatprep.subr.bf16.mxu0 %v6614
    %6655 = vmatpush1.bf16.msra.mxu0 %v6613
    %6656 = vmatprep.subr.bf16.mxu0 0
    %6657 = vmatpush1.bf16.msra.mxu0 0
    %6658 = vmatprep.subr.bf16.mxu0 0
    %6659 = vmatpush1.bf16.msra.mxu0 0
    %6660 = vmatprep.subr.bf16.mxu0 0
    %6661 = vmatpush1.bf16.msra.mxu0 0
    %6662 = vmatprep.subr.bf16.mxu0 0
    %6663 = vmatpush1.bf16.msra.mxu0 0
    %6664 = vmatprep.subr.bf16.mxu0 0
    %6665 = vmatpush1.bf16.msra.mxu0 0
    %6666 = vmatprep.subr.bf16.mxu0 0
    %6667 = vmatpush1.bf16.msra.mxu0 0
    %6668 = vmatprep.subr.bf16.mxu0 0
    %6669 = vmatpush1.bf16.msra.mxu0 0
    %6670 = vmatprep.subr.bf16.mxu0 0
    %6671 = vmatpush1.bf16.msra.mxu0 0
    %6672 = vmatprep.mubr.bf16.mxu0 0
    %6673 = vmatmul.mubr.bf16.gmra.mrb[0].mxu0 %v6499
    %v6674 = vpop.f32.mrb[0].mxu0
    %v6675 = vadd.f32 %v6503, %v6674
    %v6676 = vpop.f32.mrb[0].mxu0
    %v6677 = vadd.f32 %v6507, %v6676
    %v6678 = vpop.f32.mrb[0].mxu0
    %v6679 = vpop.f32.mrb[0].mxu0
    %6680 = vdwg.mxu0
    %6681 = vmatprep.subr.bf16.mxu0 0
    %6682 = vmatpush1.bf16.msra.mxu0 %v6594
    %6683 = vmatprep.subr.bf16.mxu0 0
    %6684 = vmatpush1.bf16.msra.mxu0 %v6597
    %6685 = vmatprep.subr.bf16.mxu0 0
    %6686 = vmatpush1.bf16.msra.mxu0 %v6600
    %6687 = vmatprep.subr.bf16.mxu0 0
    %6688 = vmatpush1.bf16.msra.mxu0 %v6603
    %6689 = vmatprep.subr.bf16.mxu0 0
    %6690 = vmatpush1.bf16.msra.mxu0 %v6606
    %6691 = vmatprep.subr.bf16.mxu0 0
    %6692 = vmatpush1.bf16.msra.mxu0 %v6609
    %6693 = vmatprep.subr.bf16.mxu0 0
    %6694 = vmatpush1.bf16.msra.mxu0 %v6612
    %6695 = vmatprep.subr.bf16.mxu0 0
    %6696 = vmatpush1.bf16.msra.mxu0 %v6615
    %6697 = vmatprep.subr.bf16.mxu0 0
    %6698 = vmatpush1.bf16.msra.mxu0 0
    %6699 = vmatprep.subr.bf16.mxu0 0
    %6700 = vmatpush1.bf16.msra.mxu0 0
    %6701 = vmatprep.subr.bf16.mxu0 0
    %6702 = vmatpush1.bf16.msra.mxu0 0
    %6703 = vmatprep.subr.bf16.mxu0 0
    %6704 = vmatpush1.bf16.msra.mxu0 0
    %6705 = vmatprep.subr.bf16.mxu0 0
    %6706 = vmatpush1.bf16.msra.mxu0 0
    %6707 = vmatprep.subr.bf16.mxu0 0
    %6708 = vmatpush1.bf16.msra.mxu0 0
    %6709 = vmatprep.subr.bf16.mxu0 0
    %6710 = vmatpush1.bf16.msra.mxu0 0
    %6711 = vmatprep.subr.bf16.mxu0 0
    %6712 = vmatpush1.bf16.msra.mxu0 0
    %6713 = vmatprep.mubr.bf16.mxu0 0
    %6714 = vmatmul.mubr.bf16.gmra.mrb[0].mxu0 %v6499
    %v6715 = vpop.f32.mrb[0].mxu0
    %v6716 = vadd.f32 %v6511, %v6715
    %v6717 = vpop.f32.mrb[0].mxu0
    %v6718 = vpop.f32.mrb[0].mxu0
    %v6719 = vpop.f32.mrb[0].mxu0
    %6720 = vdwg.mxu0
    %v6721 = vadd.f32 %v6675, %v6677
    %v6722 = vadd.f32 %v6721, %v6716
    %6723 = vadd.xlane.f32.xlu0 %v6722
    %v6724 = vpop.xlane.xlu0 %6723
    %v6725 = vmul.f32 %v6724, 0.125
    %v6726 = vmul.f32 %v6675, %v6675
    %v6727 = vmul.f32 %v6677, %v6677
    %v6728 = vmul.f32 %v6716, %v6716
    %v6729 = vadd.f32 %v6726, %v6727
    %v6730 = vadd.f32 %v6729, %v6728
    %6731 = vadd.xlane.f32.xlu0 %v6730
    %v6732 = vpop.xlane.xlu0 %6731
    %v6733 = vmul.f32 %v6732, 0.125
    %v6734 = vmul.f32 %v6725, %v6725
    %v6735 = vsub.f32 %v6733, %v6734
    %v6736 = vmax.f32 %v6735, 0.0
    %v6737 = vsub.f32 %v6675, %v6725
    %v6738 = vadd.f32 %v6736, 1e-05
    %v6739 = vrsqrt.pop %v6738
    %v6740 = vmul.f32 %v6737, %v6739
    %v6741 = vlaneseq
    %v6742 = vshrl.u32 %v6741, 7
    %v6743 = vsub.s32 1, %v6742
    %v6744 = vrot.slane %v6496, %v6743
    %v6745 = vmul.f32 %v6740, %v6744
    %v6746 = vlaneseq
    %v6747 = vshrl.u32 %v6746, 7
    %v6748 = vsub.s32 2, %v6747
    %v6749 = vrot.slane %v6496, %v6748
    %v6750 = vadd.f32 %v6745, %v6749
    %vm6751 = vcmp.gt.f32.partialorder %v6750, 0.0
    %v6752 = vmul.f32 %v6750, 0.2
    %v6753 = vsel %vm6751, %v6750, %v6752
    %v6754 = vld [vmem:[#allocation2 + $0x1440] sm:$0xff]
    %v6755 = vld [vmem:[#allocation2 + $0x1448] sm:$0xf]
    %v6756 = vld [vmem:[#allocation2 + $0x144c] sm:$0xff]
    %v6757 = vld [vmem:[#allocation2 + $0x1454] sm:$0xf]
    %v6758 = vld [vmem:[#allocation2 + $0x1458] sm:$0xff]
    %v6759 = vld [vmem:[#allocation2 + $0x1460] sm:$0xf]
    %v6760 = vld [vmem:[#allocation2 + $0x1464] sm:$0xff]
    %v6761 = vld [vmem:[#allocation2 + $0x146c] sm:$0xf]
    %v6762 = vld [vmem:[#allocation2 + $0x1470] sm:$0xff]
    %v6763 = vld [vmem:[#allocation2 + $0x1478] sm:$0xf]
    %v6764 = vld [vmem:[#allocation2 + $0x147c] sm:$0xff]
    %v6765 = vld [vmem:[#allocation2 + $0x1484] sm:$0xf]
    %v6766 = vld [vmem:[#allocation2 + $0x1488] sm:$0xff]
    %v6767 = vld [vmem:[#allocation2 + $0x1490] sm:$0xf]
    %v6768 = vld [vmem:[#allocation2 + $0x1494] sm:$0xff]
    %v6769 = vld [vmem:[#allocation2 + $0x149c] sm:$0xf]
    %v6770 = vld [vmem:[#allocation2 + $0x14a0] sm:$0xff]
    %v6771 = vld [vmem:[#allocation2 + $0x14a8] sm:$0xf]
    %v6772 = vld [vmem:[#allocation2 + $0x14ac] sm:$0xff]
    %v6773 = vld [vmem:[#allocation2 + $0x14b4] sm:$0xf]
    %v6774 = vld [vmem:[#allocation2 + $0x14b8] sm:$0xff]
    %v6775 = vld [vmem:[#allocation2 + $0x14c0] sm:$0xf]
    %v6776 = vld [vmem:[#allocation2 + $0x14c4] sm:$0xff]
    %v6777 = vld [vmem:[#allocation2 + $0x14cc] sm:$0xf]
    %v6778 = vld [vmem:[#allocation2 + $0x14d0] sm:$0xff]
    %v6779 = vld [vmem:[#allocation2 + $0x14d8] sm:$0xf]
    %v6780 = vld [vmem:[#allocation2 + $0x14dc] sm:$0xff]
    %v6781 = vld [vmem:[#allocation2 + $0x14e4] sm:$0xf]
    %v6782 = vld [vmem:[#allocation2 + $0x14e8] sm:$0xff]
    %v6783 = vld [vmem:[#allocation2 + $0x14f0] sm:$0xf]
    %v6784 = vld [vmem:[#allocation2 + $0x14f4] sm:$0xff]
    %v6785 = vld [vmem:[#allocation2 + $0x14fc] sm:$0xf]
    %v6786 = vld [vmem:[#allocation4 + $0x168] sm:$0xff]
    %v6787 = vld [vmem:[#allocation4 + $0x170] sm:$0xff]
    %v6788 = vld [vmem:[#allocation4 + $0x178] sm:$0xff]
    %v6789 = vpack.c.bf16 %v6753, %v6753
    %v6790 = vlaneseq
    %v6791 = vshrl.u32 %v6790, 7
    %v6792 = vsub.s32 0, %v6791
    %v6793 = vrot.slane %v6786, %v6792
    %v6794 = vlaneseq
    %v6795 = vshrl.u32 %v6794, 7
    %v6796 = vsub.s32 0, %v6795
    %v6797 = vrot.slane %v6787, %v6796
    %v6798 = vlaneseq
    %v6799 = vshrl.u32 %v6798, 7
    %v6800 = vsub.s32 0, %v6799
    %v6801 = vrot.slane %v6788, %v6800
    %v6834 = vunpack.c.l.b16 %v6754
    %v6835 = vunpack.c.h.b16 %v6754
    %v6836 = vunpack.c.l.b16 %v6755
    %v6837 = vunpack.c.l.b16 %v6756
    %v6838 = vunpack.c.h.b16 %v6756
    %v6839 = vunpack.c.l.b16 %v6757
    %v6840 = vunpack.c.l.b16 %v6758
    %v6841 = vunpack.c.h.b16 %v6758
    %v6842 = vunpack.c.l.b16 %v6759
    %v6843 = vunpack.c.l.b16 %v6760
    %v6844 = vunpack.c.h.b16 %v6760
    %v6845 = vunpack.c.l.b16 %v6761
    %v6846 = vunpack.c.l.b16 %v6762
    %v6847 = vunpack.c.h.b16 %v6762
    %v6848 = vunpack.c.l.b16 %v6763
    %v6849 = vunpack.c.l.b16 %v6764
    %v6850 = vunpack.c.h.b16 %v6764
    %v6851 = vunpack.c.l.b16 %v6765
    %v6852 = vunpack.c.l.b16 %v6766
    %v6853 = vunpack.c.h.b16 %v6766
    %v6854 = vunpack.c.l.b16 %v6767
    %v6855 = vunpack.c.l.b16 %v6768
    %v6856 = vunpack.c.h.b16 %v6768
    %v6857 = vunpack.c.l.b16 %v6769
    %v6858 = vunpack.c.l.b16 %v6770
    %v6859 = vunpack.c.h.b16 %v6770
    %v6860 = vunpack.c.l.b16 %v6771
    %v6861 = vunpack.c.l.b16 %v6772
    %v6862 = vunpack.c.h.b16 %v6772
    %v6863 = vunpack.c.l.b16 %v6773
    %v6864 = vunpack.c.l.b16 %v6774
    %v6865 = vunpack.c.h.b16 %v6774
    %v6866 = vunpack.c.l.b16 %v6775
    %v6867 = vunpack.c.l.b16 %v6776
    %v6868 = vunpack.c.h.b16 %v6776
    %v6869 = vunpack.c.l.b16 %v6777
    %v6870 = vunpack.c.l.b16 %v6778
    %v6871 = vunpack.c.h.b16 %v6778
    %v6872 = vunpack.c.l.b16 %v6779
    %v6873 = vunpack.c.l.b16 %v6780
    %v6874 = vunpack.c.h.b16 %v6780
    %v6875 = vunpack.c.l.b16 %v6781
    %v6876 = vunpack.c.l.b16 %v6782
    %v6877 = vunpack.c.h.b16 %v6782
    %v6878 = vunpack.c.l.b16 %v6783
    %v6879 = vunpack.c.l.b16 %v6784
    %v6880 = vunpack.c.h.b16 %v6784
    %v6881 = vunpack.c.l.b16 %v6785
    %v6882 = vpack.c.b16 %v6837, %v6834
    %v6883 = vpack.c.b16 %v6838, %v6835
    %v6884 = vpack.c.b16 %v6839, %v6836
    %v6885 = vpack.c.b16 %v6843, %v6840
    %v6886 = vpack.c.b16 %v6844, %v6841
    %v6887 = vpack.c.b16 %v6845, %v6842
    %v6888 = vpack.c.b16 %v6849, %v6846
    %v6889 = vpack.c.b16 %v6850, %v6847
    %v6890 = vpack.c.b16 %v6851, %v6848
    %v6891 = vpack.c.b16 %v6855, %v6852
    %v6892 = vpack.c.b16 %v6856, %v6853
    %v6893 = vpack.c.b16 %v6857, %v6854
    %v6894 = vpack.c.b16 %v6861, %v6858
    %v6895 = vpack.c.b16 %v6862, %v6859
    %v6896 = vpack.c.b16 %v6863, %v6860
    %v6897 = vpack.c.b16 %v6867, %v6864
    %v6898 = vpack.c.b16 %v6868, %v6865
    %v6899 = vpack.c.b16 %v6869, %v6866
    %v6900 = vpack.c.b16 %v6873, %v6870
    %v6901 = vpack.c.b16 %v6874, %v6871
    %v6902 = vpack.c.b16 %v6875, %v6872
    %v6903 = vpack.c.b16 %v6879, %v6876
    %v6904 = vpack.c.b16 %v6880, %v6877
    %v6905 = vpack.c.b16 %v6881, %v6878
    %6930 = vmatprep.subr.bf16.mxu0 %v6883
    %6931 = vmatpush1.bf16.msra.mxu0 %v6882
    %6932 = vmatprep.subr.bf16.mxu0 %v6886
    %6933 = vmatpush1.bf16.msra.mxu0 %v6885
    %6934 = vmatprep.subr.bf16.mxu0 %v6889
    %6935 = vmatpush1.bf16.msra.mxu0 %v6888
    %6936 = vmatprep.subr.bf16.mxu0 %v6892
    %6937 = vmatpush1.bf16.msra.mxu0 %v6891
    %6938 = vmatprep.subr.bf16.mxu0 %v6895
    %6939 = vmatpush1.bf16.msra.mxu0 %v6894
    %6940 = vmatprep.subr.bf16.mxu0 %v6898
    %6941 = vmatpush1.bf16.msra.mxu0 %v6897
    %6942 = vmatprep.subr.bf16.mxu0 %v6901
    %6943 = vmatpush1.bf16.msra.mxu0 %v6900
    %6944 = vmatprep.subr.bf16.mxu0 %v6904
    %6945 = vmatpush1.bf16.msra.mxu0 %v6903
    %6946 = vmatprep.subr.bf16.mxu0 0
    %6947 = vmatpush1.bf16.msra.mxu0 0
    %6948 = vmatprep.subr.bf16.mxu0 0
    %6949 = vmatpush1.bf16.msra.mxu0 0
    %6950 = vmatprep.subr.bf16.mxu0 0
    %6951 = vmatpush1.bf16.msra.mxu0 0
    %6952 = vmatprep.subr.bf16.mxu0 0
    %6953 = vmatpush1.bf16.msra.mxu0 0
    %6954 = vmatprep.subr.bf16.mxu0 0
    %6955 = vmatpush1.bf16.msra.mxu0 0
    %6956 = vmatprep.subr.bf16.mxu0 0
    %6957 = vmatpush1.bf16.msra.mxu0 0
    %6958 = vmatprep.subr.bf16.mxu0 0
    %6959 = vmatpush1.bf16.msra.mxu0 0
    %6960 = vmatprep.subr.bf16.mxu0 0
    %6961 = vmatpush1.bf16.msra.mxu0 0
    %6962 = vmatprep.mubr.bf16.mxu0 0
    %6963 = vmatmul.mubr.bf16.gmra.mrb[0].mxu0 %v6789
    %v6964 = vpop.f32.mrb[0].mxu0
    %v6965 = vadd.f32 %v6793, %v6964
    %v6966 = vpop.f32.mrb[0].mxu0
    %v6967 = vadd.f32 %v6797, %v6966
    %v6968 = vpop.f32.mrb[0].mxu0
    %v6969 = vpop.f32.mrb[0].mxu0
    %6970 = vdwg.mxu0
    %6971 = vmatprep.subr.bf16.mxu0 0
    %6972 = vmatpush1.bf16.msra.mxu0 %v6884
    %6973 = vmatprep.subr.bf16.mxu0 0
    %6974 = vmatpush1.bf16.msra.mxu0 %v6887
    %6975 = vmatprep.subr.bf16.mxu0 0
    %6976 = vmatpush1.bf16.msra.mxu0 %v6890
    %6977 = vmatprep.subr.bf16.mxu0 0
    %6978 = vmatpush1.bf16.msra.mxu0 %v6893
    %6979 = vmatprep.subr.bf16.mxu0 0
    %6980 = vmatpush1.bf16.msra.mxu0 %v6896
    %6981 = vmatprep.subr.bf16.mxu0 0
    %6982 = vmatpush1.bf16.msra.mxu0 %v6899
    %6983 = vmatprep.subr.bf16.mxu0 0
    %6984 = vmatpush1.bf16.msra.mxu0 %v6902
    %6985 = vmatprep.subr.bf16.mxu0 0
    %6986 = vmatpush1.bf16.msra.mxu0 %v6905
    %6987 = vmatprep.subr.bf16.mxu0 0
    %6988 = vmatpush1.bf16.msra.mxu0 0
    %6989 = vmatprep.subr.bf16.mxu0 0
    %6990 = vmatpush1.bf16.msra.mxu0 0
    %6991 = vmatprep.subr.bf16.mxu0 0
    %6992 = vmatpush1.bf16.msra.mxu0 0
    %6993 = vmatprep.subr.bf16.mxu0 0
    %6994 = vmatpush1.bf16.msra.mxu0 0
    %6995 = vmatprep.subr.bf16.mxu0 0
    %6996 = vmatpush1.bf16.msra.mxu0 0
    %6997 = vmatprep.subr.bf16.mxu0 0
    %6998 = vmatpush1.bf16.msra.mxu0 0
    %6999 = vmatprep.subr.bf16.mxu0 0
    %7000 = vmatpush1.bf16.msra.mxu0 0
    %7001 = vmatprep.subr.bf16.mxu0 0
    %7002 = vmatpush1.bf16.msra.mxu0 0
    %7003 = vmatprep.mubr.bf16.mxu0 0
    %7004 = vmatmul.mubr.bf16.gmra.mrb[0].mxu0 %v6789
    %v7005 = vpop.f32.mrb[0].mxu0
    %v7006 = vadd.f32 %v6801, %v7005
    %v7007 = vpop.f32.mrb[0].mxu0
    %v7008 = vpop.f32.mrb[0].mxu0
    %v7009 = vpop.f32.mrb[0].mxu0
    %7010 = vdwg.mxu0
    %v7011 = vadd.f32 %v6965, %v6967
    %v7012 = vadd.f32 %v7011, %v7006
    %7013 = vadd.xlane.f32.xlu0 %v7012
    %v7014 = vpop.xlane.xlu0 %7013
    %v7015 = vmul.f32 %v7014, 0.2
    %v7016 = vmul.f32 %v6965, %v6965
    %v7017 = vmul.f32 %v6967, %v6967
    %v7018 = vmul.f32 %v7006, %v7006
    %v7019 = vadd.f32 %v7016, %v7017
    %v7020 = vadd.f32 %v7019, %v7018
    %7021 = vadd.xlane.f32.xlu0 %v7020
    %v7022 = vpop.xlane.xlu0 %7021
    %v7023 = vmul.f32 %v7022, 0.2
    %v7024 = vmul.f32 %v7015, %v7015
    %v7025 = vsub.f32 %v7023, %v7024
    %v7026 = vmax.f32 %v7025, 0.0
    %v7027 = vsub.f32 %v6965, %v7015
    %v7028 = vadd.f32 %v7026, 1e-05
    %v7029 = vrsqrt.pop %v7028
    %v7030 = vmul.f32 %v7027, %v7029
    %v7031 = vlaneseq
    %v7032 = vshrl.u32 %v7031, 7
    %v7033 = vsub.s32 1, %v7032
    %v7034 = vrot.slane %v6786, %v7033
    %v7035 = vmul.f32 %v7030, %v7034
    %v7036 = vlaneseq
    %v7037 = vshrl.u32 %v7036, 7
    %v7038 = vsub.s32 2, %v7037
    %v7039 = vrot.slane %v6786, %v7038
    %v7040 = vadd.f32 %v7035, %v7039
    %vm7041 = vcmp.gt.f32.partialorder %v7040, 0.0
    %v7042 = vmul.f32 %v7040, 0.2
    %v7043 = vsel %vm7041, %v7040, %v7042
    %7044 = vst [vmem:[%s3 + $0x18] sm:$0xff] %v7043
    %7045 = vst [vmem:[%s3 + $0x20] sm:$0xff] %v2651
    %7046 = vst [vmem:[%s3 + $0x28] sm:$0xff] %v2653
    // Predicated region
    $region22: #{forward.1} parent=1 // pred_check
      _
    $region23: #{forward.1} parent=1 // pred_check_branch
      %7048 = sbr.rel (0) target = $region25
    $region24: #{forward.1} parent=1 // pred_region
      _
    $region25: #{forward.1} parent=1 // pred_fallthru
      _
    // Predicated region
    $region26: #{forward.1} parent=1 // pred_check
      _
    $region27: #{forward.1} parent=1 // pred_check_branch
      %7050 = sbr.rel (0) target = $region29
    $region28: #{forward.1} parent=1 // pred_region
      _
    $region29: #{forward.1} parent=1 // pred_fallthru
      _
    %7051 = vsyncpa [#allocation3], 1
    %7052 = vsyncpa [#allocation5], 1

</llo_original>
